<compile_context>
chip_gen: v7x
topology: tpu7x:2x2x1
jax: 0.10.0
libtpu: 0.0.40
codegen_flags: <defaults>
</compile_context>

<pallas_src>
from functools import partial

import jax
import jax.numpy as jnp
from jax.experimental import pallas as pl
from jax.experimental.pallas import tpu as pltpu


def dg_model_kernel(x_ref, w1_ref, b1_ref, w2_ref, b2_ref,
                    featmap_ref, feat_ref, cls_ref, acc_ref, *, hw_total):
    """One (batch n, HW tile) step of the fused projection + pool + classifier.

    x_ref:       (1, Cin, THW)  input tile, NCHW layout (HW lane-dense)
    w1_ref/b1:   (E, Cin), (E, 1)   backbone 1x1 conv (stand-in)
    w2_ref/b2:   (E, K),  (1, K)    classifier Linear(embedding_size, K)
    featmap_ref: (1, E, THW)  bf16 feature-map tile (NCHW, streamed out)
    feat_ref:    (1, E, 1)    pooled feature (written at last HW step)
    cls_ref:     (1, 1, K)    logits           (written at last HW step)
    acc_ref:     (E, 1) f32 scratch: running spatial sum for the avg-pool
    """
    hw_idx = pl.program_id(1)

    @pl.when(hw_idx == 0)
    def _():
        acc_ref[...] = jnp.zeros_like(acc_ref)

    x = x_ref[0].astype(jnp.float32)          # (Cin, THW)
    w1 = w1_ref[...].astype(jnp.float32)      # (E, Cin)
    b1 = b1_ref[...].astype(jnp.float32)      # (E, 1)
    cin = x.shape[0]

    if cin <= 32:
        # Small contraction depth: per-channel outer-product FMAs on the VPU,
        # produced directly in (E, THW) = NCHW layout (pure f32, no MXU).
        fm = w1[:, 0:1] * x[0:1, :]
        for c in range(1, cin):
            fm = fm + w1[:, c:c + 1] * x[c:c + 1, :]
    else:
        # Deep contraction: one f32 MXU matmul (E,Cin) @ (Cin,THW).
        fm = jnp.dot(w1, x, preferred_element_type=jnp.float32)

    # bias + ReLU (VPU), f32.
    fm = jnp.maximum(fm + b1, 0.0)            # (E, THW)

    # Stream this HW tile of the feature map out in bf16 (lane-dense store,
    # no transpose anywhere).
    featmap_ref[0] = fm.astype(featmap_ref.dtype)

    # AdaptiveAvgPool2d(1): accumulate the spatial sum (last-axis lane reduce,
    # f32 accumulation from the f32 VMEM copy, not the bf16 store).
    acc_ref[...] += jnp.sum(fm, axis=-1, keepdims=True)     # (E, 1)

    @pl.when(hw_idx == pl.num_programs(1) - 1)
    def _():
        feat_col = acc_ref[...] * jnp.float32(1.0 / hw_total)   # (E, 1)
        feat_ref[0] = feat_col.astype(feat_ref.dtype)

        # classifier_layer1: Linear(E, K).  K is tiny -> broadcast-multiply +
        # sublane reduce on the VPU/XLU instead of a 1-row MXU push.
        w2 = w2_ref[...].astype(jnp.float32)                    # (E, K)
        cls = jnp.sum(feat_col * w2, axis=0, keepdims=True)     # (1, K)
        cls = cls + b2_ref[...].astype(jnp.float32)
        cls_ref[0] = cls.astype(cls_ref.dtype)


def _pick_hw_tile(hw):
    """Largest lane-dense tile that divides HW; fall back to the whole extent."""
    for cand in (512, 256, 128):
        if hw % cand == 0:
            return cand
    return hw          # tiny / irregular spatial dims: single block


def dg_model_forward(x_nchw, w1, b1, w2, b2, featmap_dtype=jnp.bfloat16):
    """NCHW input -> (cls_out, feat, featmap[NCHW]) via one fused Pallas kernel.

    w1: (E, Cin)  1x1-conv weight (stand-in backbone projection)
    b1: (E,)      conv bias
    w2: (E, K)    classifier weight (laid out for feat @ w2)
    b2: (1, K)    classifier bias
    """
    N, C, H, W = x_nchw.shape
    E = w1.shape[0]
    K = w2.shape[1]
    HW = H * W
    THW = _pick_hw_tile(HW)
    num_hw = HW // THW

    x_flat = x_nchw.reshape(N, C, HW)      # contiguous reshape: free, no transpose
    b1_col = b1.reshape(E, 1)

    out_shapes = (
        jax.ShapeDtypeStruct((N, E, HW), featmap_dtype),   # featmap (NCHW, flat HW)
        jax.ShapeDtypeStruct((N, E, 1), jnp.float32),      # pooled feature
        jax.ShapeDtypeStruct((N, 1, K), jnp.float32),      # classifier logits
    )

    kernel = partial(dg_model_kernel, hw_total=HW)

    featmap_flat, feat3, cls3 = pl.pallas_call(
        kernel,
        out_shape=out_shapes,
        grid=(N, num_hw),
        in_specs=[
            pl.BlockSpec((1, C, THW), lambda n, h: (n, 0, h)),
            pl.BlockSpec((E, C), lambda n, h: (0, 0)),      # resident weights
            pl.BlockSpec((E, 1), lambda n, h: (0, 0)),
            pl.BlockSpec((E, K), lambda n, h: (0, 0)),
            pl.BlockSpec((1, K), lambda n, h: (0, 0)),
        ],
        out_specs=(
            pl.BlockSpec((1, E, THW), lambda n, h: (n, 0, h)),
            pl.BlockSpec((1, E, 1), lambda n, h: (n, 0, 0)),
            pl.BlockSpec((1, 1, K), lambda n, h: (n, 0, 0)),
        ),
        scratch_shapes=[pltpu.VMEM((E, 1), jnp.float32)],
        compiler_params=pltpu.CompilerParams(
            dimension_semantics=("parallel", "arbitrary"),
            vmem_limit_bytes=32 * 1024 * 1024),
    )(x_flat, w1, b1_col, w2, b2)

    featmap = featmap_flat.reshape(N, E, H, W)   # contiguous split: free
    feat = feat3.reshape(N, E)
    cls_out = cls3.reshape(N, K)
    return cls_out, feat, featmap


def _reference_forward(x_nchw, w1, b1, w2, b2):
    """Pure-JAX reference mirroring the PyTorch forward (f32, high precision)."""
    N, C, H, W = x_nchw.shape
    E = w1.shape[0]
    x = x_nchw.reshape(N, C, H * W).astype(jnp.float32)
    fm = jnp.einsum('ec,ncs->nes', w1, x,
                    precision=jax.lax.Precision.HIGHEST) + b1.reshape(1, E, 1)
    fm = jnp.maximum(fm, 0.0)
    feat = jnp.mean(fm, axis=2)                                       # (N, E)
    cls = jnp.dot(feat, w2, precision=jax.lax.Precision.HIGHEST) + b2  # (N, K)
    featmap = fm.reshape(N, E, H, W)
    return cls, feat, featmap


if __name__ == "__main__":
    # Small, module-consistent shapes (RGB input).  HW = 1024 -> THW = 512,
    # so the grid is (N=2 parallel, 2 arbitrary HW tiles) and both the HW
    # streaming/accumulator path and the v7x parallel axis are exercised.
    N, C_in, H, W = 2, 3, 32, 32
    embedding_size = 640                 # DG_model default
    num_classes = 4                      # DG_model default

    key = jax.random.PRNGKey(0)
    kx, k1, k2, k3, k4 = jax.random.split(key, 5)

    x = jax.random.normal(kx, (N, C_in, H, W), dtype=jnp.float32)

    # Deterministic synthetic parameters (no checkpoint load).
    w1 = 0.1 * jax.random.normal(k1, (embedding_size, C_in), dtype=jnp.float32)
    b1 = 0.1 * jax.random.normal(k2, (embedding_size,), dtype=jnp.float32)
    w2 = 0.1 * jax.random.normal(k3, (embedding_size, num_classes), dtype=jnp.float32)
    b2 = 0.1 * jax.random.normal(k4, (1, num_classes), dtype=jnp.float32)

    cls_out, feat, featmap = dg_model_forward(x, w1, b1, w2, b2)
    jax.block_until_ready((cls_out, feat, featmap))

    # Sanity check against the pure-JAX reference.
    cls_r, feat_r, featmap_r = _reference_forward(x, w1, b1, w2, b2)
    assert cls_out.shape == (N, num_classes)
    assert feat.shape == (N, embedding_size)
    assert featmap.shape == (N, embedding_size, H, W)
    assert jnp.allclose(cls_out, cls_r, atol=1e-4)
    assert jnp.allclose(feat, feat_r, atol=1e-4)
    # featmap is emitted in bf16 -> looser tolerance (f32 math, bf16 store).
    assert jnp.allclose(featmap.astype(jnp.float32), featmap_r,
                        atol=2e-2, rtol=2e-2)

    print("KERNEL_OK")
</pallas_src>

<mosaic_0001>
module attributes {stable_mosaic.version = 11 : i64} {
  func.func @dg_model_kernel(%arg0: i32, %arg1: i32, %arg2: memref<1x3x512xf32, #tpu.memory_space<vmem>>, %arg3: memref<640x3xf32, #tpu.memory_space<vmem>>, %arg4: memref<640x1xf32, #tpu.memory_space<vmem>>, %arg5: memref<640x4xf32, #tpu.memory_space<vmem>>, %arg6: memref<1x4xf32, #tpu.memory_space<vmem>>, %arg7: memref<1x640x512xbf16, #tpu.memory_space<vmem>>, %arg8: memref<1x640x1xf32, #tpu.memory_space<vmem>>, %arg9: memref<1x1x4xf32, #tpu.memory_space<vmem>>, %arg10: memref<640x1xf32, #tpu.memory_space<vmem>>) attributes {dimension_semantics = [#tpu.dimension_semantics<parallel>, #tpu.dimension_semantics<arbitrary>], iteration_bounds = array<i64: 2, 2>, scalar_prefetch = 0 : i64, scratch_operands = 1 : i64, tpu.core_type = #tpu.core_type<tc>, window_params = [{transform_indices = @transform_0, window_bounds = array<i64: 1, 3, 512>}, {pipeline_mode = #tpu.pipeline_mode<synchronous>, transform_indices = @transform_1, window_bounds = array<i64: 640, 3>}, {pipeline_mode = #tpu.pipeline_mode<synchronous>, transform_indices = @transform_2, window_bounds = array<i64: 640, 1>}, {pipeline_mode = #tpu.pipeline_mode<synchronous>, transform_indices = @transform_3, window_bounds = array<i64: 640, 4>}, {pipeline_mode = #tpu.pipeline_mode<synchronous>, transform_indices = @transform_4, window_bounds = array<i64: 1, 4>}, {transform_indices = @transform_5, window_bounds = array<i64: 1, 640, 512>}, {transform_indices = @transform_6, window_bounds = array<i64: 1, 640, 1>}, {transform_indices = @transform_7, window_bounds = array<i64: 1, 1, 4>}]} {
    %c0_i32 = arith.constant 0 : i32
    %0 = arith.cmpi eq, %arg1, %c0_i32 : i32
    %1 = arith.extui %0 : i1 to i32
    %c0_i32_0 = arith.constant 0 : i32
    %2 = arith.cmpi ne, %1, %c0_i32_0 : i32
    scf.if %2 {
      %cst_16 = arith.constant 0.000000e+00 : f32
      %40 = vector.broadcast %cst_16 : f32 to vector<640x1xf32>
      %c0_17 = arith.constant 0 : index
      %c0_18 = arith.constant 0 : index
      %41 = vector.load %arg10[%c0_17, %c0_18] : memref<640x1xf32, #tpu.memory_space<vmem>>, vector<640x1xf32>
      tpu.vector_store %arg10[%c0_17, %c0_18], %40 {strides = array<i32>} : memref<640x1xf32, #tpu.memory_space<vmem>>, vector<640x1xf32>,
    } else {
    }
    %c0 = arith.constant 0 : index
    %c0_1 = arith.constant 0 : index
    %c0_2 = arith.constant 0 : index
    %3 = vector.load %arg2[%c0, %c0_1, %c0_2] : memref<1x3x512xf32, #tpu.memory_space<vmem>>, vector<1x3x512xf32>
    %4 = vector.shape_cast %3 : vector<1x3x512xf32> to vector<3x512xf32>
    %c0_3 = arith.constant 0 : index
    %c0_4 = arith.constant 0 : index
    %5 = vector.load %arg3[%c0_3, %c0_4] : memref<640x3xf32, #tpu.memory_space<vmem>>, vector<640x3xf32>
    %c0_5 = arith.constant 0 : index
    %c0_6 = arith.constant 0 : index
    %6 = vector.load %arg4[%c0_5, %c0_6] : memref<640x1xf32, #tpu.memory_space<vmem>>, vector<640x1xf32>
    %7 = vector.extract_strided_slice %5 {offsets = [0, 0], sizes = [640, 1], strides = [1, 1]} : vector<640x3xf32> to vector<640x1xf32>
    %8 = vector.extract_strided_slice %4 {offsets = [0, 0], sizes = [1, 512], strides = [1, 1]} : vector<3x512xf32> to vector<1x512xf32>
    %9 = vector.broadcast %7 : vector<640x1xf32> to vector<640x512xf32>
    %10 = vector.broadcast %8 : vector<1x512xf32> to vector<640x512xf32>
    %11 = arith.mulf %9, %10 : vector<640x512xf32>
    %12 = vector.extract_strided_slice %5 {offsets = [0, 1], sizes = [640, 1], strides = [1, 1]} : vector<640x3xf32> to vector<640x1xf32>
    %13 = vector.extract_strided_slice %4 {offsets = [1, 0], sizes = [1, 512], strides = [1, 1]} : vector<3x512xf32> to vector<1x512xf32>
    %14 = vector.broadcast %12 : vector<640x1xf32> to vector<640x512xf32>
    %15 = vector.broadcast %13 : vector<1x512xf32> to vector<640x512xf32>
    %16 = arith.mulf %14, %15 : vector<640x512xf32>
    %17 = arith.addf %11, %16 : vector<640x512xf32>
    %18 = vector.extract_strided_slice %5 {offsets = [0, 2], sizes = [640, 1], strides = [1, 1]} : vector<640x3xf32> to vector<640x1xf32>
    %19 = vector.extract_strided_slice %4 {offsets = [2, 0], sizes = [1, 512], strides = [1, 1]} : vector<3x512xf32> to vector<1x512xf32>
    %20 = vector.broadcast %18 : vector<640x1xf32> to vector<640x512xf32>
    %21 = vector.broadcast %19 : vector<1x512xf32> to vector<640x512xf32>
    %22 = arith.mulf %20, %21 : vector<640x512xf32>
    %23 = arith.addf %17, %22 : vector<640x512xf32>
    %24 = vector.broadcast %6 : vector<640x1xf32> to vector<640x512xf32>
    %25 = arith.addf %23, %24 : vector<640x512xf32>
    %cst = arith.constant 0.000000e+00 : f32
    %26 = vector.broadcast %cst : f32 to vector<640x512xf32>
    %27 = arith.maximumf %25, %26 : vector<640x512xf32>
    %28 = arith.truncf %27 : vector<640x512xf32> to vector<640x512xbf16>
    %c0_7 = arith.constant 0 : index
    %c0_8 = arith.constant 0 : index
    %c0_9 = arith.constant 0 : index
    %29 = vector.load %arg7[%c0_7, %c0_8, %c0_9] : memref<1x640x512xbf16, #tpu.memory_space<vmem>>, vector<1x640x512xbf16>
    %30 = vector.shape_cast %29 : vector<1x640x512xbf16> to vector<640x512xbf16>
    %31 = vector.shape_cast %28 : vector<640x512xbf16> to vector<1x640x512xbf16>
    tpu.vector_store %arg7[%c0_7, %c0_8, %c0_9], %31 {strides = array<i32>} : memref<1x640x512xbf16, #tpu.memory_space<vmem>>, vector<1x640x512xbf16>,
    %c0_10 = arith.constant 0 : index
    %c0_11 = arith.constant 0 : index
    %32 = vector.load %arg10[%c0_10, %c0_11] : memref<640x1xf32, #tpu.memory_space<vmem>>, vector<640x1xf32>
    %cst_12 = arith.constant dense<0.000000e+00> : vector<640xf32>
    %33 = vector.multi_reduction <add>, %27, %cst_12 [1] : vector<640x512xf32> to vector<640xf32>
    %34 = vector.shape_cast %33 : vector<640xf32> to vector<640x1xf32>
    %35 = arith.addf %32, %34 : vector<640x1xf32>
    %c0_13 = arith.constant 0 : index
    %c0_14 = arith.constant 0 : index
    %36 = vector.load %arg10[%c0_13, %c0_14] : memref<640x1xf32, #tpu.memory_space<vmem>>, vector<640x1xf32>
    tpu.vector_store %arg10[%c0_13, %c0_14], %35 {strides = array<i32>} : memref<640x1xf32, #tpu.memory_space<vmem>>, vector<640x1xf32>,
    %c1_i32 = arith.constant 1 : i32
    %37 = arith.cmpi eq, %arg1, %c1_i32 : i32
    %38 = arith.extui %37 : i1 to i32
    %c0_i32_15 = arith.constant 0 : i32
    %39 = arith.cmpi ne, %38, %c0_i32_15 : i32
    scf.if %39 {
      %c0_16 = arith.constant 0 : index
      %c0_17 = arith.constant 0 : index
      %40 = vector.load %arg10[%c0_16, %c0_17] : memref<640x1xf32, #tpu.memory_space<vmem>>, vector<640x1xf32>
      %cst_18 = arith.constant 9.765625E-4 : f32
      %41 = vector.broadcast %cst_18 : f32 to vector<640x1xf32>
      %42 = arith.mulf %40, %41 : vector<640x1xf32>
      %c0_19 = arith.constant 0 : index
      %c0_20 = arith.constant 0 : index
      %c0_21 = arith.constant 0 : index
      %43 = vector.load %arg8[%c0_19, %c0_20, %c0_21] : memref<1x640x1xf32, #tpu.memory_space<vmem>>, vector<1x640x1xf32>
      %44 = vector.shape_cast %43 : vector<1x640x1xf32> to vector<640x1xf32>
      %45 = vector.shape_cast %42 : vector<640x1xf32> to vector<1x640x1xf32>
      tpu.vector_store %arg8[%c0_19, %c0_20, %c0_21], %45 {strides = array<i32>} : memref<1x640x1xf32, #tpu.memory_space<vmem>>, vector<1x640x1xf32>,
      %c0_22 = arith.constant 0 : index
      %c0_23 = arith.constant 0 : index
      %46 = vector.load %arg5[%c0_22, %c0_23] : memref<640x4xf32, #tpu.memory_space<vmem>>, vector<640x4xf32>
      %47 = vector.broadcast %42 : vector<640x1xf32> to vector<640x4xf32>
      %48 = arith.mulf %47, %46 : vector<640x4xf32>
      %cst_24 = arith.constant dense<0.000000e+00> : vector<4xf32>
      %49 = vector.multi_reduction <add>, %48, %cst_24 [0] : vector<640x4xf32> to vector<4xf32>
      %50 = vector.shape_cast %49 : vector<4xf32> to vector<1x4xf32>
      %c0_25 = arith.constant 0 : index
      %c0_26 = arith.constant 0 : index
      %51 = vector.load %arg6[%c0_25, %c0_26] : memref<1x4xf32, #tpu.memory_space<vmem>>, vector<1x4xf32>
      %52 = arith.addf %50, %51 : vector<1x4xf32>
      %c0_27 = arith.constant 0 : index
      %c0_28 = arith.constant 0 : index
      %c0_29 = arith.constant 0 : index
      %53 = vector.load %arg9[%c0_27, %c0_28, %c0_29] : memref<1x1x4xf32, #tpu.memory_space<vmem>>, vector<1x1x4xf32>
      %54 = vector.shape_cast %53 : vector<1x1x4xf32> to vector<1x4xf32>
      %55 = vector.shape_cast %52 : vector<1x4xf32> to vector<1x1x4xf32>
      tpu.vector_store %arg9[%c0_27, %c0_28, %c0_29], %55 {strides = array<i32>} : memref<1x1x4xf32, #tpu.memory_space<vmem>>, vector<1x1x4xf32>,
    } else {
    }
    return
  }
  func.func @transform_0(%arg0: i32, %arg1: i32) -> (i32, i32, i32) {
    %c0_i32 = arith.constant 0 : i32
    %c0_i32_0 = arith.constant 0 : i32
    return %arg0, %c0_i32, %arg1 : i32, i32, i32
  }
  func.func @transform_1(%arg0: i32, %arg1: i32) -> (i32, i32) {
    %c0_i32 = arith.constant 0 : i32
    %c0_i32_0 = arith.constant 0 : i32
    %c0_i32_1 = arith.constant 0 : i32
    return %c0_i32, %c0_i32_0 : i32, i32
  }
  func.func @transform_2(%arg0: i32, %arg1: i32) -> (i32, i32) {
    %c0_i32 = arith.constant 0 : i32
    %c0_i32_0 = arith.constant 0 : i32
    %c0_i32_1 = arith.constant 0 : i32
    return %c0_i32, %c0_i32_0 : i32, i32
  }
  func.func @transform_3(%arg0: i32, %arg1: i32) -> (i32, i32) {
    %c0_i32 = arith.constant 0 : i32
    %c0_i32_0 = arith.constant 0 : i32
    %c0_i32_1 = arith.constant 0 : i32
    return %c0_i32, %c0_i32_0 : i32, i32
  }
  func.func @transform_4(%arg0: i32, %arg1: i32) -> (i32, i32) {
    %c0_i32 = arith.constant 0 : i32
    %c0_i32_0 = arith.constant 0 : i32
    %c0_i32_1 = arith.constant 0 : i32
    return %c0_i32, %c0_i32_0 : i32, i32
  }
  func.func @transform_5(%arg0: i32, %arg1: i32) -> (i32, i32, i32) {
    %c0_i32 = arith.constant 0 : i32
    %c0_i32_0 = arith.constant 0 : i32
    return %arg0, %c0_i32, %arg1 : i32, i32, i32
  }
  func.func @transform_6(%arg0: i32, %arg1: i32) -> (i32, i32, i32) {
    %c0_i32 = arith.constant 0 : i32
    %c0_i32_0 = arith.constant 0 : i32
    %c0_i32_1 = arith.constant 0 : i32
    return %arg0, %c0_i32, %c0_i32_0 : i32, i32, i32
  }
  func.func @transform_7(%arg0: i32, %arg1: i32) -> (i32, i32, i32) {
    %c0_i32 = arith.constant 0 : i32
    %c0_i32_0 = arith.constant 0 : i32
    %c0_i32_1 = arith.constant 0 : i32
    return %arg0, %c0_i32, %c0_i32_0 : i32, i32, i32
  }
}

</mosaic_0001>

<llo_original>
// kernel: tpu_custom_call.1
$region0: #{tpu_custom_call.1}
  #allocation0 [shape = 'u32[]', space=smem, size = 0x4, offset = 0x4, fixed_abs, tag = 'smem constant byte address 0x4 - core index']
  #allocation1 [shape = 'u32[144,128]{1,0:T(1,128)}', space=vmem, size = 0x12000, scoped, tag = 'internal scratch']
  #allocation2 [shape = 'f32[640,1]{1,0:T(8,128)}', space=vmem, size = 0x50000, scoped, tag = 'scratch operand']
  %s0 = inlined_call_operand.vmem [shape: f32[2,3,1024], index: 0, kind: input, shape index: {}]
  %s1 = inlined_call_operand.vmem [shape: f32[640,3], index: 1, kind: input, shape index: {}]
  %s2 = inlined_call_operand.vmem [shape: f32[640,1], index: 2, kind: input, shape index: {}]
  %s3 = inlined_call_operand.vmem [shape: f32[640,4], index: 3, kind: input, shape index: {}]
  %s4 = inlined_call_operand.hbm [shape: f32[1,4], index: 4, kind: input, shape index: {}]
  %s5 = inlined_call_operand.hbm [shape: bf16[2,640,1024], index: 5, kind: output, shape index: {0}]
  %s6 = inlined_call_operand.vmem [shape: f32[2,640,1], index: 6, kind: output, shape index: {1}]
  %s7 = inlined_call_operand.hbm [shape: f32[2,1,4], index: 7, kind: output, shape index: {2}]
  %8 = xla_tuple %s5, %s6, %s7
  %s9 = sld [smem:[#allocation0]]
  $region81: #{tpu_custom_call.1} parent=0
    _
  %s11 = ssub.s32 1, %s9
  %s12 = scalar_select 0, %s11, %s9
  $region1: #{tpu_custom_call.1} parent=0
    #allocation3 [shape = 'u8[512]{0}', space=vmem, size = 0x400, scoped, tag = 'input window, operand 4, single buffered']
    #allocation4 [shape = 's32[2]{0}', space=sflag, size = 0x8, scoped, tag = 'scoped memory for tpu_custom_call.1']
    #allocation5 [shape = 's32[2]{0}', space=sflag, size = 0x8, scoped, tag = 'scoped memory for tpu_custom_call.1']
    #allocation6 [shape = 'u8[1310720]{0}', space=vmem, size = 0x140000, scoped, tag = 'output window, operand 0']
    #allocation7 [shape = 'u8[1024]{0}', space=vmem, size = 0x400, scoped, tag = 'output window, operand 2']
    #allocation8 [shape = 's32[2]{0}', space=sflag, size = 0x8, scoped, tag = 'scoped memory for tpu_custom_call.1']
    %13 = vsyncpa [#allocation4], 0
    %14 = vsyncpa [#allocation5], 0
    %s15 = scalar_lea.sflag [#allocation5], 1
    %16 = vsyncpa %s15, 0
    %17 = vsyncpa [#allocation8], 0
    %s18 = scalar_lea.sflag [#allocation8], 1
    %19 = vsyncpa %s18, 0
    loop: start=0, step=1, limit=6
    $region2: #{tpu_custom_call.1} parent=1 // loop_pre_header
      _
    $region3: #{tpu_custom_call.1} parent=1 // loop_header
      %s21 = sphi 0, %s25
      %p22 = scmp.ge.s32.totalorder %s21, 6
      %s28 = sphi 0, %s40
      %s29 = sphi 0, %s36
      %s30 = sphi 0, %s28
      %s31 = sphi 0, %s29
      %s32 = sphi 0, %s30
      %s33 = sphi 0, %s31
      %s45 = sphi 0, %s47
      %s48 = sphi 0, %s45
      %s49 = sphi 0, %s48
      %s65 = sphi 0, %s49
      %s69 = sphi 0, %s69
      %s71 = sphi 0, %s69
      %s72 = sphi 0, %s71
      %s86 = sphi 0, %s72
      %s90 = sphi 0, %s90
      %s92 = sphi 0, %s90
      %s93 = sphi 0, %s92
      %s107 = sphi 0, %s93
      %s111 = sphi 0, %s111
      %s113 = sphi 0, %s111
      %s114 = sphi 0, %s113
      %s128 = sphi 0, %s114
      %s132 = sphi 0, %s132
      %s134 = sphi 0, %s132
      %s135 = sphi 0, %s134
      %s149 = sphi 0, %s135
      %s157 = sphi 0, %s159
      %s160 = sphi 0, %s157
      %s161 = sphi 0, %s160
      %s177 = sphi 0, %s161
      %s183 = sphi 0, %s185
      %s186 = sphi 0, %s183
      %s187 = sphi 0, %s186
      %s203 = sphi 0, %s187
      %s209 = sphi 0, %s211
      %s212 = sphi 0, %s209
      %s213 = sphi 0, %s212
      %s229 = sphi 0, %s213
    $region4: #{tpu_custom_call.1} parent=1 // loop_header_branch
      %24 = sbr.rel (%p22) target = $region8
    $region5: #{tpu_custom_call.1} parent=1 // loop_body
      %s26 = ssub.s32 %s21, 1
      %s27 = ssub.s32 %s21, 2
      %s34 = sadd.s32 1, %s29
      %p35 = scmp.ge.s32.totalorder %s34, 2
      %s36 = scalar_select %p35, 0, %s34
      %s37 = sadd.s32 1, %s28
      %s38 = scalar_select %p35, %s37, %s28
      %p39 = scmp.ge.s32.totalorder %s38, 2
      %s40 = scalar_select %p39, 0, %s38
      %s41 = ssub.s32 %s28, %s40
      %s42 = ssub.s32 %s29, %s36
      %s43 = sor.u32 %s41, %s42
      %p44 = scmp.eq.s32.totalorder %s43, 0
      %s46 = sadd.s32 %s45, 1
      %s47 = scalar_select %p44, %s45, %s46
      %p50 = pneg %p44
      %p51 = scmp.eq.s32.totalorder %s21, 3
      %p52 = por %p50, %p51
      %p53 = scmp.ne.s32.totalorder %s45, %s48
      %p54 = scmp.eq.s32.totalorder %s21, 0
      %p55 = por %p53, %p54
      %p56 = scmp.ne.s32.totalorder %s45, %s48
      %p57 = scmp.eq.s32.totalorder %s26, 3
      %p58 = por %p56, %p57
      %p59 = scmp.ne.s32.totalorder %s48, %s49
      %p60 = scmp.eq.s32.totalorder %s26, 0
      %p61 = por %p59, %p60
      %p62 = scmp.ne.s32.totalorder %s48, %s49
      %p63 = scmp.eq.s32.totalorder %s27, 3
      %p64 = por %p62, %p63
      %p66 = scmp.ne.s32.totalorder %s49, %s65
      %p67 = scmp.eq.s32.totalorder %s27, 0
      %p68 = por %p66, %p67
      %s70 = sadd.s32 %s69, 1
      %p73 = scmp.eq.s32.totalorder %s21, 3
      %p74 = scmp.ne.s32.totalorder %s69, %s71
      %p75 = scmp.eq.s32.totalorder %s21, 0
      %p76 = por %p74, %p75
      %p77 = scmp.ne.s32.totalorder %s69, %s71
      %p78 = scmp.eq.s32.totalorder %s26, 3
      %p79 = por %p77, %p78
      %p80 = scmp.ne.s32.totalorder %s71, %s72
      %p81 = scmp.eq.s32.totalorder %s26, 0
      %p82 = por %p80, %p81
      %p83 = scmp.ne.s32.totalorder %s71, %s72
      %p84 = scmp.eq.s32.totalorder %s27, 3
      %p85 = por %p83, %p84
      %p87 = scmp.ne.s32.totalorder %s72, %s86
      %p88 = scmp.eq.s32.totalorder %s27, 0
      %p89 = por %p87, %p88
      %s91 = sadd.s32 %s90, 1
      %p94 = scmp.eq.s32.totalorder %s21, 3
      %p95 = scmp.ne.s32.totalorder %s90, %s92
      %p96 = scmp.eq.s32.totalorder %s21, 0
      %p97 = por %p95, %p96
      %p98 = scmp.ne.s32.totalorder %s90, %s92
      %p99 = scmp.eq.s32.totalorder %s26, 3
      %p100 = por %p98, %p99
      %p101 = scmp.ne.s32.totalorder %s92, %s93
      %p102 = scmp.eq.s32.totalorder %s26, 0
      %p103 = por %p101, %p102
      %p104 = scmp.ne.s32.totalorder %s92, %s93
      %p105 = scmp.eq.s32.totalorder %s27, 3
      %p106 = por %p104, %p105
      %p108 = scmp.ne.s32.totalorder %s93, %s107
      %p109 = scmp.eq.s32.totalorder %s27, 0
      %p110 = por %p108, %p109
      %s112 = sadd.s32 %s111, 1
      %p115 = scmp.eq.s32.totalorder %s21, 3
      %p116 = scmp.ne.s32.totalorder %s111, %s113
      %p117 = scmp.eq.s32.totalorder %s21, 0
      %p118 = por %p116, %p117
      %p119 = scmp.ne.s32.totalorder %s111, %s113
      %p120 = scmp.eq.s32.totalorder %s26, 3
      %p121 = por %p119, %p120
      %p122 = scmp.ne.s32.totalorder %s113, %s114
      %p123 = scmp.eq.s32.totalorder %s26, 0
      %p124 = por %p122, %p123
      %p125 = scmp.ne.s32.totalorder %s113, %s114
      %p126 = scmp.eq.s32.totalorder %s27, 3
      %p127 = por %p125, %p126
      %p129 = scmp.ne.s32.totalorder %s114, %s128
      %p130 = scmp.eq.s32.totalorder %s27, 0
      %p131 = por %p129, %p130
      %s133 = sadd.s32 %s132, 1
      %p136 = scmp.eq.s32.totalorder %s21, 3
      %p137 = scmp.ne.s32.totalorder %s132, %s134
      %p138 = scmp.eq.s32.totalorder %s21, 0
      %p139 = por %p137, %p138
      %p140 = scmp.ne.s32.totalorder %s132, %s134
      %p141 = scmp.eq.s32.totalorder %s26, 3
      %p142 = por %p140, %p141
      %p143 = scmp.ne.s32.totalorder %s134, %s135
      %p144 = scmp.eq.s32.totalorder %s26, 0
      %p145 = por %p143, %p144
      %p146 = scmp.ne.s32.totalorder %s134, %s135
      %p147 = scmp.eq.s32.totalorder %s27, 3
      %p148 = por %p146, %p147
      %p150 = scmp.ne.s32.totalorder %s135, %s149
      %p151 = scmp.eq.s32.totalorder %s27, 0
      %p152 = por %p150, %p151
      %s153 = ssub.s32 %s28, %s40
      %s154 = ssub.s32 %s29, %s36
      %s155 = sor.u32 %s153, %s154
      %p156 = scmp.eq.s32.totalorder %s155, 0
      %s158 = sadd.s32 %s157, 1
      %s159 = scalar_select %p156, %s157, %s158
      %p162 = pneg %p156
      %p163 = scmp.eq.s32.totalorder %s21, 3
      %p164 = por %p162, %p163
      %p165 = scmp.ne.s32.totalorder %s157, %s160
      %p166 = scmp.eq.s32.totalorder %s21, 0
      %p167 = por %p165, %p166
      %p168 = scmp.ne.s32.totalorder %s157, %s160
      %p169 = scmp.eq.s32.totalorder %s26, 3
      %p170 = por %p168, %p169
      %p171 = scmp.ne.s32.totalorder %s160, %s161
      %p172 = scmp.eq.s32.totalorder %s26, 0
      %p173 = por %p171, %p172
      %p174 = scmp.ne.s32.totalorder %s160, %s161
      %p175 = scmp.eq.s32.totalorder %s27, 3
      %p176 = por %p174, %p175
      %p178 = scmp.ne.s32.totalorder %s161, %s177
      %p179 = scmp.eq.s32.totalorder %s27, 0
      %p180 = por %p178, %p179
      %s181 = ssub.s32 %s28, %s40
      %p182 = scmp.eq.s32.totalorder %s181, 0
      %s184 = sadd.s32 %s183, 1
      %s185 = scalar_select %p182, %s183, %s184
      %p188 = pneg %p182
      %p189 = scmp.eq.s32.totalorder %s21, 3
      %p190 = por %p188, %p189
      %p191 = scmp.ne.s32.totalorder %s183, %s186
      %p192 = scmp.eq.s32.totalorder %s21, 0
      %p193 = por %p191, %p192
      %p194 = scmp.ne.s32.totalorder %s183, %s186
      %p195 = scmp.eq.s32.totalorder %s26, 3
      %p196 = por %p194, %p195
      %p197 = scmp.ne.s32.totalorder %s186, %s187
      %p198 = scmp.eq.s32.totalorder %s26, 0
      %p199 = por %p197, %p198
      %p200 = scmp.ne.s32.totalorder %s186, %s187
      %p201 = scmp.eq.s32.totalorder %s27, 3
      %p202 = por %p200, %p201
      %p204 = scmp.ne.s32.totalorder %s187, %s203
      %p205 = scmp.eq.s32.totalorder %s27, 0
      %p206 = por %p204, %p205
      %s207 = ssub.s32 %s28, %s40
      %p208 = scmp.eq.s32.totalorder %s207, 0
      %s210 = sadd.s32 %s209, 1
      %s211 = scalar_select %p208, %s209, %s210
      %p214 = pneg %p208
      %p215 = scmp.eq.s32.totalorder %s21, 3
      %p216 = por %p214, %p215
      %p217 = scmp.ne.s32.totalorder %s209, %s212
      %p218 = scmp.eq.s32.totalorder %s21, 0
      %p219 = por %p217, %p218
      %p220 = scmp.ne.s32.totalorder %s209, %s212
      %p221 = scmp.eq.s32.totalorder %s26, 3
      %p222 = por %p220, %p221
      %p223 = scmp.ne.s32.totalorder %s212, %s213
      %p224 = scmp.eq.s32.totalorder %s26, 0
      %p225 = por %p223, %p224
      %p226 = scmp.ne.s32.totalorder %s212, %s213
      %p227 = scmp.eq.s32.totalorder %s27, 3
      %p228 = por %p226, %p227
      %p230 = scmp.ne.s32.totalorder %s213, %s229
      %p231 = scmp.eq.s32.totalorder %s27, 0
      %p232 = por %p230, %p231
      %p233 = scmp.le.s32.totalorder 1, %s21
      %p234 = scmp.lt.s32.totalorder %s21, 5
      %p235 = pnand %p233, %p234
      %p236 = pneg %p235
      // Predicated region
      $region9: #{tpu_custom_call.1} parent=5 // pred_check
        _
      $region10: #{tpu_custom_call.1} parent=5 // pred_check_branch
        %238 = sbr.rel (%p235) target = $region12
      $region11: #{tpu_custom_call.1} parent=5 // pred_region
        %s239 = ssub.s32 %s21, 1
        // Predicated region
        $region13: #{tpu_custom_call.1} parent=11 // pred_check
          %p240 = pneg %p82
        $region14: #{tpu_custom_call.1} parent=11 // pred_check_branch
          %242 = sbr.rel (%p240) target = $region16
        $region15: #{tpu_custom_call.1} parent=11 // pred_region
          _
        $region16: #{tpu_custom_call.1} parent=11 // pred_fallthru
          _
        // Predicated region
        $region17: #{tpu_custom_call.1} parent=11 // pred_check
          %p243 = pneg %p103
        $region18: #{tpu_custom_call.1} parent=11 // pred_check_branch
          %245 = sbr.rel (%p243) target = $region20
        $region19: #{tpu_custom_call.1} parent=11 // pred_region
          _
        $region20: #{tpu_custom_call.1} parent=11 // pred_fallthru
          _
        // Predicated region
        $region21: #{tpu_custom_call.1} parent=11 // pred_check
          %p246 = pneg %p124
        $region22: #{tpu_custom_call.1} parent=11 // pred_check_branch
          %248 = sbr.rel (%p246) target = $region24
        $region23: #{tpu_custom_call.1} parent=11 // pred_region
          _
        $region24: #{tpu_custom_call.1} parent=11 // pred_fallthru
          _
        // Predicated region
        $region25: #{tpu_custom_call.1} parent=11 // pred_check
          %p249 = pneg %p145
        $region26: #{tpu_custom_call.1} parent=11 // pred_check_branch
          %251 = sbr.rel (%p249) target = $region28
        $region27: #{tpu_custom_call.1} parent=11 // pred_region
          %s253 = ssub.s32 16, 16
          %254 = vsyncadd [#allocation4], %s253
          %s256 = sshll.u32 [#allocation3], 4
          %s257 = int_to_ptr.vmem [resolvable:$true] %s256
          %259 = dma.hbm_to_vmem [thread:$0]  %s4, 16, %s257, [#allocation4]
        $region28: #{tpu_custom_call.1} parent=11 // pred_fallthru
          _
      $region12: #{tpu_custom_call.1} parent=5 // pred_fallthru
        _
      %p260 = scmp.lt.s32.totalorder %s21, 4
      // Predicated region
      $region29: #{tpu_custom_call.1} parent=5 // pred_check
        %p261 = pneg %p260
      $region30: #{tpu_custom_call.1} parent=5 // pred_check_branch
        %263 = sbr.rel (%p261) target = $region32
      $region31: #{tpu_custom_call.1} parent=5 // pred_region
        // Predicated region
        $region33: #{tpu_custom_call.1} parent=31 // pred_check
          %p264 = pneg %p55
        $region34: #{tpu_custom_call.1} parent=31 // pred_check_branch
          %266 = sbr.rel (%p264) target = $region36
        $region35: #{tpu_custom_call.1} parent=31 // pred_region
          %s267 = smul.u32 4, %s29
          %p268 = scmp.lt.s32.totalorder %s28, 1
          %s269 = scalar_select %p268, %s28, 1
          %p270 = scmp.lt.s32.totalorder %s267, 7
          %s271 = scalar_select %p270, %s267, 7
          %s272 = smul.addr %s269, 8
          %s273 = sadd.s32 %s271, %s272
          %s274 = smul.addr %s273, 4
          %s275 = scalar_lea.vmem %s0, %s274
          %s276 = smul.u32 4, %s29
        $region36: #{tpu_custom_call.1} parent=31 // pred_fallthru
          _
      $region32: #{tpu_custom_call.1} parent=5 // pred_fallthru
        _
      %p277 = scmp.le.s32.totalorder 1, %s21
      %p278 = scmp.lt.s32.totalorder %s21, 5
      %p279 = pnand %p277, %p278
      %p280 = pneg %p279
      // Predicated region
      $region37: #{tpu_custom_call.1} parent=5 // pred_check
        _
      $region38: #{tpu_custom_call.1} parent=5 // pred_check_branch
        %282 = sbr.rel (%p279) target = $region40
      $region39: #{tpu_custom_call.1} parent=5 // pred_region
        %s283 = ssub.s32 %s21, 1
        // Predicated region
        $region41: #{tpu_custom_call.1} parent=39 // pred_check
          %p284 = pneg %p145
        $region42: #{tpu_custom_call.1} parent=39 // pred_check_branch
          %286 = sbr.rel (%p284) target = $region44
        $region43: #{tpu_custom_call.1} parent=39 // pred_region
          %287 = dma.done [#allocation4], 16
        $region44: #{tpu_custom_call.1} parent=39 // pred_fallthru
          _
        %s288 = smul.u32 4, %s31
        %p289 = scmp.lt.s32.totalorder %s30, 1
        %s290 = scalar_select %p289, %s30, 1
        %p291 = scmp.lt.s32.totalorder %s288, 7
        %s292 = scalar_select %p291, %s288, 7
        %s293 = smul.addr %s290, 8
        %s294 = sadd.s32 %s292, %s293
        %s295 = smul.addr %s294, 4
        %s296 = scalar_lea.vmem %s0, %s295
        %p297 = pneg %p61
        %p298 = pneg %p58
        %p299 = pneg %p82
        %p300 = pneg %p79
        %p301 = pneg %p103
        %p302 = pneg %p100
        %p303 = pneg %p124
        %p304 = pneg %p121
        %p305 = pneg %p145
        %p306 = pneg %p142
        %p307 = pneg %p173
        %p308 = pneg %p170
        %s309 = sand.u32 %s160, 1
        %s310 = scalar_lea.sflag [#allocation5], %s309
        %s311 = sand.u32 %s160, 1
        %s312 = smul.addr %s311, 1280
        %s313 = scalar_lea.vmem [#allocation6], %s312
        %p314 = pneg %p199
        %p315 = pneg %p196
        %p316 = scmp.lt.s32.totalorder %s30, 1
        %s317 = scalar_select %p316, %s30, 1
        %s318 = smul.addr %s317, 80
        %s319 = smul.addr %s318, 8
        %s320 = scalar_lea.vmem %s6, %s319
        %p321 = pneg %p225
        %p322 = pneg %p222
        %s323 = sand.u32 %s212, 1
        %s324 = scalar_lea.sflag [#allocation8], %s323
        %s325 = sand.u32 %s212, 1
        %s326 = scalar_lea.vmem [#allocation7], %s325
        %s327 = smul.u32 4, %s31
        %p328 = scmp.lt.s32.totalorder %s30, 1
        %s329 = scalar_select %p328, %s30, 1
        %p330 = scmp.lt.s32.totalorder %s327, 7
        %s331 = scalar_select %p330, %s327, 7
        %s332 = smul.addr %s329, 8
        %s333 = sadd.s32 %s331, %s332
        %s334 = smul.addr %s333, 4
        %s335 = scalar_lea.vmem %s0, %s334
        %s336 = smul.u32 4, %s31
        %s337 = smul.u32 4, %s31
        %p338 = scmp.lt.s32.totalorder %s30, 1
        %s339 = scalar_select %p338, %s30, 1
        %s340 = smul.addr %s339, 80
        %s341 = smul.addr %s340, 8
        %s342 = scalar_lea.vmem %s6, %s341
        %p343 = scmp.eq.s32.totalorder %s31, 0
        // Predicated region
        $region45: #{tpu_custom_call.1} parent=39 // pred_check
          %p344 = pneg %p343
        $region46: #{tpu_custom_call.1} parent=39 // pred_check_branch
          %346 = sbr.rel (%p344) target = $region48
        $region47: #{tpu_custom_call.1} parent=39 // pred_region
          %vm347 = vcmask 7168
          %348 = vst.msk [vmem:[#allocation2] sm:$0xff] %vm347, 0.0
          %349 = vst.msk [vmem:[#allocation2 + $0x8] sm:$0xff] %vm347, 0.0
          %350 = vst.msk [vmem:[#allocation2 + $0x10] sm:$0xff] %vm347, 0.0
          %351 = vst.msk [vmem:[#allocation2 + $0x18] sm:$0xff] %vm347, 0.0
          %352 = vst.msk [vmem:[#allocation2 + $0x20] sm:$0xff] %vm347, 0.0
          %353 = vst.msk [vmem:[#allocation2 + $0x28] sm:$0xff] %vm347, 0.0
          %354 = vst.msk [vmem:[#allocation2 + $0x30] sm:$0xff] %vm347, 0.0
          %355 = vst.msk [vmem:[#allocation2 + $0x38] sm:$0xff] %vm347, 0.0
          %356 = vst.msk [vmem:[#allocation2 + $0x40] sm:$0xff] %vm347, 0.0
          %357 = vst.msk [vmem:[#allocation2 + $0x48] sm:$0xff] %vm347, 0.0
          %358 = vst.msk [vmem:[#allocation2 + $0x50] sm:$0xff] %vm347, 0.0
          %359 = vst.msk [vmem:[#allocation2 + $0x58] sm:$0xff] %vm347, 0.0
          %360 = vst.msk [vmem:[#allocation2 + $0x60] sm:$0xff] %vm347, 0.0
          %361 = vst.msk [vmem:[#allocation2 + $0x68] sm:$0xff] %vm347, 0.0
          %362 = vst.msk [vmem:[#allocation2 + $0x70] sm:$0xff] %vm347, 0.0
          %363 = vst.msk [vmem:[#allocation2 + $0x78] sm:$0xff] %vm347, 0.0
          %364 = vst.msk [vmem:[#allocation2 + $0x80] sm:$0xff] %vm347, 0.0
          %365 = vst.msk [vmem:[#allocation2 + $0x88] sm:$0xff] %vm347, 0.0
          %366 = vst.msk [vmem:[#allocation2 + $0x90] sm:$0xff] %vm347, 0.0
          %367 = vst.msk [vmem:[#allocation2 + $0x98] sm:$0xff] %vm347, 0.0
          %368 = vst.msk [vmem:[#allocation2 + $0xa0] sm:$0xff] %vm347, 0.0
          %369 = vst.msk [vmem:[#allocation2 + $0xa8] sm:$0xff] %vm347, 0.0
          %370 = vst.msk [vmem:[#allocation2 + $0xb0] sm:$0xff] %vm347, 0.0
          %371 = vst.msk [vmem:[#allocation2 + $0xb8] sm:$0xff] %vm347, 0.0
          %372 = vst.msk [vmem:[#allocation2 + $0xc0] sm:$0xff] %vm347, 0.0
          %373 = vst.msk [vmem:[#allocation2 + $0xc8] sm:$0xff] %vm347, 0.0
          %374 = vst.msk [vmem:[#allocation2 + $0xd0] sm:$0xff] %vm347, 0.0
          %375 = vst.msk [vmem:[#allocation2 + $0xd8] sm:$0xff] %vm347, 0.0
          %376 = vst.msk [vmem:[#allocation2 + $0xe0] sm:$0xff] %vm347, 0.0
          %377 = vst.msk [vmem:[#allocation2 + $0xe8] sm:$0xff] %vm347, 0.0
          %378 = vst.msk [vmem:[#allocation2 + $0xf0] sm:$0xff] %vm347, 0.0
          %379 = vst.msk [vmem:[#allocation2 + $0xf8] sm:$0xff] %vm347, 0.0
          %380 = vst.msk [vmem:[#allocation2 + $0x100] sm:$0xff] %vm347, 0.0
          %381 = vst.msk [vmem:[#allocation2 + $0x108] sm:$0xff] %vm347, 0.0
          %382 = vst.msk [vmem:[#allocation2 + $0x110] sm:$0xff] %vm347, 0.0
          %383 = vst.msk [vmem:[#allocation2 + $0x118] sm:$0xff] %vm347, 0.0
          %384 = vst.msk [vmem:[#allocation2 + $0x120] sm:$0xff] %vm347, 0.0
          %385 = vst.msk [vmem:[#allocation2 + $0x128] sm:$0xff] %vm347, 0.0
          %386 = vst.msk [vmem:[#allocation2 + $0x130] sm:$0xff] %vm347, 0.0
          %387 = vst.msk [vmem:[#allocation2 + $0x138] sm:$0xff] %vm347, 0.0
          %388 = vst.msk [vmem:[#allocation2 + $0x140] sm:$0xff] %vm347, 0.0
          %389 = vst.msk [vmem:[#allocation2 + $0x148] sm:$0xff] %vm347, 0.0
          %390 = vst.msk [vmem:[#allocation2 + $0x150] sm:$0xff] %vm347, 0.0
          %391 = vst.msk [vmem:[#allocation2 + $0x158] sm:$0xff] %vm347, 0.0
          %392 = vst.msk [vmem:[#allocation2 + $0x160] sm:$0xff] %vm347, 0.0
          %393 = vst.msk [vmem:[#allocation2 + $0x168] sm:$0xff] %vm347, 0.0
          %394 = vst.msk [vmem:[#allocation2 + $0x170] sm:$0xff] %vm347, 0.0
          %395 = vst.msk [vmem:[#allocation2 + $0x178] sm:$0xff] %vm347, 0.0
          %396 = vst.msk [vmem:[#allocation2 + $0x180] sm:$0xff] %vm347, 0.0
          %397 = vst.msk [vmem:[#allocation2 + $0x188] sm:$0xff] %vm347, 0.0
          %398 = vst.msk [vmem:[#allocation2 + $0x190] sm:$0xff] %vm347, 0.0
          %399 = vst.msk [vmem:[#allocation2 + $0x198] sm:$0xff] %vm347, 0.0
          %400 = vst.msk [vmem:[#allocation2 + $0x1a0] sm:$0xff] %vm347, 0.0
          %401 = vst.msk [vmem:[#allocation2 + $0x1a8] sm:$0xff] %vm347, 0.0
          %402 = vst.msk [vmem:[#allocation2 + $0x1b0] sm:$0xff] %vm347, 0.0
          %403 = vst.msk [vmem:[#allocation2 + $0x1b8] sm:$0xff] %vm347, 0.0
          %404 = vst.msk [vmem:[#allocation2 + $0x1c0] sm:$0xff] %vm347, 0.0
          %405 = vst.msk [vmem:[#allocation2 + $0x1c8] sm:$0xff] %vm347, 0.0
          %406 = vst.msk [vmem:[#allocation2 + $0x1d0] sm:$0xff] %vm347, 0.0
          %407 = vst.msk [vmem:[#allocation2 + $0x1d8] sm:$0xff] %vm347, 0.0
          %408 = vst.msk [vmem:[#allocation2 + $0x1e0] sm:$0xff] %vm347, 0.0
          %409 = vst.msk [vmem:[#allocation2 + $0x1e8] sm:$0xff] %vm347, 0.0
          %410 = vst.msk [vmem:[#allocation2 + $0x1f0] sm:$0xff] %vm347, 0.0
          %411 = vst.msk [vmem:[#allocation2 + $0x1f8] sm:$0xff] %vm347, 0.0
          %412 = vst.msk [vmem:[#allocation2 + $0x200] sm:$0xff] %vm347, 0.0
          %413 = vst.msk [vmem:[#allocation2 + $0x208] sm:$0xff] %vm347, 0.0
          %414 = vst.msk [vmem:[#allocation2 + $0x210] sm:$0xff] %vm347, 0.0
          %415 = vst.msk [vmem:[#allocation2 + $0x218] sm:$0xff] %vm347, 0.0
          %416 = vst.msk [vmem:[#allocation2 + $0x220] sm:$0xff] %vm347, 0.0
          %417 = vst.msk [vmem:[#allocation2 + $0x228] sm:$0xff] %vm347, 0.0
          %418 = vst.msk [vmem:[#allocation2 + $0x230] sm:$0xff] %vm347, 0.0
          %419 = vst.msk [vmem:[#allocation2 + $0x238] sm:$0xff] %vm347, 0.0
          %420 = vst.msk [vmem:[#allocation2 + $0x240] sm:$0xff] %vm347, 0.0
          %421 = vst.msk [vmem:[#allocation2 + $0x248] sm:$0xff] %vm347, 0.0
          %422 = vst.msk [vmem:[#allocation2 + $0x250] sm:$0xff] %vm347, 0.0
          %423 = vst.msk [vmem:[#allocation2 + $0x258] sm:$0xff] %vm347, 0.0
          %424 = vst.msk [vmem:[#allocation2 + $0x260] sm:$0xff] %vm347, 0.0
          %425 = vst.msk [vmem:[#allocation2 + $0x268] sm:$0xff] %vm347, 0.0
          %426 = vst.msk [vmem:[#allocation2 + $0x270] sm:$0xff] %vm347, 0.0
          %427 = vst.msk [vmem:[#allocation2 + $0x278] sm:$0xff] %vm347, 0.0
        $region48: #{tpu_custom_call.1} parent=39 // pred_fallthru
          _
        %v428 = vld [vmem:[%s335] sm:$0x77]
        %v429 = vld [vmem:[%s335 + $0x8] sm:$0x77]
        %v430 = vld [vmem:[%s1] sm:$0xff]
        %v431 = vld [vmem:[%s1 + $0x8] sm:$0xff]
        %v432 = vld [vmem:[%s1 + $0x10] sm:$0xff]
        %v433 = vld [vmem:[%s1 + $0x18] sm:$0xff]
        %v434 = vld [vmem:[%s1 + $0x20] sm:$0xff]
        %v435 = vld [vmem:[%s1 + $0x28] sm:$0xff]
        %v436 = vld [vmem:[%s1 + $0x30] sm:$0xff]
        %v437 = vld [vmem:[%s1 + $0x38] sm:$0xff]
        %v438 = vld [vmem:[%s1 + $0x40] sm:$0xff]
        %v439 = vld [vmem:[%s1 + $0x48] sm:$0xff]
        %v440 = vld [vmem:[%s1 + $0x50] sm:$0xff]
        %v441 = vld [vmem:[%s1 + $0x58] sm:$0xff]
        %v442 = vld [vmem:[%s1 + $0x60] sm:$0xff]
        %v443 = vld [vmem:[%s1 + $0x68] sm:$0xff]
        %v444 = vld [vmem:[%s1 + $0x70] sm:$0xff]
        %v445 = vld [vmem:[%s1 + $0x78] sm:$0xff]
        %v446 = vld [vmem:[%s1 + $0x80] sm:$0xff]
        %v447 = vld [vmem:[%s1 + $0x88] sm:$0xff]
        %v448 = vld [vmem:[%s1 + $0x90] sm:$0xff]
        %v449 = vld [vmem:[%s1 + $0x98] sm:$0xff]
        %v450 = vld [vmem:[%s1 + $0xa0] sm:$0xff]
        %v451 = vld [vmem:[%s1 + $0xa8] sm:$0xff]
        %v452 = vld [vmem:[%s1 + $0xb0] sm:$0xff]
        %v453 = vld [vmem:[%s1 + $0xb8] sm:$0xff]
        %v454 = vld [vmem:[%s1 + $0xc0] sm:$0xff]
        %v455 = vld [vmem:[%s1 + $0xc8] sm:$0xff]
        %v456 = vld [vmem:[%s1 + $0xd0] sm:$0xff]
        %v457 = vld [vmem:[%s1 + $0xd8] sm:$0xff]
        %v458 = vld [vmem:[%s1 + $0xe0] sm:$0xff]
        %v459 = vld [vmem:[%s1 + $0xe8] sm:$0xff]
        %v460 = vld [vmem:[%s1 + $0xf0] sm:$0xff]
        %v461 = vld [vmem:[%s1 + $0xf8] sm:$0xff]
        %v462 = vld [vmem:[%s1 + $0x100] sm:$0xff]
        %v463 = vld [vmem:[%s1 + $0x108] sm:$0xff]
        %v464 = vld [vmem:[%s1 + $0x110] sm:$0xff]
        %v465 = vld [vmem:[%s1 + $0x118] sm:$0xff]
        %v466 = vld [vmem:[%s1 + $0x120] sm:$0xff]
        %v467 = vld [vmem:[%s1 + $0x128] sm:$0xff]
        %v468 = vld [vmem:[%s1 + $0x130] sm:$0xff]
        %v469 = vld [vmem:[%s1 + $0x138] sm:$0xff]
        %v470 = vld [vmem:[%s1 + $0x140] sm:$0xff]
        %v471 = vld [vmem:[%s1 + $0x148] sm:$0xff]
        %v472 = vld [vmem:[%s1 + $0x150] sm:$0xff]
        %v473 = vld [vmem:[%s1 + $0x158] sm:$0xff]
        %v474 = vld [vmem:[%s1 + $0x160] sm:$0xff]
        %v475 = vld [vmem:[%s1 + $0x168] sm:$0xff]
        %v476 = vld [vmem:[%s1 + $0x170] sm:$0xff]
        %v477 = vld [vmem:[%s1 + $0x178] sm:$0xff]
        %v478 = vld [vmem:[%s1 + $0x180] sm:$0xff]
        %v479 = vld [vmem:[%s1 + $0x188] sm:$0xff]
        %v480 = vld [vmem:[%s1 + $0x190] sm:$0xff]
        %v481 = vld [vmem:[%s1 + $0x198] sm:$0xff]
        %v482 = vld [vmem:[%s1 + $0x1a0] sm:$0xff]
        %v483 = vld [vmem:[%s1 + $0x1a8] sm:$0xff]
        %v484 = vld [vmem:[%s1 + $0x1b0] sm:$0xff]
        %v485 = vld [vmem:[%s1 + $0x1b8] sm:$0xff]
        %v486 = vld [vmem:[%s1 + $0x1c0] sm:$0xff]
        %v487 = vld [vmem:[%s1 + $0x1c8] sm:$0xff]
        %v488 = vld [vmem:[%s1 + $0x1d0] sm:$0xff]
        %v489 = vld [vmem:[%s1 + $0x1d8] sm:$0xff]
        %v490 = vld [vmem:[%s1 + $0x1e0] sm:$0xff]
        %v491 = vld [vmem:[%s1 + $0x1e8] sm:$0xff]
        %v492 = vld [vmem:[%s1 + $0x1f0] sm:$0xff]
        %v493 = vld [vmem:[%s1 + $0x1f8] sm:$0xff]
        %v494 = vld [vmem:[%s1 + $0x200] sm:$0xff]
        %v495 = vld [vmem:[%s1 + $0x208] sm:$0xff]
        %v496 = vld [vmem:[%s1 + $0x210] sm:$0xff]
        %v497 = vld [vmem:[%s1 + $0x218] sm:$0xff]
        %v498 = vld [vmem:[%s1 + $0x220] sm:$0xff]
        %v499 = vld [vmem:[%s1 + $0x228] sm:$0xff]
        %v500 = vld [vmem:[%s1 + $0x230] sm:$0xff]
        %v501 = vld [vmem:[%s1 + $0x238] sm:$0xff]
        %v502 = vld [vmem:[%s1 + $0x240] sm:$0xff]
        %v503 = vld [vmem:[%s1 + $0x248] sm:$0xff]
        %v504 = vld [vmem:[%s1 + $0x250] sm:$0xff]
        %v505 = vld [vmem:[%s1 + $0x258] sm:$0xff]
        %v506 = vld [vmem:[%s1 + $0x260] sm:$0xff]
        %v507 = vld [vmem:[%s1 + $0x268] sm:$0xff]
        %v508 = vld [vmem:[%s1 + $0x270] sm:$0xff]
        %v509 = vld [vmem:[%s1 + $0x278] sm:$0xff]
        %v510 = vld [vmem:[%s2] sm:$0xff]
        %v511 = vld [vmem:[%s2 + $0x8] sm:$0xff]
        %v512 = vld [vmem:[%s2 + $0x10] sm:$0xff]
        %v513 = vld [vmem:[%s2 + $0x18] sm:$0xff]
        %v514 = vld [vmem:[%s2 + $0x20] sm:$0xff]
        %v515 = vld [vmem:[%s2 + $0x28] sm:$0xff]
        %v516 = vld [vmem:[%s2 + $0x30] sm:$0xff]
        %v517 = vld [vmem:[%s2 + $0x38] sm:$0xff]
        %v518 = vld [vmem:[%s2 + $0x40] sm:$0xff]
        %v519 = vld [vmem:[%s2 + $0x48] sm:$0xff]
        %v520 = vld [vmem:[%s2 + $0x50] sm:$0xff]
        %v521 = vld [vmem:[%s2 + $0x58] sm:$0xff]
        %v522 = vld [vmem:[%s2 + $0x60] sm:$0xff]
        %v523 = vld [vmem:[%s2 + $0x68] sm:$0xff]
        %v524 = vld [vmem:[%s2 + $0x70] sm:$0xff]
        %v525 = vld [vmem:[%s2 + $0x78] sm:$0xff]
        %v526 = vld [vmem:[%s2 + $0x80] sm:$0xff]
        %v527 = vld [vmem:[%s2 + $0x88] sm:$0xff]
        %v528 = vld [vmem:[%s2 + $0x90] sm:$0xff]
        %v529 = vld [vmem:[%s2 + $0x98] sm:$0xff]
        %v530 = vld [vmem:[%s2 + $0xa0] sm:$0xff]
        %v531 = vld [vmem:[%s2 + $0xa8] sm:$0xff]
        %v532 = vld [vmem:[%s2 + $0xb0] sm:$0xff]
        %v533 = vld [vmem:[%s2 + $0xb8] sm:$0xff]
        %v534 = vld [vmem:[%s2 + $0xc0] sm:$0xff]
        %v535 = vld [vmem:[%s2 + $0xc8] sm:$0xff]
        %v536 = vld [vmem:[%s2 + $0xd0] sm:$0xff]
        %v537 = vld [vmem:[%s2 + $0xd8] sm:$0xff]
        %v538 = vld [vmem:[%s2 + $0xe0] sm:$0xff]
        %v539 = vld [vmem:[%s2 + $0xe8] sm:$0xff]
        %v540 = vld [vmem:[%s2 + $0xf0] sm:$0xff]
        %v541 = vld [vmem:[%s2 + $0xf8] sm:$0xff]
        %v542 = vld [vmem:[%s2 + $0x100] sm:$0xff]
        %v543 = vld [vmem:[%s2 + $0x108] sm:$0xff]
        %v544 = vld [vmem:[%s2 + $0x110] sm:$0xff]
        %v545 = vld [vmem:[%s2 + $0x118] sm:$0xff]
        %v546 = vld [vmem:[%s2 + $0x120] sm:$0xff]
        %v547 = vld [vmem:[%s2 + $0x128] sm:$0xff]
        %v548 = vld [vmem:[%s2 + $0x130] sm:$0xff]
        %v549 = vld [vmem:[%s2 + $0x138] sm:$0xff]
        %v550 = vld [vmem:[%s2 + $0x140] sm:$0xff]
        %v551 = vld [vmem:[%s2 + $0x148] sm:$0xff]
        %v552 = vld [vmem:[%s2 + $0x150] sm:$0xff]
        %v553 = vld [vmem:[%s2 + $0x158] sm:$0xff]
        %v554 = vld [vmem:[%s2 + $0x160] sm:$0xff]
        %v555 = vld [vmem:[%s2 + $0x168] sm:$0xff]
        %v556 = vld [vmem:[%s2 + $0x170] sm:$0xff]
        %v557 = vld [vmem:[%s2 + $0x178] sm:$0xff]
        %v558 = vld [vmem:[%s2 + $0x180] sm:$0xff]
        %v559 = vld [vmem:[%s2 + $0x188] sm:$0xff]
        %v560 = vld [vmem:[%s2 + $0x190] sm:$0xff]
        %v561 = vld [vmem:[%s2 + $0x198] sm:$0xff]
        %v562 = vld [vmem:[%s2 + $0x1a0] sm:$0xff]
        %v563 = vld [vmem:[%s2 + $0x1a8] sm:$0xff]
        %v564 = vld [vmem:[%s2 + $0x1b0] sm:$0xff]
        %v565 = vld [vmem:[%s2 + $0x1b8] sm:$0xff]
        %v566 = vld [vmem:[%s2 + $0x1c0] sm:$0xff]
        %v567 = vld [vmem:[%s2 + $0x1c8] sm:$0xff]
        %v568 = vld [vmem:[%s2 + $0x1d0] sm:$0xff]
        %v569 = vld [vmem:[%s2 + $0x1d8] sm:$0xff]
        %v570 = vld [vmem:[%s2 + $0x1e0] sm:$0xff]
        %v571 = vld [vmem:[%s2 + $0x1e8] sm:$0xff]
        %v572 = vld [vmem:[%s2 + $0x1f0] sm:$0xff]
        %v573 = vld [vmem:[%s2 + $0x1f8] sm:$0xff]
        %v574 = vld [vmem:[%s2 + $0x200] sm:$0xff]
        %v575 = vld [vmem:[%s2 + $0x208] sm:$0xff]
        %v576 = vld [vmem:[%s2 + $0x210] sm:$0xff]
        %v577 = vld [vmem:[%s2 + $0x218] sm:$0xff]
        %v578 = vld [vmem:[%s2 + $0x220] sm:$0xff]
        %v579 = vld [vmem:[%s2 + $0x228] sm:$0xff]
        %v580 = vld [vmem:[%s2 + $0x230] sm:$0xff]
        %v581 = vld [vmem:[%s2 + $0x238] sm:$0xff]
        %v582 = vld [vmem:[%s2 + $0x240] sm:$0xff]
        %v583 = vld [vmem:[%s2 + $0x248] sm:$0xff]
        %v584 = vld [vmem:[%s2 + $0x250] sm:$0xff]
        %v585 = vld [vmem:[%s2 + $0x258] sm:$0xff]
        %v586 = vld [vmem:[%s2 + $0x260] sm:$0xff]
        %v587 = vld [vmem:[%s2 + $0x268] sm:$0xff]
        %v588 = vld [vmem:[%s2 + $0x270] sm:$0xff]
        %v589 = vld [vmem:[%s2 + $0x278] sm:$0xff]
        %591 = vset.pattern.permute.xlu0 0
        %592 = vperm.xlu0 %591, %v430
        %v593 = vpop.permute.xlu0 %592
        %596 = vset.pattern.permute.xlu0 0
        %597 = vperm.xlu0 %596, %v431
        %v598 = vpop.permute.xlu0 %597
        %601 = vset.pattern.permute.xlu0 0
        %602 = vperm.xlu0 %601, %v432
        %v603 = vpop.permute.xlu0 %602
        %606 = vset.pattern.permute.xlu0 0
        %607 = vperm.xlu0 %606, %v433
        %v608 = vpop.permute.xlu0 %607
        %611 = vset.pattern.permute.xlu0 0
        %612 = vperm.xlu0 %611, %v434
        %v613 = vpop.permute.xlu0 %612
        %616 = vset.pattern.permute.xlu0 0
        %617 = vperm.xlu0 %616, %v435
        %v618 = vpop.permute.xlu0 %617
        %621 = vset.pattern.permute.xlu0 0
        %622 = vperm.xlu0 %621, %v436
        %v623 = vpop.permute.xlu0 %622
        %626 = vset.pattern.permute.xlu0 0
        %627 = vperm.xlu0 %626, %v437
        %v628 = vpop.permute.xlu0 %627
        %631 = vset.pattern.permute.xlu0 0
        %632 = vperm.xlu0 %631, %v438
        %v633 = vpop.permute.xlu0 %632
        %636 = vset.pattern.permute.xlu0 0
        %637 = vperm.xlu0 %636, %v439
        %v638 = vpop.permute.xlu0 %637
        %641 = vset.pattern.permute.xlu0 0
        %642 = vperm.xlu0 %641, %v440
        %v643 = vpop.permute.xlu0 %642
        %646 = vset.pattern.permute.xlu0 0
        %647 = vperm.xlu0 %646, %v441
        %v648 = vpop.permute.xlu0 %647
        %651 = vset.pattern.permute.xlu0 0
        %652 = vperm.xlu0 %651, %v442
        %v653 = vpop.permute.xlu0 %652
        %656 = vset.pattern.permute.xlu0 0
        %657 = vperm.xlu0 %656, %v443
        %v658 = vpop.permute.xlu0 %657
        %661 = vset.pattern.permute.xlu0 0
        %662 = vperm.xlu0 %661, %v444
        %v663 = vpop.permute.xlu0 %662
        %666 = vset.pattern.permute.xlu0 0
        %667 = vperm.xlu0 %666, %v445
        %v668 = vpop.permute.xlu0 %667
        %671 = vset.pattern.permute.xlu0 0
        %672 = vperm.xlu0 %671, %v446
        %v673 = vpop.permute.xlu0 %672
        %676 = vset.pattern.permute.xlu0 0
        %677 = vperm.xlu0 %676, %v447
        %v678 = vpop.permute.xlu0 %677
        %681 = vset.pattern.permute.xlu0 0
        %682 = vperm.xlu0 %681, %v448
        %v683 = vpop.permute.xlu0 %682
        %686 = vset.pattern.permute.xlu0 0
        %687 = vperm.xlu0 %686, %v449
        %v688 = vpop.permute.xlu0 %687
        %691 = vset.pattern.permute.xlu0 0
        %692 = vperm.xlu0 %691, %v450
        %v693 = vpop.permute.xlu0 %692
        %696 = vset.pattern.permute.xlu0 0
        %697 = vperm.xlu0 %696, %v451
        %v698 = vpop.permute.xlu0 %697
        %701 = vset.pattern.permute.xlu0 0
        %702 = vperm.xlu0 %701, %v452
        %v703 = vpop.permute.xlu0 %702
        %706 = vset.pattern.permute.xlu0 0
        %707 = vperm.xlu0 %706, %v453
        %v708 = vpop.permute.xlu0 %707
        %711 = vset.pattern.permute.xlu0 0
        %712 = vperm.xlu0 %711, %v454
        %v713 = vpop.permute.xlu0 %712
        %716 = vset.pattern.permute.xlu0 0
        %717 = vperm.xlu0 %716, %v455
        %v718 = vpop.permute.xlu0 %717
        %721 = vset.pattern.permute.xlu0 0
        %722 = vperm.xlu0 %721, %v456
        %v723 = vpop.permute.xlu0 %722
        %726 = vset.pattern.permute.xlu0 0
        %727 = vperm.xlu0 %726, %v457
        %v728 = vpop.permute.xlu0 %727
        %731 = vset.pattern.permute.xlu0 0
        %732 = vperm.xlu0 %731, %v458
        %v733 = vpop.permute.xlu0 %732
        %736 = vset.pattern.permute.xlu0 0
        %737 = vperm.xlu0 %736, %v459
        %v738 = vpop.permute.xlu0 %737
        %741 = vset.pattern.permute.xlu0 0
        %742 = vperm.xlu0 %741, %v460
        %v743 = vpop.permute.xlu0 %742
        %746 = vset.pattern.permute.xlu0 0
        %747 = vperm.xlu0 %746, %v461
        %v748 = vpop.permute.xlu0 %747
        %751 = vset.pattern.permute.xlu0 0
        %752 = vperm.xlu0 %751, %v462
        %v753 = vpop.permute.xlu0 %752
        %756 = vset.pattern.permute.xlu0 0
        %757 = vperm.xlu0 %756, %v463
        %v758 = vpop.permute.xlu0 %757
        %761 = vset.pattern.permute.xlu0 0
        %762 = vperm.xlu0 %761, %v464
        %v763 = vpop.permute.xlu0 %762
        %766 = vset.pattern.permute.xlu0 0
        %767 = vperm.xlu0 %766, %v465
        %v768 = vpop.permute.xlu0 %767
        %771 = vset.pattern.permute.xlu0 0
        %772 = vperm.xlu0 %771, %v466
        %v773 = vpop.permute.xlu0 %772
        %776 = vset.pattern.permute.xlu0 0
        %777 = vperm.xlu0 %776, %v467
        %v778 = vpop.permute.xlu0 %777
        %781 = vset.pattern.permute.xlu0 0
        %782 = vperm.xlu0 %781, %v468
        %v783 = vpop.permute.xlu0 %782
        %786 = vset.pattern.permute.xlu0 0
        %787 = vperm.xlu0 %786, %v469
        %v788 = vpop.permute.xlu0 %787
        %791 = vset.pattern.permute.xlu0 0
        %792 = vperm.xlu0 %791, %v470
        %v793 = vpop.permute.xlu0 %792
        %796 = vset.pattern.permute.xlu0 0
        %797 = vperm.xlu0 %796, %v471
        %v798 = vpop.permute.xlu0 %797
        %801 = vset.pattern.permute.xlu0 0
        %802 = vperm.xlu0 %801, %v472
        %v803 = vpop.permute.xlu0 %802
        %806 = vset.pattern.permute.xlu0 0
        %807 = vperm.xlu0 %806, %v473
        %v808 = vpop.permute.xlu0 %807
        %811 = vset.pattern.permute.xlu0 0
        %812 = vperm.xlu0 %811, %v474
        %v813 = vpop.permute.xlu0 %812
        %816 = vset.pattern.permute.xlu0 0
        %817 = vperm.xlu0 %816, %v475
        %v818 = vpop.permute.xlu0 %817
        %821 = vset.pattern.permute.xlu0 0
        %822 = vperm.xlu0 %821, %v476
        %v823 = vpop.permute.xlu0 %822
        %826 = vset.pattern.permute.xlu0 0
        %827 = vperm.xlu0 %826, %v477
        %v828 = vpop.permute.xlu0 %827
        %831 = vset.pattern.permute.xlu0 0
        %832 = vperm.xlu0 %831, %v478
        %v833 = vpop.permute.xlu0 %832
        %836 = vset.pattern.permute.xlu0 0
        %837 = vperm.xlu0 %836, %v479
        %v838 = vpop.permute.xlu0 %837
        %841 = vset.pattern.permute.xlu0 0
        %842 = vperm.xlu0 %841, %v480
        %v843 = vpop.permute.xlu0 %842
        %846 = vset.pattern.permute.xlu0 0
        %847 = vperm.xlu0 %846, %v481
        %v848 = vpop.permute.xlu0 %847
        %851 = vset.pattern.permute.xlu0 0
        %852 = vperm.xlu0 %851, %v482
        %v853 = vpop.permute.xlu0 %852
        %856 = vset.pattern.permute.xlu0 0
        %857 = vperm.xlu0 %856, %v483
        %v858 = vpop.permute.xlu0 %857
        %861 = vset.pattern.permute.xlu0 0
        %862 = vperm.xlu0 %861, %v484
        %v863 = vpop.permute.xlu0 %862
        %866 = vset.pattern.permute.xlu0 0
        %867 = vperm.xlu0 %866, %v485
        %v868 = vpop.permute.xlu0 %867
        %871 = vset.pattern.permute.xlu0 0
        %872 = vperm.xlu0 %871, %v486
        %v873 = vpop.permute.xlu0 %872
        %876 = vset.pattern.permute.xlu0 0
        %877 = vperm.xlu0 %876, %v487
        %v878 = vpop.permute.xlu0 %877
        %881 = vset.pattern.permute.xlu0 0
        %882 = vperm.xlu0 %881, %v488
        %v883 = vpop.permute.xlu0 %882
        %886 = vset.pattern.permute.xlu0 0
        %887 = vperm.xlu0 %886, %v489
        %v888 = vpop.permute.xlu0 %887
        %891 = vset.pattern.permute.xlu0 0
        %892 = vperm.xlu0 %891, %v490
        %v893 = vpop.permute.xlu0 %892
        %896 = vset.pattern.permute.xlu0 0
        %897 = vperm.xlu0 %896, %v491
        %v898 = vpop.permute.xlu0 %897
        %901 = vset.pattern.permute.xlu0 0
        %902 = vperm.xlu0 %901, %v492
        %v903 = vpop.permute.xlu0 %902
        %906 = vset.pattern.permute.xlu0 0
        %907 = vperm.xlu0 %906, %v493
        %v908 = vpop.permute.xlu0 %907
        %911 = vset.pattern.permute.xlu0 0
        %912 = vperm.xlu0 %911, %v494
        %v913 = vpop.permute.xlu0 %912
        %916 = vset.pattern.permute.xlu0 0
        %917 = vperm.xlu0 %916, %v495
        %v918 = vpop.permute.xlu0 %917
        %921 = vset.pattern.permute.xlu0 0
        %922 = vperm.xlu0 %921, %v496
        %v923 = vpop.permute.xlu0 %922
        %926 = vset.pattern.permute.xlu0 0
        %927 = vperm.xlu0 %926, %v497
        %v928 = vpop.permute.xlu0 %927
        %931 = vset.pattern.permute.xlu0 0
        %932 = vperm.xlu0 %931, %v498
        %v933 = vpop.permute.xlu0 %932
        %936 = vset.pattern.permute.xlu0 0
        %937 = vperm.xlu0 %936, %v499
        %v938 = vpop.permute.xlu0 %937
        %941 = vset.pattern.permute.xlu0 0
        %942 = vperm.xlu0 %941, %v500
        %v943 = vpop.permute.xlu0 %942
        %946 = vset.pattern.permute.xlu0 0
        %947 = vperm.xlu0 %946, %v501
        %v948 = vpop.permute.xlu0 %947
        %951 = vset.pattern.permute.xlu0 0
        %952 = vperm.xlu0 %951, %v502
        %v953 = vpop.permute.xlu0 %952
        %956 = vset.pattern.permute.xlu0 0
        %957 = vperm.xlu0 %956, %v503
        %v958 = vpop.permute.xlu0 %957
        %961 = vset.pattern.permute.xlu0 0
        %962 = vperm.xlu0 %961, %v504
        %v963 = vpop.permute.xlu0 %962
        %966 = vset.pattern.permute.xlu0 0
        %967 = vperm.xlu0 %966, %v505
        %v968 = vpop.permute.xlu0 %967
        %971 = vset.pattern.permute.xlu0 0
        %972 = vperm.xlu0 %971, %v506
        %v973 = vpop.permute.xlu0 %972
        %976 = vset.pattern.permute.xlu0 0
        %977 = vperm.xlu0 %976, %v507
        %v978 = vpop.permute.xlu0 %977
        %981 = vset.pattern.permute.xlu0 0
        %982 = vperm.xlu0 %981, %v508
        %v983 = vpop.permute.xlu0 %982
        %986 = vset.pattern.permute.xlu0 0
        %987 = vperm.xlu0 %986, %v509
        %v988 = vpop.permute.xlu0 %987
        %v992 = vlaneseq
        %v993 = vshrl.u32 %v992, 7
        %v994 = vsub.s32 0, %v993
        %v995 = vrot.slane %v428, %v994
        %v996 = vlaneseq
        %v997 = vshrl.u32 %v996, 7
        %v998 = vsub.s32 4, %v997
        %v999 = vrot.slane %v428, %v998
        %v1000 = vlaneseq
        %v1001 = vshrl.u32 %v1000, 7
        %v1002 = vsub.s32 0, %v1001
        %v1003 = vrot.slane %v429, %v1002
        %v1004 = vlaneseq
        %v1005 = vshrl.u32 %v1004, 7
        %v1006 = vsub.s32 4, %v1005
        %v1007 = vrot.slane %v429, %v1006
        %v1012 = vlaneseq
        %v1013 = vshrl.u32 %v1012, 7
        %v1014 = vsub.s32 0, %v1013
        %v1015 = vrot.slane %v995, %v1014
        %v1016 = vlaneseq
        %v1017 = vshrl.u32 %v1016, 7
        %v1018 = vsub.s32 0, %v1017
        %v1019 = vrot.slane %v999, %v1018
        %v1020 = vlaneseq
        %v1021 = vshrl.u32 %v1020, 7
        %v1022 = vsub.s32 0, %v1021
        %v1023 = vrot.slane %v1003, %v1022
        %v1024 = vlaneseq
        %v1025 = vshrl.u32 %v1024, 7
        %v1026 = vsub.s32 0, %v1025
        %v1027 = vrot.slane %v1007, %v1026
        %v1028 = vmul.f32 %v593, %v1015
        %v1029 = vmul.f32 %v593, %v1019
        %v1030 = vmul.f32 %v593, %v1023
        %v1031 = vmul.f32 %v593, %v1027
        %v1032 = vmul.f32 %v598, %v1015
        %v1033 = vmul.f32 %v598, %v1019
        %v1034 = vmul.f32 %v598, %v1023
        %v1035 = vmul.f32 %v598, %v1027
        %v1036 = vmul.f32 %v603, %v1015
        %v1037 = vmul.f32 %v603, %v1019
        %v1038 = vmul.f32 %v603, %v1023
        %v1039 = vmul.f32 %v603, %v1027
        %v1040 = vmul.f32 %v608, %v1015
        %v1041 = vmul.f32 %v608, %v1019
        %v1042 = vmul.f32 %v608, %v1023
        %v1043 = vmul.f32 %v608, %v1027
        %v1044 = vmul.f32 %v613, %v1015
        %v1045 = vmul.f32 %v613, %v1019
        %v1046 = vmul.f32 %v613, %v1023
        %v1047 = vmul.f32 %v613, %v1027
        %v1048 = vmul.f32 %v618, %v1015
        %v1049 = vmul.f32 %v618, %v1019
        %v1050 = vmul.f32 %v618, %v1023
        %v1051 = vmul.f32 %v618, %v1027
        %v1052 = vmul.f32 %v623, %v1015
        %v1053 = vmul.f32 %v623, %v1019
        %v1054 = vmul.f32 %v623, %v1023
        %v1055 = vmul.f32 %v623, %v1027
        %v1056 = vmul.f32 %v628, %v1015
        %v1057 = vmul.f32 %v628, %v1019
        %v1058 = vmul.f32 %v628, %v1023
        %v1059 = vmul.f32 %v628, %v1027
        %v1060 = vmul.f32 %v633, %v1015
        %v1061 = vmul.f32 %v633, %v1019
        %v1062 = vmul.f32 %v633, %v1023
        %v1063 = vmul.f32 %v633, %v1027
        %v1064 = vmul.f32 %v638, %v1015
        %v1065 = vmul.f32 %v638, %v1019
        %v1066 = vmul.f32 %v638, %v1023
        %v1067 = vmul.f32 %v638, %v1027
        %v1068 = vmul.f32 %v643, %v1015
        %v1069 = vmul.f32 %v643, %v1019
        %v1070 = vmul.f32 %v643, %v1023
        %v1071 = vmul.f32 %v643, %v1027
        %v1072 = vmul.f32 %v648, %v1015
        %v1073 = vmul.f32 %v648, %v1019
        %v1074 = vmul.f32 %v648, %v1023
        %v1075 = vmul.f32 %v648, %v1027
        %v1076 = vmul.f32 %v653, %v1015
        %v1077 = vmul.f32 %v653, %v1019
        %v1078 = vmul.f32 %v653, %v1023
        %v1079 = vmul.f32 %v653, %v1027
        %v1080 = vmul.f32 %v658, %v1015
        %v1081 = vmul.f32 %v658, %v1019
        %v1082 = vmul.f32 %v658, %v1023
        %v1083 = vmul.f32 %v658, %v1027
        %v1084 = vmul.f32 %v663, %v1015
        %v1085 = vmul.f32 %v663, %v1019
        %v1086 = vmul.f32 %v663, %v1023
        %v1087 = vmul.f32 %v663, %v1027
        %v1088 = vmul.f32 %v668, %v1015
        %v1089 = vmul.f32 %v668, %v1019
        %v1090 = vmul.f32 %v668, %v1023
        %v1091 = vmul.f32 %v668, %v1027
        %v1092 = vmul.f32 %v673, %v1015
        %v1093 = vmul.f32 %v673, %v1019
        %v1094 = vmul.f32 %v673, %v1023
        %v1095 = vmul.f32 %v673, %v1027
        %v1096 = vmul.f32 %v678, %v1015
        %v1097 = vmul.f32 %v678, %v1019
        %v1098 = vmul.f32 %v678, %v1023
        %v1099 = vmul.f32 %v678, %v1027
        %v1100 = vmul.f32 %v683, %v1015
        %v1101 = vmul.f32 %v683, %v1019
        %v1102 = vmul.f32 %v683, %v1023
        %v1103 = vmul.f32 %v683, %v1027
        %v1104 = vmul.f32 %v688, %v1015
        %v1105 = vmul.f32 %v688, %v1019
        %v1106 = vmul.f32 %v688, %v1023
        %v1107 = vmul.f32 %v688, %v1027
        %v1108 = vmul.f32 %v693, %v1015
        %v1109 = vmul.f32 %v693, %v1019
        %v1110 = vmul.f32 %v693, %v1023
        %v1111 = vmul.f32 %v693, %v1027
        %v1112 = vmul.f32 %v698, %v1015
        %v1113 = vmul.f32 %v698, %v1019
        %v1114 = vmul.f32 %v698, %v1023
        %v1115 = vmul.f32 %v698, %v1027
        %v1116 = vmul.f32 %v703, %v1015
        %v1117 = vmul.f32 %v703, %v1019
        %v1118 = vmul.f32 %v703, %v1023
        %v1119 = vmul.f32 %v703, %v1027
        %v1120 = vmul.f32 %v708, %v1015
        %v1121 = vmul.f32 %v708, %v1019
        %v1122 = vmul.f32 %v708, %v1023
        %v1123 = vmul.f32 %v708, %v1027
        %v1124 = vmul.f32 %v713, %v1015
        %v1125 = vmul.f32 %v713, %v1019
        %v1126 = vmul.f32 %v713, %v1023
        %v1127 = vmul.f32 %v713, %v1027
        %v1128 = vmul.f32 %v718, %v1015
        %v1129 = vmul.f32 %v718, %v1019
        %v1130 = vmul.f32 %v718, %v1023
        %v1131 = vmul.f32 %v718, %v1027
        %v1132 = vmul.f32 %v723, %v1015
        %v1133 = vmul.f32 %v723, %v1019
        %v1134 = vmul.f32 %v723, %v1023
        %v1135 = vmul.f32 %v723, %v1027
        %v1136 = vmul.f32 %v728, %v1015
        %v1137 = vmul.f32 %v728, %v1019
        %v1138 = vmul.f32 %v728, %v1023
        %v1139 = vmul.f32 %v728, %v1027
        %v1140 = vmul.f32 %v733, %v1015
        %v1141 = vmul.f32 %v733, %v1019
        %v1142 = vmul.f32 %v733, %v1023
        %v1143 = vmul.f32 %v733, %v1027
        %v1144 = vmul.f32 %v738, %v1015
        %v1145 = vmul.f32 %v738, %v1019
        %v1146 = vmul.f32 %v738, %v1023
        %v1147 = vmul.f32 %v738, %v1027
        %v1148 = vmul.f32 %v743, %v1015
        %v1149 = vmul.f32 %v743, %v1019
        %v1150 = vmul.f32 %v743, %v1023
        %v1151 = vmul.f32 %v743, %v1027
        %v1152 = vmul.f32 %v748, %v1015
        %v1153 = vmul.f32 %v748, %v1019
        %v1154 = vmul.f32 %v748, %v1023
        %v1155 = vmul.f32 %v748, %v1027
        %v1156 = vmul.f32 %v753, %v1015
        %v1157 = vmul.f32 %v753, %v1019
        %v1158 = vmul.f32 %v753, %v1023
        %v1159 = vmul.f32 %v753, %v1027
        %v1160 = vmul.f32 %v758, %v1015
        %v1161 = vmul.f32 %v758, %v1019
        %v1162 = vmul.f32 %v758, %v1023
        %v1163 = vmul.f32 %v758, %v1027
        %v1164 = vmul.f32 %v763, %v1015
        %v1165 = vmul.f32 %v763, %v1019
        %v1166 = vmul.f32 %v763, %v1023
        %v1167 = vmul.f32 %v763, %v1027
        %v1168 = vmul.f32 %v768, %v1015
        %v1169 = vmul.f32 %v768, %v1019
        %v1170 = vmul.f32 %v768, %v1023
        %v1171 = vmul.f32 %v768, %v1027
        %v1172 = vmul.f32 %v773, %v1015
        %v1173 = vmul.f32 %v773, %v1019
        %v1174 = vmul.f32 %v773, %v1023
        %v1175 = vmul.f32 %v773, %v1027
        %v1176 = vmul.f32 %v778, %v1015
        %v1177 = vmul.f32 %v778, %v1019
        %v1178 = vmul.f32 %v778, %v1023
        %v1179 = vmul.f32 %v778, %v1027
        %v1180 = vmul.f32 %v783, %v1015
        %v1181 = vmul.f32 %v783, %v1019
        %v1182 = vmul.f32 %v783, %v1023
        %v1183 = vmul.f32 %v783, %v1027
        %v1184 = vmul.f32 %v788, %v1015
        %v1185 = vmul.f32 %v788, %v1019
        %v1186 = vmul.f32 %v788, %v1023
        %v1187 = vmul.f32 %v788, %v1027
        %v1188 = vmul.f32 %v793, %v1015
        %v1189 = vmul.f32 %v793, %v1019
        %v1190 = vmul.f32 %v793, %v1023
        %v1191 = vmul.f32 %v793, %v1027
        %v1192 = vmul.f32 %v798, %v1015
        %v1193 = vmul.f32 %v798, %v1019
        %v1194 = vmul.f32 %v798, %v1023
        %v1195 = vmul.f32 %v798, %v1027
        %v1196 = vmul.f32 %v803, %v1015
        %v1197 = vmul.f32 %v803, %v1019
        %v1198 = vmul.f32 %v803, %v1023
        %v1199 = vmul.f32 %v803, %v1027
        %v1200 = vmul.f32 %v808, %v1015
        %v1201 = vmul.f32 %v808, %v1019
        %v1202 = vmul.f32 %v808, %v1023
        %v1203 = vmul.f32 %v808, %v1027
        %v1204 = vmul.f32 %v813, %v1015
        %v1205 = vmul.f32 %v813, %v1019
        %v1206 = vmul.f32 %v813, %v1023
        %v1207 = vmul.f32 %v813, %v1027
        %v1208 = vmul.f32 %v818, %v1015
        %v1209 = vmul.f32 %v818, %v1019
        %v1210 = vmul.f32 %v818, %v1023
        %v1211 = vmul.f32 %v818, %v1027
        %v1212 = vmul.f32 %v823, %v1015
        %v1213 = vmul.f32 %v823, %v1019
        %v1214 = vmul.f32 %v823, %v1023
        %v1215 = vmul.f32 %v823, %v1027
        %v1216 = vmul.f32 %v828, %v1015
        %v1217 = vmul.f32 %v828, %v1019
        %v1218 = vmul.f32 %v828, %v1023
        %v1219 = vmul.f32 %v828, %v1027
        %v1220 = vmul.f32 %v833, %v1015
        %v1221 = vmul.f32 %v833, %v1019
        %v1222 = vmul.f32 %v833, %v1023
        %v1223 = vmul.f32 %v833, %v1027
        %v1224 = vmul.f32 %v838, %v1015
        %v1225 = vmul.f32 %v838, %v1019
        %v1226 = vmul.f32 %v838, %v1023
        %v1227 = vmul.f32 %v838, %v1027
        %v1228 = vmul.f32 %v843, %v1015
        %v1229 = vmul.f32 %v843, %v1019
        %v1230 = vmul.f32 %v843, %v1023
        %v1231 = vmul.f32 %v843, %v1027
        %v1232 = vmul.f32 %v848, %v1015
        %v1233 = vmul.f32 %v848, %v1019
        %v1234 = vmul.f32 %v848, %v1023
        %v1235 = vmul.f32 %v848, %v1027
        %v1236 = vmul.f32 %v853, %v1015
        %v1237 = vmul.f32 %v853, %v1019
        %v1238 = vmul.f32 %v853, %v1023
        %v1239 = vmul.f32 %v853, %v1027
        %v1240 = vmul.f32 %v858, %v1015
        %v1241 = vmul.f32 %v858, %v1019
        %v1242 = vmul.f32 %v858, %v1023
        %v1243 = vmul.f32 %v858, %v1027
        %v1244 = vmul.f32 %v863, %v1015
        %v1245 = vmul.f32 %v863, %v1019
        %v1246 = vmul.f32 %v863, %v1023
        %v1247 = vmul.f32 %v863, %v1027
        %v1248 = vmul.f32 %v868, %v1015
        %v1249 = vmul.f32 %v868, %v1019
        %v1250 = vmul.f32 %v868, %v1023
        %v1251 = vmul.f32 %v868, %v1027
        %v1252 = vmul.f32 %v873, %v1015
        %v1253 = vmul.f32 %v873, %v1019
        %v1254 = vmul.f32 %v873, %v1023
        %v1255 = vmul.f32 %v873, %v1027
        %v1256 = vmul.f32 %v878, %v1015
        %v1257 = vmul.f32 %v878, %v1019
        %v1258 = vmul.f32 %v878, %v1023
        %v1259 = vmul.f32 %v878, %v1027
        %v1260 = vmul.f32 %v883, %v1015
        %v1261 = vmul.f32 %v883, %v1019
        %v1262 = vmul.f32 %v883, %v1023
        %v1263 = vmul.f32 %v883, %v1027
        %v1264 = vmul.f32 %v888, %v1015
        %v1265 = vmul.f32 %v888, %v1019
        %v1266 = vmul.f32 %v888, %v1023
        %v1267 = vmul.f32 %v888, %v1027
        %v1268 = vmul.f32 %v893, %v1015
        %v1269 = vmul.f32 %v893, %v1019
        %v1270 = vmul.f32 %v893, %v1023
        %v1271 = vmul.f32 %v893, %v1027
        %v1272 = vmul.f32 %v898, %v1015
        %v1273 = vmul.f32 %v898, %v1019
        %v1274 = vmul.f32 %v898, %v1023
        %v1275 = vmul.f32 %v898, %v1027
        %v1276 = vmul.f32 %v903, %v1015
        %v1277 = vmul.f32 %v903, %v1019
        %v1278 = vmul.f32 %v903, %v1023
        %v1279 = vmul.f32 %v903, %v1027
        %v1280 = vmul.f32 %v908, %v1015
        %v1281 = vmul.f32 %v908, %v1019
        %v1282 = vmul.f32 %v908, %v1023
        %v1283 = vmul.f32 %v908, %v1027
        %v1284 = vmul.f32 %v913, %v1015
        %v1285 = vmul.f32 %v913, %v1019
        %v1286 = vmul.f32 %v913, %v1023
        %v1287 = vmul.f32 %v913, %v1027
        %v1288 = vmul.f32 %v918, %v1015
        %v1289 = vmul.f32 %v918, %v1019
        %v1290 = vmul.f32 %v918, %v1023
        %v1291 = vmul.f32 %v918, %v1027
        %v1292 = vmul.f32 %v923, %v1015
        %v1293 = vmul.f32 %v923, %v1019
        %v1294 = vmul.f32 %v923, %v1023
        %v1295 = vmul.f32 %v923, %v1027
        %v1296 = vmul.f32 %v928, %v1015
        %v1297 = vmul.f32 %v928, %v1019
        %v1298 = vmul.f32 %v928, %v1023
        %v1299 = vmul.f32 %v928, %v1027
        %v1300 = vmul.f32 %v933, %v1015
        %v1301 = vmul.f32 %v933, %v1019
        %v1302 = vmul.f32 %v933, %v1023
        %v1303 = vmul.f32 %v933, %v1027
        %v1304 = vmul.f32 %v938, %v1015
        %v1305 = vmul.f32 %v938, %v1019
        %v1306 = vmul.f32 %v938, %v1023
        %v1307 = vmul.f32 %v938, %v1027
        %v1308 = vmul.f32 %v943, %v1015
        %v1309 = vmul.f32 %v943, %v1019
        %v1310 = vmul.f32 %v943, %v1023
        %v1311 = vmul.f32 %v943, %v1027
        %v1312 = vmul.f32 %v948, %v1015
        %v1313 = vmul.f32 %v948, %v1019
        %v1314 = vmul.f32 %v948, %v1023
        %v1315 = vmul.f32 %v948, %v1027
        %v1316 = vmul.f32 %v953, %v1015
        %v1317 = vmul.f32 %v953, %v1019
        %v1318 = vmul.f32 %v953, %v1023
        %v1319 = vmul.f32 %v953, %v1027
        %v1320 = vmul.f32 %v958, %v1015
        %v1321 = vmul.f32 %v958, %v1019
        %v1322 = vmul.f32 %v958, %v1023
        %v1323 = vmul.f32 %v958, %v1027
        %v1324 = vmul.f32 %v963, %v1015
        %v1325 = vmul.f32 %v963, %v1019
        %v1326 = vmul.f32 %v963, %v1023
        %v1327 = vmul.f32 %v963, %v1027
        %v1328 = vmul.f32 %v968, %v1015
        %v1329 = vmul.f32 %v968, %v1019
        %v1330 = vmul.f32 %v968, %v1023
        %v1331 = vmul.f32 %v968, %v1027
        %v1332 = vmul.f32 %v973, %v1015
        %v1333 = vmul.f32 %v973, %v1019
        %v1334 = vmul.f32 %v973, %v1023
        %v1335 = vmul.f32 %v973, %v1027
        %v1336 = vmul.f32 %v978, %v1015
        %v1337 = vmul.f32 %v978, %v1019
        %v1338 = vmul.f32 %v978, %v1023
        %v1339 = vmul.f32 %v978, %v1027
        %v1340 = vmul.f32 %v983, %v1015
        %v1341 = vmul.f32 %v983, %v1019
        %v1342 = vmul.f32 %v983, %v1023
        %v1343 = vmul.f32 %v983, %v1027
        %v1344 = vmul.f32 %v988, %v1015
        %v1345 = vmul.f32 %v988, %v1019
        %v1346 = vmul.f32 %v988, %v1023
        %v1347 = vmul.f32 %v988, %v1027
        %1348 = vset.pattern.permute.xlu0 1
        %1349 = vperm.xlu0 %1348, %v430
        %v1350 = vpop.permute.xlu0 %1349
        %1352 = vset.pattern.permute.xlu0 1
        %1353 = vperm.xlu0 %1352, %v431
        %v1354 = vpop.permute.xlu0 %1353
        %1356 = vset.pattern.permute.xlu0 1
        %1357 = vperm.xlu0 %1356, %v432
        %v1358 = vpop.permute.xlu0 %1357
        %1360 = vset.pattern.permute.xlu0 1
        %1361 = vperm.xlu0 %1360, %v433
        %v1362 = vpop.permute.xlu0 %1361
        %1364 = vset.pattern.permute.xlu0 1
        %1365 = vperm.xlu0 %1364, %v434
        %v1366 = vpop.permute.xlu0 %1365
        %1368 = vset.pattern.permute.xlu0 1
        %1369 = vperm.xlu0 %1368, %v435
        %v1370 = vpop.permute.xlu0 %1369
        %1372 = vset.pattern.permute.xlu0 1
        %1373 = vperm.xlu0 %1372, %v436
        %v1374 = vpop.permute.xlu0 %1373
        %1376 = vset.pattern.permute.xlu0 1
        %1377 = vperm.xlu0 %1376, %v437
        %v1378 = vpop.permute.xlu0 %1377
        %1380 = vset.pattern.permute.xlu0 1
        %1381 = vperm.xlu0 %1380, %v438
        %v1382 = vpop.permute.xlu0 %1381
        %1384 = vset.pattern.permute.xlu0 1
        %1385 = vperm.xlu0 %1384, %v439
        %v1386 = vpop.permute.xlu0 %1385
        %1388 = vset.pattern.permute.xlu0 1
        %1389 = vperm.xlu0 %1388, %v440
        %v1390 = vpop.permute.xlu0 %1389
        %1392 = vset.pattern.permute.xlu0 1
        %1393 = vperm.xlu0 %1392, %v441
        %v1394 = vpop.permute.xlu0 %1393
        %1396 = vset.pattern.permute.xlu0 1
        %1397 = vperm.xlu0 %1396, %v442
        %v1398 = vpop.permute.xlu0 %1397
        %1400 = vset.pattern.permute.xlu0 1
        %1401 = vperm.xlu0 %1400, %v443
        %v1402 = vpop.permute.xlu0 %1401
        %1404 = vset.pattern.permute.xlu0 1
        %1405 = vperm.xlu0 %1404, %v444
        %v1406 = vpop.permute.xlu0 %1405
        %1408 = vset.pattern.permute.xlu0 1
        %1409 = vperm.xlu0 %1408, %v445
        %v1410 = vpop.permute.xlu0 %1409
        %1412 = vset.pattern.permute.xlu0 1
        %1413 = vperm.xlu0 %1412, %v446
        %v1414 = vpop.permute.xlu0 %1413
        %1416 = vset.pattern.permute.xlu0 1
        %1417 = vperm.xlu0 %1416, %v447
        %v1418 = vpop.permute.xlu0 %1417
        %1420 = vset.pattern.permute.xlu0 1
        %1421 = vperm.xlu0 %1420, %v448
        %v1422 = vpop.permute.xlu0 %1421
        %1424 = vset.pattern.permute.xlu0 1
        %1425 = vperm.xlu0 %1424, %v449
        %v1426 = vpop.permute.xlu0 %1425
        %1428 = vset.pattern.permute.xlu0 1
        %1429 = vperm.xlu0 %1428, %v450
        %v1430 = vpop.permute.xlu0 %1429
        %1432 = vset.pattern.permute.xlu0 1
        %1433 = vperm.xlu0 %1432, %v451
        %v1434 = vpop.permute.xlu0 %1433
        %1436 = vset.pattern.permute.xlu0 1
        %1437 = vperm.xlu0 %1436, %v452
        %v1438 = vpop.permute.xlu0 %1437
        %1440 = vset.pattern.permute.xlu0 1
        %1441 = vperm.xlu0 %1440, %v453
        %v1442 = vpop.permute.xlu0 %1441
        %1444 = vset.pattern.permute.xlu0 1
        %1445 = vperm.xlu0 %1444, %v454
        %v1446 = vpop.permute.xlu0 %1445
        %1448 = vset.pattern.permute.xlu0 1
        %1449 = vperm.xlu0 %1448, %v455
        %v1450 = vpop.permute.xlu0 %1449
        %1452 = vset.pattern.permute.xlu0 1
        %1453 = vperm.xlu0 %1452, %v456
        %v1454 = vpop.permute.xlu0 %1453
        %1456 = vset.pattern.permute.xlu0 1
        %1457 = vperm.xlu0 %1456, %v457
        %v1458 = vpop.permute.xlu0 %1457
        %1460 = vset.pattern.permute.xlu0 1
        %1461 = vperm.xlu0 %1460, %v458
        %v1462 = vpop.permute.xlu0 %1461
        %1464 = vset.pattern.permute.xlu0 1
        %1465 = vperm.xlu0 %1464, %v459
        %v1466 = vpop.permute.xlu0 %1465
        %1468 = vset.pattern.permute.xlu0 1
        %1469 = vperm.xlu0 %1468, %v460
        %v1470 = vpop.permute.xlu0 %1469
        %1472 = vset.pattern.permute.xlu0 1
        %1473 = vperm.xlu0 %1472, %v461
        %v1474 = vpop.permute.xlu0 %1473
        %1476 = vset.pattern.permute.xlu0 1
        %1477 = vperm.xlu0 %1476, %v462
        %v1478 = vpop.permute.xlu0 %1477
        %1480 = vset.pattern.permute.xlu0 1
        %1481 = vperm.xlu0 %1480, %v463
        %v1482 = vpop.permute.xlu0 %1481
        %1484 = vset.pattern.permute.xlu0 1
        %1485 = vperm.xlu0 %1484, %v464
        %v1486 = vpop.permute.xlu0 %1485
        %1488 = vset.pattern.permute.xlu0 1
        %1489 = vperm.xlu0 %1488, %v465
        %v1490 = vpop.permute.xlu0 %1489
        %1492 = vset.pattern.permute.xlu0 1
        %1493 = vperm.xlu0 %1492, %v466
        %v1494 = vpop.permute.xlu0 %1493
        %1496 = vset.pattern.permute.xlu0 1
        %1497 = vperm.xlu0 %1496, %v467
        %v1498 = vpop.permute.xlu0 %1497
        %1500 = vset.pattern.permute.xlu0 1
        %1501 = vperm.xlu0 %1500, %v468
        %v1502 = vpop.permute.xlu0 %1501
        %1504 = vset.pattern.permute.xlu0 1
        %1505 = vperm.xlu0 %1504, %v469
        %v1506 = vpop.permute.xlu0 %1505
        %1508 = vset.pattern.permute.xlu0 1
        %1509 = vperm.xlu0 %1508, %v470
        %v1510 = vpop.permute.xlu0 %1509
        %1512 = vset.pattern.permute.xlu0 1
        %1513 = vperm.xlu0 %1512, %v471
        %v1514 = vpop.permute.xlu0 %1513
        %1516 = vset.pattern.permute.xlu0 1
        %1517 = vperm.xlu0 %1516, %v472
        %v1518 = vpop.permute.xlu0 %1517
        %1520 = vset.pattern.permute.xlu0 1
        %1521 = vperm.xlu0 %1520, %v473
        %v1522 = vpop.permute.xlu0 %1521
        %1524 = vset.pattern.permute.xlu0 1
        %1525 = vperm.xlu0 %1524, %v474
        %v1526 = vpop.permute.xlu0 %1525
        %1528 = vset.pattern.permute.xlu0 1
        %1529 = vperm.xlu0 %1528, %v475
        %v1530 = vpop.permute.xlu0 %1529
        %1532 = vset.pattern.permute.xlu0 1
        %1533 = vperm.xlu0 %1532, %v476
        %v1534 = vpop.permute.xlu0 %1533
        %1536 = vset.pattern.permute.xlu0 1
        %1537 = vperm.xlu0 %1536, %v477
        %v1538 = vpop.permute.xlu0 %1537
        %1540 = vset.pattern.permute.xlu0 1
        %1541 = vperm.xlu0 %1540, %v478
        %v1542 = vpop.permute.xlu0 %1541
        %1544 = vset.pattern.permute.xlu0 1
        %1545 = vperm.xlu0 %1544, %v479
        %v1546 = vpop.permute.xlu0 %1545
        %1548 = vset.pattern.permute.xlu0 1
        %1549 = vperm.xlu0 %1548, %v480
        %v1550 = vpop.permute.xlu0 %1549
        %1552 = vset.pattern.permute.xlu0 1
        %1553 = vperm.xlu0 %1552, %v481
        %v1554 = vpop.permute.xlu0 %1553
        %1556 = vset.pattern.permute.xlu0 1
        %1557 = vperm.xlu0 %1556, %v482
        %v1558 = vpop.permute.xlu0 %1557
        %1560 = vset.pattern.permute.xlu0 1
        %1561 = vperm.xlu0 %1560, %v483
        %v1562 = vpop.permute.xlu0 %1561
        %1564 = vset.pattern.permute.xlu0 1
        %1565 = vperm.xlu0 %1564, %v484
        %v1566 = vpop.permute.xlu0 %1565
        %1568 = vset.pattern.permute.xlu0 1
        %1569 = vperm.xlu0 %1568, %v485
        %v1570 = vpop.permute.xlu0 %1569
        %1572 = vset.pattern.permute.xlu0 1
        %1573 = vperm.xlu0 %1572, %v486
        %v1574 = vpop.permute.xlu0 %1573
        %1576 = vset.pattern.permute.xlu0 1
        %1577 = vperm.xlu0 %1576, %v487
        %v1578 = vpop.permute.xlu0 %1577
        %1580 = vset.pattern.permute.xlu0 1
        %1581 = vperm.xlu0 %1580, %v488
        %v1582 = vpop.permute.xlu0 %1581
        %1584 = vset.pattern.permute.xlu0 1
        %1585 = vperm.xlu0 %1584, %v489
        %v1586 = vpop.permute.xlu0 %1585
        %1588 = vset.pattern.permute.xlu0 1
        %1589 = vperm.xlu0 %1588, %v490
        %v1590 = vpop.permute.xlu0 %1589
        %1592 = vset.pattern.permute.xlu0 1
        %1593 = vperm.xlu0 %1592, %v491
        %v1594 = vpop.permute.xlu0 %1593
        %1596 = vset.pattern.permute.xlu0 1
        %1597 = vperm.xlu0 %1596, %v492
        %v1598 = vpop.permute.xlu0 %1597
        %1600 = vset.pattern.permute.xlu0 1
        %1601 = vperm.xlu0 %1600, %v493
        %v1602 = vpop.permute.xlu0 %1601
        %1604 = vset.pattern.permute.xlu0 1
        %1605 = vperm.xlu0 %1604, %v494
        %v1606 = vpop.permute.xlu0 %1605
        %1608 = vset.pattern.permute.xlu0 1
        %1609 = vperm.xlu0 %1608, %v495
        %v1610 = vpop.permute.xlu0 %1609
        %1612 = vset.pattern.permute.xlu0 1
        %1613 = vperm.xlu0 %1612, %v496
        %v1614 = vpop.permute.xlu0 %1613
        %1616 = vset.pattern.permute.xlu0 1
        %1617 = vperm.xlu0 %1616, %v497
        %v1618 = vpop.permute.xlu0 %1617
        %1620 = vset.pattern.permute.xlu0 1
        %1621 = vperm.xlu0 %1620, %v498
        %v1622 = vpop.permute.xlu0 %1621
        %1624 = vset.pattern.permute.xlu0 1
        %1625 = vperm.xlu0 %1624, %v499
        %v1626 = vpop.permute.xlu0 %1625
        %1628 = vset.pattern.permute.xlu0 1
        %1629 = vperm.xlu0 %1628, %v500
        %v1630 = vpop.permute.xlu0 %1629
        %1632 = vset.pattern.permute.xlu0 1
        %1633 = vperm.xlu0 %1632, %v501
        %v1634 = vpop.permute.xlu0 %1633
        %1636 = vset.pattern.permute.xlu0 1
        %1637 = vperm.xlu0 %1636, %v502
        %v1638 = vpop.permute.xlu0 %1637
        %1640 = vset.pattern.permute.xlu0 1
        %1641 = vperm.xlu0 %1640, %v503
        %v1642 = vpop.permute.xlu0 %1641
        %1644 = vset.pattern.permute.xlu0 1
        %1645 = vperm.xlu0 %1644, %v504
        %v1646 = vpop.permute.xlu0 %1645
        %1648 = vset.pattern.permute.xlu0 1
        %1649 = vperm.xlu0 %1648, %v505
        %v1650 = vpop.permute.xlu0 %1649
        %1652 = vset.pattern.permute.xlu0 1
        %1653 = vperm.xlu0 %1652, %v506
        %v1654 = vpop.permute.xlu0 %1653
        %1656 = vset.pattern.permute.xlu0 1
        %1657 = vperm.xlu0 %1656, %v507
        %v1658 = vpop.permute.xlu0 %1657
        %1660 = vset.pattern.permute.xlu0 1
        %1661 = vperm.xlu0 %1660, %v508
        %v1662 = vpop.permute.xlu0 %1661
        %1664 = vset.pattern.permute.xlu0 1
        %1665 = vperm.xlu0 %1664, %v509
        %v1666 = vpop.permute.xlu0 %1665
        %v1668 = vlaneseq
        %v1669 = vshrl.u32 %v1668, 7
        %v1670 = vsub.s32 1, %v1669
        %v1671 = vrot.slane %v428, %v1670
        %v1672 = vlaneseq
        %v1673 = vshrl.u32 %v1672, 7
        %v1674 = vsub.s32 5, %v1673
        %v1675 = vrot.slane %v428, %v1674
        %v1676 = vlaneseq
        %v1677 = vshrl.u32 %v1676, 7
        %v1678 = vsub.s32 1, %v1677
        %v1679 = vrot.slane %v429, %v1678
        %v1680 = vlaneseq
        %v1681 = vshrl.u32 %v1680, 7
        %v1682 = vsub.s32 5, %v1681
        %v1683 = vrot.slane %v429, %v1682
        %v1688 = vlaneseq
        %v1689 = vshrl.u32 %v1688, 7
        %v1690 = vsub.s32 1, %v1689
        %v1691 = vrot.slane %v1671, %v1690
        %v1692 = vlaneseq
        %v1693 = vshrl.u32 %v1692, 7
        %v1694 = vsub.s32 1, %v1693
        %v1695 = vrot.slane %v1675, %v1694
        %v1696 = vlaneseq
        %v1697 = vshrl.u32 %v1696, 7
        %v1698 = vsub.s32 1, %v1697
        %v1699 = vrot.slane %v1679, %v1698
        %v1700 = vlaneseq
        %v1701 = vshrl.u32 %v1700, 7
        %v1702 = vsub.s32 1, %v1701
        %v1703 = vrot.slane %v1683, %v1702
        %v1704 = vmul.f32 %v1350, %v1691
        %v1705 = vmul.f32 %v1350, %v1695
        %v1706 = vmul.f32 %v1350, %v1699
        %v1707 = vmul.f32 %v1350, %v1703
        %v1708 = vmul.f32 %v1354, %v1691
        %v1709 = vmul.f32 %v1354, %v1695
        %v1710 = vmul.f32 %v1354, %v1699
        %v1711 = vmul.f32 %v1354, %v1703
        %v1712 = vmul.f32 %v1358, %v1691
        %v1713 = vmul.f32 %v1358, %v1695
        %v1714 = vmul.f32 %v1358, %v1699
        %v1715 = vmul.f32 %v1358, %v1703
        %v1716 = vmul.f32 %v1362, %v1691
        %v1717 = vmul.f32 %v1362, %v1695
        %v1718 = vmul.f32 %v1362, %v1699
        %v1719 = vmul.f32 %v1362, %v1703
        %v1720 = vmul.f32 %v1366, %v1691
        %v1721 = vmul.f32 %v1366, %v1695
        %v1722 = vmul.f32 %v1366, %v1699
        %v1723 = vmul.f32 %v1366, %v1703
        %v1724 = vmul.f32 %v1370, %v1691
        %v1725 = vmul.f32 %v1370, %v1695
        %v1726 = vmul.f32 %v1370, %v1699
        %v1727 = vmul.f32 %v1370, %v1703
        %v1728 = vmul.f32 %v1374, %v1691
        %v1729 = vmul.f32 %v1374, %v1695
        %v1730 = vmul.f32 %v1374, %v1699
        %v1731 = vmul.f32 %v1374, %v1703
        %v1732 = vmul.f32 %v1378, %v1691
        %v1733 = vmul.f32 %v1378, %v1695
        %v1734 = vmul.f32 %v1378, %v1699
        %v1735 = vmul.f32 %v1378, %v1703
        %v1736 = vmul.f32 %v1382, %v1691
        %v1737 = vmul.f32 %v1382, %v1695
        %v1738 = vmul.f32 %v1382, %v1699
        %v1739 = vmul.f32 %v1382, %v1703
        %v1740 = vmul.f32 %v1386, %v1691
        %v1741 = vmul.f32 %v1386, %v1695
        %v1742 = vmul.f32 %v1386, %v1699
        %v1743 = vmul.f32 %v1386, %v1703
        %v1744 = vmul.f32 %v1390, %v1691
        %v1745 = vmul.f32 %v1390, %v1695
        %v1746 = vmul.f32 %v1390, %v1699
        %v1747 = vmul.f32 %v1390, %v1703
        %v1748 = vmul.f32 %v1394, %v1691
        %v1749 = vmul.f32 %v1394, %v1695
        %v1750 = vmul.f32 %v1394, %v1699
        %v1751 = vmul.f32 %v1394, %v1703
        %v1752 = vmul.f32 %v1398, %v1691
        %v1753 = vmul.f32 %v1398, %v1695
        %v1754 = vmul.f32 %v1398, %v1699
        %v1755 = vmul.f32 %v1398, %v1703
        %v1756 = vmul.f32 %v1402, %v1691
        %v1757 = vmul.f32 %v1402, %v1695
        %v1758 = vmul.f32 %v1402, %v1699
        %v1759 = vmul.f32 %v1402, %v1703
        %v1760 = vmul.f32 %v1406, %v1691
        %v1761 = vmul.f32 %v1406, %v1695
        %v1762 = vmul.f32 %v1406, %v1699
        %v1763 = vmul.f32 %v1406, %v1703
        %v1764 = vmul.f32 %v1410, %v1691
        %v1765 = vmul.f32 %v1410, %v1695
        %v1766 = vmul.f32 %v1410, %v1699
        %v1767 = vmul.f32 %v1410, %v1703
        %v1768 = vmul.f32 %v1414, %v1691
        %v1769 = vmul.f32 %v1414, %v1695
        %v1770 = vmul.f32 %v1414, %v1699
        %v1771 = vmul.f32 %v1414, %v1703
        %v1772 = vmul.f32 %v1418, %v1691
        %v1773 = vmul.f32 %v1418, %v1695
        %v1774 = vmul.f32 %v1418, %v1699
        %v1775 = vmul.f32 %v1418, %v1703
        %v1776 = vmul.f32 %v1422, %v1691
        %v1777 = vmul.f32 %v1422, %v1695
        %v1778 = vmul.f32 %v1422, %v1699
        %v1779 = vmul.f32 %v1422, %v1703
        %v1780 = vmul.f32 %v1426, %v1691
        %v1781 = vmul.f32 %v1426, %v1695
        %v1782 = vmul.f32 %v1426, %v1699
        %v1783 = vmul.f32 %v1426, %v1703
        %v1784 = vmul.f32 %v1430, %v1691
        %v1785 = vmul.f32 %v1430, %v1695
        %v1786 = vmul.f32 %v1430, %v1699
        %v1787 = vmul.f32 %v1430, %v1703
        %v1788 = vmul.f32 %v1434, %v1691
        %v1789 = vmul.f32 %v1434, %v1695
        %v1790 = vmul.f32 %v1434, %v1699
        %v1791 = vmul.f32 %v1434, %v1703
        %v1792 = vmul.f32 %v1438, %v1691
        %v1793 = vmul.f32 %v1438, %v1695
        %v1794 = vmul.f32 %v1438, %v1699
        %v1795 = vmul.f32 %v1438, %v1703
        %v1796 = vmul.f32 %v1442, %v1691
        %v1797 = vmul.f32 %v1442, %v1695
        %v1798 = vmul.f32 %v1442, %v1699
        %v1799 = vmul.f32 %v1442, %v1703
        %v1800 = vmul.f32 %v1446, %v1691
        %v1801 = vmul.f32 %v1446, %v1695
        %v1802 = vmul.f32 %v1446, %v1699
        %v1803 = vmul.f32 %v1446, %v1703
        %v1804 = vmul.f32 %v1450, %v1691
        %v1805 = vmul.f32 %v1450, %v1695
        %v1806 = vmul.f32 %v1450, %v1699
        %v1807 = vmul.f32 %v1450, %v1703
        %v1808 = vmul.f32 %v1454, %v1691
        %v1809 = vmul.f32 %v1454, %v1695
        %v1810 = vmul.f32 %v1454, %v1699
        %v1811 = vmul.f32 %v1454, %v1703
        %v1812 = vmul.f32 %v1458, %v1691
        %v1813 = vmul.f32 %v1458, %v1695
        %v1814 = vmul.f32 %v1458, %v1699
        %v1815 = vmul.f32 %v1458, %v1703
        %v1816 = vmul.f32 %v1462, %v1691
        %v1817 = vmul.f32 %v1462, %v1695
        %v1818 = vmul.f32 %v1462, %v1699
        %v1819 = vmul.f32 %v1462, %v1703
        %v1820 = vmul.f32 %v1466, %v1691
        %v1821 = vmul.f32 %v1466, %v1695
        %v1822 = vmul.f32 %v1466, %v1699
        %v1823 = vmul.f32 %v1466, %v1703
        %v1824 = vmul.f32 %v1470, %v1691
        %v1825 = vmul.f32 %v1470, %v1695
        %v1826 = vmul.f32 %v1470, %v1699
        %v1827 = vmul.f32 %v1470, %v1703
        %v1828 = vmul.f32 %v1474, %v1691
        %v1829 = vmul.f32 %v1474, %v1695
        %v1830 = vmul.f32 %v1474, %v1699
        %v1831 = vmul.f32 %v1474, %v1703
        %v1832 = vmul.f32 %v1478, %v1691
        %v1833 = vmul.f32 %v1478, %v1695
        %v1834 = vmul.f32 %v1478, %v1699
        %v1835 = vmul.f32 %v1478, %v1703
        %v1836 = vmul.f32 %v1482, %v1691
        %v1837 = vmul.f32 %v1482, %v1695
        %v1838 = vmul.f32 %v1482, %v1699
        %v1839 = vmul.f32 %v1482, %v1703
        %v1840 = vmul.f32 %v1486, %v1691
        %v1841 = vmul.f32 %v1486, %v1695
        %v1842 = vmul.f32 %v1486, %v1699
        %v1843 = vmul.f32 %v1486, %v1703
        %v1844 = vmul.f32 %v1490, %v1691
        %v1845 = vmul.f32 %v1490, %v1695
        %v1846 = vmul.f32 %v1490, %v1699
        %v1847 = vmul.f32 %v1490, %v1703
        %v1848 = vmul.f32 %v1494, %v1691
        %v1849 = vmul.f32 %v1494, %v1695
        %v1850 = vmul.f32 %v1494, %v1699
        %v1851 = vmul.f32 %v1494, %v1703
        %v1852 = vmul.f32 %v1498, %v1691
        %v1853 = vmul.f32 %v1498, %v1695
        %v1854 = vmul.f32 %v1498, %v1699
        %v1855 = vmul.f32 %v1498, %v1703
        %v1856 = vmul.f32 %v1502, %v1691
        %v1857 = vmul.f32 %v1502, %v1695
        %v1858 = vmul.f32 %v1502, %v1699
        %v1859 = vmul.f32 %v1502, %v1703
        %v1860 = vmul.f32 %v1506, %v1691
        %v1861 = vmul.f32 %v1506, %v1695
        %v1862 = vmul.f32 %v1506, %v1699
        %v1863 = vmul.f32 %v1506, %v1703
        %v1864 = vmul.f32 %v1510, %v1691
        %v1865 = vmul.f32 %v1510, %v1695
        %v1866 = vmul.f32 %v1510, %v1699
        %v1867 = vmul.f32 %v1510, %v1703
        %v1868 = vmul.f32 %v1514, %v1691
        %v1869 = vmul.f32 %v1514, %v1695
        %v1870 = vmul.f32 %v1514, %v1699
        %v1871 = vmul.f32 %v1514, %v1703
        %v1872 = vmul.f32 %v1518, %v1691
        %v1873 = vmul.f32 %v1518, %v1695
        %v1874 = vmul.f32 %v1518, %v1699
        %v1875 = vmul.f32 %v1518, %v1703
        %v1876 = vmul.f32 %v1522, %v1691
        %v1877 = vmul.f32 %v1522, %v1695
        %v1878 = vmul.f32 %v1522, %v1699
        %v1879 = vmul.f32 %v1522, %v1703
        %v1880 = vmul.f32 %v1526, %v1691
        %v1881 = vmul.f32 %v1526, %v1695
        %v1882 = vmul.f32 %v1526, %v1699
        %v1883 = vmul.f32 %v1526, %v1703
        %v1884 = vmul.f32 %v1530, %v1691
        %v1885 = vmul.f32 %v1530, %v1695
        %v1886 = vmul.f32 %v1530, %v1699
        %v1887 = vmul.f32 %v1530, %v1703
        %v1888 = vmul.f32 %v1534, %v1691
        %v1889 = vmul.f32 %v1534, %v1695
        %v1890 = vmul.f32 %v1534, %v1699
        %v1891 = vmul.f32 %v1534, %v1703
        %v1892 = vmul.f32 %v1538, %v1691
        %v1893 = vmul.f32 %v1538, %v1695
        %v1894 = vmul.f32 %v1538, %v1699
        %v1895 = vmul.f32 %v1538, %v1703
        %v1896 = vmul.f32 %v1542, %v1691
        %v1897 = vmul.f32 %v1542, %v1695
        %v1898 = vmul.f32 %v1542, %v1699
        %v1899 = vmul.f32 %v1542, %v1703
        %v1900 = vmul.f32 %v1546, %v1691
        %v1901 = vmul.f32 %v1546, %v1695
        %v1902 = vmul.f32 %v1546, %v1699
        %v1903 = vmul.f32 %v1546, %v1703
        %v1904 = vmul.f32 %v1550, %v1691
        %v1905 = vmul.f32 %v1550, %v1695
        %v1906 = vmul.f32 %v1550, %v1699
        %v1907 = vmul.f32 %v1550, %v1703
        %v1908 = vmul.f32 %v1554, %v1691
        %v1909 = vmul.f32 %v1554, %v1695
        %v1910 = vmul.f32 %v1554, %v1699
        %v1911 = vmul.f32 %v1554, %v1703
        %v1912 = vmul.f32 %v1558, %v1691
        %v1913 = vmul.f32 %v1558, %v1695
        %v1914 = vmul.f32 %v1558, %v1699
        %v1915 = vmul.f32 %v1558, %v1703
        %v1916 = vmul.f32 %v1562, %v1691
        %v1917 = vmul.f32 %v1562, %v1695
        %v1918 = vmul.f32 %v1562, %v1699
        %v1919 = vmul.f32 %v1562, %v1703
        %v1920 = vmul.f32 %v1566, %v1691
        %v1921 = vmul.f32 %v1566, %v1695
        %v1922 = vmul.f32 %v1566, %v1699
        %v1923 = vmul.f32 %v1566, %v1703
        %v1924 = vmul.f32 %v1570, %v1691
        %v1925 = vmul.f32 %v1570, %v1695
        %v1926 = vmul.f32 %v1570, %v1699
        %v1927 = vmul.f32 %v1570, %v1703
        %v1928 = vmul.f32 %v1574, %v1691
        %v1929 = vmul.f32 %v1574, %v1695
        %v1930 = vmul.f32 %v1574, %v1699
        %v1931 = vmul.f32 %v1574, %v1703
        %v1932 = vmul.f32 %v1578, %v1691
        %v1933 = vmul.f32 %v1578, %v1695
        %v1934 = vmul.f32 %v1578, %v1699
        %v1935 = vmul.f32 %v1578, %v1703
        %v1936 = vmul.f32 %v1582, %v1691
        %v1937 = vmul.f32 %v1582, %v1695
        %v1938 = vmul.f32 %v1582, %v1699
        %v1939 = vmul.f32 %v1582, %v1703
        %v1940 = vmul.f32 %v1586, %v1691
        %v1941 = vmul.f32 %v1586, %v1695
        %v1942 = vmul.f32 %v1586, %v1699
        %v1943 = vmul.f32 %v1586, %v1703
        %v1944 = vmul.f32 %v1590, %v1691
        %v1945 = vmul.f32 %v1590, %v1695
        %v1946 = vmul.f32 %v1590, %v1699
        %v1947 = vmul.f32 %v1590, %v1703
        %v1948 = vmul.f32 %v1594, %v1691
        %v1949 = vmul.f32 %v1594, %v1695
        %v1950 = vmul.f32 %v1594, %v1699
        %v1951 = vmul.f32 %v1594, %v1703
        %v1952 = vmul.f32 %v1598, %v1691
        %v1953 = vmul.f32 %v1598, %v1695
        %v1954 = vmul.f32 %v1598, %v1699
        %v1955 = vmul.f32 %v1598, %v1703
        %v1956 = vmul.f32 %v1602, %v1691
        %v1957 = vmul.f32 %v1602, %v1695
        %v1958 = vmul.f32 %v1602, %v1699
        %v1959 = vmul.f32 %v1602, %v1703
        %v1960 = vmul.f32 %v1606, %v1691
        %v1961 = vmul.f32 %v1606, %v1695
        %v1962 = vmul.f32 %v1606, %v1699
        %v1963 = vmul.f32 %v1606, %v1703
        %v1964 = vmul.f32 %v1610, %v1691
        %v1965 = vmul.f32 %v1610, %v1695
        %v1966 = vmul.f32 %v1610, %v1699
        %v1967 = vmul.f32 %v1610, %v1703
        %v1968 = vmul.f32 %v1614, %v1691
        %v1969 = vmul.f32 %v1614, %v1695
        %v1970 = vmul.f32 %v1614, %v1699
        %v1971 = vmul.f32 %v1614, %v1703
        %v1972 = vmul.f32 %v1618, %v1691
        %v1973 = vmul.f32 %v1618, %v1695
        %v1974 = vmul.f32 %v1618, %v1699
        %v1975 = vmul.f32 %v1618, %v1703
        %v1976 = vmul.f32 %v1622, %v1691
        %v1977 = vmul.f32 %v1622, %v1695
        %v1978 = vmul.f32 %v1622, %v1699
        %v1979 = vmul.f32 %v1622, %v1703
        %v1980 = vmul.f32 %v1626, %v1691
        %v1981 = vmul.f32 %v1626, %v1695
        %v1982 = vmul.f32 %v1626, %v1699
        %v1983 = vmul.f32 %v1626, %v1703
        %v1984 = vmul.f32 %v1630, %v1691
        %v1985 = vmul.f32 %v1630, %v1695
        %v1986 = vmul.f32 %v1630, %v1699
        %v1987 = vmul.f32 %v1630, %v1703
        %v1988 = vmul.f32 %v1634, %v1691
        %v1989 = vmul.f32 %v1634, %v1695
        %v1990 = vmul.f32 %v1634, %v1699
        %v1991 = vmul.f32 %v1634, %v1703
        %v1992 = vmul.f32 %v1638, %v1691
        %v1993 = vmul.f32 %v1638, %v1695
        %v1994 = vmul.f32 %v1638, %v1699
        %v1995 = vmul.f32 %v1638, %v1703
        %v1996 = vmul.f32 %v1642, %v1691
        %v1997 = vmul.f32 %v1642, %v1695
        %v1998 = vmul.f32 %v1642, %v1699
        %v1999 = vmul.f32 %v1642, %v1703
        %v2000 = vmul.f32 %v1646, %v1691
        %v2001 = vmul.f32 %v1646, %v1695
        %v2002 = vmul.f32 %v1646, %v1699
        %v2003 = vmul.f32 %v1646, %v1703
        %v2004 = vmul.f32 %v1650, %v1691
        %v2005 = vmul.f32 %v1650, %v1695
        %v2006 = vmul.f32 %v1650, %v1699
        %v2007 = vmul.f32 %v1650, %v1703
        %v2008 = vmul.f32 %v1654, %v1691
        %v2009 = vmul.f32 %v1654, %v1695
        %v2010 = vmul.f32 %v1654, %v1699
        %v2011 = vmul.f32 %v1654, %v1703
        %v2012 = vmul.f32 %v1658, %v1691
        %v2013 = vmul.f32 %v1658, %v1695
        %v2014 = vmul.f32 %v1658, %v1699
        %v2015 = vmul.f32 %v1658, %v1703
        %v2016 = vmul.f32 %v1662, %v1691
        %v2017 = vmul.f32 %v1662, %v1695
        %v2018 = vmul.f32 %v1662, %v1699
        %v2019 = vmul.f32 %v1662, %v1703
        %v2020 = vmul.f32 %v1666, %v1691
        %v2021 = vmul.f32 %v1666, %v1695
        %v2022 = vmul.f32 %v1666, %v1699
        %v2023 = vmul.f32 %v1666, %v1703
        %v2024 = vadd.f32 %v1028, %v1704
        %v2025 = vadd.f32 %v1029, %v1705
        %v2026 = vadd.f32 %v1030, %v1706
        %v2027 = vadd.f32 %v1031, %v1707
        %v2028 = vadd.f32 %v1032, %v1708
        %v2029 = vadd.f32 %v1033, %v1709
        %v2030 = vadd.f32 %v1034, %v1710
        %v2031 = vadd.f32 %v1035, %v1711
        %v2032 = vadd.f32 %v1036, %v1712
        %v2033 = vadd.f32 %v1037, %v1713
        %v2034 = vadd.f32 %v1038, %v1714
        %v2035 = vadd.f32 %v1039, %v1715
        %v2036 = vadd.f32 %v1040, %v1716
        %v2037 = vadd.f32 %v1041, %v1717
        %v2038 = vadd.f32 %v1042, %v1718
        %v2039 = vadd.f32 %v1043, %v1719
        %v2040 = vadd.f32 %v1044, %v1720
        %v2041 = vadd.f32 %v1045, %v1721
        %v2042 = vadd.f32 %v1046, %v1722
        %v2043 = vadd.f32 %v1047, %v1723
        %v2044 = vadd.f32 %v1048, %v1724
        %v2045 = vadd.f32 %v1049, %v1725
        %v2046 = vadd.f32 %v1050, %v1726
        %v2047 = vadd.f32 %v1051, %v1727
        %v2048 = vadd.f32 %v1052, %v1728
        %v2049 = vadd.f32 %v1053, %v1729
        %v2050 = vadd.f32 %v1054, %v1730
        %v2051 = vadd.f32 %v1055, %v1731
        %v2052 = vadd.f32 %v1056, %v1732
        %v2053 = vadd.f32 %v1057, %v1733
        %v2054 = vadd.f32 %v1058, %v1734
        %v2055 = vadd.f32 %v1059, %v1735
        %v2056 = vadd.f32 %v1060, %v1736
        %v2057 = vadd.f32 %v1061, %v1737
        %v2058 = vadd.f32 %v1062, %v1738
        %v2059 = vadd.f32 %v1063, %v1739
        %v2060 = vadd.f32 %v1064, %v1740
        %v2061 = vadd.f32 %v1065, %v1741
        %v2062 = vadd.f32 %v1066, %v1742
        %v2063 = vadd.f32 %v1067, %v1743
        %v2064 = vadd.f32 %v1068, %v1744
        %v2065 = vadd.f32 %v1069, %v1745
        %v2066 = vadd.f32 %v1070, %v1746
        %v2067 = vadd.f32 %v1071, %v1747
        %v2068 = vadd.f32 %v1072, %v1748
        %v2069 = vadd.f32 %v1073, %v1749
        %v2070 = vadd.f32 %v1074, %v1750
        %v2071 = vadd.f32 %v1075, %v1751
        %v2072 = vadd.f32 %v1076, %v1752
        %v2073 = vadd.f32 %v1077, %v1753
        %v2074 = vadd.f32 %v1078, %v1754
        %v2075 = vadd.f32 %v1079, %v1755
        %v2076 = vadd.f32 %v1080, %v1756
        %v2077 = vadd.f32 %v1081, %v1757
        %v2078 = vadd.f32 %v1082, %v1758
        %v2079 = vadd.f32 %v1083, %v1759
        %v2080 = vadd.f32 %v1084, %v1760
        %v2081 = vadd.f32 %v1085, %v1761
        %v2082 = vadd.f32 %v1086, %v1762
        %v2083 = vadd.f32 %v1087, %v1763
        %v2084 = vadd.f32 %v1088, %v1764
        %v2085 = vadd.f32 %v1089, %v1765
        %v2086 = vadd.f32 %v1090, %v1766
        %v2087 = vadd.f32 %v1091, %v1767
        %v2088 = vadd.f32 %v1092, %v1768
        %v2089 = vadd.f32 %v1093, %v1769
        %v2090 = vadd.f32 %v1094, %v1770
        %v2091 = vadd.f32 %v1095, %v1771
        %v2092 = vadd.f32 %v1096, %v1772
        %v2093 = vadd.f32 %v1097, %v1773
        %v2094 = vadd.f32 %v1098, %v1774
        %v2095 = vadd.f32 %v1099, %v1775
        %v2096 = vadd.f32 %v1100, %v1776
        %v2097 = vadd.f32 %v1101, %v1777
        %v2098 = vadd.f32 %v1102, %v1778
        %v2099 = vadd.f32 %v1103, %v1779
        %v2100 = vadd.f32 %v1104, %v1780
        %v2101 = vadd.f32 %v1105, %v1781
        %v2102 = vadd.f32 %v1106, %v1782
        %v2103 = vadd.f32 %v1107, %v1783
        %v2104 = vadd.f32 %v1108, %v1784
        %v2105 = vadd.f32 %v1109, %v1785
        %v2106 = vadd.f32 %v1110, %v1786
        %v2107 = vadd.f32 %v1111, %v1787
        %v2108 = vadd.f32 %v1112, %v1788
        %v2109 = vadd.f32 %v1113, %v1789
        %v2110 = vadd.f32 %v1114, %v1790
        %v2111 = vadd.f32 %v1115, %v1791
        %v2112 = vadd.f32 %v1116, %v1792
        %v2113 = vadd.f32 %v1117, %v1793
        %v2114 = vadd.f32 %v1118, %v1794
        %v2115 = vadd.f32 %v1119, %v1795
        %v2116 = vadd.f32 %v1120, %v1796
        %v2117 = vadd.f32 %v1121, %v1797
        %v2118 = vadd.f32 %v1122, %v1798
        %v2119 = vadd.f32 %v1123, %v1799
        %v2120 = vadd.f32 %v1124, %v1800
        %v2121 = vadd.f32 %v1125, %v1801
        %v2122 = vadd.f32 %v1126, %v1802
        %v2123 = vadd.f32 %v1127, %v1803
        %v2124 = vadd.f32 %v1128, %v1804
        %v2125 = vadd.f32 %v1129, %v1805
        %v2126 = vadd.f32 %v1130, %v1806
        %v2127 = vadd.f32 %v1131, %v1807
        %v2128 = vadd.f32 %v1132, %v1808
        %v2129 = vadd.f32 %v1133, %v1809
        %v2130 = vadd.f32 %v1134, %v1810
        %v2131 = vadd.f32 %v1135, %v1811
        %v2132 = vadd.f32 %v1136, %v1812
        %v2133 = vadd.f32 %v1137, %v1813
        %v2134 = vadd.f32 %v1138, %v1814
        %v2135 = vadd.f32 %v1139, %v1815
        %v2136 = vadd.f32 %v1140, %v1816
        %v2137 = vadd.f32 %v1141, %v1817
        %v2138 = vadd.f32 %v1142, %v1818
        %v2139 = vadd.f32 %v1143, %v1819
        %v2140 = vadd.f32 %v1144, %v1820
        %v2141 = vadd.f32 %v1145, %v1821
        %v2142 = vadd.f32 %v1146, %v1822
        %v2143 = vadd.f32 %v1147, %v1823
        %v2144 = vadd.f32 %v1148, %v1824
        %v2145 = vadd.f32 %v1149, %v1825
        %v2146 = vadd.f32 %v1150, %v1826
        %v2147 = vadd.f32 %v1151, %v1827
        %v2148 = vadd.f32 %v1152, %v1828
        %v2149 = vadd.f32 %v1153, %v1829
        %v2150 = vadd.f32 %v1154, %v1830
        %v2151 = vadd.f32 %v1155, %v1831
        %v2152 = vadd.f32 %v1156, %v1832
        %v2153 = vadd.f32 %v1157, %v1833
        %v2154 = vadd.f32 %v1158, %v1834
        %v2155 = vadd.f32 %v1159, %v1835
        %v2156 = vadd.f32 %v1160, %v1836
        %v2157 = vadd.f32 %v1161, %v1837
        %v2158 = vadd.f32 %v1162, %v1838
        %v2159 = vadd.f32 %v1163, %v1839
        %v2160 = vadd.f32 %v1164, %v1840
        %v2161 = vadd.f32 %v1165, %v1841
        %v2162 = vadd.f32 %v1166, %v1842
        %v2163 = vadd.f32 %v1167, %v1843
        %v2164 = vadd.f32 %v1168, %v1844
        %v2165 = vadd.f32 %v1169, %v1845
        %v2166 = vadd.f32 %v1170, %v1846
        %v2167 = vadd.f32 %v1171, %v1847
        %v2168 = vadd.f32 %v1172, %v1848
        %v2169 = vadd.f32 %v1173, %v1849
        %v2170 = vadd.f32 %v1174, %v1850
        %v2171 = vadd.f32 %v1175, %v1851
        %v2172 = vadd.f32 %v1176, %v1852
        %v2173 = vadd.f32 %v1177, %v1853
        %v2174 = vadd.f32 %v1178, %v1854
        %v2175 = vadd.f32 %v1179, %v1855
        %v2176 = vadd.f32 %v1180, %v1856
        %v2177 = vadd.f32 %v1181, %v1857
        %v2178 = vadd.f32 %v1182, %v1858
        %v2179 = vadd.f32 %v1183, %v1859
        %v2180 = vadd.f32 %v1184, %v1860
        %v2181 = vadd.f32 %v1185, %v1861
        %v2182 = vadd.f32 %v1186, %v1862
        %v2183 = vadd.f32 %v1187, %v1863
        %v2184 = vadd.f32 %v1188, %v1864
        %v2185 = vadd.f32 %v1189, %v1865
        %v2186 = vadd.f32 %v1190, %v1866
        %v2187 = vadd.f32 %v1191, %v1867
        %v2188 = vadd.f32 %v1192, %v1868
        %v2189 = vadd.f32 %v1193, %v1869
        %v2190 = vadd.f32 %v1194, %v1870
        %v2191 = vadd.f32 %v1195, %v1871
        %v2192 = vadd.f32 %v1196, %v1872
        %v2193 = vadd.f32 %v1197, %v1873
        %v2194 = vadd.f32 %v1198, %v1874
        %v2195 = vadd.f32 %v1199, %v1875
        %v2196 = vadd.f32 %v1200, %v1876
        %v2197 = vadd.f32 %v1201, %v1877
        %v2198 = vadd.f32 %v1202, %v1878
        %v2199 = vadd.f32 %v1203, %v1879
        %v2200 = vadd.f32 %v1204, %v1880
        %v2201 = vadd.f32 %v1205, %v1881
        %v2202 = vadd.f32 %v1206, %v1882
        %v2203 = vadd.f32 %v1207, %v1883
        %v2204 = vadd.f32 %v1208, %v1884
        %v2205 = vadd.f32 %v1209, %v1885
        %v2206 = vadd.f32 %v1210, %v1886
        %v2207 = vadd.f32 %v1211, %v1887
        %v2208 = vadd.f32 %v1212, %v1888
        %v2209 = vadd.f32 %v1213, %v1889
        %v2210 = vadd.f32 %v1214, %v1890
        %v2211 = vadd.f32 %v1215, %v1891
        %v2212 = vadd.f32 %v1216, %v1892
        %v2213 = vadd.f32 %v1217, %v1893
        %v2214 = vadd.f32 %v1218, %v1894
        %v2215 = vadd.f32 %v1219, %v1895
        %v2216 = vadd.f32 %v1220, %v1896
        %v2217 = vadd.f32 %v1221, %v1897
        %v2218 = vadd.f32 %v1222, %v1898
        %v2219 = vadd.f32 %v1223, %v1899
        %v2220 = vadd.f32 %v1224, %v1900
        %v2221 = vadd.f32 %v1225, %v1901
        %v2222 = vadd.f32 %v1226, %v1902
        %v2223 = vadd.f32 %v1227, %v1903
        %v2224 = vadd.f32 %v1228, %v1904
        %v2225 = vadd.f32 %v1229, %v1905
        %v2226 = vadd.f32 %v1230, %v1906
        %v2227 = vadd.f32 %v1231, %v1907
        %v2228 = vadd.f32 %v1232, %v1908
        %v2229 = vadd.f32 %v1233, %v1909
        %v2230 = vadd.f32 %v1234, %v1910
        %v2231 = vadd.f32 %v1235, %v1911
        %v2232 = vadd.f32 %v1236, %v1912
        %v2233 = vadd.f32 %v1237, %v1913
        %v2234 = vadd.f32 %v1238, %v1914
        %v2235 = vadd.f32 %v1239, %v1915
        %v2236 = vadd.f32 %v1240, %v1916
        %v2237 = vadd.f32 %v1241, %v1917
        %v2238 = vadd.f32 %v1242, %v1918
        %v2239 = vadd.f32 %v1243, %v1919
        %v2240 = vadd.f32 %v1244, %v1920
        %v2241 = vadd.f32 %v1245, %v1921
        %v2242 = vadd.f32 %v1246, %v1922
        %v2243 = vadd.f32 %v1247, %v1923
        %v2244 = vadd.f32 %v1248, %v1924
        %v2245 = vadd.f32 %v1249, %v1925
        %v2246 = vadd.f32 %v1250, %v1926
        %v2247 = vadd.f32 %v1251, %v1927
        %v2248 = vadd.f32 %v1252, %v1928
        %v2249 = vadd.f32 %v1253, %v1929
        %v2250 = vadd.f32 %v1254, %v1930
        %v2251 = vadd.f32 %v1255, %v1931
        %v2252 = vadd.f32 %v1256, %v1932
        %v2253 = vadd.f32 %v1257, %v1933
        %v2254 = vadd.f32 %v1258, %v1934
        %v2255 = vadd.f32 %v1259, %v1935
        %v2256 = vadd.f32 %v1260, %v1936
        %v2257 = vadd.f32 %v1261, %v1937
        %v2258 = vadd.f32 %v1262, %v1938
        %v2259 = vadd.f32 %v1263, %v1939
        %v2260 = vadd.f32 %v1264, %v1940
        %v2261 = vadd.f32 %v1265, %v1941
        %v2262 = vadd.f32 %v1266, %v1942
        %v2263 = vadd.f32 %v1267, %v1943
        %v2264 = vadd.f32 %v1268, %v1944
        %v2265 = vadd.f32 %v1269, %v1945
        %v2266 = vadd.f32 %v1270, %v1946
        %v2267 = vadd.f32 %v1271, %v1947
        %v2268 = vadd.f32 %v1272, %v1948
        %v2269 = vadd.f32 %v1273, %v1949
        %v2270 = vadd.f32 %v1274, %v1950
        %v2271 = vadd.f32 %v1275, %v1951
        %v2272 = vadd.f32 %v1276, %v1952
        %v2273 = vadd.f32 %v1277, %v1953
        %v2274 = vadd.f32 %v1278, %v1954
        %v2275 = vadd.f32 %v1279, %v1955
        %v2276 = vadd.f32 %v1280, %v1956
        %v2277 = vadd.f32 %v1281, %v1957
        %v2278 = vadd.f32 %v1282, %v1958
        %v2279 = vadd.f32 %v1283, %v1959
        %v2280 = vadd.f32 %v1284, %v1960
        %v2281 = vadd.f32 %v1285, %v1961
        %v2282 = vadd.f32 %v1286, %v1962
        %v2283 = vadd.f32 %v1287, %v1963
        %v2284 = vadd.f32 %v1288, %v1964
        %v2285 = vadd.f32 %v1289, %v1965
        %v2286 = vadd.f32 %v1290, %v1966
        %v2287 = vadd.f32 %v1291, %v1967
        %v2288 = vadd.f32 %v1292, %v1968
        %v2289 = vadd.f32 %v1293, %v1969
        %v2290 = vadd.f32 %v1294, %v1970
        %v2291 = vadd.f32 %v1295, %v1971
        %v2292 = vadd.f32 %v1296, %v1972
        %v2293 = vadd.f32 %v1297, %v1973
        %v2294 = vadd.f32 %v1298, %v1974
        %v2295 = vadd.f32 %v1299, %v1975
        %v2296 = vadd.f32 %v1300, %v1976
        %v2297 = vadd.f32 %v1301, %v1977
        %v2298 = vadd.f32 %v1302, %v1978
        %v2299 = vadd.f32 %v1303, %v1979
        %v2300 = vadd.f32 %v1304, %v1980
        %v2301 = vadd.f32 %v1305, %v1981
        %v2302 = vadd.f32 %v1306, %v1982
        %v2303 = vadd.f32 %v1307, %v1983
        %v2304 = vadd.f32 %v1308, %v1984
        %v2305 = vadd.f32 %v1309, %v1985
        %v2306 = vadd.f32 %v1310, %v1986
        %v2307 = vadd.f32 %v1311, %v1987
        %v2308 = vadd.f32 %v1312, %v1988
        %v2309 = vadd.f32 %v1313, %v1989
        %v2310 = vadd.f32 %v1314, %v1990
        %v2311 = vadd.f32 %v1315, %v1991
        %v2312 = vadd.f32 %v1316, %v1992
        %v2313 = vadd.f32 %v1317, %v1993
        %v2314 = vadd.f32 %v1318, %v1994
        %v2315 = vadd.f32 %v1319, %v1995
        %v2316 = vadd.f32 %v1320, %v1996
        %v2317 = vadd.f32 %v1321, %v1997
        %v2318 = vadd.f32 %v1322, %v1998
        %v2319 = vadd.f32 %v1323, %v1999
        %v2320 = vadd.f32 %v1324, %v2000
        %v2321 = vadd.f32 %v1325, %v2001
        %v2322 = vadd.f32 %v1326, %v2002
        %v2323 = vadd.f32 %v1327, %v2003
        %v2324 = vadd.f32 %v1328, %v2004
        %v2325 = vadd.f32 %v1329, %v2005
        %v2326 = vadd.f32 %v1330, %v2006
        %v2327 = vadd.f32 %v1331, %v2007
        %v2328 = vadd.f32 %v1332, %v2008
        %v2329 = vadd.f32 %v1333, %v2009
        %v2330 = vadd.f32 %v1334, %v2010
        %v2331 = vadd.f32 %v1335, %v2011
        %v2332 = vadd.f32 %v1336, %v2012
        %v2333 = vadd.f32 %v1337, %v2013
        %v2334 = vadd.f32 %v1338, %v2014
        %v2335 = vadd.f32 %v1339, %v2015
        %v2336 = vadd.f32 %v1340, %v2016
        %v2337 = vadd.f32 %v1341, %v2017
        %v2338 = vadd.f32 %v1342, %v2018
        %v2339 = vadd.f32 %v1343, %v2019
        %v2340 = vadd.f32 %v1344, %v2020
        %v2341 = vadd.f32 %v1345, %v2021
        %v2342 = vadd.f32 %v1346, %v2022
        %v2343 = vadd.f32 %v1347, %v2023
        %2344 = vset.pattern.permute.xlu0 2
        %2345 = vperm.xlu0 %2344, %v430
        %v2346 = vpop.permute.xlu0 %2345
        %2348 = vset.pattern.permute.xlu0 2
        %2349 = vperm.xlu0 %2348, %v431
        %v2350 = vpop.permute.xlu0 %2349
        %2352 = vset.pattern.permute.xlu0 2
        %2353 = vperm.xlu0 %2352, %v432
        %v2354 = vpop.permute.xlu0 %2353
        %2356 = vset.pattern.permute.xlu0 2
        %2357 = vperm.xlu0 %2356, %v433
        %v2358 = vpop.permute.xlu0 %2357
        %2360 = vset.pattern.permute.xlu0 2
        %2361 = vperm.xlu0 %2360, %v434
        %v2362 = vpop.permute.xlu0 %2361
        %2364 = vset.pattern.permute.xlu0 2
        %2365 = vperm.xlu0 %2364, %v435
        %v2366 = vpop.permute.xlu0 %2365
        %2368 = vset.pattern.permute.xlu0 2
        %2369 = vperm.xlu0 %2368, %v436
        %v2370 = vpop.permute.xlu0 %2369
        %2372 = vset.pattern.permute.xlu0 2
        %2373 = vperm.xlu0 %2372, %v437
        %v2374 = vpop.permute.xlu0 %2373
        %2376 = vset.pattern.permute.xlu0 2
        %2377 = vperm.xlu0 %2376, %v438
        %v2378 = vpop.permute.xlu0 %2377
        %2380 = vset.pattern.permute.xlu0 2
        %2381 = vperm.xlu0 %2380, %v439
        %v2382 = vpop.permute.xlu0 %2381
        %2384 = vset.pattern.permute.xlu0 2
        %2385 = vperm.xlu0 %2384, %v440
        %v2386 = vpop.permute.xlu0 %2385
        %2388 = vset.pattern.permute.xlu0 2
        %2389 = vperm.xlu0 %2388, %v441
        %v2390 = vpop.permute.xlu0 %2389
        %2392 = vset.pattern.permute.xlu0 2
        %2393 = vperm.xlu0 %2392, %v442
        %v2394 = vpop.permute.xlu0 %2393
        %2396 = vset.pattern.permute.xlu0 2
        %2397 = vperm.xlu0 %2396, %v443
        %v2398 = vpop.permute.xlu0 %2397
        %2400 = vset.pattern.permute.xlu0 2
        %2401 = vperm.xlu0 %2400, %v444
        %v2402 = vpop.permute.xlu0 %2401
        %2404 = vset.pattern.permute.xlu0 2
        %2405 = vperm.xlu0 %2404, %v445
        %v2406 = vpop.permute.xlu0 %2405
        %2408 = vset.pattern.permute.xlu0 2
        %2409 = vperm.xlu0 %2408, %v446
        %v2410 = vpop.permute.xlu0 %2409
        %2412 = vset.pattern.permute.xlu0 2
        %2413 = vperm.xlu0 %2412, %v447
        %v2414 = vpop.permute.xlu0 %2413
        %2416 = vset.pattern.permute.xlu0 2
        %2417 = vperm.xlu0 %2416, %v448
        %v2418 = vpop.permute.xlu0 %2417
        %2420 = vset.pattern.permute.xlu0 2
        %2421 = vperm.xlu0 %2420, %v449
        %v2422 = vpop.permute.xlu0 %2421
        %2424 = vset.pattern.permute.xlu0 2
        %2425 = vperm.xlu0 %2424, %v450
        %v2426 = vpop.permute.xlu0 %2425
        %2428 = vset.pattern.permute.xlu0 2
        %2429 = vperm.xlu0 %2428, %v451
        %v2430 = vpop.permute.xlu0 %2429
        %2432 = vset.pattern.permute.xlu0 2
        %2433 = vperm.xlu0 %2432, %v452
        %v2434 = vpop.permute.xlu0 %2433
        %2436 = vset.pattern.permute.xlu0 2
        %2437 = vperm.xlu0 %2436, %v453
        %v2438 = vpop.permute.xlu0 %2437
        %2440 = vset.pattern.permute.xlu0 2
        %2441 = vperm.xlu0 %2440, %v454
        %v2442 = vpop.permute.xlu0 %2441
        %2444 = vset.pattern.permute.xlu0 2
        %2445 = vperm.xlu0 %2444, %v455
        %v2446 = vpop.permute.xlu0 %2445
        %2448 = vset.pattern.permute.xlu0 2
        %2449 = vperm.xlu0 %2448, %v456
        %v2450 = vpop.permute.xlu0 %2449
        %2452 = vset.pattern.permute.xlu0 2
        %2453 = vperm.xlu0 %2452, %v457
        %v2454 = vpop.permute.xlu0 %2453
        %2456 = vset.pattern.permute.xlu0 2
        %2457 = vperm.xlu0 %2456, %v458
        %v2458 = vpop.permute.xlu0 %2457
        %2460 = vset.pattern.permute.xlu0 2
        %2461 = vperm.xlu0 %2460, %v459
        %v2462 = vpop.permute.xlu0 %2461
        %2464 = vset.pattern.permute.xlu0 2
        %2465 = vperm.xlu0 %2464, %v460
        %v2466 = vpop.permute.xlu0 %2465
        %2468 = vset.pattern.permute.xlu0 2
        %2469 = vperm.xlu0 %2468, %v461
        %v2470 = vpop.permute.xlu0 %2469
        %2472 = vset.pattern.permute.xlu0 2
        %2473 = vperm.xlu0 %2472, %v462
        %v2474 = vpop.permute.xlu0 %2473
        %2476 = vset.pattern.permute.xlu0 2
        %2477 = vperm.xlu0 %2476, %v463
        %v2478 = vpop.permute.xlu0 %2477
        %2480 = vset.pattern.permute.xlu0 2
        %2481 = vperm.xlu0 %2480, %v464
        %v2482 = vpop.permute.xlu0 %2481
        %2484 = vset.pattern.permute.xlu0 2
        %2485 = vperm.xlu0 %2484, %v465
        %v2486 = vpop.permute.xlu0 %2485
        %2488 = vset.pattern.permute.xlu0 2
        %2489 = vperm.xlu0 %2488, %v466
        %v2490 = vpop.permute.xlu0 %2489
        %2492 = vset.pattern.permute.xlu0 2
        %2493 = vperm.xlu0 %2492, %v467
        %v2494 = vpop.permute.xlu0 %2493
        %2496 = vset.pattern.permute.xlu0 2
        %2497 = vperm.xlu0 %2496, %v468
        %v2498 = vpop.permute.xlu0 %2497
        %2500 = vset.pattern.permute.xlu0 2
        %2501 = vperm.xlu0 %2500, %v469
        %v2502 = vpop.permute.xlu0 %2501
        %2504 = vset.pattern.permute.xlu0 2
        %2505 = vperm.xlu0 %2504, %v470
        %v2506 = vpop.permute.xlu0 %2505
        %2508 = vset.pattern.permute.xlu0 2
        %2509 = vperm.xlu0 %2508, %v471
        %v2510 = vpop.permute.xlu0 %2509
        %2512 = vset.pattern.permute.xlu0 2
        %2513 = vperm.xlu0 %2512, %v472
        %v2514 = vpop.permute.xlu0 %2513
        %2516 = vset.pattern.permute.xlu0 2
        %2517 = vperm.xlu0 %2516, %v473
        %v2518 = vpop.permute.xlu0 %2517
        %2520 = vset.pattern.permute.xlu0 2
        %2521 = vperm.xlu0 %2520, %v474
        %v2522 = vpop.permute.xlu0 %2521
        %2524 = vset.pattern.permute.xlu0 2
        %2525 = vperm.xlu0 %2524, %v475
        %v2526 = vpop.permute.xlu0 %2525
        %2528 = vset.pattern.permute.xlu0 2
        %2529 = vperm.xlu0 %2528, %v476
        %v2530 = vpop.permute.xlu0 %2529
        %2532 = vset.pattern.permute.xlu0 2
        %2533 = vperm.xlu0 %2532, %v477
        %v2534 = vpop.permute.xlu0 %2533
        %2536 = vset.pattern.permute.xlu0 2
        %2537 = vperm.xlu0 %2536, %v478
        %v2538 = vpop.permute.xlu0 %2537
        %2540 = vset.pattern.permute.xlu0 2
        %2541 = vperm.xlu0 %2540, %v479
        %v2542 = vpop.permute.xlu0 %2541
        %2544 = vset.pattern.permute.xlu0 2
        %2545 = vperm.xlu0 %2544, %v480
        %v2546 = vpop.permute.xlu0 %2545
        %2548 = vset.pattern.permute.xlu0 2
        %2549 = vperm.xlu0 %2548, %v481
        %v2550 = vpop.permute.xlu0 %2549
        %2552 = vset.pattern.permute.xlu0 2
        %2553 = vperm.xlu0 %2552, %v482
        %v2554 = vpop.permute.xlu0 %2553
        %2556 = vset.pattern.permute.xlu0 2
        %2557 = vperm.xlu0 %2556, %v483
        %v2558 = vpop.permute.xlu0 %2557
        %2560 = vset.pattern.permute.xlu0 2
        %2561 = vperm.xlu0 %2560, %v484
        %v2562 = vpop.permute.xlu0 %2561
        %2564 = vset.pattern.permute.xlu0 2
        %2565 = vperm.xlu0 %2564, %v485
        %v2566 = vpop.permute.xlu0 %2565
        %2568 = vset.pattern.permute.xlu0 2
        %2569 = vperm.xlu0 %2568, %v486
        %v2570 = vpop.permute.xlu0 %2569
        %2572 = vset.pattern.permute.xlu0 2
        %2573 = vperm.xlu0 %2572, %v487
        %v2574 = vpop.permute.xlu0 %2573
        %2576 = vset.pattern.permute.xlu0 2
        %2577 = vperm.xlu0 %2576, %v488
        %v2578 = vpop.permute.xlu0 %2577
        %2580 = vset.pattern.permute.xlu0 2
        %2581 = vperm.xlu0 %2580, %v489
        %v2582 = vpop.permute.xlu0 %2581
        %2584 = vset.pattern.permute.xlu0 2
        %2585 = vperm.xlu0 %2584, %v490
        %v2586 = vpop.permute.xlu0 %2585
        %2588 = vset.pattern.permute.xlu0 2
        %2589 = vperm.xlu0 %2588, %v491
        %v2590 = vpop.permute.xlu0 %2589
        %2592 = vset.pattern.permute.xlu0 2
        %2593 = vperm.xlu0 %2592, %v492
        %v2594 = vpop.permute.xlu0 %2593
        %2596 = vset.pattern.permute.xlu0 2
        %2597 = vperm.xlu0 %2596, %v493
        %v2598 = vpop.permute.xlu0 %2597
        %2600 = vset.pattern.permute.xlu0 2
        %2601 = vperm.xlu0 %2600, %v494
        %v2602 = vpop.permute.xlu0 %2601
        %2604 = vset.pattern.permute.xlu0 2
        %2605 = vperm.xlu0 %2604, %v495
        %v2606 = vpop.permute.xlu0 %2605
        %2608 = vset.pattern.permute.xlu0 2
        %2609 = vperm.xlu0 %2608, %v496
        %v2610 = vpop.permute.xlu0 %2609
        %2612 = vset.pattern.permute.xlu0 2
        %2613 = vperm.xlu0 %2612, %v497
        %v2614 = vpop.permute.xlu0 %2613
        %2616 = vset.pattern.permute.xlu0 2
        %2617 = vperm.xlu0 %2616, %v498
        %v2618 = vpop.permute.xlu0 %2617
        %2620 = vset.pattern.permute.xlu0 2
        %2621 = vperm.xlu0 %2620, %v499
        %v2622 = vpop.permute.xlu0 %2621
        %2624 = vset.pattern.permute.xlu0 2
        %2625 = vperm.xlu0 %2624, %v500
        %v2626 = vpop.permute.xlu0 %2625
        %2628 = vset.pattern.permute.xlu0 2
        %2629 = vperm.xlu0 %2628, %v501
        %v2630 = vpop.permute.xlu0 %2629
        %2632 = vset.pattern.permute.xlu0 2
        %2633 = vperm.xlu0 %2632, %v502
        %v2634 = vpop.permute.xlu0 %2633
        %2636 = vset.pattern.permute.xlu0 2
        %2637 = vperm.xlu0 %2636, %v503
        %v2638 = vpop.permute.xlu0 %2637
        %2640 = vset.pattern.permute.xlu0 2
        %2641 = vperm.xlu0 %2640, %v504
        %v2642 = vpop.permute.xlu0 %2641
        %2644 = vset.pattern.permute.xlu0 2
        %2645 = vperm.xlu0 %2644, %v505
        %v2646 = vpop.permute.xlu0 %2645
        %2648 = vset.pattern.permute.xlu0 2
        %2649 = vperm.xlu0 %2648, %v506
        %v2650 = vpop.permute.xlu0 %2649
        %2652 = vset.pattern.permute.xlu0 2
        %2653 = vperm.xlu0 %2652, %v507
        %v2654 = vpop.permute.xlu0 %2653
        %2656 = vset.pattern.permute.xlu0 2
        %2657 = vperm.xlu0 %2656, %v508
        %v2658 = vpop.permute.xlu0 %2657
        %2660 = vset.pattern.permute.xlu0 2
        %2661 = vperm.xlu0 %2660, %v509
        %v2662 = vpop.permute.xlu0 %2661
        %v2664 = vlaneseq
        %v2665 = vshrl.u32 %v2664, 7
        %v2666 = vsub.s32 2, %v2665
        %v2667 = vrot.slane %v428, %v2666
        %v2668 = vlaneseq
        %v2669 = vshrl.u32 %v2668, 7
        %v2670 = vsub.s32 6, %v2669
        %v2671 = vrot.slane %v428, %v2670
        %v2672 = vlaneseq
        %v2673 = vshrl.u32 %v2672, 7
        %v2674 = vsub.s32 2, %v2673
        %v2675 = vrot.slane %v429, %v2674
        %v2676 = vlaneseq
        %v2677 = vshrl.u32 %v2676, 7
        %v2678 = vsub.s32 6, %v2677
        %v2679 = vrot.slane %v429, %v2678
        %v2684 = vlaneseq
        %v2685 = vshrl.u32 %v2684, 7
        %v2686 = vsub.s32 2, %v2685
        %v2687 = vrot.slane %v2667, %v2686
        %v2688 = vlaneseq
        %v2689 = vshrl.u32 %v2688, 7
        %v2690 = vsub.s32 2, %v2689
        %v2691 = vrot.slane %v2671, %v2690
        %v2692 = vlaneseq
        %v2693 = vshrl.u32 %v2692, 7
        %v2694 = vsub.s32 2, %v2693
        %v2695 = vrot.slane %v2675, %v2694
        %v2696 = vlaneseq
        %v2697 = vshrl.u32 %v2696, 7
        %v2698 = vsub.s32 2, %v2697
        %v2699 = vrot.slane %v2679, %v2698
        %v2700 = vmul.f32 %v2346, %v2687
        %v2701 = vmul.f32 %v2346, %v2691
        %v2702 = vmul.f32 %v2346, %v2695
        %v2703 = vmul.f32 %v2346, %v2699
        %v2704 = vmul.f32 %v2350, %v2687
        %v2705 = vmul.f32 %v2350, %v2691
        %v2706 = vmul.f32 %v2350, %v2695
        %v2707 = vmul.f32 %v2350, %v2699
        %v2708 = vmul.f32 %v2354, %v2687
        %v2709 = vmul.f32 %v2354, %v2691
        %v2710 = vmul.f32 %v2354, %v2695
        %v2711 = vmul.f32 %v2354, %v2699
        %v2712 = vmul.f32 %v2358, %v2687
        %v2713 = vmul.f32 %v2358, %v2691
        %v2714 = vmul.f32 %v2358, %v2695
        %v2715 = vmul.f32 %v2358, %v2699
        %v2716 = vmul.f32 %v2362, %v2687
        %v2717 = vmul.f32 %v2362, %v2691
        %v2718 = vmul.f32 %v2362, %v2695
        %v2719 = vmul.f32 %v2362, %v2699
        %v2720 = vmul.f32 %v2366, %v2687
        %v2721 = vmul.f32 %v2366, %v2691
        %v2722 = vmul.f32 %v2366, %v2695
        %v2723 = vmul.f32 %v2366, %v2699
        %v2724 = vmul.f32 %v2370, %v2687
        %v2725 = vmul.f32 %v2370, %v2691
        %v2726 = vmul.f32 %v2370, %v2695
        %v2727 = vmul.f32 %v2370, %v2699
        %v2728 = vmul.f32 %v2374, %v2687
        %v2729 = vmul.f32 %v2374, %v2691
        %v2730 = vmul.f32 %v2374, %v2695
        %v2731 = vmul.f32 %v2374, %v2699
        %v2732 = vmul.f32 %v2378, %v2687
        %v2733 = vmul.f32 %v2378, %v2691
        %v2734 = vmul.f32 %v2378, %v2695
        %v2735 = vmul.f32 %v2378, %v2699
        %v2736 = vmul.f32 %v2382, %v2687
        %v2737 = vmul.f32 %v2382, %v2691
        %v2738 = vmul.f32 %v2382, %v2695
        %v2739 = vmul.f32 %v2382, %v2699
        %v2740 = vmul.f32 %v2386, %v2687
        %v2741 = vmul.f32 %v2386, %v2691
        %v2742 = vmul.f32 %v2386, %v2695
        %v2743 = vmul.f32 %v2386, %v2699
        %v2744 = vmul.f32 %v2390, %v2687
        %v2745 = vmul.f32 %v2390, %v2691
        %v2746 = vmul.f32 %v2390, %v2695
        %v2747 = vmul.f32 %v2390, %v2699
        %v2748 = vmul.f32 %v2394, %v2687
        %v2749 = vmul.f32 %v2394, %v2691
        %v2750 = vmul.f32 %v2394, %v2695
        %v2751 = vmul.f32 %v2394, %v2699
        %v2752 = vmul.f32 %v2398, %v2687
        %v2753 = vmul.f32 %v2398, %v2691
        %v2754 = vmul.f32 %v2398, %v2695
        %v2755 = vmul.f32 %v2398, %v2699
        %v2756 = vmul.f32 %v2402, %v2687
        %v2757 = vmul.f32 %v2402, %v2691
        %v2758 = vmul.f32 %v2402, %v2695
        %v2759 = vmul.f32 %v2402, %v2699
        %v2760 = vmul.f32 %v2406, %v2687
        %v2761 = vmul.f32 %v2406, %v2691
        %v2762 = vmul.f32 %v2406, %v2695
        %v2763 = vmul.f32 %v2406, %v2699
        %v2764 = vmul.f32 %v2410, %v2687
        %v2765 = vmul.f32 %v2410, %v2691
        %v2766 = vmul.f32 %v2410, %v2695
        %v2767 = vmul.f32 %v2410, %v2699
        %v2768 = vmul.f32 %v2414, %v2687
        %v2769 = vmul.f32 %v2414, %v2691
        %v2770 = vmul.f32 %v2414, %v2695
        %v2771 = vmul.f32 %v2414, %v2699
        %v2772 = vmul.f32 %v2418, %v2687
        %v2773 = vmul.f32 %v2418, %v2691
        %v2774 = vmul.f32 %v2418, %v2695
        %v2775 = vmul.f32 %v2418, %v2699
        %v2776 = vmul.f32 %v2422, %v2687
        %v2777 = vmul.f32 %v2422, %v2691
        %v2778 = vmul.f32 %v2422, %v2695
        %v2779 = vmul.f32 %v2422, %v2699
        %v2780 = vmul.f32 %v2426, %v2687
        %v2781 = vmul.f32 %v2426, %v2691
        %v2782 = vmul.f32 %v2426, %v2695
        %v2783 = vmul.f32 %v2426, %v2699
        %v2784 = vmul.f32 %v2430, %v2687
        %v2785 = vmul.f32 %v2430, %v2691
        %v2786 = vmul.f32 %v2430, %v2695
        %v2787 = vmul.f32 %v2430, %v2699
        %v2788 = vmul.f32 %v2434, %v2687
        %v2789 = vmul.f32 %v2434, %v2691
        %v2790 = vmul.f32 %v2434, %v2695
        %v2791 = vmul.f32 %v2434, %v2699
        %v2792 = vmul.f32 %v2438, %v2687
        %v2793 = vmul.f32 %v2438, %v2691
        %v2794 = vmul.f32 %v2438, %v2695
        %v2795 = vmul.f32 %v2438, %v2699
        %v2796 = vmul.f32 %v2442, %v2687
        %v2797 = vmul.f32 %v2442, %v2691
        %v2798 = vmul.f32 %v2442, %v2695
        %v2799 = vmul.f32 %v2442, %v2699
        %v2800 = vmul.f32 %v2446, %v2687
        %v2801 = vmul.f32 %v2446, %v2691
        %v2802 = vmul.f32 %v2446, %v2695
        %v2803 = vmul.f32 %v2446, %v2699
        %v2804 = vmul.f32 %v2450, %v2687
        %v2805 = vmul.f32 %v2450, %v2691
        %v2806 = vmul.f32 %v2450, %v2695
        %v2807 = vmul.f32 %v2450, %v2699
        %v2808 = vmul.f32 %v2454, %v2687
        %v2809 = vmul.f32 %v2454, %v2691
        %v2810 = vmul.f32 %v2454, %v2695
        %v2811 = vmul.f32 %v2454, %v2699
        %v2812 = vmul.f32 %v2458, %v2687
        %v2813 = vmul.f32 %v2458, %v2691
        %v2814 = vmul.f32 %v2458, %v2695
        %v2815 = vmul.f32 %v2458, %v2699
        %v2816 = vmul.f32 %v2462, %v2687
        %v2817 = vmul.f32 %v2462, %v2691
        %v2818 = vmul.f32 %v2462, %v2695
        %v2819 = vmul.f32 %v2462, %v2699
        %v2820 = vmul.f32 %v2466, %v2687
        %v2821 = vmul.f32 %v2466, %v2691
        %v2822 = vmul.f32 %v2466, %v2695
        %v2823 = vmul.f32 %v2466, %v2699
        %v2824 = vmul.f32 %v2470, %v2687
        %v2825 = vmul.f32 %v2470, %v2691
        %v2826 = vmul.f32 %v2470, %v2695
        %v2827 = vmul.f32 %v2470, %v2699
        %v2828 = vmul.f32 %v2474, %v2687
        %v2829 = vmul.f32 %v2474, %v2691
        %v2830 = vmul.f32 %v2474, %v2695
        %v2831 = vmul.f32 %v2474, %v2699
        %v2832 = vmul.f32 %v2478, %v2687
        %v2833 = vmul.f32 %v2478, %v2691
        %v2834 = vmul.f32 %v2478, %v2695
        %v2835 = vmul.f32 %v2478, %v2699
        %v2836 = vmul.f32 %v2482, %v2687
        %v2837 = vmul.f32 %v2482, %v2691
        %v2838 = vmul.f32 %v2482, %v2695
        %v2839 = vmul.f32 %v2482, %v2699
        %v2840 = vmul.f32 %v2486, %v2687
        %v2841 = vmul.f32 %v2486, %v2691
        %v2842 = vmul.f32 %v2486, %v2695
        %v2843 = vmul.f32 %v2486, %v2699
        %v2844 = vmul.f32 %v2490, %v2687
        %v2845 = vmul.f32 %v2490, %v2691
        %v2846 = vmul.f32 %v2490, %v2695
        %v2847 = vmul.f32 %v2490, %v2699
        %v2848 = vmul.f32 %v2494, %v2687
        %v2849 = vmul.f32 %v2494, %v2691
        %v2850 = vmul.f32 %v2494, %v2695
        %v2851 = vmul.f32 %v2494, %v2699
        %v2852 = vmul.f32 %v2498, %v2687
        %v2853 = vmul.f32 %v2498, %v2691
        %v2854 = vmul.f32 %v2498, %v2695
        %v2855 = vmul.f32 %v2498, %v2699
        %v2856 = vmul.f32 %v2502, %v2687
        %v2857 = vmul.f32 %v2502, %v2691
        %v2858 = vmul.f32 %v2502, %v2695
        %v2859 = vmul.f32 %v2502, %v2699
        %v2860 = vmul.f32 %v2506, %v2687
        %v2861 = vmul.f32 %v2506, %v2691
        %v2862 = vmul.f32 %v2506, %v2695
        %v2863 = vmul.f32 %v2506, %v2699
        %v2864 = vmul.f32 %v2510, %v2687
        %v2865 = vmul.f32 %v2510, %v2691
        %v2866 = vmul.f32 %v2510, %v2695
        %v2867 = vmul.f32 %v2510, %v2699
        %v2868 = vmul.f32 %v2514, %v2687
        %v2869 = vmul.f32 %v2514, %v2691
        %v2870 = vmul.f32 %v2514, %v2695
        %v2871 = vmul.f32 %v2514, %v2699
        %v2872 = vmul.f32 %v2518, %v2687
        %v2873 = vmul.f32 %v2518, %v2691
        %v2874 = vmul.f32 %v2518, %v2695
        %v2875 = vmul.f32 %v2518, %v2699
        %v2876 = vmul.f32 %v2522, %v2687
        %v2877 = vmul.f32 %v2522, %v2691
        %v2878 = vmul.f32 %v2522, %v2695
        %v2879 = vmul.f32 %v2522, %v2699
        %v2880 = vmul.f32 %v2526, %v2687
        %v2881 = vmul.f32 %v2526, %v2691
        %v2882 = vmul.f32 %v2526, %v2695
        %v2883 = vmul.f32 %v2526, %v2699
        %v2884 = vmul.f32 %v2530, %v2687
        %v2885 = vmul.f32 %v2530, %v2691
        %v2886 = vmul.f32 %v2530, %v2695
        %v2887 = vmul.f32 %v2530, %v2699
        %v2888 = vmul.f32 %v2534, %v2687
        %v2889 = vmul.f32 %v2534, %v2691
        %v2890 = vmul.f32 %v2534, %v2695
        %v2891 = vmul.f32 %v2534, %v2699
        %v2892 = vmul.f32 %v2538, %v2687
        %v2893 = vmul.f32 %v2538, %v2691
        %v2894 = vmul.f32 %v2538, %v2695
        %v2895 = vmul.f32 %v2538, %v2699
        %v2896 = vmul.f32 %v2542, %v2687
        %v2897 = vmul.f32 %v2542, %v2691
        %v2898 = vmul.f32 %v2542, %v2695
        %v2899 = vmul.f32 %v2542, %v2699
        %v2900 = vmul.f32 %v2546, %v2687
        %v2901 = vmul.f32 %v2546, %v2691
        %v2902 = vmul.f32 %v2546, %v2695
        %v2903 = vmul.f32 %v2546, %v2699
        %v2904 = vmul.f32 %v2550, %v2687
        %v2905 = vmul.f32 %v2550, %v2691
        %v2906 = vmul.f32 %v2550, %v2695
        %v2907 = vmul.f32 %v2550, %v2699
        %v2908 = vmul.f32 %v2554, %v2687
        %v2909 = vmul.f32 %v2554, %v2691
        %v2910 = vmul.f32 %v2554, %v2695
        %v2911 = vmul.f32 %v2554, %v2699
        %v2912 = vmul.f32 %v2558, %v2687
        %v2913 = vmul.f32 %v2558, %v2691
        %v2914 = vmul.f32 %v2558, %v2695
        %v2915 = vmul.f32 %v2558, %v2699
        %v2916 = vmul.f32 %v2562, %v2687
        %v2917 = vmul.f32 %v2562, %v2691
        %v2918 = vmul.f32 %v2562, %v2695
        %v2919 = vmul.f32 %v2562, %v2699
        %v2920 = vmul.f32 %v2566, %v2687
        %v2921 = vmul.f32 %v2566, %v2691
        %v2922 = vmul.f32 %v2566, %v2695
        %v2923 = vmul.f32 %v2566, %v2699
        %v2924 = vmul.f32 %v2570, %v2687
        %v2925 = vmul.f32 %v2570, %v2691
        %v2926 = vmul.f32 %v2570, %v2695
        %v2927 = vmul.f32 %v2570, %v2699
        %v2928 = vmul.f32 %v2574, %v2687
        %v2929 = vmul.f32 %v2574, %v2691
        %v2930 = vmul.f32 %v2574, %v2695
        %v2931 = vmul.f32 %v2574, %v2699
        %v2932 = vmul.f32 %v2578, %v2687
        %v2933 = vmul.f32 %v2578, %v2691
        %v2934 = vmul.f32 %v2578, %v2695
        %v2935 = vmul.f32 %v2578, %v2699
        %v2936 = vmul.f32 %v2582, %v2687
        %v2937 = vmul.f32 %v2582, %v2691
        %v2938 = vmul.f32 %v2582, %v2695
        %v2939 = vmul.f32 %v2582, %v2699
        %v2940 = vmul.f32 %v2586, %v2687
        %v2941 = vmul.f32 %v2586, %v2691
        %v2942 = vmul.f32 %v2586, %v2695
        %v2943 = vmul.f32 %v2586, %v2699
        %v2944 = vmul.f32 %v2590, %v2687
        %v2945 = vmul.f32 %v2590, %v2691
        %v2946 = vmul.f32 %v2590, %v2695
        %v2947 = vmul.f32 %v2590, %v2699
        %v2948 = vmul.f32 %v2594, %v2687
        %v2949 = vmul.f32 %v2594, %v2691
        %v2950 = vmul.f32 %v2594, %v2695
        %v2951 = vmul.f32 %v2594, %v2699
        %v2952 = vmul.f32 %v2598, %v2687
        %v2953 = vmul.f32 %v2598, %v2691
        %v2954 = vmul.f32 %v2598, %v2695
        %v2955 = vmul.f32 %v2598, %v2699
        %v2956 = vmul.f32 %v2602, %v2687
        %v2957 = vmul.f32 %v2602, %v2691
        %v2958 = vmul.f32 %v2602, %v2695
        %v2959 = vmul.f32 %v2602, %v2699
        %v2960 = vmul.f32 %v2606, %v2687
        %v2961 = vmul.f32 %v2606, %v2691
        %v2962 = vmul.f32 %v2606, %v2695
        %v2963 = vmul.f32 %v2606, %v2699
        %v2964 = vmul.f32 %v2610, %v2687
        %v2965 = vmul.f32 %v2610, %v2691
        %v2966 = vmul.f32 %v2610, %v2695
        %v2967 = vmul.f32 %v2610, %v2699
        %v2968 = vmul.f32 %v2614, %v2687
        %v2969 = vmul.f32 %v2614, %v2691
        %v2970 = vmul.f32 %v2614, %v2695
        %v2971 = vmul.f32 %v2614, %v2699
        %v2972 = vmul.f32 %v2618, %v2687
        %v2973 = vmul.f32 %v2618, %v2691
        %v2974 = vmul.f32 %v2618, %v2695
        %v2975 = vmul.f32 %v2618, %v2699
        %v2976 = vmul.f32 %v2622, %v2687
        %v2977 = vmul.f32 %v2622, %v2691
        %v2978 = vmul.f32 %v2622, %v2695
        %v2979 = vmul.f32 %v2622, %v2699
        %v2980 = vmul.f32 %v2626, %v2687
        %v2981 = vmul.f32 %v2626, %v2691
        %v2982 = vmul.f32 %v2626, %v2695
        %v2983 = vmul.f32 %v2626, %v2699
        %v2984 = vmul.f32 %v2630, %v2687
        %v2985 = vmul.f32 %v2630, %v2691
        %v2986 = vmul.f32 %v2630, %v2695
        %v2987 = vmul.f32 %v2630, %v2699
        %v2988 = vmul.f32 %v2634, %v2687
        %v2989 = vmul.f32 %v2634, %v2691
        %v2990 = vmul.f32 %v2634, %v2695
        %v2991 = vmul.f32 %v2634, %v2699
        %v2992 = vmul.f32 %v2638, %v2687
        %v2993 = vmul.f32 %v2638, %v2691
        %v2994 = vmul.f32 %v2638, %v2695
        %v2995 = vmul.f32 %v2638, %v2699
        %v2996 = vmul.f32 %v2642, %v2687
        %v2997 = vmul.f32 %v2642, %v2691
        %v2998 = vmul.f32 %v2642, %v2695
        %v2999 = vmul.f32 %v2642, %v2699
        %v3000 = vmul.f32 %v2646, %v2687
        %v3001 = vmul.f32 %v2646, %v2691
        %v3002 = vmul.f32 %v2646, %v2695
        %v3003 = vmul.f32 %v2646, %v2699
        %v3004 = vmul.f32 %v2650, %v2687
        %v3005 = vmul.f32 %v2650, %v2691
        %v3006 = vmul.f32 %v2650, %v2695
        %v3007 = vmul.f32 %v2650, %v2699
        %v3008 = vmul.f32 %v2654, %v2687
        %v3009 = vmul.f32 %v2654, %v2691
        %v3010 = vmul.f32 %v2654, %v2695
        %v3011 = vmul.f32 %v2654, %v2699
        %v3012 = vmul.f32 %v2658, %v2687
        %v3013 = vmul.f32 %v2658, %v2691
        %v3014 = vmul.f32 %v2658, %v2695
        %v3015 = vmul.f32 %v2658, %v2699
        %v3016 = vmul.f32 %v2662, %v2687
        %v3017 = vmul.f32 %v2662, %v2691
        %v3018 = vmul.f32 %v2662, %v2695
        %v3019 = vmul.f32 %v2662, %v2699
        %v3020 = vadd.f32 %v2024, %v2700
        %v3021 = vadd.f32 %v2025, %v2701
        %v3022 = vadd.f32 %v2026, %v2702
        %v3023 = vadd.f32 %v2027, %v2703
        %v3024 = vadd.f32 %v2028, %v2704
        %v3025 = vadd.f32 %v2029, %v2705
        %v3026 = vadd.f32 %v2030, %v2706
        %v3027 = vadd.f32 %v2031, %v2707
        %v3028 = vadd.f32 %v2032, %v2708
        %v3029 = vadd.f32 %v2033, %v2709
        %v3030 = vadd.f32 %v2034, %v2710
        %v3031 = vadd.f32 %v2035, %v2711
        %v3032 = vadd.f32 %v2036, %v2712
        %v3033 = vadd.f32 %v2037, %v2713
        %v3034 = vadd.f32 %v2038, %v2714
        %v3035 = vadd.f32 %v2039, %v2715
        %v3036 = vadd.f32 %v2040, %v2716
        %v3037 = vadd.f32 %v2041, %v2717
        %v3038 = vadd.f32 %v2042, %v2718
        %v3039 = vadd.f32 %v2043, %v2719
        %v3040 = vadd.f32 %v2044, %v2720
        %v3041 = vadd.f32 %v2045, %v2721
        %v3042 = vadd.f32 %v2046, %v2722
        %v3043 = vadd.f32 %v2047, %v2723
        %v3044 = vadd.f32 %v2048, %v2724
        %v3045 = vadd.f32 %v2049, %v2725
        %v3046 = vadd.f32 %v2050, %v2726
        %v3047 = vadd.f32 %v2051, %v2727
        %v3048 = vadd.f32 %v2052, %v2728
        %v3049 = vadd.f32 %v2053, %v2729
        %v3050 = vadd.f32 %v2054, %v2730
        %v3051 = vadd.f32 %v2055, %v2731
        %v3052 = vadd.f32 %v2056, %v2732
        %v3053 = vadd.f32 %v2057, %v2733
        %v3054 = vadd.f32 %v2058, %v2734
        %v3055 = vadd.f32 %v2059, %v2735
        %v3056 = vadd.f32 %v2060, %v2736
        %v3057 = vadd.f32 %v2061, %v2737
        %v3058 = vadd.f32 %v2062, %v2738
        %v3059 = vadd.f32 %v2063, %v2739
        %v3060 = vadd.f32 %v2064, %v2740
        %v3061 = vadd.f32 %v2065, %v2741
        %v3062 = vadd.f32 %v2066, %v2742
        %v3063 = vadd.f32 %v2067, %v2743
        %v3064 = vadd.f32 %v2068, %v2744
        %v3065 = vadd.f32 %v2069, %v2745
        %v3066 = vadd.f32 %v2070, %v2746
        %v3067 = vadd.f32 %v2071, %v2747
        %v3068 = vadd.f32 %v2072, %v2748
        %v3069 = vadd.f32 %v2073, %v2749
        %v3070 = vadd.f32 %v2074, %v2750
        %v3071 = vadd.f32 %v2075, %v2751
        %v3072 = vadd.f32 %v2076, %v2752
        %v3073 = vadd.f32 %v2077, %v2753
        %v3074 = vadd.f32 %v2078, %v2754
        %v3075 = vadd.f32 %v2079, %v2755
        %v3076 = vadd.f32 %v2080, %v2756
        %v3077 = vadd.f32 %v2081, %v2757
        %v3078 = vadd.f32 %v2082, %v2758
        %v3079 = vadd.f32 %v2083, %v2759
        %v3080 = vadd.f32 %v2084, %v2760
        %v3081 = vadd.f32 %v2085, %v2761
        %v3082 = vadd.f32 %v2086, %v2762
        %v3083 = vadd.f32 %v2087, %v2763
        %v3084 = vadd.f32 %v2088, %v2764
        %v3085 = vadd.f32 %v2089, %v2765
        %v3086 = vadd.f32 %v2090, %v2766
        %v3087 = vadd.f32 %v2091, %v2767
        %v3088 = vadd.f32 %v2092, %v2768
        %v3089 = vadd.f32 %v2093, %v2769
        %v3090 = vadd.f32 %v2094, %v2770
        %v3091 = vadd.f32 %v2095, %v2771
        %v3092 = vadd.f32 %v2096, %v2772
        %v3093 = vadd.f32 %v2097, %v2773
        %v3094 = vadd.f32 %v2098, %v2774
        %v3095 = vadd.f32 %v2099, %v2775
        %v3096 = vadd.f32 %v2100, %v2776
        %v3097 = vadd.f32 %v2101, %v2777
        %v3098 = vadd.f32 %v2102, %v2778
        %v3099 = vadd.f32 %v2103, %v2779
        %v3100 = vadd.f32 %v2104, %v2780
        %v3101 = vadd.f32 %v2105, %v2781
        %v3102 = vadd.f32 %v2106, %v2782
        %v3103 = vadd.f32 %v2107, %v2783
        %v3104 = vadd.f32 %v2108, %v2784
        %v3105 = vadd.f32 %v2109, %v2785
        %v3106 = vadd.f32 %v2110, %v2786
        %v3107 = vadd.f32 %v2111, %v2787
        %v3108 = vadd.f32 %v2112, %v2788
        %v3109 = vadd.f32 %v2113, %v2789
        %v3110 = vadd.f32 %v2114, %v2790
        %v3111 = vadd.f32 %v2115, %v2791
        %v3112 = vadd.f32 %v2116, %v2792
        %v3113 = vadd.f32 %v2117, %v2793
        %v3114 = vadd.f32 %v2118, %v2794
        %v3115 = vadd.f32 %v2119, %v2795
        %v3116 = vadd.f32 %v2120, %v2796
        %v3117 = vadd.f32 %v2121, %v2797
        %v3118 = vadd.f32 %v2122, %v2798
        %v3119 = vadd.f32 %v2123, %v2799
        %v3120 = vadd.f32 %v2124, %v2800
        %v3121 = vadd.f32 %v2125, %v2801
        %v3122 = vadd.f32 %v2126, %v2802
        %v3123 = vadd.f32 %v2127, %v2803
        %v3124 = vadd.f32 %v2128, %v2804
        %v3125 = vadd.f32 %v2129, %v2805
        %v3126 = vadd.f32 %v2130, %v2806
        %v3127 = vadd.f32 %v2131, %v2807
        %v3128 = vadd.f32 %v2132, %v2808
        %v3129 = vadd.f32 %v2133, %v2809
        %v3130 = vadd.f32 %v2134, %v2810
        %v3131 = vadd.f32 %v2135, %v2811
        %v3132 = vadd.f32 %v2136, %v2812
        %v3133 = vadd.f32 %v2137, %v2813
        %v3134 = vadd.f32 %v2138, %v2814
        %v3135 = vadd.f32 %v2139, %v2815
        %v3136 = vadd.f32 %v2140, %v2816
        %v3137 = vadd.f32 %v2141, %v2817
        %v3138 = vadd.f32 %v2142, %v2818
        %v3139 = vadd.f32 %v2143, %v2819
        %v3140 = vadd.f32 %v2144, %v2820
        %v3141 = vadd.f32 %v2145, %v2821
        %v3142 = vadd.f32 %v2146, %v2822
        %v3143 = vadd.f32 %v2147, %v2823
        %v3144 = vadd.f32 %v2148, %v2824
        %v3145 = vadd.f32 %v2149, %v2825
        %v3146 = vadd.f32 %v2150, %v2826
        %v3147 = vadd.f32 %v2151, %v2827
        %v3148 = vadd.f32 %v2152, %v2828
        %v3149 = vadd.f32 %v2153, %v2829
        %v3150 = vadd.f32 %v2154, %v2830
        %v3151 = vadd.f32 %v2155, %v2831
        %v3152 = vadd.f32 %v2156, %v2832
        %v3153 = vadd.f32 %v2157, %v2833
        %v3154 = vadd.f32 %v2158, %v2834
        %v3155 = vadd.f32 %v2159, %v2835
        %v3156 = vadd.f32 %v2160, %v2836
        %v3157 = vadd.f32 %v2161, %v2837
        %v3158 = vadd.f32 %v2162, %v2838
        %v3159 = vadd.f32 %v2163, %v2839
        %v3160 = vadd.f32 %v2164, %v2840
        %v3161 = vadd.f32 %v2165, %v2841
        %v3162 = vadd.f32 %v2166, %v2842
        %v3163 = vadd.f32 %v2167, %v2843
        %v3164 = vadd.f32 %v2168, %v2844
        %v3165 = vadd.f32 %v2169, %v2845
        %v3166 = vadd.f32 %v2170, %v2846
        %v3167 = vadd.f32 %v2171, %v2847
        %v3168 = vadd.f32 %v2172, %v2848
        %v3169 = vadd.f32 %v2173, %v2849
        %v3170 = vadd.f32 %v2174, %v2850
        %v3171 = vadd.f32 %v2175, %v2851
        %v3172 = vadd.f32 %v2176, %v2852
        %v3173 = vadd.f32 %v2177, %v2853
        %v3174 = vadd.f32 %v2178, %v2854
        %v3175 = vadd.f32 %v2179, %v2855
        %v3176 = vadd.f32 %v2180, %v2856
        %v3177 = vadd.f32 %v2181, %v2857
        %v3178 = vadd.f32 %v2182, %v2858
        %v3179 = vadd.f32 %v2183, %v2859
        %v3180 = vadd.f32 %v2184, %v2860
        %v3181 = vadd.f32 %v2185, %v2861
        %v3182 = vadd.f32 %v2186, %v2862
        %v3183 = vadd.f32 %v2187, %v2863
        %v3184 = vadd.f32 %v2188, %v2864
        %v3185 = vadd.f32 %v2189, %v2865
        %v3186 = vadd.f32 %v2190, %v2866
        %v3187 = vadd.f32 %v2191, %v2867
        %v3188 = vadd.f32 %v2192, %v2868
        %v3189 = vadd.f32 %v2193, %v2869
        %v3190 = vadd.f32 %v2194, %v2870
        %v3191 = vadd.f32 %v2195, %v2871
        %v3192 = vadd.f32 %v2196, %v2872
        %v3193 = vadd.f32 %v2197, %v2873
        %v3194 = vadd.f32 %v2198, %v2874
        %v3195 = vadd.f32 %v2199, %v2875
        %v3196 = vadd.f32 %v2200, %v2876
        %v3197 = vadd.f32 %v2201, %v2877
        %v3198 = vadd.f32 %v2202, %v2878
        %v3199 = vadd.f32 %v2203, %v2879
        %v3200 = vadd.f32 %v2204, %v2880
        %v3201 = vadd.f32 %v2205, %v2881
        %v3202 = vadd.f32 %v2206, %v2882
        %v3203 = vadd.f32 %v2207, %v2883
        %v3204 = vadd.f32 %v2208, %v2884
        %v3205 = vadd.f32 %v2209, %v2885
        %v3206 = vadd.f32 %v2210, %v2886
        %v3207 = vadd.f32 %v2211, %v2887
        %v3208 = vadd.f32 %v2212, %v2888
        %v3209 = vadd.f32 %v2213, %v2889
        %v3210 = vadd.f32 %v2214, %v2890
        %v3211 = vadd.f32 %v2215, %v2891
        %v3212 = vadd.f32 %v2216, %v2892
        %v3213 = vadd.f32 %v2217, %v2893
        %v3214 = vadd.f32 %v2218, %v2894
        %v3215 = vadd.f32 %v2219, %v2895
        %v3216 = vadd.f32 %v2220, %v2896
        %v3217 = vadd.f32 %v2221, %v2897
        %v3218 = vadd.f32 %v2222, %v2898
        %v3219 = vadd.f32 %v2223, %v2899
        %v3220 = vadd.f32 %v2224, %v2900
        %v3221 = vadd.f32 %v2225, %v2901
        %v3222 = vadd.f32 %v2226, %v2902
        %v3223 = vadd.f32 %v2227, %v2903
        %v3224 = vadd.f32 %v2228, %v2904
        %v3225 = vadd.f32 %v2229, %v2905
        %v3226 = vadd.f32 %v2230, %v2906
        %v3227 = vadd.f32 %v2231, %v2907
        %v3228 = vadd.f32 %v2232, %v2908
        %v3229 = vadd.f32 %v2233, %v2909
        %v3230 = vadd.f32 %v2234, %v2910
        %v3231 = vadd.f32 %v2235, %v2911
        %v3232 = vadd.f32 %v2236, %v2912
        %v3233 = vadd.f32 %v2237, %v2913
        %v3234 = vadd.f32 %v2238, %v2914
        %v3235 = vadd.f32 %v2239, %v2915
        %v3236 = vadd.f32 %v2240, %v2916
        %v3237 = vadd.f32 %v2241, %v2917
        %v3238 = vadd.f32 %v2242, %v2918
        %v3239 = vadd.f32 %v2243, %v2919
        %v3240 = vadd.f32 %v2244, %v2920
        %v3241 = vadd.f32 %v2245, %v2921
        %v3242 = vadd.f32 %v2246, %v2922
        %v3243 = vadd.f32 %v2247, %v2923
        %v3244 = vadd.f32 %v2248, %v2924
        %v3245 = vadd.f32 %v2249, %v2925
        %v3246 = vadd.f32 %v2250, %v2926
        %v3247 = vadd.f32 %v2251, %v2927
        %v3248 = vadd.f32 %v2252, %v2928
        %v3249 = vadd.f32 %v2253, %v2929
        %v3250 = vadd.f32 %v2254, %v2930
        %v3251 = vadd.f32 %v2255, %v2931
        %v3252 = vadd.f32 %v2256, %v2932
        %v3253 = vadd.f32 %v2257, %v2933
        %v3254 = vadd.f32 %v2258, %v2934
        %v3255 = vadd.f32 %v2259, %v2935
        %v3256 = vadd.f32 %v2260, %v2936
        %v3257 = vadd.f32 %v2261, %v2937
        %v3258 = vadd.f32 %v2262, %v2938
        %v3259 = vadd.f32 %v2263, %v2939
        %v3260 = vadd.f32 %v2264, %v2940
        %v3261 = vadd.f32 %v2265, %v2941
        %v3262 = vadd.f32 %v2266, %v2942
        %v3263 = vadd.f32 %v2267, %v2943
        %v3264 = vadd.f32 %v2268, %v2944
        %v3265 = vadd.f32 %v2269, %v2945
        %v3266 = vadd.f32 %v2270, %v2946
        %v3267 = vadd.f32 %v2271, %v2947
        %v3268 = vadd.f32 %v2272, %v2948
        %v3269 = vadd.f32 %v2273, %v2949
        %v3270 = vadd.f32 %v2274, %v2950
        %v3271 = vadd.f32 %v2275, %v2951
        %v3272 = vadd.f32 %v2276, %v2952
        %v3273 = vadd.f32 %v2277, %v2953
        %v3274 = vadd.f32 %v2278, %v2954
        %v3275 = vadd.f32 %v2279, %v2955
        %v3276 = vadd.f32 %v2280, %v2956
        %v3277 = vadd.f32 %v2281, %v2957
        %v3278 = vadd.f32 %v2282, %v2958
        %v3279 = vadd.f32 %v2283, %v2959
        %v3280 = vadd.f32 %v2284, %v2960
        %v3281 = vadd.f32 %v2285, %v2961
        %v3282 = vadd.f32 %v2286, %v2962
        %v3283 = vadd.f32 %v2287, %v2963
        %v3284 = vadd.f32 %v2288, %v2964
        %v3285 = vadd.f32 %v2289, %v2965
        %v3286 = vadd.f32 %v2290, %v2966
        %v3287 = vadd.f32 %v2291, %v2967
        %v3288 = vadd.f32 %v2292, %v2968
        %v3289 = vadd.f32 %v2293, %v2969
        %v3290 = vadd.f32 %v2294, %v2970
        %v3291 = vadd.f32 %v2295, %v2971
        %v3292 = vadd.f32 %v2296, %v2972
        %v3293 = vadd.f32 %v2297, %v2973
        %v3294 = vadd.f32 %v2298, %v2974
        %v3295 = vadd.f32 %v2299, %v2975
        %v3296 = vadd.f32 %v2300, %v2976
        %v3297 = vadd.f32 %v2301, %v2977
        %v3298 = vadd.f32 %v2302, %v2978
        %v3299 = vadd.f32 %v2303, %v2979
        %v3300 = vadd.f32 %v2304, %v2980
        %v3301 = vadd.f32 %v2305, %v2981
        %v3302 = vadd.f32 %v2306, %v2982
        %v3303 = vadd.f32 %v2307, %v2983
        %v3304 = vadd.f32 %v2308, %v2984
        %v3305 = vadd.f32 %v2309, %v2985
        %v3306 = vadd.f32 %v2310, %v2986
        %v3307 = vadd.f32 %v2311, %v2987
        %v3308 = vadd.f32 %v2312, %v2988
        %v3309 = vadd.f32 %v2313, %v2989
        %v3310 = vadd.f32 %v2314, %v2990
        %v3311 = vadd.f32 %v2315, %v2991
        %v3312 = vadd.f32 %v2316, %v2992
        %v3313 = vadd.f32 %v2317, %v2993
        %v3314 = vadd.f32 %v2318, %v2994
        %v3315 = vadd.f32 %v2319, %v2995
        %v3316 = vadd.f32 %v2320, %v2996
        %v3317 = vadd.f32 %v2321, %v2997
        %v3318 = vadd.f32 %v2322, %v2998
        %v3319 = vadd.f32 %v2323, %v2999
        %v3320 = vadd.f32 %v2324, %v3000
        %v3321 = vadd.f32 %v2325, %v3001
        %v3322 = vadd.f32 %v2326, %v3002
        %v3323 = vadd.f32 %v2327, %v3003
        %v3324 = vadd.f32 %v2328, %v3004
        %v3325 = vadd.f32 %v2329, %v3005
        %v3326 = vadd.f32 %v2330, %v3006
        %v3327 = vadd.f32 %v2331, %v3007
        %v3328 = vadd.f32 %v2332, %v3008
        %v3329 = vadd.f32 %v2333, %v3009
        %v3330 = vadd.f32 %v2334, %v3010
        %v3331 = vadd.f32 %v2335, %v3011
        %v3332 = vadd.f32 %v2336, %v3012
        %v3333 = vadd.f32 %v2337, %v3013
        %v3334 = vadd.f32 %v2338, %v3014
        %v3335 = vadd.f32 %v2339, %v3015
        %v3336 = vadd.f32 %v2340, %v3016
        %v3337 = vadd.f32 %v2341, %v3017
        %v3338 = vadd.f32 %v2342, %v3018
        %v3339 = vadd.f32 %v2343, %v3019
        %3341 = vset.pattern.permute.xlu0 0
        %3342 = vperm.xlu0 %3341, %v510
        %v3343 = vpop.permute.xlu0 %3342
        %3346 = vset.pattern.permute.xlu0 0
        %3347 = vperm.xlu0 %3346, %v511
        %v3348 = vpop.permute.xlu0 %3347
        %3351 = vset.pattern.permute.xlu0 0
        %3352 = vperm.xlu0 %3351, %v512
        %v3353 = vpop.permute.xlu0 %3352
        %3356 = vset.pattern.permute.xlu0 0
        %3357 = vperm.xlu0 %3356, %v513
        %v3358 = vpop.permute.xlu0 %3357
        %3361 = vset.pattern.permute.xlu0 0
        %3362 = vperm.xlu0 %3361, %v514
        %v3363 = vpop.permute.xlu0 %3362
        %3366 = vset.pattern.permute.xlu0 0
        %3367 = vperm.xlu0 %3366, %v515
        %v3368 = vpop.permute.xlu0 %3367
        %3371 = vset.pattern.permute.xlu0 0
        %3372 = vperm.xlu0 %3371, %v516
        %v3373 = vpop.permute.xlu0 %3372
        %3376 = vset.pattern.permute.xlu0 0
        %3377 = vperm.xlu0 %3376, %v517
        %v3378 = vpop.permute.xlu0 %3377
        %3381 = vset.pattern.permute.xlu0 0
        %3382 = vperm.xlu0 %3381, %v518
        %v3383 = vpop.permute.xlu0 %3382
        %3386 = vset.pattern.permute.xlu0 0
        %3387 = vperm.xlu0 %3386, %v519
        %v3388 = vpop.permute.xlu0 %3387
        %3391 = vset.pattern.permute.xlu0 0
        %3392 = vperm.xlu0 %3391, %v520
        %v3393 = vpop.permute.xlu0 %3392
        %3396 = vset.pattern.permute.xlu0 0
        %3397 = vperm.xlu0 %3396, %v521
        %v3398 = vpop.permute.xlu0 %3397
        %3401 = vset.pattern.permute.xlu0 0
        %3402 = vperm.xlu0 %3401, %v522
        %v3403 = vpop.permute.xlu0 %3402
        %3406 = vset.pattern.permute.xlu0 0
        %3407 = vperm.xlu0 %3406, %v523
        %v3408 = vpop.permute.xlu0 %3407
        %3411 = vset.pattern.permute.xlu0 0
        %3412 = vperm.xlu0 %3411, %v524
        %v3413 = vpop.permute.xlu0 %3412
        %3416 = vset.pattern.permute.xlu0 0
        %3417 = vperm.xlu0 %3416, %v525
        %v3418 = vpop.permute.xlu0 %3417
        %3421 = vset.pattern.permute.xlu0 0
        %3422 = vperm.xlu0 %3421, %v526
        %v3423 = vpop.permute.xlu0 %3422
        %3426 = vset.pattern.permute.xlu0 0
        %3427 = vperm.xlu0 %3426, %v527
        %v3428 = vpop.permute.xlu0 %3427
        %3431 = vset.pattern.permute.xlu0 0
        %3432 = vperm.xlu0 %3431, %v528
        %v3433 = vpop.permute.xlu0 %3432
        %3436 = vset.pattern.permute.xlu0 0
        %3437 = vperm.xlu0 %3436, %v529
        %v3438 = vpop.permute.xlu0 %3437
        %3441 = vset.pattern.permute.xlu0 0
        %3442 = vperm.xlu0 %3441, %v530
        %v3443 = vpop.permute.xlu0 %3442
        %3446 = vset.pattern.permute.xlu0 0
        %3447 = vperm.xlu0 %3446, %v531
        %v3448 = vpop.permute.xlu0 %3447
        %3451 = vset.pattern.permute.xlu0 0
        %3452 = vperm.xlu0 %3451, %v532
        %v3453 = vpop.permute.xlu0 %3452
        %3456 = vset.pattern.permute.xlu0 0
        %3457 = vperm.xlu0 %3456, %v533
        %v3458 = vpop.permute.xlu0 %3457
        %3461 = vset.pattern.permute.xlu0 0
        %3462 = vperm.xlu0 %3461, %v534
        %v3463 = vpop.permute.xlu0 %3462
        %3466 = vset.pattern.permute.xlu0 0
        %3467 = vperm.xlu0 %3466, %v535
        %v3468 = vpop.permute.xlu0 %3467
        %3471 = vset.pattern.permute.xlu0 0
        %3472 = vperm.xlu0 %3471, %v536
        %v3473 = vpop.permute.xlu0 %3472
        %3476 = vset.pattern.permute.xlu0 0
        %3477 = vperm.xlu0 %3476, %v537
        %v3478 = vpop.permute.xlu0 %3477
        %3481 = vset.pattern.permute.xlu0 0
        %3482 = vperm.xlu0 %3481, %v538
        %v3483 = vpop.permute.xlu0 %3482
        %3486 = vset.pattern.permute.xlu0 0
        %3487 = vperm.xlu0 %3486, %v539
        %v3488 = vpop.permute.xlu0 %3487
        %3491 = vset.pattern.permute.xlu0 0
        %3492 = vperm.xlu0 %3491, %v540
        %v3493 = vpop.permute.xlu0 %3492
        %3496 = vset.pattern.permute.xlu0 0
        %3497 = vperm.xlu0 %3496, %v541
        %v3498 = vpop.permute.xlu0 %3497
        %3501 = vset.pattern.permute.xlu0 0
        %3502 = vperm.xlu0 %3501, %v542
        %v3503 = vpop.permute.xlu0 %3502
        %3506 = vset.pattern.permute.xlu0 0
        %3507 = vperm.xlu0 %3506, %v543
        %v3508 = vpop.permute.xlu0 %3507
        %3511 = vset.pattern.permute.xlu0 0
        %3512 = vperm.xlu0 %3511, %v544
        %v3513 = vpop.permute.xlu0 %3512
        %3516 = vset.pattern.permute.xlu0 0
        %3517 = vperm.xlu0 %3516, %v545
        %v3518 = vpop.permute.xlu0 %3517
        %3521 = vset.pattern.permute.xlu0 0
        %3522 = vperm.xlu0 %3521, %v546
        %v3523 = vpop.permute.xlu0 %3522
        %3526 = vset.pattern.permute.xlu0 0
        %3527 = vperm.xlu0 %3526, %v547
        %v3528 = vpop.permute.xlu0 %3527
        %3531 = vset.pattern.permute.xlu0 0
        %3532 = vperm.xlu0 %3531, %v548
        %v3533 = vpop.permute.xlu0 %3532
        %3536 = vset.pattern.permute.xlu0 0
        %3537 = vperm.xlu0 %3536, %v549
        %v3538 = vpop.permute.xlu0 %3537
        %3541 = vset.pattern.permute.xlu0 0
        %3542 = vperm.xlu0 %3541, %v550
        %v3543 = vpop.permute.xlu0 %3542
        %3546 = vset.pattern.permute.xlu0 0
        %3547 = vperm.xlu0 %3546, %v551
        %v3548 = vpop.permute.xlu0 %3547
        %3551 = vset.pattern.permute.xlu0 0
        %3552 = vperm.xlu0 %3551, %v552
        %v3553 = vpop.permute.xlu0 %3552
        %3556 = vset.pattern.permute.xlu0 0
        %3557 = vperm.xlu0 %3556, %v553
        %v3558 = vpop.permute.xlu0 %3557
        %3561 = vset.pattern.permute.xlu0 0
        %3562 = vperm.xlu0 %3561, %v554
        %v3563 = vpop.permute.xlu0 %3562
        %3566 = vset.pattern.permute.xlu0 0
        %3567 = vperm.xlu0 %3566, %v555
        %v3568 = vpop.permute.xlu0 %3567
        %3571 = vset.pattern.permute.xlu0 0
        %3572 = vperm.xlu0 %3571, %v556
        %v3573 = vpop.permute.xlu0 %3572
        %3576 = vset.pattern.permute.xlu0 0
        %3577 = vperm.xlu0 %3576, %v557
        %v3578 = vpop.permute.xlu0 %3577
        %3581 = vset.pattern.permute.xlu0 0
        %3582 = vperm.xlu0 %3581, %v558
        %v3583 = vpop.permute.xlu0 %3582
        %3586 = vset.pattern.permute.xlu0 0
        %3587 = vperm.xlu0 %3586, %v559
        %v3588 = vpop.permute.xlu0 %3587
        %3591 = vset.pattern.permute.xlu0 0
        %3592 = vperm.xlu0 %3591, %v560
        %v3593 = vpop.permute.xlu0 %3592
        %3596 = vset.pattern.permute.xlu0 0
        %3597 = vperm.xlu0 %3596, %v561
        %v3598 = vpop.permute.xlu0 %3597
        %3601 = vset.pattern.permute.xlu0 0
        %3602 = vperm.xlu0 %3601, %v562
        %v3603 = vpop.permute.xlu0 %3602
        %3606 = vset.pattern.permute.xlu0 0
        %3607 = vperm.xlu0 %3606, %v563
        %v3608 = vpop.permute.xlu0 %3607
        %3611 = vset.pattern.permute.xlu0 0
        %3612 = vperm.xlu0 %3611, %v564
        %v3613 = vpop.permute.xlu0 %3612
        %3616 = vset.pattern.permute.xlu0 0
        %3617 = vperm.xlu0 %3616, %v565
        %v3618 = vpop.permute.xlu0 %3617
        %3621 = vset.pattern.permute.xlu0 0
        %3622 = vperm.xlu0 %3621, %v566
        %v3623 = vpop.permute.xlu0 %3622
        %3626 = vset.pattern.permute.xlu0 0
        %3627 = vperm.xlu0 %3626, %v567
        %v3628 = vpop.permute.xlu0 %3627
        %3631 = vset.pattern.permute.xlu0 0
        %3632 = vperm.xlu0 %3631, %v568
        %v3633 = vpop.permute.xlu0 %3632
        %3636 = vset.pattern.permute.xlu0 0
        %3637 = vperm.xlu0 %3636, %v569
        %v3638 = vpop.permute.xlu0 %3637
        %3641 = vset.pattern.permute.xlu0 0
        %3642 = vperm.xlu0 %3641, %v570
        %v3643 = vpop.permute.xlu0 %3642
        %3646 = vset.pattern.permute.xlu0 0
        %3647 = vperm.xlu0 %3646, %v571
        %v3648 = vpop.permute.xlu0 %3647
        %3651 = vset.pattern.permute.xlu0 0
        %3652 = vperm.xlu0 %3651, %v572
        %v3653 = vpop.permute.xlu0 %3652
        %3656 = vset.pattern.permute.xlu0 0
        %3657 = vperm.xlu0 %3656, %v573
        %v3658 = vpop.permute.xlu0 %3657
        %3661 = vset.pattern.permute.xlu0 0
        %3662 = vperm.xlu0 %3661, %v574
        %v3663 = vpop.permute.xlu0 %3662
        %3666 = vset.pattern.permute.xlu0 0
        %3667 = vperm.xlu0 %3666, %v575
        %v3668 = vpop.permute.xlu0 %3667
        %3671 = vset.pattern.permute.xlu0 0
        %3672 = vperm.xlu0 %3671, %v576
        %v3673 = vpop.permute.xlu0 %3672
        %3676 = vset.pattern.permute.xlu0 0
        %3677 = vperm.xlu0 %3676, %v577
        %v3678 = vpop.permute.xlu0 %3677
        %3681 = vset.pattern.permute.xlu0 0
        %3682 = vperm.xlu0 %3681, %v578
        %v3683 = vpop.permute.xlu0 %3682
        %3686 = vset.pattern.permute.xlu0 0
        %3687 = vperm.xlu0 %3686, %v579
        %v3688 = vpop.permute.xlu0 %3687
        %3691 = vset.pattern.permute.xlu0 0
        %3692 = vperm.xlu0 %3691, %v580
        %v3693 = vpop.permute.xlu0 %3692
        %3696 = vset.pattern.permute.xlu0 0
        %3697 = vperm.xlu0 %3696, %v581
        %v3698 = vpop.permute.xlu0 %3697
        %3701 = vset.pattern.permute.xlu0 0
        %3702 = vperm.xlu0 %3701, %v582
        %v3703 = vpop.permute.xlu0 %3702
        %3706 = vset.pattern.permute.xlu0 0
        %3707 = vperm.xlu0 %3706, %v583
        %v3708 = vpop.permute.xlu0 %3707
        %3711 = vset.pattern.permute.xlu0 0
        %3712 = vperm.xlu0 %3711, %v584
        %v3713 = vpop.permute.xlu0 %3712
        %3716 = vset.pattern.permute.xlu0 0
        %3717 = vperm.xlu0 %3716, %v585
        %v3718 = vpop.permute.xlu0 %3717
        %3721 = vset.pattern.permute.xlu0 0
        %3722 = vperm.xlu0 %3721, %v586
        %v3723 = vpop.permute.xlu0 %3722
        %3726 = vset.pattern.permute.xlu0 0
        %3727 = vperm.xlu0 %3726, %v587
        %v3728 = vpop.permute.xlu0 %3727
        %3731 = vset.pattern.permute.xlu0 0
        %3732 = vperm.xlu0 %3731, %v588
        %v3733 = vpop.permute.xlu0 %3732
        %3736 = vset.pattern.permute.xlu0 0
        %3737 = vperm.xlu0 %3736, %v589
        %v3738 = vpop.permute.xlu0 %3737
        %v3740 = vadd.f32 %v3020, %v3343
        %v3741 = vadd.f32 %v3021, %v3343
        %v3742 = vadd.f32 %v3022, %v3343
        %v3743 = vadd.f32 %v3023, %v3343
        %v3744 = vadd.f32 %v3024, %v3348
        %v3745 = vadd.f32 %v3025, %v3348
        %v3746 = vadd.f32 %v3026, %v3348
        %v3747 = vadd.f32 %v3027, %v3348
        %v3748 = vadd.f32 %v3028, %v3353
        %v3749 = vadd.f32 %v3029, %v3353
        %v3750 = vadd.f32 %v3030, %v3353
        %v3751 = vadd.f32 %v3031, %v3353
        %v3752 = vadd.f32 %v3032, %v3358
        %v3753 = vadd.f32 %v3033, %v3358
        %v3754 = vadd.f32 %v3034, %v3358
        %v3755 = vadd.f32 %v3035, %v3358
        %v3756 = vadd.f32 %v3036, %v3363
        %v3757 = vadd.f32 %v3037, %v3363
        %v3758 = vadd.f32 %v3038, %v3363
        %v3759 = vadd.f32 %v3039, %v3363
        %v3760 = vadd.f32 %v3040, %v3368
        %v3761 = vadd.f32 %v3041, %v3368
        %v3762 = vadd.f32 %v3042, %v3368
        %v3763 = vadd.f32 %v3043, %v3368
        %v3764 = vadd.f32 %v3044, %v3373
        %v3765 = vadd.f32 %v3045, %v3373
        %v3766 = vadd.f32 %v3046, %v3373
        %v3767 = vadd.f32 %v3047, %v3373
        %v3768 = vadd.f32 %v3048, %v3378
        %v3769 = vadd.f32 %v3049, %v3378
        %v3770 = vadd.f32 %v3050, %v3378
        %v3771 = vadd.f32 %v3051, %v3378
        %v3772 = vadd.f32 %v3052, %v3383
        %v3773 = vadd.f32 %v3053, %v3383
        %v3774 = vadd.f32 %v3054, %v3383
        %v3775 = vadd.f32 %v3055, %v3383
        %v3776 = vadd.f32 %v3056, %v3388
        %v3777 = vadd.f32 %v3057, %v3388
        %v3778 = vadd.f32 %v3058, %v3388
        %v3779 = vadd.f32 %v3059, %v3388
        %v3780 = vadd.f32 %v3060, %v3393
        %v3781 = vadd.f32 %v3061, %v3393
        %v3782 = vadd.f32 %v3062, %v3393
        %v3783 = vadd.f32 %v3063, %v3393
        %v3784 = vadd.f32 %v3064, %v3398
        %v3785 = vadd.f32 %v3065, %v3398
        %v3786 = vadd.f32 %v3066, %v3398
        %v3787 = vadd.f32 %v3067, %v3398
        %v3788 = vadd.f32 %v3068, %v3403
        %v3789 = vadd.f32 %v3069, %v3403
        %v3790 = vadd.f32 %v3070, %v3403
        %v3791 = vadd.f32 %v3071, %v3403
        %v3792 = vadd.f32 %v3072, %v3408
        %v3793 = vadd.f32 %v3073, %v3408
        %v3794 = vadd.f32 %v3074, %v3408
        %v3795 = vadd.f32 %v3075, %v3408
        %v3796 = vadd.f32 %v3076, %v3413
        %v3797 = vadd.f32 %v3077, %v3413
        %v3798 = vadd.f32 %v3078, %v3413
        %v3799 = vadd.f32 %v3079, %v3413
        %v3800 = vadd.f32 %v3080, %v3418
        %v3801 = vadd.f32 %v3081, %v3418
        %v3802 = vadd.f32 %v3082, %v3418
        %v3803 = vadd.f32 %v3083, %v3418
        %v3804 = vadd.f32 %v3084, %v3423
        %v3805 = vadd.f32 %v3085, %v3423
        %v3806 = vadd.f32 %v3086, %v3423
        %v3807 = vadd.f32 %v3087, %v3423
        %v3808 = vadd.f32 %v3088, %v3428
        %v3809 = vadd.f32 %v3089, %v3428
        %v3810 = vadd.f32 %v3090, %v3428
        %v3811 = vadd.f32 %v3091, %v3428
        %v3812 = vadd.f32 %v3092, %v3433
        %v3813 = vadd.f32 %v3093, %v3433
        %v3814 = vadd.f32 %v3094, %v3433
        %v3815 = vadd.f32 %v3095, %v3433
        %v3816 = vadd.f32 %v3096, %v3438
        %v3817 = vadd.f32 %v3097, %v3438
        %v3818 = vadd.f32 %v3098, %v3438
        %v3819 = vadd.f32 %v3099, %v3438
        %v3820 = vadd.f32 %v3100, %v3443
        %v3821 = vadd.f32 %v3101, %v3443
        %v3822 = vadd.f32 %v3102, %v3443
        %v3823 = vadd.f32 %v3103, %v3443
        %v3824 = vadd.f32 %v3104, %v3448
        %v3825 = vadd.f32 %v3105, %v3448
        %v3826 = vadd.f32 %v3106, %v3448
        %v3827 = vadd.f32 %v3107, %v3448
        %v3828 = vadd.f32 %v3108, %v3453
        %v3829 = vadd.f32 %v3109, %v3453
        %v3830 = vadd.f32 %v3110, %v3453
        %v3831 = vadd.f32 %v3111, %v3453
        %v3832 = vadd.f32 %v3112, %v3458
        %v3833 = vadd.f32 %v3113, %v3458
        %v3834 = vadd.f32 %v3114, %v3458
        %v3835 = vadd.f32 %v3115, %v3458
        %v3836 = vadd.f32 %v3116, %v3463
        %v3837 = vadd.f32 %v3117, %v3463
        %v3838 = vadd.f32 %v3118, %v3463
        %v3839 = vadd.f32 %v3119, %v3463
        %v3840 = vadd.f32 %v3120, %v3468
        %v3841 = vadd.f32 %v3121, %v3468
        %v3842 = vadd.f32 %v3122, %v3468
        %v3843 = vadd.f32 %v3123, %v3468
        %v3844 = vadd.f32 %v3124, %v3473
        %v3845 = vadd.f32 %v3125, %v3473
        %v3846 = vadd.f32 %v3126, %v3473
        %v3847 = vadd.f32 %v3127, %v3473
        %v3848 = vadd.f32 %v3128, %v3478
        %v3849 = vadd.f32 %v3129, %v3478
        %v3850 = vadd.f32 %v3130, %v3478
        %v3851 = vadd.f32 %v3131, %v3478
        %v3852 = vadd.f32 %v3132, %v3483
        %v3853 = vadd.f32 %v3133, %v3483
        %v3854 = vadd.f32 %v3134, %v3483
        %v3855 = vadd.f32 %v3135, %v3483
        %v3856 = vadd.f32 %v3136, %v3488
        %v3857 = vadd.f32 %v3137, %v3488
        %v3858 = vadd.f32 %v3138, %v3488
        %v3859 = vadd.f32 %v3139, %v3488
        %v3860 = vadd.f32 %v3140, %v3493
        %v3861 = vadd.f32 %v3141, %v3493
        %v3862 = vadd.f32 %v3142, %v3493
        %v3863 = vadd.f32 %v3143, %v3493
        %v3864 = vadd.f32 %v3144, %v3498
        %v3865 = vadd.f32 %v3145, %v3498
        %v3866 = vadd.f32 %v3146, %v3498
        %v3867 = vadd.f32 %v3147, %v3498
        %v3868 = vadd.f32 %v3148, %v3503
        %v3869 = vadd.f32 %v3149, %v3503
        %v3870 = vadd.f32 %v3150, %v3503
        %v3871 = vadd.f32 %v3151, %v3503
        %v3872 = vadd.f32 %v3152, %v3508
        %v3873 = vadd.f32 %v3153, %v3508
        %v3874 = vadd.f32 %v3154, %v3508
        %v3875 = vadd.f32 %v3155, %v3508
        %v3876 = vadd.f32 %v3156, %v3513
        %v3877 = vadd.f32 %v3157, %v3513
        %v3878 = vadd.f32 %v3158, %v3513
        %v3879 = vadd.f32 %v3159, %v3513
        %v3880 = vadd.f32 %v3160, %v3518
        %v3881 = vadd.f32 %v3161, %v3518
        %v3882 = vadd.f32 %v3162, %v3518
        %v3883 = vadd.f32 %v3163, %v3518
        %v3884 = vadd.f32 %v3164, %v3523
        %v3885 = vadd.f32 %v3165, %v3523
        %v3886 = vadd.f32 %v3166, %v3523
        %v3887 = vadd.f32 %v3167, %v3523
        %v3888 = vadd.f32 %v3168, %v3528
        %v3889 = vadd.f32 %v3169, %v3528
        %v3890 = vadd.f32 %v3170, %v3528
        %v3891 = vadd.f32 %v3171, %v3528
        %v3892 = vadd.f32 %v3172, %v3533
        %v3893 = vadd.f32 %v3173, %v3533
        %v3894 = vadd.f32 %v3174, %v3533
        %v3895 = vadd.f32 %v3175, %v3533
        %v3896 = vadd.f32 %v3176, %v3538
        %v3897 = vadd.f32 %v3177, %v3538
        %v3898 = vadd.f32 %v3178, %v3538
        %v3899 = vadd.f32 %v3179, %v3538
        %v3900 = vadd.f32 %v3180, %v3543
        %v3901 = vadd.f32 %v3181, %v3543
        %v3902 = vadd.f32 %v3182, %v3543
        %v3903 = vadd.f32 %v3183, %v3543
        %v3904 = vadd.f32 %v3184, %v3548
        %v3905 = vadd.f32 %v3185, %v3548
        %v3906 = vadd.f32 %v3186, %v3548
        %v3907 = vadd.f32 %v3187, %v3548
        %v3908 = vadd.f32 %v3188, %v3553
        %v3909 = vadd.f32 %v3189, %v3553
        %v3910 = vadd.f32 %v3190, %v3553
        %v3911 = vadd.f32 %v3191, %v3553
        %v3912 = vadd.f32 %v3192, %v3558
        %v3913 = vadd.f32 %v3193, %v3558
        %v3914 = vadd.f32 %v3194, %v3558
        %v3915 = vadd.f32 %v3195, %v3558
        %v3916 = vadd.f32 %v3196, %v3563
        %v3917 = vadd.f32 %v3197, %v3563
        %v3918 = vadd.f32 %v3198, %v3563
        %v3919 = vadd.f32 %v3199, %v3563
        %v3920 = vadd.f32 %v3200, %v3568
        %v3921 = vadd.f32 %v3201, %v3568
        %v3922 = vadd.f32 %v3202, %v3568
        %v3923 = vadd.f32 %v3203, %v3568
        %v3924 = vadd.f32 %v3204, %v3573
        %v3925 = vadd.f32 %v3205, %v3573
        %v3926 = vadd.f32 %v3206, %v3573
        %v3927 = vadd.f32 %v3207, %v3573
        %v3928 = vadd.f32 %v3208, %v3578
        %v3929 = vadd.f32 %v3209, %v3578
        %v3930 = vadd.f32 %v3210, %v3578
        %v3931 = vadd.f32 %v3211, %v3578
        %v3932 = vadd.f32 %v3212, %v3583
        %v3933 = vadd.f32 %v3213, %v3583
        %v3934 = vadd.f32 %v3214, %v3583
        %v3935 = vadd.f32 %v3215, %v3583
        %v3936 = vadd.f32 %v3216, %v3588
        %v3937 = vadd.f32 %v3217, %v3588
        %v3938 = vadd.f32 %v3218, %v3588
        %v3939 = vadd.f32 %v3219, %v3588
        %v3940 = vadd.f32 %v3220, %v3593
        %v3941 = vadd.f32 %v3221, %v3593
        %v3942 = vadd.f32 %v3222, %v3593
        %v3943 = vadd.f32 %v3223, %v3593
        %v3944 = vadd.f32 %v3224, %v3598
        %v3945 = vadd.f32 %v3225, %v3598
        %v3946 = vadd.f32 %v3226, %v3598
        %v3947 = vadd.f32 %v3227, %v3598
        %v3948 = vadd.f32 %v3228, %v3603
        %v3949 = vadd.f32 %v3229, %v3603
        %v3950 = vadd.f32 %v3230, %v3603
        %v3951 = vadd.f32 %v3231, %v3603
        %v3952 = vadd.f32 %v3232, %v3608
        %v3953 = vadd.f32 %v3233, %v3608
        %v3954 = vadd.f32 %v3234, %v3608
        %v3955 = vadd.f32 %v3235, %v3608
        %v3956 = vadd.f32 %v3236, %v3613
        %v3957 = vadd.f32 %v3237, %v3613
        %v3958 = vadd.f32 %v3238, %v3613
        %v3959 = vadd.f32 %v3239, %v3613
        %v3960 = vadd.f32 %v3240, %v3618
        %v3961 = vadd.f32 %v3241, %v3618
        %v3962 = vadd.f32 %v3242, %v3618
        %v3963 = vadd.f32 %v3243, %v3618
        %v3964 = vadd.f32 %v3244, %v3623
        %v3965 = vadd.f32 %v3245, %v3623
        %v3966 = vadd.f32 %v3246, %v3623
        %v3967 = vadd.f32 %v3247, %v3623
        %v3968 = vadd.f32 %v3248, %v3628
        %v3969 = vadd.f32 %v3249, %v3628
        %v3970 = vadd.f32 %v3250, %v3628
        %v3971 = vadd.f32 %v3251, %v3628
        %v3972 = vadd.f32 %v3252, %v3633
        %v3973 = vadd.f32 %v3253, %v3633
        %v3974 = vadd.f32 %v3254, %v3633
        %v3975 = vadd.f32 %v3255, %v3633
        %v3976 = vadd.f32 %v3256, %v3638
        %v3977 = vadd.f32 %v3257, %v3638
        %v3978 = vadd.f32 %v3258, %v3638
        %v3979 = vadd.f32 %v3259, %v3638
        %v3980 = vadd.f32 %v3260, %v3643
        %v3981 = vadd.f32 %v3261, %v3643
        %v3982 = vadd.f32 %v3262, %v3643
        %v3983 = vadd.f32 %v3263, %v3643
        %v3984 = vadd.f32 %v3264, %v3648
        %v3985 = vadd.f32 %v3265, %v3648
        %v3986 = vadd.f32 %v3266, %v3648
        %v3987 = vadd.f32 %v3267, %v3648
        %v3988 = vadd.f32 %v3268, %v3653
        %v3989 = vadd.f32 %v3269, %v3653
        %v3990 = vadd.f32 %v3270, %v3653
        %v3991 = vadd.f32 %v3271, %v3653
        %v3992 = vadd.f32 %v3272, %v3658
        %v3993 = vadd.f32 %v3273, %v3658
        %v3994 = vadd.f32 %v3274, %v3658
        %v3995 = vadd.f32 %v3275, %v3658
        %v3996 = vadd.f32 %v3276, %v3663
        %v3997 = vadd.f32 %v3277, %v3663
        %v3998 = vadd.f32 %v3278, %v3663
        %v3999 = vadd.f32 %v3279, %v3663
        %v4000 = vadd.f32 %v3280, %v3668
        %v4001 = vadd.f32 %v3281, %v3668
        %v4002 = vadd.f32 %v3282, %v3668
        %v4003 = vadd.f32 %v3283, %v3668
        %v4004 = vadd.f32 %v3284, %v3673
        %v4005 = vadd.f32 %v3285, %v3673
        %v4006 = vadd.f32 %v3286, %v3673
        %v4007 = vadd.f32 %v3287, %v3673
        %v4008 = vadd.f32 %v3288, %v3678
        %v4009 = vadd.f32 %v3289, %v3678
        %v4010 = vadd.f32 %v3290, %v3678
        %v4011 = vadd.f32 %v3291, %v3678
        %v4012 = vadd.f32 %v3292, %v3683
        %v4013 = vadd.f32 %v3293, %v3683
        %v4014 = vadd.f32 %v3294, %v3683
        %v4015 = vadd.f32 %v3295, %v3683
        %v4016 = vadd.f32 %v3296, %v3688
        %v4017 = vadd.f32 %v3297, %v3688
        %v4018 = vadd.f32 %v3298, %v3688
        %v4019 = vadd.f32 %v3299, %v3688
        %v4020 = vadd.f32 %v3300, %v3693
        %v4021 = vadd.f32 %v3301, %v3693
        %v4022 = vadd.f32 %v3302, %v3693
        %v4023 = vadd.f32 %v3303, %v3693
        %v4024 = vadd.f32 %v3304, %v3698
        %v4025 = vadd.f32 %v3305, %v3698
        %v4026 = vadd.f32 %v3306, %v3698
        %v4027 = vadd.f32 %v3307, %v3698
        %v4028 = vadd.f32 %v3308, %v3703
        %v4029 = vadd.f32 %v3309, %v3703
        %v4030 = vadd.f32 %v3310, %v3703
        %v4031 = vadd.f32 %v3311, %v3703
        %v4032 = vadd.f32 %v3312, %v3708
        %v4033 = vadd.f32 %v3313, %v3708
        %v4034 = vadd.f32 %v3314, %v3708
        %v4035 = vadd.f32 %v3315, %v3708
        %v4036 = vadd.f32 %v3316, %v3713
        %v4037 = vadd.f32 %v3317, %v3713
        %v4038 = vadd.f32 %v3318, %v3713
        %v4039 = vadd.f32 %v3319, %v3713
        %v4040 = vadd.f32 %v3320, %v3718
        %v4041 = vadd.f32 %v3321, %v3718
        %v4042 = vadd.f32 %v3322, %v3718
        %v4043 = vadd.f32 %v3323, %v3718
        %v4044 = vadd.f32 %v3324, %v3723
        %v4045 = vadd.f32 %v3325, %v3723
        %v4046 = vadd.f32 %v3326, %v3723
        %v4047 = vadd.f32 %v3327, %v3723
        %v4048 = vadd.f32 %v3328, %v3728
        %v4049 = vadd.f32 %v3329, %v3728
        %v4050 = vadd.f32 %v3330, %v3728
        %v4051 = vadd.f32 %v3331, %v3728
        %v4052 = vadd.f32 %v3332, %v3733
        %v4053 = vadd.f32 %v3333, %v3733
        %v4054 = vadd.f32 %v3334, %v3733
        %v4055 = vadd.f32 %v3335, %v3733
        %v4056 = vadd.f32 %v3336, %v3738
        %v4057 = vadd.f32 %v3337, %v3738
        %v4058 = vadd.f32 %v3338, %v3738
        %v4059 = vadd.f32 %v3339, %v3738
        %v4060 = vmax.f32 %v3740, 0.0
        %v4061 = vmax.f32 %v3741, 0.0
        %v4062 = vmax.f32 %v3742, 0.0
        %v4063 = vmax.f32 %v3743, 0.0
        %v4064 = vmax.f32 %v3744, 0.0
        %v4065 = vmax.f32 %v3745, 0.0
        %v4066 = vmax.f32 %v3746, 0.0
        %v4067 = vmax.f32 %v3747, 0.0
        %v4068 = vmax.f32 %v3748, 0.0
        %v4069 = vmax.f32 %v3749, 0.0
        %v4070 = vmax.f32 %v3750, 0.0
        %v4071 = vmax.f32 %v3751, 0.0
        %v4072 = vmax.f32 %v3752, 0.0
        %v4073 = vmax.f32 %v3753, 0.0
        %v4074 = vmax.f32 %v3754, 0.0
        %v4075 = vmax.f32 %v3755, 0.0
        %v4076 = vmax.f32 %v3756, 0.0
        %v4077 = vmax.f32 %v3757, 0.0
        %v4078 = vmax.f32 %v3758, 0.0
        %v4079 = vmax.f32 %v3759, 0.0
        %v4080 = vmax.f32 %v3760, 0.0
        %v4081 = vmax.f32 %v3761, 0.0
        %v4082 = vmax.f32 %v3762, 0.0
        %v4083 = vmax.f32 %v3763, 0.0
        %v4084 = vmax.f32 %v3764, 0.0
        %v4085 = vmax.f32 %v3765, 0.0
        %v4086 = vmax.f32 %v3766, 0.0
        %v4087 = vmax.f32 %v3767, 0.0
        %v4088 = vmax.f32 %v3768, 0.0
        %v4089 = vmax.f32 %v3769, 0.0
        %v4090 = vmax.f32 %v3770, 0.0
        %v4091 = vmax.f32 %v3771, 0.0
        %v4092 = vmax.f32 %v3772, 0.0
        %v4093 = vmax.f32 %v3773, 0.0
        %v4094 = vmax.f32 %v3774, 0.0
        %v4095 = vmax.f32 %v3775, 0.0
        %v4096 = vmax.f32 %v3776, 0.0
        %v4097 = vmax.f32 %v3777, 0.0
        %v4098 = vmax.f32 %v3778, 0.0
        %v4099 = vmax.f32 %v3779, 0.0
        %v4100 = vmax.f32 %v3780, 0.0
        %v4101 = vmax.f32 %v3781, 0.0
        %v4102 = vmax.f32 %v3782, 0.0
        %v4103 = vmax.f32 %v3783, 0.0
        %v4104 = vmax.f32 %v3784, 0.0
        %v4105 = vmax.f32 %v3785, 0.0
        %v4106 = vmax.f32 %v3786, 0.0
        %v4107 = vmax.f32 %v3787, 0.0
        %v4108 = vmax.f32 %v3788, 0.0
        %v4109 = vmax.f32 %v3789, 0.0
        %v4110 = vmax.f32 %v3790, 0.0
        %v4111 = vmax.f32 %v3791, 0.0
        %v4112 = vmax.f32 %v3792, 0.0
        %v4113 = vmax.f32 %v3793, 0.0
        %v4114 = vmax.f32 %v3794, 0.0
        %v4115 = vmax.f32 %v3795, 0.0
        %v4116 = vmax.f32 %v3796, 0.0
        %v4117 = vmax.f32 %v3797, 0.0
        %v4118 = vmax.f32 %v3798, 0.0
        %v4119 = vmax.f32 %v3799, 0.0
        %v4120 = vmax.f32 %v3800, 0.0
        %v4121 = vmax.f32 %v3801, 0.0
        %v4122 = vmax.f32 %v3802, 0.0
        %v4123 = vmax.f32 %v3803, 0.0
        %v4124 = vmax.f32 %v3804, 0.0
        %v4125 = vmax.f32 %v3805, 0.0
        %v4126 = vmax.f32 %v3806, 0.0
        %v4127 = vmax.f32 %v3807, 0.0
        %v4128 = vmax.f32 %v3808, 0.0
        %v4129 = vmax.f32 %v3809, 0.0
        %v4130 = vmax.f32 %v3810, 0.0
        %v4131 = vmax.f32 %v3811, 0.0
        %v4132 = vmax.f32 %v3812, 0.0
        %v4133 = vmax.f32 %v3813, 0.0
        %v4134 = vmax.f32 %v3814, 0.0
        %v4135 = vmax.f32 %v3815, 0.0
        %v4136 = vmax.f32 %v3816, 0.0
        %v4137 = vmax.f32 %v3817, 0.0
        %v4138 = vmax.f32 %v3818, 0.0
        %v4139 = vmax.f32 %v3819, 0.0
        %v4140 = vmax.f32 %v3820, 0.0
        %v4141 = vmax.f32 %v3821, 0.0
        %v4142 = vmax.f32 %v3822, 0.0
        %v4143 = vmax.f32 %v3823, 0.0
        %v4144 = vmax.f32 %v3824, 0.0
        %v4145 = vmax.f32 %v3825, 0.0
        %v4146 = vmax.f32 %v3826, 0.0
        %v4147 = vmax.f32 %v3827, 0.0
        %v4148 = vmax.f32 %v3828, 0.0
        %v4149 = vmax.f32 %v3829, 0.0
        %v4150 = vmax.f32 %v3830, 0.0
        %v4151 = vmax.f32 %v3831, 0.0
        %v4152 = vmax.f32 %v3832, 0.0
        %v4153 = vmax.f32 %v3833, 0.0
        %v4154 = vmax.f32 %v3834, 0.0
        %v4155 = vmax.f32 %v3835, 0.0
        %v4156 = vmax.f32 %v3836, 0.0
        %v4157 = vmax.f32 %v3837, 0.0
        %v4158 = vmax.f32 %v3838, 0.0
        %v4159 = vmax.f32 %v3839, 0.0
        %v4160 = vmax.f32 %v3840, 0.0
        %v4161 = vmax.f32 %v3841, 0.0
        %v4162 = vmax.f32 %v3842, 0.0
        %v4163 = vmax.f32 %v3843, 0.0
        %v4164 = vmax.f32 %v3844, 0.0
        %v4165 = vmax.f32 %v3845, 0.0
        %v4166 = vmax.f32 %v3846, 0.0
        %v4167 = vmax.f32 %v3847, 0.0
        %v4168 = vmax.f32 %v3848, 0.0
        %v4169 = vmax.f32 %v3849, 0.0
        %v4170 = vmax.f32 %v3850, 0.0
        %v4171 = vmax.f32 %v3851, 0.0
        %v4172 = vmax.f32 %v3852, 0.0
        %v4173 = vmax.f32 %v3853, 0.0
        %v4174 = vmax.f32 %v3854, 0.0
        %v4175 = vmax.f32 %v3855, 0.0
        %v4176 = vmax.f32 %v3856, 0.0
        %v4177 = vmax.f32 %v3857, 0.0
        %v4178 = vmax.f32 %v3858, 0.0
        %v4179 = vmax.f32 %v3859, 0.0
        %v4180 = vmax.f32 %v3860, 0.0
        %v4181 = vmax.f32 %v3861, 0.0
        %v4182 = vmax.f32 %v3862, 0.0
        %v4183 = vmax.f32 %v3863, 0.0
        %v4184 = vmax.f32 %v3864, 0.0
        %v4185 = vmax.f32 %v3865, 0.0
        %v4186 = vmax.f32 %v3866, 0.0
        %v4187 = vmax.f32 %v3867, 0.0
        %v4188 = vmax.f32 %v3868, 0.0
        %v4189 = vmax.f32 %v3869, 0.0
        %v4190 = vmax.f32 %v3870, 0.0
        %v4191 = vmax.f32 %v3871, 0.0
        %v4192 = vmax.f32 %v3872, 0.0
        %v4193 = vmax.f32 %v3873, 0.0
        %v4194 = vmax.f32 %v3874, 0.0
        %v4195 = vmax.f32 %v3875, 0.0
        %v4196 = vmax.f32 %v3876, 0.0
        %v4197 = vmax.f32 %v3877, 0.0
        %v4198 = vmax.f32 %v3878, 0.0
        %v4199 = vmax.f32 %v3879, 0.0
        %v4200 = vmax.f32 %v3880, 0.0
        %v4201 = vmax.f32 %v3881, 0.0
        %v4202 = vmax.f32 %v3882, 0.0
        %v4203 = vmax.f32 %v3883, 0.0
        %v4204 = vmax.f32 %v3884, 0.0
        %v4205 = vmax.f32 %v3885, 0.0
        %v4206 = vmax.f32 %v3886, 0.0
        %v4207 = vmax.f32 %v3887, 0.0
        %v4208 = vmax.f32 %v3888, 0.0
        %v4209 = vmax.f32 %v3889, 0.0
        %v4210 = vmax.f32 %v3890, 0.0
        %v4211 = vmax.f32 %v3891, 0.0
        %v4212 = vmax.f32 %v3892, 0.0
        %v4213 = vmax.f32 %v3893, 0.0
        %v4214 = vmax.f32 %v3894, 0.0
        %v4215 = vmax.f32 %v3895, 0.0
        %v4216 = vmax.f32 %v3896, 0.0
        %v4217 = vmax.f32 %v3897, 0.0
        %v4218 = vmax.f32 %v3898, 0.0
        %v4219 = vmax.f32 %v3899, 0.0
        %v4220 = vmax.f32 %v3900, 0.0
        %v4221 = vmax.f32 %v3901, 0.0
        %v4222 = vmax.f32 %v3902, 0.0
        %v4223 = vmax.f32 %v3903, 0.0
        %v4224 = vmax.f32 %v3904, 0.0
        %v4225 = vmax.f32 %v3905, 0.0
        %v4226 = vmax.f32 %v3906, 0.0
        %v4227 = vmax.f32 %v3907, 0.0
        %v4228 = vmax.f32 %v3908, 0.0
        %v4229 = vmax.f32 %v3909, 0.0
        %v4230 = vmax.f32 %v3910, 0.0
        %v4231 = vmax.f32 %v3911, 0.0
        %v4232 = vmax.f32 %v3912, 0.0
        %v4233 = vmax.f32 %v3913, 0.0
        %v4234 = vmax.f32 %v3914, 0.0
        %v4235 = vmax.f32 %v3915, 0.0
        %v4236 = vmax.f32 %v3916, 0.0
        %v4237 = vmax.f32 %v3917, 0.0
        %v4238 = vmax.f32 %v3918, 0.0
        %v4239 = vmax.f32 %v3919, 0.0
        %v4240 = vmax.f32 %v3920, 0.0
        %v4241 = vmax.f32 %v3921, 0.0
        %v4242 = vmax.f32 %v3922, 0.0
        %v4243 = vmax.f32 %v3923, 0.0
        %v4244 = vmax.f32 %v3924, 0.0
        %v4245 = vmax.f32 %v3925, 0.0
        %v4246 = vmax.f32 %v3926, 0.0
        %v4247 = vmax.f32 %v3927, 0.0
        %v4248 = vmax.f32 %v3928, 0.0
        %v4249 = vmax.f32 %v3929, 0.0
        %v4250 = vmax.f32 %v3930, 0.0
        %v4251 = vmax.f32 %v3931, 0.0
        %v4252 = vmax.f32 %v3932, 0.0
        %v4253 = vmax.f32 %v3933, 0.0
        %v4254 = vmax.f32 %v3934, 0.0
        %v4255 = vmax.f32 %v3935, 0.0
        %v4256 = vmax.f32 %v3936, 0.0
        %v4257 = vmax.f32 %v3937, 0.0
        %v4258 = vmax.f32 %v3938, 0.0
        %v4259 = vmax.f32 %v3939, 0.0
        %v4260 = vmax.f32 %v3940, 0.0
        %v4261 = vmax.f32 %v3941, 0.0
        %v4262 = vmax.f32 %v3942, 0.0
        %v4263 = vmax.f32 %v3943, 0.0
        %v4264 = vmax.f32 %v3944, 0.0
        %v4265 = vmax.f32 %v3945, 0.0
        %v4266 = vmax.f32 %v3946, 0.0
        %v4267 = vmax.f32 %v3947, 0.0
        %v4268 = vmax.f32 %v3948, 0.0
        %v4269 = vmax.f32 %v3949, 0.0
        %v4270 = vmax.f32 %v3950, 0.0
        %v4271 = vmax.f32 %v3951, 0.0
        %v4272 = vmax.f32 %v3952, 0.0
        %v4273 = vmax.f32 %v3953, 0.0
        %v4274 = vmax.f32 %v3954, 0.0
        %v4275 = vmax.f32 %v3955, 0.0
        %v4276 = vmax.f32 %v3956, 0.0
        %v4277 = vmax.f32 %v3957, 0.0
        %v4278 = vmax.f32 %v3958, 0.0
        %v4279 = vmax.f32 %v3959, 0.0
        %v4280 = vmax.f32 %v3960, 0.0
        %v4281 = vmax.f32 %v3961, 0.0
        %v4282 = vmax.f32 %v3962, 0.0
        %v4283 = vmax.f32 %v3963, 0.0
        %v4284 = vmax.f32 %v3964, 0.0
        %v4285 = vmax.f32 %v3965, 0.0
        %v4286 = vmax.f32 %v3966, 0.0
        %v4287 = vmax.f32 %v3967, 0.0
        %v4288 = vmax.f32 %v3968, 0.0
        %v4289 = vmax.f32 %v3969, 0.0
        %v4290 = vmax.f32 %v3970, 0.0
        %v4291 = vmax.f32 %v3971, 0.0
        %v4292 = vmax.f32 %v3972, 0.0
        %v4293 = vmax.f32 %v3973, 0.0
        %v4294 = vmax.f32 %v3974, 0.0
        %v4295 = vmax.f32 %v3975, 0.0
        %v4296 = vmax.f32 %v3976, 0.0
        %v4297 = vmax.f32 %v3977, 0.0
        %v4298 = vmax.f32 %v3978, 0.0
        %v4299 = vmax.f32 %v3979, 0.0
        %v4300 = vmax.f32 %v3980, 0.0
        %v4301 = vmax.f32 %v3981, 0.0
        %v4302 = vmax.f32 %v3982, 0.0
        %v4303 = vmax.f32 %v3983, 0.0
        %v4304 = vmax.f32 %v3984, 0.0
        %v4305 = vmax.f32 %v3985, 0.0
        %v4306 = vmax.f32 %v3986, 0.0
        %v4307 = vmax.f32 %v3987, 0.0
        %v4308 = vmax.f32 %v3988, 0.0
        %v4309 = vmax.f32 %v3989, 0.0
        %v4310 = vmax.f32 %v3990, 0.0
        %v4311 = vmax.f32 %v3991, 0.0
        %v4312 = vmax.f32 %v3992, 0.0
        %v4313 = vmax.f32 %v3993, 0.0
        %v4314 = vmax.f32 %v3994, 0.0
        %v4315 = vmax.f32 %v3995, 0.0
        %v4316 = vmax.f32 %v3996, 0.0
        %v4317 = vmax.f32 %v3997, 0.0
        %v4318 = vmax.f32 %v3998, 0.0
        %v4319 = vmax.f32 %v3999, 0.0
        %v4320 = vmax.f32 %v4000, 0.0
        %v4321 = vmax.f32 %v4001, 0.0
        %v4322 = vmax.f32 %v4002, 0.0
        %v4323 = vmax.f32 %v4003, 0.0
        %v4324 = vmax.f32 %v4004, 0.0
        %v4325 = vmax.f32 %v4005, 0.0
        %v4326 = vmax.f32 %v4006, 0.0
        %v4327 = vmax.f32 %v4007, 0.0
        %v4328 = vmax.f32 %v4008, 0.0
        %v4329 = vmax.f32 %v4009, 0.0
        %v4330 = vmax.f32 %v4010, 0.0
        %v4331 = vmax.f32 %v4011, 0.0
        %v4332 = vmax.f32 %v4012, 0.0
        %v4333 = vmax.f32 %v4013, 0.0
        %v4334 = vmax.f32 %v4014, 0.0
        %v4335 = vmax.f32 %v4015, 0.0
        %v4336 = vmax.f32 %v4016, 0.0
        %v4337 = vmax.f32 %v4017, 0.0
        %v4338 = vmax.f32 %v4018, 0.0
        %v4339 = vmax.f32 %v4019, 0.0
        %v4340 = vmax.f32 %v4020, 0.0
        %v4341 = vmax.f32 %v4021, 0.0
        %v4342 = vmax.f32 %v4022, 0.0
        %v4343 = vmax.f32 %v4023, 0.0
        %v4344 = vmax.f32 %v4024, 0.0
        %v4345 = vmax.f32 %v4025, 0.0
        %v4346 = vmax.f32 %v4026, 0.0
        %v4347 = vmax.f32 %v4027, 0.0
        %v4348 = vmax.f32 %v4028, 0.0
        %v4349 = vmax.f32 %v4029, 0.0
        %v4350 = vmax.f32 %v4030, 0.0
        %v4351 = vmax.f32 %v4031, 0.0
        %v4352 = vmax.f32 %v4032, 0.0
        %v4353 = vmax.f32 %v4033, 0.0
        %v4354 = vmax.f32 %v4034, 0.0
        %v4355 = vmax.f32 %v4035, 0.0
        %v4356 = vmax.f32 %v4036, 0.0
        %v4357 = vmax.f32 %v4037, 0.0
        %v4358 = vmax.f32 %v4038, 0.0
        %v4359 = vmax.f32 %v4039, 0.0
        %v4360 = vmax.f32 %v4040, 0.0
        %v4361 = vmax.f32 %v4041, 0.0
        %v4362 = vmax.f32 %v4042, 0.0
        %v4363 = vmax.f32 %v4043, 0.0
        %v4364 = vmax.f32 %v4044, 0.0
        %v4365 = vmax.f32 %v4045, 0.0
        %v4366 = vmax.f32 %v4046, 0.0
        %v4367 = vmax.f32 %v4047, 0.0
        %v4368 = vmax.f32 %v4048, 0.0
        %v4369 = vmax.f32 %v4049, 0.0
        %v4370 = vmax.f32 %v4050, 0.0
        %v4371 = vmax.f32 %v4051, 0.0
        %v4372 = vmax.f32 %v4052, 0.0
        %v4373 = vmax.f32 %v4053, 0.0
        %v4374 = vmax.f32 %v4054, 0.0
        %v4375 = vmax.f32 %v4055, 0.0
        %v4376 = vmax.f32 %v4056, 0.0
        %v4377 = vmax.f32 %v4057, 0.0
        %v4378 = vmax.f32 %v4058, 0.0
        %v4379 = vmax.f32 %v4059, 0.0
        %v4380 = vpack.c.bf16 %v4064, %v4060
        %v4381 = vpack.c.bf16 %v4065, %v4061
        %v4382 = vpack.c.bf16 %v4066, %v4062
        %v4383 = vpack.c.bf16 %v4067, %v4063
        %v4384 = vpack.c.bf16 %v4072, %v4068
        %v4385 = vpack.c.bf16 %v4073, %v4069
        %v4386 = vpack.c.bf16 %v4074, %v4070
        %v4387 = vpack.c.bf16 %v4075, %v4071
        %v4388 = vpack.c.bf16 %v4080, %v4076
        %v4389 = vpack.c.bf16 %v4081, %v4077
        %v4390 = vpack.c.bf16 %v4082, %v4078
        %v4391 = vpack.c.bf16 %v4083, %v4079
        %v4392 = vpack.c.bf16 %v4088, %v4084
        %v4393 = vpack.c.bf16 %v4089, %v4085
        %v4394 = vpack.c.bf16 %v4090, %v4086
        %v4395 = vpack.c.bf16 %v4091, %v4087
        %v4396 = vpack.c.bf16 %v4096, %v4092
        %v4397 = vpack.c.bf16 %v4097, %v4093
        %v4398 = vpack.c.bf16 %v4098, %v4094
        %v4399 = vpack.c.bf16 %v4099, %v4095
        %v4400 = vpack.c.bf16 %v4104, %v4100
        %v4401 = vpack.c.bf16 %v4105, %v4101
        %v4402 = vpack.c.bf16 %v4106, %v4102
        %v4403 = vpack.c.bf16 %v4107, %v4103
        %v4404 = vpack.c.bf16 %v4112, %v4108
        %v4405 = vpack.c.bf16 %v4113, %v4109
        %v4406 = vpack.c.bf16 %v4114, %v4110
        %v4407 = vpack.c.bf16 %v4115, %v4111
        %v4408 = vpack.c.bf16 %v4120, %v4116
        %v4409 = vpack.c.bf16 %v4121, %v4117
        %v4410 = vpack.c.bf16 %v4122, %v4118
        %v4411 = vpack.c.bf16 %v4123, %v4119
        %v4412 = vpack.c.bf16 %v4128, %v4124
        %v4413 = vpack.c.bf16 %v4129, %v4125
        %v4414 = vpack.c.bf16 %v4130, %v4126
        %v4415 = vpack.c.bf16 %v4131, %v4127
        %v4416 = vpack.c.bf16 %v4136, %v4132
        %v4417 = vpack.c.bf16 %v4137, %v4133
        %v4418 = vpack.c.bf16 %v4138, %v4134
        %v4419 = vpack.c.bf16 %v4139, %v4135
        %v4420 = vpack.c.bf16 %v4144, %v4140
        %v4421 = vpack.c.bf16 %v4145, %v4141
        %v4422 = vpack.c.bf16 %v4146, %v4142
        %v4423 = vpack.c.bf16 %v4147, %v4143
        %v4424 = vpack.c.bf16 %v4152, %v4148
        %v4425 = vpack.c.bf16 %v4153, %v4149
        %v4426 = vpack.c.bf16 %v4154, %v4150
        %v4427 = vpack.c.bf16 %v4155, %v4151
        %v4428 = vpack.c.bf16 %v4160, %v4156
        %v4429 = vpack.c.bf16 %v4161, %v4157
        %v4430 = vpack.c.bf16 %v4162, %v4158
        %v4431 = vpack.c.bf16 %v4163, %v4159
        %v4432 = vpack.c.bf16 %v4168, %v4164
        %v4433 = vpack.c.bf16 %v4169, %v4165
        %v4434 = vpack.c.bf16 %v4170, %v4166
        %v4435 = vpack.c.bf16 %v4171, %v4167
        %v4436 = vpack.c.bf16 %v4176, %v4172
        %v4437 = vpack.c.bf16 %v4177, %v4173
        %v4438 = vpack.c.bf16 %v4178, %v4174
        %v4439 = vpack.c.bf16 %v4179, %v4175
        %v4440 = vpack.c.bf16 %v4184, %v4180
        %v4441 = vpack.c.bf16 %v4185, %v4181
        %v4442 = vpack.c.bf16 %v4186, %v4182
        %v4443 = vpack.c.bf16 %v4187, %v4183
        %v4444 = vpack.c.bf16 %v4192, %v4188
        %v4445 = vpack.c.bf16 %v4193, %v4189
        %v4446 = vpack.c.bf16 %v4194, %v4190
        %v4447 = vpack.c.bf16 %v4195, %v4191
        %v4448 = vpack.c.bf16 %v4200, %v4196
        %v4449 = vpack.c.bf16 %v4201, %v4197
        %v4450 = vpack.c.bf16 %v4202, %v4198
        %v4451 = vpack.c.bf16 %v4203, %v4199
        %v4452 = vpack.c.bf16 %v4208, %v4204
        %v4453 = vpack.c.bf16 %v4209, %v4205
        %v4454 = vpack.c.bf16 %v4210, %v4206
        %v4455 = vpack.c.bf16 %v4211, %v4207
        %v4456 = vpack.c.bf16 %v4216, %v4212
        %v4457 = vpack.c.bf16 %v4217, %v4213
        %v4458 = vpack.c.bf16 %v4218, %v4214
        %v4459 = vpack.c.bf16 %v4219, %v4215
        %v4460 = vpack.c.bf16 %v4224, %v4220
        %v4461 = vpack.c.bf16 %v4225, %v4221
        %v4462 = vpack.c.bf16 %v4226, %v4222
        %v4463 = vpack.c.bf16 %v4227, %v4223
        %v4464 = vpack.c.bf16 %v4232, %v4228
        %v4465 = vpack.c.bf16 %v4233, %v4229
        %v4466 = vpack.c.bf16 %v4234, %v4230
        %v4467 = vpack.c.bf16 %v4235, %v4231
        %v4468 = vpack.c.bf16 %v4240, %v4236
        %v4469 = vpack.c.bf16 %v4241, %v4237
        %v4470 = vpack.c.bf16 %v4242, %v4238
        %v4471 = vpack.c.bf16 %v4243, %v4239
        %v4472 = vpack.c.bf16 %v4248, %v4244
        %v4473 = vpack.c.bf16 %v4249, %v4245
        %v4474 = vpack.c.bf16 %v4250, %v4246
        %v4475 = vpack.c.bf16 %v4251, %v4247
        %v4476 = vpack.c.bf16 %v4256, %v4252
        %v4477 = vpack.c.bf16 %v4257, %v4253
        %v4478 = vpack.c.bf16 %v4258, %v4254
        %v4479 = vpack.c.bf16 %v4259, %v4255
        %v4480 = vpack.c.bf16 %v4264, %v4260
        %v4481 = vpack.c.bf16 %v4265, %v4261
        %v4482 = vpack.c.bf16 %v4266, %v4262
        %v4483 = vpack.c.bf16 %v4267, %v4263
        %v4484 = vpack.c.bf16 %v4272, %v4268
        %v4485 = vpack.c.bf16 %v4273, %v4269
        %v4486 = vpack.c.bf16 %v4274, %v4270
        %v4487 = vpack.c.bf16 %v4275, %v4271
        %v4488 = vpack.c.bf16 %v4280, %v4276
        %v4489 = vpack.c.bf16 %v4281, %v4277
        %v4490 = vpack.c.bf16 %v4282, %v4278
        %v4491 = vpack.c.bf16 %v4283, %v4279
        %v4492 = vpack.c.bf16 %v4288, %v4284
        %v4493 = vpack.c.bf16 %v4289, %v4285
        %v4494 = vpack.c.bf16 %v4290, %v4286
        %v4495 = vpack.c.bf16 %v4291, %v4287
        %v4496 = vpack.c.bf16 %v4296, %v4292
        %v4497 = vpack.c.bf16 %v4297, %v4293
        %v4498 = vpack.c.bf16 %v4298, %v4294
        %v4499 = vpack.c.bf16 %v4299, %v4295
        %v4500 = vpack.c.bf16 %v4304, %v4300
        %v4501 = vpack.c.bf16 %v4305, %v4301
        %v4502 = vpack.c.bf16 %v4306, %v4302
        %v4503 = vpack.c.bf16 %v4307, %v4303
        %v4504 = vpack.c.bf16 %v4312, %v4308
        %v4505 = vpack.c.bf16 %v4313, %v4309
        %v4506 = vpack.c.bf16 %v4314, %v4310
        %v4507 = vpack.c.bf16 %v4315, %v4311
        %v4508 = vpack.c.bf16 %v4320, %v4316
        %v4509 = vpack.c.bf16 %v4321, %v4317
        %v4510 = vpack.c.bf16 %v4322, %v4318
        %v4511 = vpack.c.bf16 %v4323, %v4319
        %v4512 = vpack.c.bf16 %v4328, %v4324
        %v4513 = vpack.c.bf16 %v4329, %v4325
        %v4514 = vpack.c.bf16 %v4330, %v4326
        %v4515 = vpack.c.bf16 %v4331, %v4327
        %v4516 = vpack.c.bf16 %v4336, %v4332
        %v4517 = vpack.c.bf16 %v4337, %v4333
        %v4518 = vpack.c.bf16 %v4338, %v4334
        %v4519 = vpack.c.bf16 %v4339, %v4335
        %v4520 = vpack.c.bf16 %v4344, %v4340
        %v4521 = vpack.c.bf16 %v4345, %v4341
        %v4522 = vpack.c.bf16 %v4346, %v4342
        %v4523 = vpack.c.bf16 %v4347, %v4343
        %v4524 = vpack.c.bf16 %v4352, %v4348
        %v4525 = vpack.c.bf16 %v4353, %v4349
        %v4526 = vpack.c.bf16 %v4354, %v4350
        %v4527 = vpack.c.bf16 %v4355, %v4351
        %v4528 = vpack.c.bf16 %v4360, %v4356
        %v4529 = vpack.c.bf16 %v4361, %v4357
        %v4530 = vpack.c.bf16 %v4362, %v4358
        %v4531 = vpack.c.bf16 %v4363, %v4359
        %v4532 = vpack.c.bf16 %v4368, %v4364
        %v4533 = vpack.c.bf16 %v4369, %v4365
        %v4534 = vpack.c.bf16 %v4370, %v4366
        %v4535 = vpack.c.bf16 %v4371, %v4367
        %v4536 = vpack.c.bf16 %v4376, %v4372
        %v4537 = vpack.c.bf16 %v4377, %v4373
        %v4538 = vpack.c.bf16 %v4378, %v4374
        %v4539 = vpack.c.bf16 %v4379, %v4375
        %v4700 = vunpack.c.l.b16 %v4380
        %v4701 = vunpack.c.l.b16 %v4381
        %v4702 = vunpack.c.l.b16 %v4382
        %v4703 = vunpack.c.l.b16 %v4383
        %v4704 = vunpack.c.h.b16 %v4380
        %v4705 = vunpack.c.h.b16 %v4381
        %v4706 = vunpack.c.h.b16 %v4382
        %v4707 = vunpack.c.h.b16 %v4383
        %v4708 = vunpack.c.l.b16 %v4384
        %v4709 = vunpack.c.l.b16 %v4385
        %v4710 = vunpack.c.l.b16 %v4386
        %v4711 = vunpack.c.l.b16 %v4387
        %v4712 = vunpack.c.h.b16 %v4384
        %v4713 = vunpack.c.h.b16 %v4385
        %v4714 = vunpack.c.h.b16 %v4386
        %v4715 = vunpack.c.h.b16 %v4387
        %v4716 = vunpack.c.l.b16 %v4388
        %v4717 = vunpack.c.l.b16 %v4389
        %v4718 = vunpack.c.l.b16 %v4390
        %v4719 = vunpack.c.l.b16 %v4391
        %v4720 = vunpack.c.h.b16 %v4388
        %v4721 = vunpack.c.h.b16 %v4389
        %v4722 = vunpack.c.h.b16 %v4390
        %v4723 = vunpack.c.h.b16 %v4391
        %v4724 = vunpack.c.l.b16 %v4392
        %v4725 = vunpack.c.l.b16 %v4393
        %v4726 = vunpack.c.l.b16 %v4394
        %v4727 = vunpack.c.l.b16 %v4395
        %v4728 = vunpack.c.h.b16 %v4392
        %v4729 = vunpack.c.h.b16 %v4393
        %v4730 = vunpack.c.h.b16 %v4394
        %v4731 = vunpack.c.h.b16 %v4395
        %v4732 = vunpack.c.l.b16 %v4396
        %v4733 = vunpack.c.l.b16 %v4397
        %v4734 = vunpack.c.l.b16 %v4398
        %v4735 = vunpack.c.l.b16 %v4399
        %v4736 = vunpack.c.h.b16 %v4396
        %v4737 = vunpack.c.h.b16 %v4397
        %v4738 = vunpack.c.h.b16 %v4398
        %v4739 = vunpack.c.h.b16 %v4399
        %v4740 = vunpack.c.l.b16 %v4400
        %v4741 = vunpack.c.l.b16 %v4401
        %v4742 = vunpack.c.l.b16 %v4402
        %v4743 = vunpack.c.l.b16 %v4403
        %v4744 = vunpack.c.h.b16 %v4400
        %v4745 = vunpack.c.h.b16 %v4401
        %v4746 = vunpack.c.h.b16 %v4402
        %v4747 = vunpack.c.h.b16 %v4403
        %v4748 = vunpack.c.l.b16 %v4404
        %v4749 = vunpack.c.l.b16 %v4405
        %v4750 = vunpack.c.l.b16 %v4406
        %v4751 = vunpack.c.l.b16 %v4407
        %v4752 = vunpack.c.h.b16 %v4404
        %v4753 = vunpack.c.h.b16 %v4405
        %v4754 = vunpack.c.h.b16 %v4406
        %v4755 = vunpack.c.h.b16 %v4407
        %v4756 = vunpack.c.l.b16 %v4408
        %v4757 = vunpack.c.l.b16 %v4409
        %v4758 = vunpack.c.l.b16 %v4410
        %v4759 = vunpack.c.l.b16 %v4411
        %v4760 = vunpack.c.h.b16 %v4408
        %v4761 = vunpack.c.h.b16 %v4409
        %v4762 = vunpack.c.h.b16 %v4410
        %v4763 = vunpack.c.h.b16 %v4411
        %v4764 = vunpack.c.l.b16 %v4412
        %v4765 = vunpack.c.l.b16 %v4413
        %v4766 = vunpack.c.l.b16 %v4414
        %v4767 = vunpack.c.l.b16 %v4415
        %v4768 = vunpack.c.h.b16 %v4412
        %v4769 = vunpack.c.h.b16 %v4413
        %v4770 = vunpack.c.h.b16 %v4414
        %v4771 = vunpack.c.h.b16 %v4415
        %v4772 = vunpack.c.l.b16 %v4416
        %v4773 = vunpack.c.l.b16 %v4417
        %v4774 = vunpack.c.l.b16 %v4418
        %v4775 = vunpack.c.l.b16 %v4419
        %v4776 = vunpack.c.h.b16 %v4416
        %v4777 = vunpack.c.h.b16 %v4417
        %v4778 = vunpack.c.h.b16 %v4418
        %v4779 = vunpack.c.h.b16 %v4419
        %v4780 = vunpack.c.l.b16 %v4420
        %v4781 = vunpack.c.l.b16 %v4421
        %v4782 = vunpack.c.l.b16 %v4422
        %v4783 = vunpack.c.l.b16 %v4423
        %v4784 = vunpack.c.h.b16 %v4420
        %v4785 = vunpack.c.h.b16 %v4421
        %v4786 = vunpack.c.h.b16 %v4422
        %v4787 = vunpack.c.h.b16 %v4423
        %v4788 = vunpack.c.l.b16 %v4424
        %v4789 = vunpack.c.l.b16 %v4425
        %v4790 = vunpack.c.l.b16 %v4426
        %v4791 = vunpack.c.l.b16 %v4427
        %v4792 = vunpack.c.h.b16 %v4424
        %v4793 = vunpack.c.h.b16 %v4425
        %v4794 = vunpack.c.h.b16 %v4426
        %v4795 = vunpack.c.h.b16 %v4427
        %v4796 = vunpack.c.l.b16 %v4428
        %v4797 = vunpack.c.l.b16 %v4429
        %v4798 = vunpack.c.l.b16 %v4430
        %v4799 = vunpack.c.l.b16 %v4431
        %v4800 = vunpack.c.h.b16 %v4428
        %v4801 = vunpack.c.h.b16 %v4429
        %v4802 = vunpack.c.h.b16 %v4430
        %v4803 = vunpack.c.h.b16 %v4431
        %v4804 = vunpack.c.l.b16 %v4432
        %v4805 = vunpack.c.l.b16 %v4433
        %v4806 = vunpack.c.l.b16 %v4434
        %v4807 = vunpack.c.l.b16 %v4435
        %v4808 = vunpack.c.h.b16 %v4432
        %v4809 = vunpack.c.h.b16 %v4433
        %v4810 = vunpack.c.h.b16 %v4434
        %v4811 = vunpack.c.h.b16 %v4435
        %v4812 = vunpack.c.l.b16 %v4436
        %v4813 = vunpack.c.l.b16 %v4437
        %v4814 = vunpack.c.l.b16 %v4438
        %v4815 = vunpack.c.l.b16 %v4439
        %v4816 = vunpack.c.h.b16 %v4436
        %v4817 = vunpack.c.h.b16 %v4437
        %v4818 = vunpack.c.h.b16 %v4438
        %v4819 = vunpack.c.h.b16 %v4439
        %v4820 = vunpack.c.l.b16 %v4440
        %v4821 = vunpack.c.l.b16 %v4441
        %v4822 = vunpack.c.l.b16 %v4442
        %v4823 = vunpack.c.l.b16 %v4443
        %v4824 = vunpack.c.h.b16 %v4440
        %v4825 = vunpack.c.h.b16 %v4441
        %v4826 = vunpack.c.h.b16 %v4442
        %v4827 = vunpack.c.h.b16 %v4443
        %v4828 = vunpack.c.l.b16 %v4444
        %v4829 = vunpack.c.l.b16 %v4445
        %v4830 = vunpack.c.l.b16 %v4446
        %v4831 = vunpack.c.l.b16 %v4447
        %v4832 = vunpack.c.h.b16 %v4444
        %v4833 = vunpack.c.h.b16 %v4445
        %v4834 = vunpack.c.h.b16 %v4446
        %v4835 = vunpack.c.h.b16 %v4447
        %v4836 = vunpack.c.l.b16 %v4448
        %v4837 = vunpack.c.l.b16 %v4449
        %v4838 = vunpack.c.l.b16 %v4450
        %v4839 = vunpack.c.l.b16 %v4451
        %v4840 = vunpack.c.h.b16 %v4448
        %v4841 = vunpack.c.h.b16 %v4449
        %v4842 = vunpack.c.h.b16 %v4450
        %v4843 = vunpack.c.h.b16 %v4451
        %v4844 = vunpack.c.l.b16 %v4452
        %v4845 = vunpack.c.l.b16 %v4453
        %v4846 = vunpack.c.l.b16 %v4454
        %v4847 = vunpack.c.l.b16 %v4455
        %v4848 = vunpack.c.h.b16 %v4452
        %v4849 = vunpack.c.h.b16 %v4453
        %v4850 = vunpack.c.h.b16 %v4454
        %v4851 = vunpack.c.h.b16 %v4455
        %v4852 = vunpack.c.l.b16 %v4456
        %v4853 = vunpack.c.l.b16 %v4457
        %v4854 = vunpack.c.l.b16 %v4458
        %v4855 = vunpack.c.l.b16 %v4459
        %v4856 = vunpack.c.h.b16 %v4456
        %v4857 = vunpack.c.h.b16 %v4457
        %v4858 = vunpack.c.h.b16 %v4458
        %v4859 = vunpack.c.h.b16 %v4459
        %v4860 = vunpack.c.l.b16 %v4460
        %v4861 = vunpack.c.l.b16 %v4461
        %v4862 = vunpack.c.l.b16 %v4462
        %v4863 = vunpack.c.l.b16 %v4463
        %v4864 = vunpack.c.h.b16 %v4460
        %v4865 = vunpack.c.h.b16 %v4461
        %v4866 = vunpack.c.h.b16 %v4462
        %v4867 = vunpack.c.h.b16 %v4463
        %v4868 = vunpack.c.l.b16 %v4464
        %v4869 = vunpack.c.l.b16 %v4465
        %v4870 = vunpack.c.l.b16 %v4466
        %v4871 = vunpack.c.l.b16 %v4467
        %v4872 = vunpack.c.h.b16 %v4464
        %v4873 = vunpack.c.h.b16 %v4465
        %v4874 = vunpack.c.h.b16 %v4466
        %v4875 = vunpack.c.h.b16 %v4467
        %v4876 = vunpack.c.l.b16 %v4468
        %v4877 = vunpack.c.l.b16 %v4469
        %v4878 = vunpack.c.l.b16 %v4470
        %v4879 = vunpack.c.l.b16 %v4471
        %v4880 = vunpack.c.h.b16 %v4468
        %v4881 = vunpack.c.h.b16 %v4469
        %v4882 = vunpack.c.h.b16 %v4470
        %v4883 = vunpack.c.h.b16 %v4471
        %v4884 = vunpack.c.l.b16 %v4472
        %v4885 = vunpack.c.l.b16 %v4473
        %v4886 = vunpack.c.l.b16 %v4474
        %v4887 = vunpack.c.l.b16 %v4475
        %v4888 = vunpack.c.h.b16 %v4472
        %v4889 = vunpack.c.h.b16 %v4473
        %v4890 = vunpack.c.h.b16 %v4474
        %v4891 = vunpack.c.h.b16 %v4475
        %v4892 = vunpack.c.l.b16 %v4476
        %v4893 = vunpack.c.l.b16 %v4477
        %v4894 = vunpack.c.l.b16 %v4478
        %v4895 = vunpack.c.l.b16 %v4479
        %v4896 = vunpack.c.h.b16 %v4476
        %v4897 = vunpack.c.h.b16 %v4477
        %v4898 = vunpack.c.h.b16 %v4478
        %v4899 = vunpack.c.h.b16 %v4479
        %v4900 = vunpack.c.l.b16 %v4480
        %v4901 = vunpack.c.l.b16 %v4481
        %v4902 = vunpack.c.l.b16 %v4482
        %v4903 = vunpack.c.l.b16 %v4483
        %v4904 = vunpack.c.h.b16 %v4480
        %v4905 = vunpack.c.h.b16 %v4481
        %v4906 = vunpack.c.h.b16 %v4482
        %v4907 = vunpack.c.h.b16 %v4483
        %v4908 = vunpack.c.l.b16 %v4484
        %v4909 = vunpack.c.l.b16 %v4485
        %v4910 = vunpack.c.l.b16 %v4486
        %v4911 = vunpack.c.l.b16 %v4487
        %v4912 = vunpack.c.h.b16 %v4484
        %v4913 = vunpack.c.h.b16 %v4485
        %v4914 = vunpack.c.h.b16 %v4486
        %v4915 = vunpack.c.h.b16 %v4487
        %v4916 = vunpack.c.l.b16 %v4488
        %v4917 = vunpack.c.l.b16 %v4489
        %v4918 = vunpack.c.l.b16 %v4490
        %v4919 = vunpack.c.l.b16 %v4491
        %v4920 = vunpack.c.h.b16 %v4488
        %v4921 = vunpack.c.h.b16 %v4489
        %v4922 = vunpack.c.h.b16 %v4490
        %v4923 = vunpack.c.h.b16 %v4491
        %v4924 = vunpack.c.l.b16 %v4492
        %v4925 = vunpack.c.l.b16 %v4493
        %v4926 = vunpack.c.l.b16 %v4494
        %v4927 = vunpack.c.l.b16 %v4495
        %v4928 = vunpack.c.h.b16 %v4492
        %v4929 = vunpack.c.h.b16 %v4493
        %v4930 = vunpack.c.h.b16 %v4494
        %v4931 = vunpack.c.h.b16 %v4495
        %v4932 = vunpack.c.l.b16 %v4496
        %v4933 = vunpack.c.l.b16 %v4497
        %v4934 = vunpack.c.l.b16 %v4498
        %v4935 = vunpack.c.l.b16 %v4499
        %v4936 = vunpack.c.h.b16 %v4496
        %v4937 = vunpack.c.h.b16 %v4497
        %v4938 = vunpack.c.h.b16 %v4498
        %v4939 = vunpack.c.h.b16 %v4499
        %v4940 = vunpack.c.l.b16 %v4500
        %v4941 = vunpack.c.l.b16 %v4501
        %v4942 = vunpack.c.l.b16 %v4502
        %v4943 = vunpack.c.l.b16 %v4503
        %v4944 = vunpack.c.h.b16 %v4500
        %v4945 = vunpack.c.h.b16 %v4501
        %v4946 = vunpack.c.h.b16 %v4502
        %v4947 = vunpack.c.h.b16 %v4503
        %v4948 = vunpack.c.l.b16 %v4504
        %v4949 = vunpack.c.l.b16 %v4505
        %v4950 = vunpack.c.l.b16 %v4506
        %v4951 = vunpack.c.l.b16 %v4507
        %v4952 = vunpack.c.h.b16 %v4504
        %v4953 = vunpack.c.h.b16 %v4505
        %v4954 = vunpack.c.h.b16 %v4506
        %v4955 = vunpack.c.h.b16 %v4507
        %v4956 = vunpack.c.l.b16 %v4508
        %v4957 = vunpack.c.l.b16 %v4509
        %v4958 = vunpack.c.l.b16 %v4510
        %v4959 = vunpack.c.l.b16 %v4511
        %v4960 = vunpack.c.h.b16 %v4508
        %v4961 = vunpack.c.h.b16 %v4509
        %v4962 = vunpack.c.h.b16 %v4510
        %v4963 = vunpack.c.h.b16 %v4511
        %v4964 = vunpack.c.l.b16 %v4512
        %v4965 = vunpack.c.l.b16 %v4513
        %v4966 = vunpack.c.l.b16 %v4514
        %v4967 = vunpack.c.l.b16 %v4515
        %v4968 = vunpack.c.h.b16 %v4512
        %v4969 = vunpack.c.h.b16 %v4513
        %v4970 = vunpack.c.h.b16 %v4514
        %v4971 = vunpack.c.h.b16 %v4515
        %v4972 = vunpack.c.l.b16 %v4516
        %v4973 = vunpack.c.l.b16 %v4517
        %v4974 = vunpack.c.l.b16 %v4518
        %v4975 = vunpack.c.l.b16 %v4519
        %v4976 = vunpack.c.h.b16 %v4516
        %v4977 = vunpack.c.h.b16 %v4517
        %v4978 = vunpack.c.h.b16 %v4518
        %v4979 = vunpack.c.h.b16 %v4519
        %v4980 = vunpack.c.l.b16 %v4520
        %v4981 = vunpack.c.l.b16 %v4521
        %v4982 = vunpack.c.l.b16 %v4522
        %v4983 = vunpack.c.l.b16 %v4523
        %v4984 = vunpack.c.h.b16 %v4520
        %v4985 = vunpack.c.h.b16 %v4521
        %v4986 = vunpack.c.h.b16 %v4522
        %v4987 = vunpack.c.h.b16 %v4523
        %v4988 = vunpack.c.l.b16 %v4524
        %v4989 = vunpack.c.l.b16 %v4525
        %v4990 = vunpack.c.l.b16 %v4526
        %v4991 = vunpack.c.l.b16 %v4527
        %v4992 = vunpack.c.h.b16 %v4524
        %v4993 = vunpack.c.h.b16 %v4525
        %v4994 = vunpack.c.h.b16 %v4526
        %v4995 = vunpack.c.h.b16 %v4527
        %v4996 = vunpack.c.l.b16 %v4528
        %v4997 = vunpack.c.l.b16 %v4529
        %v4998 = vunpack.c.l.b16 %v4530
        %v4999 = vunpack.c.l.b16 %v4531
        %v5000 = vunpack.c.h.b16 %v4528
        %v5001 = vunpack.c.h.b16 %v4529
        %v5002 = vunpack.c.h.b16 %v4530
        %v5003 = vunpack.c.h.b16 %v4531
        %v5004 = vunpack.c.l.b16 %v4532
        %v5005 = vunpack.c.l.b16 %v4533
        %v5006 = vunpack.c.l.b16 %v4534
        %v5007 = vunpack.c.l.b16 %v4535
        %v5008 = vunpack.c.h.b16 %v4532
        %v5009 = vunpack.c.h.b16 %v4533
        %v5010 = vunpack.c.h.b16 %v4534
        %v5011 = vunpack.c.h.b16 %v4535
        %v5012 = vunpack.c.l.b16 %v4536
        %v5013 = vunpack.c.l.b16 %v4537
        %v5014 = vunpack.c.l.b16 %v4538
        %v5015 = vunpack.c.l.b16 %v4539
        %v5016 = vunpack.c.h.b16 %v4536
        %v5017 = vunpack.c.h.b16 %v4537
        %v5018 = vunpack.c.h.b16 %v4538
        %v5019 = vunpack.c.h.b16 %v4539
        %v5020 = vpack.c.b16 %v4701, %v4700
        %v5021 = vpack.c.b16 %v4703, %v4702
        %v5022 = vpack.c.b16 %v4705, %v4704
        %v5023 = vpack.c.b16 %v4707, %v4706
        %v5024 = vpack.c.b16 %v4709, %v4708
        %v5025 = vpack.c.b16 %v4711, %v4710
        %v5026 = vpack.c.b16 %v4713, %v4712
        %v5027 = vpack.c.b16 %v4715, %v4714
        %v5028 = vpack.c.b16 %v4717, %v4716
        %v5029 = vpack.c.b16 %v4719, %v4718
        %v5030 = vpack.c.b16 %v4721, %v4720
        %v5031 = vpack.c.b16 %v4723, %v4722
        %v5032 = vpack.c.b16 %v4725, %v4724
        %v5033 = vpack.c.b16 %v4727, %v4726
        %v5034 = vpack.c.b16 %v4729, %v4728
        %v5035 = vpack.c.b16 %v4731, %v4730
        %v5036 = vpack.c.b16 %v4733, %v4732
        %v5037 = vpack.c.b16 %v4735, %v4734
        %v5038 = vpack.c.b16 %v4737, %v4736
        %v5039 = vpack.c.b16 %v4739, %v4738
        %v5040 = vpack.c.b16 %v4741, %v4740
        %v5041 = vpack.c.b16 %v4743, %v4742
        %v5042 = vpack.c.b16 %v4745, %v4744
        %v5043 = vpack.c.b16 %v4747, %v4746
        %v5044 = vpack.c.b16 %v4749, %v4748
        %v5045 = vpack.c.b16 %v4751, %v4750
        %v5046 = vpack.c.b16 %v4753, %v4752
        %v5047 = vpack.c.b16 %v4755, %v4754
        %v5048 = vpack.c.b16 %v4757, %v4756
        %v5049 = vpack.c.b16 %v4759, %v4758
        %v5050 = vpack.c.b16 %v4761, %v4760
        %v5051 = vpack.c.b16 %v4763, %v4762
        %v5052 = vpack.c.b16 %v4765, %v4764
        %v5053 = vpack.c.b16 %v4767, %v4766
        %v5054 = vpack.c.b16 %v4769, %v4768
        %v5055 = vpack.c.b16 %v4771, %v4770
        %v5056 = vpack.c.b16 %v4773, %v4772
        %v5057 = vpack.c.b16 %v4775, %v4774
        %v5058 = vpack.c.b16 %v4777, %v4776
        %v5059 = vpack.c.b16 %v4779, %v4778
        %v5060 = vpack.c.b16 %v4781, %v4780
        %v5061 = vpack.c.b16 %v4783, %v4782
        %v5062 = vpack.c.b16 %v4785, %v4784
        %v5063 = vpack.c.b16 %v4787, %v4786
        %v5064 = vpack.c.b16 %v4789, %v4788
        %v5065 = vpack.c.b16 %v4791, %v4790
        %v5066 = vpack.c.b16 %v4793, %v4792
        %v5067 = vpack.c.b16 %v4795, %v4794
        %v5068 = vpack.c.b16 %v4797, %v4796
        %v5069 = vpack.c.b16 %v4799, %v4798
        %v5070 = vpack.c.b16 %v4801, %v4800
        %v5071 = vpack.c.b16 %v4803, %v4802
        %v5072 = vpack.c.b16 %v4805, %v4804
        %v5073 = vpack.c.b16 %v4807, %v4806
        %v5074 = vpack.c.b16 %v4809, %v4808
        %v5075 = vpack.c.b16 %v4811, %v4810
        %v5076 = vpack.c.b16 %v4813, %v4812
        %v5077 = vpack.c.b16 %v4815, %v4814
        %v5078 = vpack.c.b16 %v4817, %v4816
        %v5079 = vpack.c.b16 %v4819, %v4818
        %v5080 = vpack.c.b16 %v4821, %v4820
        %v5081 = vpack.c.b16 %v4823, %v4822
        %v5082 = vpack.c.b16 %v4825, %v4824
        %v5083 = vpack.c.b16 %v4827, %v4826
        %v5084 = vpack.c.b16 %v4829, %v4828
        %v5085 = vpack.c.b16 %v4831, %v4830
        %v5086 = vpack.c.b16 %v4833, %v4832
        %v5087 = vpack.c.b16 %v4835, %v4834
        %v5088 = vpack.c.b16 %v4837, %v4836
        %v5089 = vpack.c.b16 %v4839, %v4838
        %v5090 = vpack.c.b16 %v4841, %v4840
        %v5091 = vpack.c.b16 %v4843, %v4842
        %v5092 = vpack.c.b16 %v4845, %v4844
        %v5093 = vpack.c.b16 %v4847, %v4846
        %v5094 = vpack.c.b16 %v4849, %v4848
        %v5095 = vpack.c.b16 %v4851, %v4850
        %v5096 = vpack.c.b16 %v4853, %v4852
        %v5097 = vpack.c.b16 %v4855, %v4854
        %v5098 = vpack.c.b16 %v4857, %v4856
        %v5099 = vpack.c.b16 %v4859, %v4858
        %v5100 = vpack.c.b16 %v4861, %v4860
        %v5101 = vpack.c.b16 %v4863, %v4862
        %v5102 = vpack.c.b16 %v4865, %v4864
        %v5103 = vpack.c.b16 %v4867, %v4866
        %v5104 = vpack.c.b16 %v4869, %v4868
        %v5105 = vpack.c.b16 %v4871, %v4870
        %v5106 = vpack.c.b16 %v4873, %v4872
        %v5107 = vpack.c.b16 %v4875, %v4874
        %v5108 = vpack.c.b16 %v4877, %v4876
        %v5109 = vpack.c.b16 %v4879, %v4878
        %v5110 = vpack.c.b16 %v4881, %v4880
        %v5111 = vpack.c.b16 %v4883, %v4882
        %v5112 = vpack.c.b16 %v4885, %v4884
        %v5113 = vpack.c.b16 %v4887, %v4886
        %v5114 = vpack.c.b16 %v4889, %v4888
        %v5115 = vpack.c.b16 %v4891, %v4890
        %v5116 = vpack.c.b16 %v4893, %v4892
        %v5117 = vpack.c.b16 %v4895, %v4894
        %v5118 = vpack.c.b16 %v4897, %v4896
        %v5119 = vpack.c.b16 %v4899, %v4898
        %v5120 = vpack.c.b16 %v4901, %v4900
        %v5121 = vpack.c.b16 %v4903, %v4902
        %v5122 = vpack.c.b16 %v4905, %v4904
        %v5123 = vpack.c.b16 %v4907, %v4906
        %v5124 = vpack.c.b16 %v4909, %v4908
        %v5125 = vpack.c.b16 %v4911, %v4910
        %v5126 = vpack.c.b16 %v4913, %v4912
        %v5127 = vpack.c.b16 %v4915, %v4914
        %v5128 = vpack.c.b16 %v4917, %v4916
        %v5129 = vpack.c.b16 %v4919, %v4918
        %v5130 = vpack.c.b16 %v4921, %v4920
        %v5131 = vpack.c.b16 %v4923, %v4922
        %v5132 = vpack.c.b16 %v4925, %v4924
        %v5133 = vpack.c.b16 %v4927, %v4926
        %v5134 = vpack.c.b16 %v4929, %v4928
        %v5135 = vpack.c.b16 %v4931, %v4930
        %v5136 = vpack.c.b16 %v4933, %v4932
        %v5137 = vpack.c.b16 %v4935, %v4934
        %v5138 = vpack.c.b16 %v4937, %v4936
        %v5139 = vpack.c.b16 %v4939, %v4938
        %v5140 = vpack.c.b16 %v4941, %v4940
        %v5141 = vpack.c.b16 %v4943, %v4942
        %v5142 = vpack.c.b16 %v4945, %v4944
        %v5143 = vpack.c.b16 %v4947, %v4946
        %v5144 = vpack.c.b16 %v4949, %v4948
        %v5145 = vpack.c.b16 %v4951, %v4950
        %v5146 = vpack.c.b16 %v4953, %v4952
        %v5147 = vpack.c.b16 %v4955, %v4954
        %v5148 = vpack.c.b16 %v4957, %v4956
        %v5149 = vpack.c.b16 %v4959, %v4958
        %v5150 = vpack.c.b16 %v4961, %v4960
        %v5151 = vpack.c.b16 %v4963, %v4962
        %v5152 = vpack.c.b16 %v4965, %v4964
        %v5153 = vpack.c.b16 %v4967, %v4966
        %v5154 = vpack.c.b16 %v4969, %v4968
        %v5155 = vpack.c.b16 %v4971, %v4970
        %v5156 = vpack.c.b16 %v4973, %v4972
        %v5157 = vpack.c.b16 %v4975, %v4974
        %v5158 = vpack.c.b16 %v4977, %v4976
        %v5159 = vpack.c.b16 %v4979, %v4978
        %v5160 = vpack.c.b16 %v4981, %v4980
        %v5161 = vpack.c.b16 %v4983, %v4982
        %v5162 = vpack.c.b16 %v4985, %v4984
        %v5163 = vpack.c.b16 %v4987, %v4986
        %v5164 = vpack.c.b16 %v4989, %v4988
        %v5165 = vpack.c.b16 %v4991, %v4990
        %v5166 = vpack.c.b16 %v4993, %v4992
        %v5167 = vpack.c.b16 %v4995, %v4994
        %v5168 = vpack.c.b16 %v4997, %v4996
        %v5169 = vpack.c.b16 %v4999, %v4998
        %v5170 = vpack.c.b16 %v5001, %v5000
        %v5171 = vpack.c.b16 %v5003, %v5002
        %v5172 = vpack.c.b16 %v5005, %v5004
        %v5173 = vpack.c.b16 %v5007, %v5006
        %v5174 = vpack.c.b16 %v5009, %v5008
        %v5175 = vpack.c.b16 %v5011, %v5010
        %v5176 = vpack.c.b16 %v5013, %v5012
        %v5177 = vpack.c.b16 %v5015, %v5014
        %v5178 = vpack.c.b16 %v5017, %v5016
        %v5179 = vpack.c.b16 %v5019, %v5018
        %5340 = vst [vmem:[%s313] sm:$0xff] %v5020
        %5341 = vst [vmem:[%s313 + $0x8] sm:$0xff] %v5021
        %5342 = vst [vmem:[%s313 + $0x10] sm:$0xff] %v5022
        %5343 = vst [vmem:[%s313 + $0x18] sm:$0xff] %v5023
        %5344 = vst [vmem:[%s313 + $0x20] sm:$0xff] %v5024
        %5345 = vst [vmem:[%s313 + $0x28] sm:$0xff] %v5025
        %5346 = vst [vmem:[%s313 + $0x30] sm:$0xff] %v5026
        %5347 = vst [vmem:[%s313 + $0x38] sm:$0xff] %v5027
        %5348 = vst [vmem:[%s313 + $0x40] sm:$0xff] %v5028
        %5349 = vst [vmem:[%s313 + $0x48] sm:$0xff] %v5029
        %5350 = vst [vmem:[%s313 + $0x50] sm:$0xff] %v5030
        %5351 = vst [vmem:[%s313 + $0x58] sm:$0xff] %v5031
        %5352 = vst [vmem:[%s313 + $0x60] sm:$0xff] %v5032
        %5353 = vst [vmem:[%s313 + $0x68] sm:$0xff] %v5033
        %5354 = vst [vmem:[%s313 + $0x70] sm:$0xff] %v5034
        %5355 = vst [vmem:[%s313 + $0x78] sm:$0xff] %v5035
        %5356 = vst [vmem:[%s313 + $0x80] sm:$0xff] %v5036
        %5357 = vst [vmem:[%s313 + $0x88] sm:$0xff] %v5037
        %5358 = vst [vmem:[%s313 + $0x90] sm:$0xff] %v5038
        %5359 = vst [vmem:[%s313 + $0x98] sm:$0xff] %v5039
        %5360 = vst [vmem:[%s313 + $0xa0] sm:$0xff] %v5040
        %5361 = vst [vmem:[%s313 + $0xa8] sm:$0xff] %v5041
        %5362 = vst [vmem:[%s313 + $0xb0] sm:$0xff] %v5042
        %5363 = vst [vmem:[%s313 + $0xb8] sm:$0xff] %v5043
        %5364 = vst [vmem:[%s313 + $0xc0] sm:$0xff] %v5044
        %5365 = vst [vmem:[%s313 + $0xc8] sm:$0xff] %v5045
        %5366 = vst [vmem:[%s313 + $0xd0] sm:$0xff] %v5046
        %5367 = vst [vmem:[%s313 + $0xd8] sm:$0xff] %v5047
        %5368 = vst [vmem:[%s313 + $0xe0] sm:$0xff] %v5048
        %5369 = vst [vmem:[%s313 + $0xe8] sm:$0xff] %v5049
        %5370 = vst [vmem:[%s313 + $0xf0] sm:$0xff] %v5050
        %5371 = vst [vmem:[%s313 + $0xf8] sm:$0xff] %v5051
        %5372 = vst [vmem:[%s313 + $0x100] sm:$0xff] %v5052
        %5373 = vst [vmem:[%s313 + $0x108] sm:$0xff] %v5053
        %5374 = vst [vmem:[%s313 + $0x110] sm:$0xff] %v5054
        %5375 = vst [vmem:[%s313 + $0x118] sm:$0xff] %v5055
        %5376 = vst [vmem:[%s313 + $0x120] sm:$0xff] %v5056
        %5377 = vst [vmem:[%s313 + $0x128] sm:$0xff] %v5057
        %5378 = vst [vmem:[%s313 + $0x130] sm:$0xff] %v5058
        %5379 = vst [vmem:[%s313 + $0x138] sm:$0xff] %v5059
        %5380 = vst [vmem:[%s313 + $0x140] sm:$0xff] %v5060
        %5381 = vst [vmem:[%s313 + $0x148] sm:$0xff] %v5061
        %5382 = vst [vmem:[%s313 + $0x150] sm:$0xff] %v5062
        %5383 = vst [vmem:[%s313 + $0x158] sm:$0xff] %v5063
        %5384 = vst [vmem:[%s313 + $0x160] sm:$0xff] %v5064
        %5385 = vst [vmem:[%s313 + $0x168] sm:$0xff] %v5065
        %5386 = vst [vmem:[%s313 + $0x170] sm:$0xff] %v5066
        %5387 = vst [vmem:[%s313 + $0x178] sm:$0xff] %v5067
        %5388 = vst [vmem:[%s313 + $0x180] sm:$0xff] %v5068
        %5389 = vst [vmem:[%s313 + $0x188] sm:$0xff] %v5069
        %5390 = vst [vmem:[%s313 + $0x190] sm:$0xff] %v5070
        %5391 = vst [vmem:[%s313 + $0x198] sm:$0xff] %v5071
        %5392 = vst [vmem:[%s313 + $0x1a0] sm:$0xff] %v5072
        %5393 = vst [vmem:[%s313 + $0x1a8] sm:$0xff] %v5073
        %5394 = vst [vmem:[%s313 + $0x1b0] sm:$0xff] %v5074
        %5395 = vst [vmem:[%s313 + $0x1b8] sm:$0xff] %v5075
        %5396 = vst [vmem:[%s313 + $0x1c0] sm:$0xff] %v5076
        %5397 = vst [vmem:[%s313 + $0x1c8] sm:$0xff] %v5077
        %5398 = vst [vmem:[%s313 + $0x1d0] sm:$0xff] %v5078
        %5399 = vst [vmem:[%s313 + $0x1d8] sm:$0xff] %v5079
        %5400 = vst [vmem:[%s313 + $0x1e0] sm:$0xff] %v5080
        %5401 = vst [vmem:[%s313 + $0x1e8] sm:$0xff] %v5081
        %5402 = vst [vmem:[%s313 + $0x1f0] sm:$0xff] %v5082
        %5403 = vst [vmem:[%s313 + $0x1f8] sm:$0xff] %v5083
        %5404 = vst [vmem:[%s313 + $0x200] sm:$0xff] %v5084
        %5405 = vst [vmem:[%s313 + $0x208] sm:$0xff] %v5085
        %5406 = vst [vmem:[%s313 + $0x210] sm:$0xff] %v5086
        %5407 = vst [vmem:[%s313 + $0x218] sm:$0xff] %v5087
        %5408 = vst [vmem:[%s313 + $0x220] sm:$0xff] %v5088
        %5409 = vst [vmem:[%s313 + $0x228] sm:$0xff] %v5089
        %5410 = vst [vmem:[%s313 + $0x230] sm:$0xff] %v5090
        %5411 = vst [vmem:[%s313 + $0x238] sm:$0xff] %v5091
        %5412 = vst [vmem:[%s313 + $0x240] sm:$0xff] %v5092
        %5413 = vst [vmem:[%s313 + $0x248] sm:$0xff] %v5093
        %5414 = vst [vmem:[%s313 + $0x250] sm:$0xff] %v5094
        %5415 = vst [vmem:[%s313 + $0x258] sm:$0xff] %v5095
        %5416 = vst [vmem:[%s313 + $0x260] sm:$0xff] %v5096
        %5417 = vst [vmem:[%s313 + $0x268] sm:$0xff] %v5097
        %5418 = vst [vmem:[%s313 + $0x270] sm:$0xff] %v5098
        %5419 = vst [vmem:[%s313 + $0x278] sm:$0xff] %v5099
        %5420 = vst [vmem:[%s313 + $0x280] sm:$0xff] %v5100
        %5421 = vst [vmem:[%s313 + $0x288] sm:$0xff] %v5101
        %5422 = vst [vmem:[%s313 + $0x290] sm:$0xff] %v5102
        %5423 = vst [vmem:[%s313 + $0x298] sm:$0xff] %v5103
        %5424 = vst [vmem:[%s313 + $0x2a0] sm:$0xff] %v5104
        %5425 = vst [vmem:[%s313 + $0x2a8] sm:$0xff] %v5105
        %5426 = vst [vmem:[%s313 + $0x2b0] sm:$0xff] %v5106
        %5427 = vst [vmem:[%s313 + $0x2b8] sm:$0xff] %v5107
        %5428 = vst [vmem:[%s313 + $0x2c0] sm:$0xff] %v5108
        %5429 = vst [vmem:[%s313 + $0x2c8] sm:$0xff] %v5109
        %5430 = vst [vmem:[%s313 + $0x2d0] sm:$0xff] %v5110
        %5431 = vst [vmem:[%s313 + $0x2d8] sm:$0xff] %v5111
        %5432 = vst [vmem:[%s313 + $0x2e0] sm:$0xff] %v5112
        %5433 = vst [vmem:[%s313 + $0x2e8] sm:$0xff] %v5113
        %5434 = vst [vmem:[%s313 + $0x2f0] sm:$0xff] %v5114
        %5435 = vst [vmem:[%s313 + $0x2f8] sm:$0xff] %v5115
        %5436 = vst [vmem:[%s313 + $0x300] sm:$0xff] %v5116
        %5437 = vst [vmem:[%s313 + $0x308] sm:$0xff] %v5117
        %5438 = vst [vmem:[%s313 + $0x310] sm:$0xff] %v5118
        %5439 = vst [vmem:[%s313 + $0x318] sm:$0xff] %v5119
        %5440 = vst [vmem:[%s313 + $0x320] sm:$0xff] %v5120
        %5441 = vst [vmem:[%s313 + $0x328] sm:$0xff] %v5121
        %5442 = vst [vmem:[%s313 + $0x330] sm:$0xff] %v5122
        %5443 = vst [vmem:[%s313 + $0x338] sm:$0xff] %v5123
        %5444 = vst [vmem:[%s313 + $0x340] sm:$0xff] %v5124
        %5445 = vst [vmem:[%s313 + $0x348] sm:$0xff] %v5125
        %5446 = vst [vmem:[%s313 + $0x350] sm:$0xff] %v5126
        %5447 = vst [vmem:[%s313 + $0x358] sm:$0xff] %v5127
        %5448 = vst [vmem:[%s313 + $0x360] sm:$0xff] %v5128
        %5449 = vst [vmem:[%s313 + $0x368] sm:$0xff] %v5129
        %5450 = vst [vmem:[%s313 + $0x370] sm:$0xff] %v5130
        %5451 = vst [vmem:[%s313 + $0x378] sm:$0xff] %v5131
        %5452 = vst [vmem:[%s313 + $0x380] sm:$0xff] %v5132
        %5453 = vst [vmem:[%s313 + $0x388] sm:$0xff] %v5133
        %5454 = vst [vmem:[%s313 + $0x390] sm:$0xff] %v5134
        %5455 = vst [vmem:[%s313 + $0x398] sm:$0xff] %v5135
        %5456 = vst [vmem:[%s313 + $0x3a0] sm:$0xff] %v5136
        %5457 = vst [vmem:[%s313 + $0x3a8] sm:$0xff] %v5137
        %5458 = vst [vmem:[%s313 + $0x3b0] sm:$0xff] %v5138
        %5459 = vst [vmem:[%s313 + $0x3b8] sm:$0xff] %v5139
        %5460 = vst [vmem:[%s313 + $0x3c0] sm:$0xff] %v5140
        %5461 = vst [vmem:[%s313 + $0x3c8] sm:$0xff] %v5141
        %5462 = vst [vmem:[%s313 + $0x3d0] sm:$0xff] %v5142
        %5463 = vst [vmem:[%s313 + $0x3d8] sm:$0xff] %v5143
        %5464 = vst [vmem:[%s313 + $0x3e0] sm:$0xff] %v5144
        %5465 = vst [vmem:[%s313 + $0x3e8] sm:$0xff] %v5145
        %5466 = vst [vmem:[%s313 + $0x3f0] sm:$0xff] %v5146
        %5467 = vst [vmem:[%s313 + $0x3f8] sm:$0xff] %v5147
        %5468 = vst [vmem:[%s313 + $0x400] sm:$0xff] %v5148
        %5469 = vst [vmem:[%s313 + $0x408] sm:$0xff] %v5149
        %5470 = vst [vmem:[%s313 + $0x410] sm:$0xff] %v5150
        %5471 = vst [vmem:[%s313 + $0x418] sm:$0xff] %v5151
        %5472 = vst [vmem:[%s313 + $0x420] sm:$0xff] %v5152
        %5473 = vst [vmem:[%s313 + $0x428] sm:$0xff] %v5153
        %5474 = vst [vmem:[%s313 + $0x430] sm:$0xff] %v5154
        %5475 = vst [vmem:[%s313 + $0x438] sm:$0xff] %v5155
        %5476 = vst [vmem:[%s313 + $0x440] sm:$0xff] %v5156
        %5477 = vst [vmem:[%s313 + $0x448] sm:$0xff] %v5157
        %5478 = vst [vmem:[%s313 + $0x450] sm:$0xff] %v5158
        %5479 = vst [vmem:[%s313 + $0x458] sm:$0xff] %v5159
        %5480 = vst [vmem:[%s313 + $0x460] sm:$0xff] %v5160
        %5481 = vst [vmem:[%s313 + $0x468] sm:$0xff] %v5161
        %5482 = vst [vmem:[%s313 + $0x470] sm:$0xff] %v5162
        %5483 = vst [vmem:[%s313 + $0x478] sm:$0xff] %v5163
        %5484 = vst [vmem:[%s313 + $0x480] sm:$0xff] %v5164
        %5485 = vst [vmem:[%s313 + $0x488] sm:$0xff] %v5165
        %5486 = vst [vmem:[%s313 + $0x490] sm:$0xff] %v5166
        %5487 = vst [vmem:[%s313 + $0x498] sm:$0xff] %v5167
        %5488 = vst [vmem:[%s313 + $0x4a0] sm:$0xff] %v5168
        %5489 = vst [vmem:[%s313 + $0x4a8] sm:$0xff] %v5169
        %5490 = vst [vmem:[%s313 + $0x4b0] sm:$0xff] %v5170
        %5491 = vst [vmem:[%s313 + $0x4b8] sm:$0xff] %v5171
        %5492 = vst [vmem:[%s313 + $0x4c0] sm:$0xff] %v5172
        %5493 = vst [vmem:[%s313 + $0x4c8] sm:$0xff] %v5173
        %5494 = vst [vmem:[%s313 + $0x4d0] sm:$0xff] %v5174
        %5495 = vst [vmem:[%s313 + $0x4d8] sm:$0xff] %v5175
        %5496 = vst [vmem:[%s313 + $0x4e0] sm:$0xff] %v5176
        %5497 = vst [vmem:[%s313 + $0x4e8] sm:$0xff] %v5177
        %5498 = vst [vmem:[%s313 + $0x4f0] sm:$0xff] %v5178
        %5499 = vst [vmem:[%s313 + $0x4f8] sm:$0xff] %v5179
        %v5500 = vld [vmem:[#allocation2] sm:$0xff]
        %v5501 = vld [vmem:[#allocation2 + $0x8] sm:$0xff]
        %v5502 = vld [vmem:[#allocation2 + $0x10] sm:$0xff]
        %v5503 = vld [vmem:[#allocation2 + $0x18] sm:$0xff]
        %v5504 = vld [vmem:[#allocation2 + $0x20] sm:$0xff]
        %v5505 = vld [vmem:[#allocation2 + $0x28] sm:$0xff]
        %v5506 = vld [vmem:[#allocation2 + $0x30] sm:$0xff]
        %v5507 = vld [vmem:[#allocation2 + $0x38] sm:$0xff]
        %v5508 = vld [vmem:[#allocation2 + $0x40] sm:$0xff]
        %v5509 = vld [vmem:[#allocation2 + $0x48] sm:$0xff]
        %v5510 = vld [vmem:[#allocation2 + $0x50] sm:$0xff]
        %v5511 = vld [vmem:[#allocation2 + $0x58] sm:$0xff]
        %v5512 = vld [vmem:[#allocation2 + $0x60] sm:$0xff]
        %v5513 = vld [vmem:[#allocation2 + $0x68] sm:$0xff]
        %v5514 = vld [vmem:[#allocation2 + $0x70] sm:$0xff]
        %v5515 = vld [vmem:[#allocation2 + $0x78] sm:$0xff]
        %v5516 = vld [vmem:[#allocation2 + $0x80] sm:$0xff]
        %v5517 = vld [vmem:[#allocation2 + $0x88] sm:$0xff]
        %v5518 = vld [vmem:[#allocation2 + $0x90] sm:$0xff]
        %v5519 = vld [vmem:[#allocation2 + $0x98] sm:$0xff]
        %v5520 = vld [vmem:[#allocation2 + $0xa0] sm:$0xff]
        %v5521 = vld [vmem:[#allocation2 + $0xa8] sm:$0xff]
        %v5522 = vld [vmem:[#allocation2 + $0xb0] sm:$0xff]
        %v5523 = vld [vmem:[#allocation2 + $0xb8] sm:$0xff]
        %v5524 = vld [vmem:[#allocation2 + $0xc0] sm:$0xff]
        %v5525 = vld [vmem:[#allocation2 + $0xc8] sm:$0xff]
        %v5526 = vld [vmem:[#allocation2 + $0xd0] sm:$0xff]
        %v5527 = vld [vmem:[#allocation2 + $0xd8] sm:$0xff]
        %v5528 = vld [vmem:[#allocation2 + $0xe0] sm:$0xff]
        %v5529 = vld [vmem:[#allocation2 + $0xe8] sm:$0xff]
        %v5530 = vld [vmem:[#allocation2 + $0xf0] sm:$0xff]
        %v5531 = vld [vmem:[#allocation2 + $0xf8] sm:$0xff]
        %v5532 = vld [vmem:[#allocation2 + $0x100] sm:$0xff]
        %v5533 = vld [vmem:[#allocation2 + $0x108] sm:$0xff]
        %v5534 = vld [vmem:[#allocation2 + $0x110] sm:$0xff]
        %v5535 = vld [vmem:[#allocation2 + $0x118] sm:$0xff]
        %v5536 = vld [vmem:[#allocation2 + $0x120] sm:$0xff]
        %v5537 = vld [vmem:[#allocation2 + $0x128] sm:$0xff]
        %v5538 = vld [vmem:[#allocation2 + $0x130] sm:$0xff]
        %v5539 = vld [vmem:[#allocation2 + $0x138] sm:$0xff]
        %v5540 = vld [vmem:[#allocation2 + $0x140] sm:$0xff]
        %v5541 = vld [vmem:[#allocation2 + $0x148] sm:$0xff]
        %v5542 = vld [vmem:[#allocation2 + $0x150] sm:$0xff]
        %v5543 = vld [vmem:[#allocation2 + $0x158] sm:$0xff]
        %v5544 = vld [vmem:[#allocation2 + $0x160] sm:$0xff]
        %v5545 = vld [vmem:[#allocation2 + $0x168] sm:$0xff]
        %v5546 = vld [vmem:[#allocation2 + $0x170] sm:$0xff]
        %v5547 = vld [vmem:[#allocation2 + $0x178] sm:$0xff]
        %v5548 = vld [vmem:[#allocation2 + $0x180] sm:$0xff]
        %v5549 = vld [vmem:[#allocation2 + $0x188] sm:$0xff]
        %v5550 = vld [vmem:[#allocation2 + $0x190] sm:$0xff]
        %v5551 = vld [vmem:[#allocation2 + $0x198] sm:$0xff]
        %v5552 = vld [vmem:[#allocation2 + $0x1a0] sm:$0xff]
        %v5553 = vld [vmem:[#allocation2 + $0x1a8] sm:$0xff]
        %v5554 = vld [vmem:[#allocation2 + $0x1b0] sm:$0xff]
        %v5555 = vld [vmem:[#allocation2 + $0x1b8] sm:$0xff]
        %v5556 = vld [vmem:[#allocation2 + $0x1c0] sm:$0xff]
        %v5557 = vld [vmem:[#allocation2 + $0x1c8] sm:$0xff]
        %v5558 = vld [vmem:[#allocation2 + $0x1d0] sm:$0xff]
        %v5559 = vld [vmem:[#allocation2 + $0x1d8] sm:$0xff]
        %v5560 = vld [vmem:[#allocation2 + $0x1e0] sm:$0xff]
        %v5561 = vld [vmem:[#allocation2 + $0x1e8] sm:$0xff]
        %v5562 = vld [vmem:[#allocation2 + $0x1f0] sm:$0xff]
        %v5563 = vld [vmem:[#allocation2 + $0x1f8] sm:$0xff]
        %v5564 = vld [vmem:[#allocation2 + $0x200] sm:$0xff]
        %v5565 = vld [vmem:[#allocation2 + $0x208] sm:$0xff]
        %v5566 = vld [vmem:[#allocation2 + $0x210] sm:$0xff]
        %v5567 = vld [vmem:[#allocation2 + $0x218] sm:$0xff]
        %v5568 = vld [vmem:[#allocation2 + $0x220] sm:$0xff]
        %v5569 = vld [vmem:[#allocation2 + $0x228] sm:$0xff]
        %v5570 = vld [vmem:[#allocation2 + $0x230] sm:$0xff]
        %v5571 = vld [vmem:[#allocation2 + $0x238] sm:$0xff]
        %v5572 = vld [vmem:[#allocation2 + $0x240] sm:$0xff]
        %v5573 = vld [vmem:[#allocation2 + $0x248] sm:$0xff]
        %v5574 = vld [vmem:[#allocation2 + $0x250] sm:$0xff]
        %v5575 = vld [vmem:[#allocation2 + $0x258] sm:$0xff]
        %v5576 = vld [vmem:[#allocation2 + $0x260] sm:$0xff]
        %v5577 = vld [vmem:[#allocation2 + $0x268] sm:$0xff]
        %v5578 = vld [vmem:[#allocation2 + $0x270] sm:$0xff]
        %v5579 = vld [vmem:[#allocation2 + $0x278] sm:$0xff]
        %v5580 = vadd.f32 %v4060, %v4061
        %v5581 = vadd.f32 %v5580, %v4062
        %v5582 = vadd.f32 %v5581, %v4063
        %5583 = vadd.xlane.f32.xlu0 %v5582
        %v5584 = vpop.xlane.xlu0 %5583
        %v5585 = vadd.f32 %v4064, %v4065
        %v5586 = vadd.f32 %v5585, %v4066
        %v5587 = vadd.f32 %v5586, %v4067
        %5588 = vadd.xlane.f32.xlu0 %v5587
        %v5589 = vpop.xlane.xlu0 %5588
        %v5590 = vadd.f32 %v4068, %v4069
        %v5591 = vadd.f32 %v5590, %v4070
        %v5592 = vadd.f32 %v5591, %v4071
        %5593 = vadd.xlane.f32.xlu0 %v5592
        %v5594 = vpop.xlane.xlu0 %5593
        %v5595 = vadd.f32 %v4072, %v4073
        %v5596 = vadd.f32 %v5595, %v4074
        %v5597 = vadd.f32 %v5596, %v4075
        %5598 = vadd.xlane.f32.xlu0 %v5597
        %v5599 = vpop.xlane.xlu0 %5598
        %v5600 = vadd.f32 %v4076, %v4077
        %v5601 = vadd.f32 %v5600, %v4078
        %v5602 = vadd.f32 %v5601, %v4079
        %5603 = vadd.xlane.f32.xlu0 %v5602
        %v5604 = vpop.xlane.xlu0 %5603
        %v5605 = vadd.f32 %v4080, %v4081
        %v5606 = vadd.f32 %v5605, %v4082
        %v5607 = vadd.f32 %v5606, %v4083
        %5608 = vadd.xlane.f32.xlu0 %v5607
        %v5609 = vpop.xlane.xlu0 %5608
        %v5610 = vadd.f32 %v4084, %v4085
        %v5611 = vadd.f32 %v5610, %v4086
        %v5612 = vadd.f32 %v5611, %v4087
        %5613 = vadd.xlane.f32.xlu0 %v5612
        %v5614 = vpop.xlane.xlu0 %5613
        %v5615 = vadd.f32 %v4088, %v4089
        %v5616 = vadd.f32 %v5615, %v4090
        %v5617 = vadd.f32 %v5616, %v4091
        %5618 = vadd.xlane.f32.xlu0 %v5617
        %v5619 = vpop.xlane.xlu0 %5618
        %v5620 = vadd.f32 %v4092, %v4093
        %v5621 = vadd.f32 %v5620, %v4094
        %v5622 = vadd.f32 %v5621, %v4095
        %5623 = vadd.xlane.f32.xlu0 %v5622
        %v5624 = vpop.xlane.xlu0 %5623
        %v5625 = vadd.f32 %v4096, %v4097
        %v5626 = vadd.f32 %v5625, %v4098
        %v5627 = vadd.f32 %v5626, %v4099
        %5628 = vadd.xlane.f32.xlu0 %v5627
        %v5629 = vpop.xlane.xlu0 %5628
        %v5630 = vadd.f32 %v4100, %v4101
        %v5631 = vadd.f32 %v5630, %v4102
        %v5632 = vadd.f32 %v5631, %v4103
        %5633 = vadd.xlane.f32.xlu0 %v5632
        %v5634 = vpop.xlane.xlu0 %5633
        %v5635 = vadd.f32 %v4104, %v4105
        %v5636 = vadd.f32 %v5635, %v4106
        %v5637 = vadd.f32 %v5636, %v4107
        %5638 = vadd.xlane.f32.xlu0 %v5637
        %v5639 = vpop.xlane.xlu0 %5638
        %v5640 = vadd.f32 %v4108, %v4109
        %v5641 = vadd.f32 %v5640, %v4110
        %v5642 = vadd.f32 %v5641, %v4111
        %5643 = vadd.xlane.f32.xlu0 %v5642
        %v5644 = vpop.xlane.xlu0 %5643
        %v5645 = vadd.f32 %v4112, %v4113
        %v5646 = vadd.f32 %v5645, %v4114
        %v5647 = vadd.f32 %v5646, %v4115
        %5648 = vadd.xlane.f32.xlu0 %v5647
        %v5649 = vpop.xlane.xlu0 %5648
        %v5650 = vadd.f32 %v4116, %v4117
        %v5651 = vadd.f32 %v5650, %v4118
        %v5652 = vadd.f32 %v5651, %v4119
        %5653 = vadd.xlane.f32.xlu0 %v5652
        %v5654 = vpop.xlane.xlu0 %5653
        %v5655 = vadd.f32 %v4120, %v4121
        %v5656 = vadd.f32 %v5655, %v4122
        %v5657 = vadd.f32 %v5656, %v4123
        %5658 = vadd.xlane.f32.xlu0 %v5657
        %v5659 = vpop.xlane.xlu0 %5658
        %v5660 = vadd.f32 %v4124, %v4125
        %v5661 = vadd.f32 %v5660, %v4126
        %v5662 = vadd.f32 %v5661, %v4127
        %5663 = vadd.xlane.f32.xlu0 %v5662
        %v5664 = vpop.xlane.xlu0 %5663
        %v5665 = vadd.f32 %v4128, %v4129
        %v5666 = vadd.f32 %v5665, %v4130
        %v5667 = vadd.f32 %v5666, %v4131
        %5668 = vadd.xlane.f32.xlu0 %v5667
        %v5669 = vpop.xlane.xlu0 %5668
        %v5670 = vadd.f32 %v4132, %v4133
        %v5671 = vadd.f32 %v5670, %v4134
        %v5672 = vadd.f32 %v5671, %v4135
        %5673 = vadd.xlane.f32.xlu0 %v5672
        %v5674 = vpop.xlane.xlu0 %5673
        %v5675 = vadd.f32 %v4136, %v4137
        %v5676 = vadd.f32 %v5675, %v4138
        %v5677 = vadd.f32 %v5676, %v4139
        %5678 = vadd.xlane.f32.xlu0 %v5677
        %v5679 = vpop.xlane.xlu0 %5678
        %v5680 = vadd.f32 %v4140, %v4141
        %v5681 = vadd.f32 %v5680, %v4142
        %v5682 = vadd.f32 %v5681, %v4143
        %5683 = vadd.xlane.f32.xlu0 %v5682
        %v5684 = vpop.xlane.xlu0 %5683
        %v5685 = vadd.f32 %v4144, %v4145
        %v5686 = vadd.f32 %v5685, %v4146
        %v5687 = vadd.f32 %v5686, %v4147
        %5688 = vadd.xlane.f32.xlu0 %v5687
        %v5689 = vpop.xlane.xlu0 %5688
        %v5690 = vadd.f32 %v4148, %v4149
        %v5691 = vadd.f32 %v5690, %v4150
        %v5692 = vadd.f32 %v5691, %v4151
        %5693 = vadd.xlane.f32.xlu0 %v5692
        %v5694 = vpop.xlane.xlu0 %5693
        %v5695 = vadd.f32 %v4152, %v4153
        %v5696 = vadd.f32 %v5695, %v4154
        %v5697 = vadd.f32 %v5696, %v4155
        %5698 = vadd.xlane.f32.xlu0 %v5697
        %v5699 = vpop.xlane.xlu0 %5698
        %v5700 = vadd.f32 %v4156, %v4157
        %v5701 = vadd.f32 %v5700, %v4158
        %v5702 = vadd.f32 %v5701, %v4159
        %5703 = vadd.xlane.f32.xlu0 %v5702
        %v5704 = vpop.xlane.xlu0 %5703
        %v5705 = vadd.f32 %v4160, %v4161
        %v5706 = vadd.f32 %v5705, %v4162
        %v5707 = vadd.f32 %v5706, %v4163
        %5708 = vadd.xlane.f32.xlu0 %v5707
        %v5709 = vpop.xlane.xlu0 %5708
        %v5710 = vadd.f32 %v4164, %v4165
        %v5711 = vadd.f32 %v5710, %v4166
        %v5712 = vadd.f32 %v5711, %v4167
        %5713 = vadd.xlane.f32.xlu0 %v5712
        %v5714 = vpop.xlane.xlu0 %5713
        %v5715 = vadd.f32 %v4168, %v4169
        %v5716 = vadd.f32 %v5715, %v4170
        %v5717 = vadd.f32 %v5716, %v4171
        %5718 = vadd.xlane.f32.xlu0 %v5717
        %v5719 = vpop.xlane.xlu0 %5718
        %v5720 = vadd.f32 %v4172, %v4173
        %v5721 = vadd.f32 %v5720, %v4174
        %v5722 = vadd.f32 %v5721, %v4175
        %5723 = vadd.xlane.f32.xlu0 %v5722
        %v5724 = vpop.xlane.xlu0 %5723
        %v5725 = vadd.f32 %v4176, %v4177
        %v5726 = vadd.f32 %v5725, %v4178
        %v5727 = vadd.f32 %v5726, %v4179
        %5728 = vadd.xlane.f32.xlu0 %v5727
        %v5729 = vpop.xlane.xlu0 %5728
        %v5730 = vadd.f32 %v4180, %v4181
        %v5731 = vadd.f32 %v5730, %v4182
        %v5732 = vadd.f32 %v5731, %v4183
        %5733 = vadd.xlane.f32.xlu0 %v5732
        %v5734 = vpop.xlane.xlu0 %5733
        %v5735 = vadd.f32 %v4184, %v4185
        %v5736 = vadd.f32 %v5735, %v4186
        %v5737 = vadd.f32 %v5736, %v4187
        %5738 = vadd.xlane.f32.xlu0 %v5737
        %v5739 = vpop.xlane.xlu0 %5738
        %v5740 = vadd.f32 %v4188, %v4189
        %v5741 = vadd.f32 %v5740, %v4190
        %v5742 = vadd.f32 %v5741, %v4191
        %5743 = vadd.xlane.f32.xlu0 %v5742
        %v5744 = vpop.xlane.xlu0 %5743
        %v5745 = vadd.f32 %v4192, %v4193
        %v5746 = vadd.f32 %v5745, %v4194
        %v5747 = vadd.f32 %v5746, %v4195
        %5748 = vadd.xlane.f32.xlu0 %v5747
        %v5749 = vpop.xlane.xlu0 %5748
        %v5750 = vadd.f32 %v4196, %v4197
        %v5751 = vadd.f32 %v5750, %v4198
        %v5752 = vadd.f32 %v5751, %v4199
        %5753 = vadd.xlane.f32.xlu0 %v5752
        %v5754 = vpop.xlane.xlu0 %5753
        %v5755 = vadd.f32 %v4200, %v4201
        %v5756 = vadd.f32 %v5755, %v4202
        %v5757 = vadd.f32 %v5756, %v4203
        %5758 = vadd.xlane.f32.xlu0 %v5757
        %v5759 = vpop.xlane.xlu0 %5758
        %v5760 = vadd.f32 %v4204, %v4205
        %v5761 = vadd.f32 %v5760, %v4206
        %v5762 = vadd.f32 %v5761, %v4207
        %5763 = vadd.xlane.f32.xlu0 %v5762
        %v5764 = vpop.xlane.xlu0 %5763
        %v5765 = vadd.f32 %v4208, %v4209
        %v5766 = vadd.f32 %v5765, %v4210
        %v5767 = vadd.f32 %v5766, %v4211
        %5768 = vadd.xlane.f32.xlu0 %v5767
        %v5769 = vpop.xlane.xlu0 %5768
        %v5770 = vadd.f32 %v4212, %v4213
        %v5771 = vadd.f32 %v5770, %v4214
        %v5772 = vadd.f32 %v5771, %v4215
        %5773 = vadd.xlane.f32.xlu0 %v5772
        %v5774 = vpop.xlane.xlu0 %5773
        %v5775 = vadd.f32 %v4216, %v4217
        %v5776 = vadd.f32 %v5775, %v4218
        %v5777 = vadd.f32 %v5776, %v4219
        %5778 = vadd.xlane.f32.xlu0 %v5777
        %v5779 = vpop.xlane.xlu0 %5778
        %v5780 = vadd.f32 %v4220, %v4221
        %v5781 = vadd.f32 %v5780, %v4222
        %v5782 = vadd.f32 %v5781, %v4223
        %5783 = vadd.xlane.f32.xlu0 %v5782
        %v5784 = vpop.xlane.xlu0 %5783
        %v5785 = vadd.f32 %v4224, %v4225
        %v5786 = vadd.f32 %v5785, %v4226
        %v5787 = vadd.f32 %v5786, %v4227
        %5788 = vadd.xlane.f32.xlu0 %v5787
        %v5789 = vpop.xlane.xlu0 %5788
        %v5790 = vadd.f32 %v4228, %v4229
        %v5791 = vadd.f32 %v5790, %v4230
        %v5792 = vadd.f32 %v5791, %v4231
        %5793 = vadd.xlane.f32.xlu0 %v5792
        %v5794 = vpop.xlane.xlu0 %5793
        %v5795 = vadd.f32 %v4232, %v4233
        %v5796 = vadd.f32 %v5795, %v4234
        %v5797 = vadd.f32 %v5796, %v4235
        %5798 = vadd.xlane.f32.xlu0 %v5797
        %v5799 = vpop.xlane.xlu0 %5798
        %v5800 = vadd.f32 %v4236, %v4237
        %v5801 = vadd.f32 %v5800, %v4238
        %v5802 = vadd.f32 %v5801, %v4239
        %5803 = vadd.xlane.f32.xlu0 %v5802
        %v5804 = vpop.xlane.xlu0 %5803
        %v5805 = vadd.f32 %v4240, %v4241
        %v5806 = vadd.f32 %v5805, %v4242
        %v5807 = vadd.f32 %v5806, %v4243
        %5808 = vadd.xlane.f32.xlu0 %v5807
        %v5809 = vpop.xlane.xlu0 %5808
        %v5810 = vadd.f32 %v4244, %v4245
        %v5811 = vadd.f32 %v5810, %v4246
        %v5812 = vadd.f32 %v5811, %v4247
        %5813 = vadd.xlane.f32.xlu0 %v5812
        %v5814 = vpop.xlane.xlu0 %5813
        %v5815 = vadd.f32 %v4248, %v4249
        %v5816 = vadd.f32 %v5815, %v4250
        %v5817 = vadd.f32 %v5816, %v4251
        %5818 = vadd.xlane.f32.xlu0 %v5817
        %v5819 = vpop.xlane.xlu0 %5818
        %v5820 = vadd.f32 %v4252, %v4253
        %v5821 = vadd.f32 %v5820, %v4254
        %v5822 = vadd.f32 %v5821, %v4255
        %5823 = vadd.xlane.f32.xlu0 %v5822
        %v5824 = vpop.xlane.xlu0 %5823
        %v5825 = vadd.f32 %v4256, %v4257
        %v5826 = vadd.f32 %v5825, %v4258
        %v5827 = vadd.f32 %v5826, %v4259
        %5828 = vadd.xlane.f32.xlu0 %v5827
        %v5829 = vpop.xlane.xlu0 %5828
        %v5830 = vadd.f32 %v4260, %v4261
        %v5831 = vadd.f32 %v5830, %v4262
        %v5832 = vadd.f32 %v5831, %v4263
        %5833 = vadd.xlane.f32.xlu0 %v5832
        %v5834 = vpop.xlane.xlu0 %5833
        %v5835 = vadd.f32 %v4264, %v4265
        %v5836 = vadd.f32 %v5835, %v4266
        %v5837 = vadd.f32 %v5836, %v4267
        %5838 = vadd.xlane.f32.xlu0 %v5837
        %v5839 = vpop.xlane.xlu0 %5838
        %v5840 = vadd.f32 %v4268, %v4269
        %v5841 = vadd.f32 %v5840, %v4270
        %v5842 = vadd.f32 %v5841, %v4271
        %5843 = vadd.xlane.f32.xlu0 %v5842
        %v5844 = vpop.xlane.xlu0 %5843
        %v5845 = vadd.f32 %v4272, %v4273
        %v5846 = vadd.f32 %v5845, %v4274
        %v5847 = vadd.f32 %v5846, %v4275
        %5848 = vadd.xlane.f32.xlu0 %v5847
        %v5849 = vpop.xlane.xlu0 %5848
        %v5850 = vadd.f32 %v4276, %v4277
        %v5851 = vadd.f32 %v5850, %v4278
        %v5852 = vadd.f32 %v5851, %v4279
        %5853 = vadd.xlane.f32.xlu0 %v5852
        %v5854 = vpop.xlane.xlu0 %5853
        %v5855 = vadd.f32 %v4280, %v4281
        %v5856 = vadd.f32 %v5855, %v4282
        %v5857 = vadd.f32 %v5856, %v4283
        %5858 = vadd.xlane.f32.xlu0 %v5857
        %v5859 = vpop.xlane.xlu0 %5858
        %v5860 = vadd.f32 %v4284, %v4285
        %v5861 = vadd.f32 %v5860, %v4286
        %v5862 = vadd.f32 %v5861, %v4287
        %5863 = vadd.xlane.f32.xlu0 %v5862
        %v5864 = vpop.xlane.xlu0 %5863
        %v5865 = vadd.f32 %v4288, %v4289
        %v5866 = vadd.f32 %v5865, %v4290
        %v5867 = vadd.f32 %v5866, %v4291
        %5868 = vadd.xlane.f32.xlu0 %v5867
        %v5869 = vpop.xlane.xlu0 %5868
        %v5870 = vadd.f32 %v4292, %v4293
        %v5871 = vadd.f32 %v5870, %v4294
        %v5872 = vadd.f32 %v5871, %v4295
        %5873 = vadd.xlane.f32.xlu0 %v5872
        %v5874 = vpop.xlane.xlu0 %5873
        %v5875 = vadd.f32 %v4296, %v4297
        %v5876 = vadd.f32 %v5875, %v4298
        %v5877 = vadd.f32 %v5876, %v4299
        %5878 = vadd.xlane.f32.xlu0 %v5877
        %v5879 = vpop.xlane.xlu0 %5878
        %v5880 = vadd.f32 %v4300, %v4301
        %v5881 = vadd.f32 %v5880, %v4302
        %v5882 = vadd.f32 %v5881, %v4303
        %5883 = vadd.xlane.f32.xlu0 %v5882
        %v5884 = vpop.xlane.xlu0 %5883
        %v5885 = vadd.f32 %v4304, %v4305
        %v5886 = vadd.f32 %v5885, %v4306
        %v5887 = vadd.f32 %v5886, %v4307
        %5888 = vadd.xlane.f32.xlu0 %v5887
        %v5889 = vpop.xlane.xlu0 %5888
        %v5890 = vadd.f32 %v4308, %v4309
        %v5891 = vadd.f32 %v5890, %v4310
        %v5892 = vadd.f32 %v5891, %v4311
        %5893 = vadd.xlane.f32.xlu0 %v5892
        %v5894 = vpop.xlane.xlu0 %5893
        %v5895 = vadd.f32 %v4312, %v4313
        %v5896 = vadd.f32 %v5895, %v4314
        %v5897 = vadd.f32 %v5896, %v4315
        %5898 = vadd.xlane.f32.xlu0 %v5897
        %v5899 = vpop.xlane.xlu0 %5898
        %v5900 = vadd.f32 %v4316, %v4317
        %v5901 = vadd.f32 %v5900, %v4318
        %v5902 = vadd.f32 %v5901, %v4319
        %5903 = vadd.xlane.f32.xlu0 %v5902
        %v5904 = vpop.xlane.xlu0 %5903
        %v5905 = vadd.f32 %v4320, %v4321
        %v5906 = vadd.f32 %v5905, %v4322
        %v5907 = vadd.f32 %v5906, %v4323
        %5908 = vadd.xlane.f32.xlu0 %v5907
        %v5909 = vpop.xlane.xlu0 %5908
        %v5910 = vadd.f32 %v4324, %v4325
        %v5911 = vadd.f32 %v5910, %v4326
        %v5912 = vadd.f32 %v5911, %v4327
        %5913 = vadd.xlane.f32.xlu0 %v5912
        %v5914 = vpop.xlane.xlu0 %5913
        %v5915 = vadd.f32 %v4328, %v4329
        %v5916 = vadd.f32 %v5915, %v4330
        %v5917 = vadd.f32 %v5916, %v4331
        %5918 = vadd.xlane.f32.xlu0 %v5917
        %v5919 = vpop.xlane.xlu0 %5918
        %v5920 = vadd.f32 %v4332, %v4333
        %v5921 = vadd.f32 %v5920, %v4334
        %v5922 = vadd.f32 %v5921, %v4335
        %5923 = vadd.xlane.f32.xlu0 %v5922
        %v5924 = vpop.xlane.xlu0 %5923
        %v5925 = vadd.f32 %v4336, %v4337
        %v5926 = vadd.f32 %v5925, %v4338
        %v5927 = vadd.f32 %v5926, %v4339
        %5928 = vadd.xlane.f32.xlu0 %v5927
        %v5929 = vpop.xlane.xlu0 %5928
        %v5930 = vadd.f32 %v4340, %v4341
        %v5931 = vadd.f32 %v5930, %v4342
        %v5932 = vadd.f32 %v5931, %v4343
        %5933 = vadd.xlane.f32.xlu0 %v5932
        %v5934 = vpop.xlane.xlu0 %5933
        %v5935 = vadd.f32 %v4344, %v4345
        %v5936 = vadd.f32 %v5935, %v4346
        %v5937 = vadd.f32 %v5936, %v4347
        %5938 = vadd.xlane.f32.xlu0 %v5937
        %v5939 = vpop.xlane.xlu0 %5938
        %v5940 = vadd.f32 %v4348, %v4349
        %v5941 = vadd.f32 %v5940, %v4350
        %v5942 = vadd.f32 %v5941, %v4351
        %5943 = vadd.xlane.f32.xlu0 %v5942
        %v5944 = vpop.xlane.xlu0 %5943
        %v5945 = vadd.f32 %v4352, %v4353
        %v5946 = vadd.f32 %v5945, %v4354
        %v5947 = vadd.f32 %v5946, %v4355
        %5948 = vadd.xlane.f32.xlu0 %v5947
        %v5949 = vpop.xlane.xlu0 %5948
        %v5950 = vadd.f32 %v4356, %v4357
        %v5951 = vadd.f32 %v5950, %v4358
        %v5952 = vadd.f32 %v5951, %v4359
        %5953 = vadd.xlane.f32.xlu0 %v5952
        %v5954 = vpop.xlane.xlu0 %5953
        %v5955 = vadd.f32 %v4360, %v4361
        %v5956 = vadd.f32 %v5955, %v4362
        %v5957 = vadd.f32 %v5956, %v4363
        %5958 = vadd.xlane.f32.xlu0 %v5957
        %v5959 = vpop.xlane.xlu0 %5958
        %v5960 = vadd.f32 %v4364, %v4365
        %v5961 = vadd.f32 %v5960, %v4366
        %v5962 = vadd.f32 %v5961, %v4367
        %5963 = vadd.xlane.f32.xlu0 %v5962
        %v5964 = vpop.xlane.xlu0 %5963
        %v5965 = vadd.f32 %v4368, %v4369
        %v5966 = vadd.f32 %v5965, %v4370
        %v5967 = vadd.f32 %v5966, %v4371
        %5968 = vadd.xlane.f32.xlu0 %v5967
        %v5969 = vpop.xlane.xlu0 %5968
        %v5970 = vadd.f32 %v4372, %v4373
        %v5971 = vadd.f32 %v5970, %v4374
        %v5972 = vadd.f32 %v5971, %v4375
        %5973 = vadd.xlane.f32.xlu0 %v5972
        %v5974 = vpop.xlane.xlu0 %5973
        %v5975 = vadd.f32 %v4376, %v4377
        %v5976 = vadd.f32 %v5975, %v4378
        %v5977 = vadd.f32 %v5976, %v4379
        %5978 = vadd.xlane.f32.xlu0 %v5977
        %v5979 = vpop.xlane.xlu0 %5978
        %v5980 = vadd.f32 %v5500, %v5584
        %v5981 = vadd.f32 %v5501, %v5589
        %v5982 = vadd.f32 %v5502, %v5594
        %v5983 = vadd.f32 %v5503, %v5599
        %v5984 = vadd.f32 %v5504, %v5604
        %v5985 = vadd.f32 %v5505, %v5609
        %v5986 = vadd.f32 %v5506, %v5614
        %v5987 = vadd.f32 %v5507, %v5619
        %v5988 = vadd.f32 %v5508, %v5624
        %v5989 = vadd.f32 %v5509, %v5629
        %v5990 = vadd.f32 %v5510, %v5634
        %v5991 = vadd.f32 %v5511, %v5639
        %v5992 = vadd.f32 %v5512, %v5644
        %v5993 = vadd.f32 %v5513, %v5649
        %v5994 = vadd.f32 %v5514, %v5654
        %v5995 = vadd.f32 %v5515, %v5659
        %v5996 = vadd.f32 %v5516, %v5664
        %v5997 = vadd.f32 %v5517, %v5669
        %v5998 = vadd.f32 %v5518, %v5674
        %v5999 = vadd.f32 %v5519, %v5679
        %v6000 = vadd.f32 %v5520, %v5684
        %v6001 = vadd.f32 %v5521, %v5689
        %v6002 = vadd.f32 %v5522, %v5694
        %v6003 = vadd.f32 %v5523, %v5699
        %v6004 = vadd.f32 %v5524, %v5704
        %v6005 = vadd.f32 %v5525, %v5709
        %v6006 = vadd.f32 %v5526, %v5714
        %v6007 = vadd.f32 %v5527, %v5719
        %v6008 = vadd.f32 %v5528, %v5724
        %v6009 = vadd.f32 %v5529, %v5729
        %v6010 = vadd.f32 %v5530, %v5734
        %v6011 = vadd.f32 %v5531, %v5739
        %v6012 = vadd.f32 %v5532, %v5744
        %v6013 = vadd.f32 %v5533, %v5749
        %v6014 = vadd.f32 %v5534, %v5754
        %v6015 = vadd.f32 %v5535, %v5759
        %v6016 = vadd.f32 %v5536, %v5764
        %v6017 = vadd.f32 %v5537, %v5769
        %v6018 = vadd.f32 %v5538, %v5774
        %v6019 = vadd.f32 %v5539, %v5779
        %v6020 = vadd.f32 %v5540, %v5784
        %v6021 = vadd.f32 %v5541, %v5789
        %v6022 = vadd.f32 %v5542, %v5794
        %v6023 = vadd.f32 %v5543, %v5799
        %v6024 = vadd.f32 %v5544, %v5804
        %v6025 = vadd.f32 %v5545, %v5809
        %v6026 = vadd.f32 %v5546, %v5814
        %v6027 = vadd.f32 %v5547, %v5819
        %v6028 = vadd.f32 %v5548, %v5824
        %v6029 = vadd.f32 %v5549, %v5829
        %v6030 = vadd.f32 %v5550, %v5834
        %v6031 = vadd.f32 %v5551, %v5839
        %v6032 = vadd.f32 %v5552, %v5844
        %v6033 = vadd.f32 %v5553, %v5849
        %v6034 = vadd.f32 %v5554, %v5854
        %v6035 = vadd.f32 %v5555, %v5859
        %v6036 = vadd.f32 %v5556, %v5864
        %v6037 = vadd.f32 %v5557, %v5869
        %v6038 = vadd.f32 %v5558, %v5874
        %v6039 = vadd.f32 %v5559, %v5879
        %v6040 = vadd.f32 %v5560, %v5884
        %v6041 = vadd.f32 %v5561, %v5889
        %v6042 = vadd.f32 %v5562, %v5894
        %v6043 = vadd.f32 %v5563, %v5899
        %v6044 = vadd.f32 %v5564, %v5904
        %v6045 = vadd.f32 %v5565, %v5909
        %v6046 = vadd.f32 %v5566, %v5914
        %v6047 = vadd.f32 %v5567, %v5919
        %v6048 = vadd.f32 %v5568, %v5924
        %v6049 = vadd.f32 %v5569, %v5929
        %v6050 = vadd.f32 %v5570, %v5934
        %v6051 = vadd.f32 %v5571, %v5939
        %v6052 = vadd.f32 %v5572, %v5944
        %v6053 = vadd.f32 %v5573, %v5949
        %v6054 = vadd.f32 %v5574, %v5954
        %v6055 = vadd.f32 %v5575, %v5959
        %v6056 = vadd.f32 %v5576, %v5964
        %v6057 = vadd.f32 %v5577, %v5969
        %v6058 = vadd.f32 %v5578, %v5974
        %v6059 = vadd.f32 %v5579, %v5979
        %vm6060 = vcmask 7168
        %6061 = vst.msk [vmem:[#allocation2] sm:$0xff] %vm6060, %v5980
        %6062 = vst.msk [vmem:[#allocation2 + $0x8] sm:$0xff] %vm6060, %v5981
        %6063 = vst.msk [vmem:[#allocation2 + $0x10] sm:$0xff] %vm6060, %v5982
        %6064 = vst.msk [vmem:[#allocation2 + $0x18] sm:$0xff] %vm6060, %v5983
        %6065 = vst.msk [vmem:[#allocation2 + $0x20] sm:$0xff] %vm6060, %v5984
        %6066 = vst.msk [vmem:[#allocation2 + $0x28] sm:$0xff] %vm6060, %v5985
        %6067 = vst.msk [vmem:[#allocation2 + $0x30] sm:$0xff] %vm6060, %v5986
        %6068 = vst.msk [vmem:[#allocation2 + $0x38] sm:$0xff] %vm6060, %v5987
        %6069 = vst.msk [vmem:[#allocation2 + $0x40] sm:$0xff] %vm6060, %v5988
        %6070 = vst.msk [vmem:[#allocation2 + $0x48] sm:$0xff] %vm6060, %v5989
        %6071 = vst.msk [vmem:[#allocation2 + $0x50] sm:$0xff] %vm6060, %v5990
        %6072 = vst.msk [vmem:[#allocation2 + $0x58] sm:$0xff] %vm6060, %v5991
        %6073 = vst.msk [vmem:[#allocation2 + $0x60] sm:$0xff] %vm6060, %v5992
        %6074 = vst.msk [vmem:[#allocation2 + $0x68] sm:$0xff] %vm6060, %v5993
        %6075 = vst.msk [vmem:[#allocation2 + $0x70] sm:$0xff] %vm6060, %v5994
        %6076 = vst.msk [vmem:[#allocation2 + $0x78] sm:$0xff] %vm6060, %v5995
        %6077 = vst.msk [vmem:[#allocation2 + $0x80] sm:$0xff] %vm6060, %v5996
        %6078 = vst.msk [vmem:[#allocation2 + $0x88] sm:$0xff] %vm6060, %v5997
        %6079 = vst.msk [vmem:[#allocation2 + $0x90] sm:$0xff] %vm6060, %v5998
        %6080 = vst.msk [vmem:[#allocation2 + $0x98] sm:$0xff] %vm6060, %v5999
        %6081 = vst.msk [vmem:[#allocation2 + $0xa0] sm:$0xff] %vm6060, %v6000
        %6082 = vst.msk [vmem:[#allocation2 + $0xa8] sm:$0xff] %vm6060, %v6001
        %6083 = vst.msk [vmem:[#allocation2 + $0xb0] sm:$0xff] %vm6060, %v6002
        %6084 = vst.msk [vmem:[#allocation2 + $0xb8] sm:$0xff] %vm6060, %v6003
        %6085 = vst.msk [vmem:[#allocation2 + $0xc0] sm:$0xff] %vm6060, %v6004
        %6086 = vst.msk [vmem:[#allocation2 + $0xc8] sm:$0xff] %vm6060, %v6005
        %6087 = vst.msk [vmem:[#allocation2 + $0xd0] sm:$0xff] %vm6060, %v6006
        %6088 = vst.msk [vmem:[#allocation2 + $0xd8] sm:$0xff] %vm6060, %v6007
        %6089 = vst.msk [vmem:[#allocation2 + $0xe0] sm:$0xff] %vm6060, %v6008
        %6090 = vst.msk [vmem:[#allocation2 + $0xe8] sm:$0xff] %vm6060, %v6009
        %6091 = vst.msk [vmem:[#allocation2 + $0xf0] sm:$0xff] %vm6060, %v6010
        %6092 = vst.msk [vmem:[#allocation2 + $0xf8] sm:$0xff] %vm6060, %v6011
        %6093 = vst.msk [vmem:[#allocation2 + $0x100] sm:$0xff] %vm6060, %v6012
        %6094 = vst.msk [vmem:[#allocation2 + $0x108] sm:$0xff] %vm6060, %v6013
        %6095 = vst.msk [vmem:[#allocation2 + $0x110] sm:$0xff] %vm6060, %v6014
        %6096 = vst.msk [vmem:[#allocation2 + $0x118] sm:$0xff] %vm6060, %v6015
        %6097 = vst.msk [vmem:[#allocation2 + $0x120] sm:$0xff] %vm6060, %v6016
        %6098 = vst.msk [vmem:[#allocation2 + $0x128] sm:$0xff] %vm6060, %v6017
        %6099 = vst.msk [vmem:[#allocation2 + $0x130] sm:$0xff] %vm6060, %v6018
        %6100 = vst.msk [vmem:[#allocation2 + $0x138] sm:$0xff] %vm6060, %v6019
        %6101 = vst.msk [vmem:[#allocation2 + $0x140] sm:$0xff] %vm6060, %v6020
        %6102 = vst.msk [vmem:[#allocation2 + $0x148] sm:$0xff] %vm6060, %v6021
        %6103 = vst.msk [vmem:[#allocation2 + $0x150] sm:$0xff] %vm6060, %v6022
        %6104 = vst.msk [vmem:[#allocation2 + $0x158] sm:$0xff] %vm6060, %v6023
        %6105 = vst.msk [vmem:[#allocation2 + $0x160] sm:$0xff] %vm6060, %v6024
        %6106 = vst.msk [vmem:[#allocation2 + $0x168] sm:$0xff] %vm6060, %v6025
        %6107 = vst.msk [vmem:[#allocation2 + $0x170] sm:$0xff] %vm6060, %v6026
        %6108 = vst.msk [vmem:[#allocation2 + $0x178] sm:$0xff] %vm6060, %v6027
        %6109 = vst.msk [vmem:[#allocation2 + $0x180] sm:$0xff] %vm6060, %v6028
        %6110 = vst.msk [vmem:[#allocation2 + $0x188] sm:$0xff] %vm6060, %v6029
        %6111 = vst.msk [vmem:[#allocation2 + $0x190] sm:$0xff] %vm6060, %v6030
        %6112 = vst.msk [vmem:[#allocation2 + $0x198] sm:$0xff] %vm6060, %v6031
        %6113 = vst.msk [vmem:[#allocation2 + $0x1a0] sm:$0xff] %vm6060, %v6032
        %6114 = vst.msk [vmem:[#allocation2 + $0x1a8] sm:$0xff] %vm6060, %v6033
        %6115 = vst.msk [vmem:[#allocation2 + $0x1b0] sm:$0xff] %vm6060, %v6034
        %6116 = vst.msk [vmem:[#allocation2 + $0x1b8] sm:$0xff] %vm6060, %v6035
        %6117 = vst.msk [vmem:[#allocation2 + $0x1c0] sm:$0xff] %vm6060, %v6036
        %6118 = vst.msk [vmem:[#allocation2 + $0x1c8] sm:$0xff] %vm6060, %v6037
        %6119 = vst.msk [vmem:[#allocation2 + $0x1d0] sm:$0xff] %vm6060, %v6038
        %6120 = vst.msk [vmem:[#allocation2 + $0x1d8] sm:$0xff] %vm6060, %v6039
        %6121 = vst.msk [vmem:[#allocation2 + $0x1e0] sm:$0xff] %vm6060, %v6040
        %6122 = vst.msk [vmem:[#allocation2 + $0x1e8] sm:$0xff] %vm6060, %v6041
        %6123 = vst.msk [vmem:[#allocation2 + $0x1f0] sm:$0xff] %vm6060, %v6042
        %6124 = vst.msk [vmem:[#allocation2 + $0x1f8] sm:$0xff] %vm6060, %v6043
        %6125 = vst.msk [vmem:[#allocation2 + $0x200] sm:$0xff] %vm6060, %v6044
        %6126 = vst.msk [vmem:[#allocation2 + $0x208] sm:$0xff] %vm6060, %v6045
        %6127 = vst.msk [vmem:[#allocation2 + $0x210] sm:$0xff] %vm6060, %v6046
        %6128 = vst.msk [vmem:[#allocation2 + $0x218] sm:$0xff] %vm6060, %v6047
        %6129 = vst.msk [vmem:[#allocation2 + $0x220] sm:$0xff] %vm6060, %v6048
        %6130 = vst.msk [vmem:[#allocation2 + $0x228] sm:$0xff] %vm6060, %v6049
        %6131 = vst.msk [vmem:[#allocation2 + $0x230] sm:$0xff] %vm6060, %v6050
        %6132 = vst.msk [vmem:[#allocation2 + $0x238] sm:$0xff] %vm6060, %v6051
        %6133 = vst.msk [vmem:[#allocation2 + $0x240] sm:$0xff] %vm6060, %v6052
        %6134 = vst.msk [vmem:[#allocation2 + $0x248] sm:$0xff] %vm6060, %v6053
        %6135 = vst.msk [vmem:[#allocation2 + $0x250] sm:$0xff] %vm6060, %v6054
        %6136 = vst.msk [vmem:[#allocation2 + $0x258] sm:$0xff] %vm6060, %v6055
        %6137 = vst.msk [vmem:[#allocation2 + $0x260] sm:$0xff] %vm6060, %v6056
        %6138 = vst.msk [vmem:[#allocation2 + $0x268] sm:$0xff] %vm6060, %v6057
        %6139 = vst.msk [vmem:[#allocation2 + $0x270] sm:$0xff] %vm6060, %v6058
        %6140 = vst.msk [vmem:[#allocation2 + $0x278] sm:$0xff] %vm6060, %v6059
        %p6141 = scmp.eq.s32.totalorder %s31, 1
        // Predicated region
        $region49: #{tpu_custom_call.1} parent=39 // pred_check
          %p6142 = pneg %p6141
        $region50: #{tpu_custom_call.1} parent=39 // pred_check_branch
          %6144 = sbr.rel (%p6142) target = $region52
        $region51: #{tpu_custom_call.1} parent=39 // pred_region
          %v6145 = vld [vmem:[#allocation2] sm:$0xff]
          %v6146 = vld [vmem:[#allocation2 + $0x8] sm:$0xff]
          %v6147 = vld [vmem:[#allocation2 + $0x10] sm:$0xff]
          %v6148 = vld [vmem:[#allocation2 + $0x18] sm:$0xff]
          %v6149 = vld [vmem:[#allocation2 + $0x20] sm:$0xff]
          %v6150 = vld [vmem:[#allocation2 + $0x28] sm:$0xff]
          %v6151 = vld [vmem:[#allocation2 + $0x30] sm:$0xff]
          %v6152 = vld [vmem:[#allocation2 + $0x38] sm:$0xff]
          %v6153 = vld [vmem:[#allocation2 + $0x40] sm:$0xff]
          %v6154 = vld [vmem:[#allocation2 + $0x48] sm:$0xff]
          %v6155 = vld [vmem:[#allocation2 + $0x50] sm:$0xff]
          %v6156 = vld [vmem:[#allocation2 + $0x58] sm:$0xff]
          %v6157 = vld [vmem:[#allocation2 + $0x60] sm:$0xff]
          %v6158 = vld [vmem:[#allocation2 + $0x68] sm:$0xff]
          %v6159 = vld [vmem:[#allocation2 + $0x70] sm:$0xff]
          %v6160 = vld [vmem:[#allocation2 + $0x78] sm:$0xff]
          %v6161 = vld [vmem:[#allocation2 + $0x80] sm:$0xff]
          %v6162 = vld [vmem:[#allocation2 + $0x88] sm:$0xff]
          %v6163 = vld [vmem:[#allocation2 + $0x90] sm:$0xff]
          %v6164 = vld [vmem:[#allocation2 + $0x98] sm:$0xff]
          %v6165 = vld [vmem:[#allocation2 + $0xa0] sm:$0xff]
          %v6166 = vld [vmem:[#allocation2 + $0xa8] sm:$0xff]
          %v6167 = vld [vmem:[#allocation2 + $0xb0] sm:$0xff]
          %v6168 = vld [vmem:[#allocation2 + $0xb8] sm:$0xff]
          %v6169 = vld [vmem:[#allocation2 + $0xc0] sm:$0xff]
          %v6170 = vld [vmem:[#allocation2 + $0xc8] sm:$0xff]
          %v6171 = vld [vmem:[#allocation2 + $0xd0] sm:$0xff]
          %v6172 = vld [vmem:[#allocation2 + $0xd8] sm:$0xff]
          %v6173 = vld [vmem:[#allocation2 + $0xe0] sm:$0xff]
          %v6174 = vld [vmem:[#allocation2 + $0xe8] sm:$0xff]
          %v6175 = vld [vmem:[#allocation2 + $0xf0] sm:$0xff]
          %v6176 = vld [vmem:[#allocation2 + $0xf8] sm:$0xff]
          %v6177 = vld [vmem:[#allocation2 + $0x100] sm:$0xff]
          %v6178 = vld [vmem:[#allocation2 + $0x108] sm:$0xff]
          %v6179 = vld [vmem:[#allocation2 + $0x110] sm:$0xff]
          %v6180 = vld [vmem:[#allocation2 + $0x118] sm:$0xff]
          %v6181 = vld [vmem:[#allocation2 + $0x120] sm:$0xff]
          %v6182 = vld [vmem:[#allocation2 + $0x128] sm:$0xff]
          %v6183 = vld [vmem:[#allocation2 + $0x130] sm:$0xff]
          %v6184 = vld [vmem:[#allocation2 + $0x138] sm:$0xff]
          %v6185 = vld [vmem:[#allocation2 + $0x140] sm:$0xff]
          %v6186 = vld [vmem:[#allocation2 + $0x148] sm:$0xff]
          %v6187 = vld [vmem:[#allocation2 + $0x150] sm:$0xff]
          %v6188 = vld [vmem:[#allocation2 + $0x158] sm:$0xff]
          %v6189 = vld [vmem:[#allocation2 + $0x160] sm:$0xff]
          %v6190 = vld [vmem:[#allocation2 + $0x168] sm:$0xff]
          %v6191 = vld [vmem:[#allocation2 + $0x170] sm:$0xff]
          %v6192 = vld [vmem:[#allocation2 + $0x178] sm:$0xff]
          %v6193 = vld [vmem:[#allocation2 + $0x180] sm:$0xff]
          %v6194 = vld [vmem:[#allocation2 + $0x188] sm:$0xff]
          %v6195 = vld [vmem:[#allocation2 + $0x190] sm:$0xff]
          %v6196 = vld [vmem:[#allocation2 + $0x198] sm:$0xff]
          %v6197 = vld [vmem:[#allocation2 + $0x1a0] sm:$0xff]
          %v6198 = vld [vmem:[#allocation2 + $0x1a8] sm:$0xff]
          %v6199 = vld [vmem:[#allocation2 + $0x1b0] sm:$0xff]
          %v6200 = vld [vmem:[#allocation2 + $0x1b8] sm:$0xff]
          %v6201 = vld [vmem:[#allocation2 + $0x1c0] sm:$0xff]
          %v6202 = vld [vmem:[#allocation2 + $0x1c8] sm:$0xff]
          %v6203 = vld [vmem:[#allocation2 + $0x1d0] sm:$0xff]
          %v6204 = vld [vmem:[#allocation2 + $0x1d8] sm:$0xff]
          %v6205 = vld [vmem:[#allocation2 + $0x1e0] sm:$0xff]
          %v6206 = vld [vmem:[#allocation2 + $0x1e8] sm:$0xff]
          %v6207 = vld [vmem:[#allocation2 + $0x1f0] sm:$0xff]
          %v6208 = vld [vmem:[#allocation2 + $0x1f8] sm:$0xff]
          %v6209 = vld [vmem:[#allocation2 + $0x200] sm:$0xff]
          %v6210 = vld [vmem:[#allocation2 + $0x208] sm:$0xff]
          %v6211 = vld [vmem:[#allocation2 + $0x210] sm:$0xff]
          %v6212 = vld [vmem:[#allocation2 + $0x218] sm:$0xff]
          %v6213 = vld [vmem:[#allocation2 + $0x220] sm:$0xff]
          %v6214 = vld [vmem:[#allocation2 + $0x228] sm:$0xff]
          %v6215 = vld [vmem:[#allocation2 + $0x230] sm:$0xff]
          %v6216 = vld [vmem:[#allocation2 + $0x238] sm:$0xff]
          %v6217 = vld [vmem:[#allocation2 + $0x240] sm:$0xff]
          %v6218 = vld [vmem:[#allocation2 + $0x248] sm:$0xff]
          %v6219 = vld [vmem:[#allocation2 + $0x250] sm:$0xff]
          %v6220 = vld [vmem:[#allocation2 + $0x258] sm:$0xff]
          %v6221 = vld [vmem:[#allocation2 + $0x260] sm:$0xff]
          %v6222 = vld [vmem:[#allocation2 + $0x268] sm:$0xff]
          %v6223 = vld [vmem:[#allocation2 + $0x270] sm:$0xff]
          %v6224 = vld [vmem:[#allocation2 + $0x278] sm:$0xff]
          %v6225 = vmul.f32 %v6145, 0.0009765625
          %v6226 = vmul.f32 %v6146, 0.0009765625
          %v6227 = vmul.f32 %v6147, 0.0009765625
          %v6228 = vmul.f32 %v6148, 0.0009765625
          %v6229 = vmul.f32 %v6149, 0.0009765625
          %v6230 = vmul.f32 %v6150, 0.0009765625
          %v6231 = vmul.f32 %v6151, 0.0009765625
          %v6232 = vmul.f32 %v6152, 0.0009765625
          %v6233 = vmul.f32 %v6153, 0.0009765625
          %v6234 = vmul.f32 %v6154, 0.0009765625
          %v6235 = vmul.f32 %v6155, 0.0009765625
          %v6236 = vmul.f32 %v6156, 0.0009765625
          %v6237 = vmul.f32 %v6157, 0.0009765625
          %v6238 = vmul.f32 %v6158, 0.0009765625
          %v6239 = vmul.f32 %v6159, 0.0009765625
          %v6240 = vmul.f32 %v6160, 0.0009765625
          %v6241 = vmul.f32 %v6161, 0.0009765625
          %v6242 = vmul.f32 %v6162, 0.0009765625
          %v6243 = vmul.f32 %v6163, 0.0009765625
          %v6244 = vmul.f32 %v6164, 0.0009765625
          %v6245 = vmul.f32 %v6165, 0.0009765625
          %v6246 = vmul.f32 %v6166, 0.0009765625
          %v6247 = vmul.f32 %v6167, 0.0009765625
          %v6248 = vmul.f32 %v6168, 0.0009765625
          %v6249 = vmul.f32 %v6169, 0.0009765625
          %v6250 = vmul.f32 %v6170, 0.0009765625
          %v6251 = vmul.f32 %v6171, 0.0009765625
          %v6252 = vmul.f32 %v6172, 0.0009765625
          %v6253 = vmul.f32 %v6173, 0.0009765625
          %v6254 = vmul.f32 %v6174, 0.0009765625
          %v6255 = vmul.f32 %v6175, 0.0009765625
          %v6256 = vmul.f32 %v6176, 0.0009765625
          %v6257 = vmul.f32 %v6177, 0.0009765625
          %v6258 = vmul.f32 %v6178, 0.0009765625
          %v6259 = vmul.f32 %v6179, 0.0009765625
          %v6260 = vmul.f32 %v6180, 0.0009765625
          %v6261 = vmul.f32 %v6181, 0.0009765625
          %v6262 = vmul.f32 %v6182, 0.0009765625
          %v6263 = vmul.f32 %v6183, 0.0009765625
          %v6264 = vmul.f32 %v6184, 0.0009765625
          %v6265 = vmul.f32 %v6185, 0.0009765625
          %v6266 = vmul.f32 %v6186, 0.0009765625
          %v6267 = vmul.f32 %v6187, 0.0009765625
          %v6268 = vmul.f32 %v6188, 0.0009765625
          %v6269 = vmul.f32 %v6189, 0.0009765625
          %v6270 = vmul.f32 %v6190, 0.0009765625
          %v6271 = vmul.f32 %v6191, 0.0009765625
          %v6272 = vmul.f32 %v6192, 0.0009765625
          %v6273 = vmul.f32 %v6193, 0.0009765625
          %v6274 = vmul.f32 %v6194, 0.0009765625
          %v6275 = vmul.f32 %v6195, 0.0009765625
          %v6276 = vmul.f32 %v6196, 0.0009765625
          %v6277 = vmul.f32 %v6197, 0.0009765625
          %v6278 = vmul.f32 %v6198, 0.0009765625
          %v6279 = vmul.f32 %v6199, 0.0009765625
          %v6280 = vmul.f32 %v6200, 0.0009765625
          %v6281 = vmul.f32 %v6201, 0.0009765625
          %v6282 = vmul.f32 %v6202, 0.0009765625
          %v6283 = vmul.f32 %v6203, 0.0009765625
          %v6284 = vmul.f32 %v6204, 0.0009765625
          %v6285 = vmul.f32 %v6205, 0.0009765625
          %v6286 = vmul.f32 %v6206, 0.0009765625
          %v6287 = vmul.f32 %v6207, 0.0009765625
          %v6288 = vmul.f32 %v6208, 0.0009765625
          %v6289 = vmul.f32 %v6209, 0.0009765625
          %v6290 = vmul.f32 %v6210, 0.0009765625
          %v6291 = vmul.f32 %v6211, 0.0009765625
          %v6292 = vmul.f32 %v6212, 0.0009765625
          %v6293 = vmul.f32 %v6213, 0.0009765625
          %v6294 = vmul.f32 %v6214, 0.0009765625
          %v6295 = vmul.f32 %v6215, 0.0009765625
          %v6296 = vmul.f32 %v6216, 0.0009765625
          %v6297 = vmul.f32 %v6217, 0.0009765625
          %v6298 = vmul.f32 %v6218, 0.0009765625
          %v6299 = vmul.f32 %v6219, 0.0009765625
          %v6300 = vmul.f32 %v6220, 0.0009765625
          %v6301 = vmul.f32 %v6221, 0.0009765625
          %v6302 = vmul.f32 %v6222, 0.0009765625
          %v6303 = vmul.f32 %v6223, 0.0009765625
          %v6304 = vmul.f32 %v6224, 0.0009765625
          %6305 = vst.msk [vmem:[%s342] sm:$0xff] %vm6060, %v6225
          %6306 = vst.msk [vmem:[%s342 + $0x8] sm:$0xff] %vm6060, %v6226
          %6307 = vst.msk [vmem:[%s342 + $0x10] sm:$0xff] %vm6060, %v6227
          %6308 = vst.msk [vmem:[%s342 + $0x18] sm:$0xff] %vm6060, %v6228
          %6309 = vst.msk [vmem:[%s342 + $0x20] sm:$0xff] %vm6060, %v6229
          %6310 = vst.msk [vmem:[%s342 + $0x28] sm:$0xff] %vm6060, %v6230
          %6311 = vst.msk [vmem:[%s342 + $0x30] sm:$0xff] %vm6060, %v6231
          %6312 = vst.msk [vmem:[%s342 + $0x38] sm:$0xff] %vm6060, %v6232
          %6313 = vst.msk [vmem:[%s342 + $0x40] sm:$0xff] %vm6060, %v6233
          %6314 = vst.msk [vmem:[%s342 + $0x48] sm:$0xff] %vm6060, %v6234
          %6315 = vst.msk [vmem:[%s342 + $0x50] sm:$0xff] %vm6060, %v6235
          %6316 = vst.msk [vmem:[%s342 + $0x58] sm:$0xff] %vm6060, %v6236
          %6317 = vst.msk [vmem:[%s342 + $0x60] sm:$0xff] %vm6060, %v6237
          %6318 = vst.msk [vmem:[%s342 + $0x68] sm:$0xff] %vm6060, %v6238
          %6319 = vst.msk [vmem:[%s342 + $0x70] sm:$0xff] %vm6060, %v6239
          %6320 = vst.msk [vmem:[%s342 + $0x78] sm:$0xff] %vm6060, %v6240
          %6321 = vst.msk [vmem:[%s342 + $0x80] sm:$0xff] %vm6060, %v6241
          %6322 = vst.msk [vmem:[%s342 + $0x88] sm:$0xff] %vm6060, %v6242
          %6323 = vst.msk [vmem:[%s342 + $0x90] sm:$0xff] %vm6060, %v6243
          %6324 = vst.msk [vmem:[%s342 + $0x98] sm:$0xff] %vm6060, %v6244
          %6325 = vst.msk [vmem:[%s342 + $0xa0] sm:$0xff] %vm6060, %v6245
          %6326 = vst.msk [vmem:[%s342 + $0xa8] sm:$0xff] %vm6060, %v6246
          %6327 = vst.msk [vmem:[%s342 + $0xb0] sm:$0xff] %vm6060, %v6247
          %6328 = vst.msk [vmem:[%s342 + $0xb8] sm:$0xff] %vm6060, %v6248
          %6329 = vst.msk [vmem:[%s342 + $0xc0] sm:$0xff] %vm6060, %v6249
          %6330 = vst.msk [vmem:[%s342 + $0xc8] sm:$0xff] %vm6060, %v6250
          %6331 = vst.msk [vmem:[%s342 + $0xd0] sm:$0xff] %vm6060, %v6251
          %6332 = vst.msk [vmem:[%s342 + $0xd8] sm:$0xff] %vm6060, %v6252
          %6333 = vst.msk [vmem:[%s342 + $0xe0] sm:$0xff] %vm6060, %v6253
          %6334 = vst.msk [vmem:[%s342 + $0xe8] sm:$0xff] %vm6060, %v6254
          %6335 = vst.msk [vmem:[%s342 + $0xf0] sm:$0xff] %vm6060, %v6255
          %6336 = vst.msk [vmem:[%s342 + $0xf8] sm:$0xff] %vm6060, %v6256
          %6337 = vst.msk [vmem:[%s342 + $0x100] sm:$0xff] %vm6060, %v6257
          %6338 = vst.msk [vmem:[%s342 + $0x108] sm:$0xff] %vm6060, %v6258
          %6339 = vst.msk [vmem:[%s342 + $0x110] sm:$0xff] %vm6060, %v6259
          %6340 = vst.msk [vmem:[%s342 + $0x118] sm:$0xff] %vm6060, %v6260
          %6341 = vst.msk [vmem:[%s342 + $0x120] sm:$0xff] %vm6060, %v6261
          %6342 = vst.msk [vmem:[%s342 + $0x128] sm:$0xff] %vm6060, %v6262
          %6343 = vst.msk [vmem:[%s342 + $0x130] sm:$0xff] %vm6060, %v6263
          %6344 = vst.msk [vmem:[%s342 + $0x138] sm:$0xff] %vm6060, %v6264
          %6345 = vst.msk [vmem:[%s342 + $0x140] sm:$0xff] %vm6060, %v6265
          %6346 = vst.msk [vmem:[%s342 + $0x148] sm:$0xff] %vm6060, %v6266
          %6347 = vst.msk [vmem:[%s342 + $0x150] sm:$0xff] %vm6060, %v6267
          %6348 = vst.msk [vmem:[%s342 + $0x158] sm:$0xff] %vm6060, %v6268
          %6349 = vst.msk [vmem:[%s342 + $0x160] sm:$0xff] %vm6060, %v6269
          %6350 = vst.msk [vmem:[%s342 + $0x168] sm:$0xff] %vm6060, %v6270
          %6351 = vst.msk [vmem:[%s342 + $0x170] sm:$0xff] %vm6060, %v6271
          %6352 = vst.msk [vmem:[%s342 + $0x178] sm:$0xff] %vm6060, %v6272
          %6353 = vst.msk [vmem:[%s342 + $0x180] sm:$0xff] %vm6060, %v6273
          %6354 = vst.msk [vmem:[%s342 + $0x188] sm:$0xff] %vm6060, %v6274
          %6355 = vst.msk [vmem:[%s342 + $0x190] sm:$0xff] %vm6060, %v6275
          %6356 = vst.msk [vmem:[%s342 + $0x198] sm:$0xff] %vm6060, %v6276
          %6357 = vst.msk [vmem:[%s342 + $0x1a0] sm:$0xff] %vm6060, %v6277
          %6358 = vst.msk [vmem:[%s342 + $0x1a8] sm:$0xff] %vm6060, %v6278
          %6359 = vst.msk [vmem:[%s342 + $0x1b0] sm:$0xff] %vm6060, %v6279
          %6360 = vst.msk [vmem:[%s342 + $0x1b8] sm:$0xff] %vm6060, %v6280
          %6361 = vst.msk [vmem:[%s342 + $0x1c0] sm:$0xff] %vm6060, %v6281
          %6362 = vst.msk [vmem:[%s342 + $0x1c8] sm:$0xff] %vm6060, %v6282
          %6363 = vst.msk [vmem:[%s342 + $0x1d0] sm:$0xff] %vm6060, %v6283
          %6364 = vst.msk [vmem:[%s342 + $0x1d8] sm:$0xff] %vm6060, %v6284
          %6365 = vst.msk [vmem:[%s342 + $0x1e0] sm:$0xff] %vm6060, %v6285
          %6366 = vst.msk [vmem:[%s342 + $0x1e8] sm:$0xff] %vm6060, %v6286
          %6367 = vst.msk [vmem:[%s342 + $0x1f0] sm:$0xff] %vm6060, %v6287
          %6368 = vst.msk [vmem:[%s342 + $0x1f8] sm:$0xff] %vm6060, %v6288
          %6369 = vst.msk [vmem:[%s342 + $0x200] sm:$0xff] %vm6060, %v6289
          %6370 = vst.msk [vmem:[%s342 + $0x208] sm:$0xff] %vm6060, %v6290
          %6371 = vst.msk [vmem:[%s342 + $0x210] sm:$0xff] %vm6060, %v6291
          %6372 = vst.msk [vmem:[%s342 + $0x218] sm:$0xff] %vm6060, %v6292
          %6373 = vst.msk [vmem:[%s342 + $0x220] sm:$0xff] %vm6060, %v6293
          %6374 = vst.msk [vmem:[%s342 + $0x228] sm:$0xff] %vm6060, %v6294
          %6375 = vst.msk [vmem:[%s342 + $0x230] sm:$0xff] %vm6060, %v6295
          %6376 = vst.msk [vmem:[%s342 + $0x238] sm:$0xff] %vm6060, %v6296
          %6377 = vst.msk [vmem:[%s342 + $0x240] sm:$0xff] %vm6060, %v6297
          %6378 = vst.msk [vmem:[%s342 + $0x248] sm:$0xff] %vm6060, %v6298
          %6379 = vst.msk [vmem:[%s342 + $0x250] sm:$0xff] %vm6060, %v6299
          %6380 = vst.msk [vmem:[%s342 + $0x258] sm:$0xff] %vm6060, %v6300
          %6381 = vst.msk [vmem:[%s342 + $0x260] sm:$0xff] %vm6060, %v6301
          %6382 = vst.msk [vmem:[%s342 + $0x268] sm:$0xff] %vm6060, %v6302
          %6383 = vst.msk [vmem:[%s342 + $0x270] sm:$0xff] %vm6060, %v6303
          %6384 = vst.msk [vmem:[%s342 + $0x278] sm:$0xff] %vm6060, %v6304
          %v6385 = vld [vmem:[%s3] sm:$0xff]
          %v6386 = vld [vmem:[%s3 + $0x8] sm:$0xff]
          %v6387 = vld [vmem:[%s3 + $0x10] sm:$0xff]
          %v6388 = vld [vmem:[%s3 + $0x18] sm:$0xff]
          %v6389 = vld [vmem:[%s3 + $0x20] sm:$0xff]
          %v6390 = vld [vmem:[%s3 + $0x28] sm:$0xff]
          %v6391 = vld [vmem:[%s3 + $0x30] sm:$0xff]
          %v6392 = vld [vmem:[%s3 + $0x38] sm:$0xff]
          %v6393 = vld [vmem:[%s3 + $0x40] sm:$0xff]
          %v6394 = vld [vmem:[%s3 + $0x48] sm:$0xff]
          %v6395 = vld [vmem:[%s3 + $0x50] sm:$0xff]
          %v6396 = vld [vmem:[%s3 + $0x58] sm:$0xff]
          %v6397 = vld [vmem:[%s3 + $0x60] sm:$0xff]
          %v6398 = vld [vmem:[%s3 + $0x68] sm:$0xff]
          %v6399 = vld [vmem:[%s3 + $0x70] sm:$0xff]
          %v6400 = vld [vmem:[%s3 + $0x78] sm:$0xff]
          %v6401 = vld [vmem:[%s3 + $0x80] sm:$0xff]
          %v6402 = vld [vmem:[%s3 + $0x88] sm:$0xff]
          %v6403 = vld [vmem:[%s3 + $0x90] sm:$0xff]
          %v6404 = vld [vmem:[%s3 + $0x98] sm:$0xff]
          %v6405 = vld [vmem:[%s3 + $0xa0] sm:$0xff]
          %v6406 = vld [vmem:[%s3 + $0xa8] sm:$0xff]
          %v6407 = vld [vmem:[%s3 + $0xb0] sm:$0xff]
          %v6408 = vld [vmem:[%s3 + $0xb8] sm:$0xff]
          %v6409 = vld [vmem:[%s3 + $0xc0] sm:$0xff]
          %v6410 = vld [vmem:[%s3 + $0xc8] sm:$0xff]
          %v6411 = vld [vmem:[%s3 + $0xd0] sm:$0xff]
          %v6412 = vld [vmem:[%s3 + $0xd8] sm:$0xff]
          %v6413 = vld [vmem:[%s3 + $0xe0] sm:$0xff]
          %v6414 = vld [vmem:[%s3 + $0xe8] sm:$0xff]
          %v6415 = vld [vmem:[%s3 + $0xf0] sm:$0xff]
          %v6416 = vld [vmem:[%s3 + $0xf8] sm:$0xff]
          %v6417 = vld [vmem:[%s3 + $0x100] sm:$0xff]
          %v6418 = vld [vmem:[%s3 + $0x108] sm:$0xff]
          %v6419 = vld [vmem:[%s3 + $0x110] sm:$0xff]
          %v6420 = vld [vmem:[%s3 + $0x118] sm:$0xff]
          %v6421 = vld [vmem:[%s3 + $0x120] sm:$0xff]
          %v6422 = vld [vmem:[%s3 + $0x128] sm:$0xff]
          %v6423 = vld [vmem:[%s3 + $0x130] sm:$0xff]
          %v6424 = vld [vmem:[%s3 + $0x138] sm:$0xff]
          %v6425 = vld [vmem:[%s3 + $0x140] sm:$0xff]
          %v6426 = vld [vmem:[%s3 + $0x148] sm:$0xff]
          %v6427 = vld [vmem:[%s3 + $0x150] sm:$0xff]
          %v6428 = vld [vmem:[%s3 + $0x158] sm:$0xff]
          %v6429 = vld [vmem:[%s3 + $0x160] sm:$0xff]
          %v6430 = vld [vmem:[%s3 + $0x168] sm:$0xff]
          %v6431 = vld [vmem:[%s3 + $0x170] sm:$0xff]
          %v6432 = vld [vmem:[%s3 + $0x178] sm:$0xff]
          %v6433 = vld [vmem:[%s3 + $0x180] sm:$0xff]
          %v6434 = vld [vmem:[%s3 + $0x188] sm:$0xff]
          %v6435 = vld [vmem:[%s3 + $0x190] sm:$0xff]
          %v6436 = vld [vmem:[%s3 + $0x198] sm:$0xff]
          %v6437 = vld [vmem:[%s3 + $0x1a0] sm:$0xff]
          %v6438 = vld [vmem:[%s3 + $0x1a8] sm:$0xff]
          %v6439 = vld [vmem:[%s3 + $0x1b0] sm:$0xff]
          %v6440 = vld [vmem:[%s3 + $0x1b8] sm:$0xff]
          %v6441 = vld [vmem:[%s3 + $0x1c0] sm:$0xff]
          %v6442 = vld [vmem:[%s3 + $0x1c8] sm:$0xff]
          %v6443 = vld [vmem:[%s3 + $0x1d0] sm:$0xff]
          %v6444 = vld [vmem:[%s3 + $0x1d8] sm:$0xff]
          %v6445 = vld [vmem:[%s3 + $0x1e0] sm:$0xff]
          %v6446 = vld [vmem:[%s3 + $0x1e8] sm:$0xff]
          %v6447 = vld [vmem:[%s3 + $0x1f0] sm:$0xff]
          %v6448 = vld [vmem:[%s3 + $0x1f8] sm:$0xff]
          %v6449 = vld [vmem:[%s3 + $0x200] sm:$0xff]
          %v6450 = vld [vmem:[%s3 + $0x208] sm:$0xff]
          %v6451 = vld [vmem:[%s3 + $0x210] sm:$0xff]
          %v6452 = vld [vmem:[%s3 + $0x218] sm:$0xff]
          %v6453 = vld [vmem:[%s3 + $0x220] sm:$0xff]
          %v6454 = vld [vmem:[%s3 + $0x228] sm:$0xff]
          %v6455 = vld [vmem:[%s3 + $0x230] sm:$0xff]
          %v6456 = vld [vmem:[%s3 + $0x238] sm:$0xff]
          %v6457 = vld [vmem:[%s3 + $0x240] sm:$0xff]
          %v6458 = vld [vmem:[%s3 + $0x248] sm:$0xff]
          %v6459 = vld [vmem:[%s3 + $0x250] sm:$0xff]
          %v6460 = vld [vmem:[%s3 + $0x258] sm:$0xff]
          %v6461 = vld [vmem:[%s3 + $0x260] sm:$0xff]
          %v6462 = vld [vmem:[%s3 + $0x268] sm:$0xff]
          %v6463 = vld [vmem:[%s3 + $0x270] sm:$0xff]
          %v6464 = vld [vmem:[%s3 + $0x278] sm:$0xff]
          %6466 = vset.pattern.permute.xlu0 0
          %6467 = vperm.xlu0 %6466, %v6225
          %v6468 = vpop.permute.xlu0 %6467
          %6471 = vset.pattern.permute.xlu0 0
          %6472 = vperm.xlu0 %6471, %v6226
          %v6473 = vpop.permute.xlu0 %6472
          %6476 = vset.pattern.permute.xlu0 0
          %6477 = vperm.xlu0 %6476, %v6227
          %v6478 = vpop.permute.xlu0 %6477
          %6481 = vset.pattern.permute.xlu0 0
          %6482 = vperm.xlu0 %6481, %v6228
          %v6483 = vpop.permute.xlu0 %6482
          %6486 = vset.pattern.permute.xlu0 0
          %6487 = vperm.xlu0 %6486, %v6229
          %v6488 = vpop.permute.xlu0 %6487
          %6491 = vset.pattern.permute.xlu0 0
          %6492 = vperm.xlu0 %6491, %v6230
          %v6493 = vpop.permute.xlu0 %6492
          %6496 = vset.pattern.permute.xlu0 0
          %6497 = vperm.xlu0 %6496, %v6231
          %v6498 = vpop.permute.xlu0 %6497
          %6501 = vset.pattern.permute.xlu0 0
          %6502 = vperm.xlu0 %6501, %v6232
          %v6503 = vpop.permute.xlu0 %6502
          %6506 = vset.pattern.permute.xlu0 0
          %6507 = vperm.xlu0 %6506, %v6233
          %v6508 = vpop.permute.xlu0 %6507
          %6511 = vset.pattern.permute.xlu0 0
          %6512 = vperm.xlu0 %6511, %v6234
          %v6513 = vpop.permute.xlu0 %6512
          %6516 = vset.pattern.permute.xlu0 0
          %6517 = vperm.xlu0 %6516, %v6235
          %v6518 = vpop.permute.xlu0 %6517
          %6521 = vset.pattern.permute.xlu0 0
          %6522 = vperm.xlu0 %6521, %v6236
          %v6523 = vpop.permute.xlu0 %6522
          %6526 = vset.pattern.permute.xlu0 0
          %6527 = vperm.xlu0 %6526, %v6237
          %v6528 = vpop.permute.xlu0 %6527
          %6531 = vset.pattern.permute.xlu0 0
          %6532 = vperm.xlu0 %6531, %v6238
          %v6533 = vpop.permute.xlu0 %6532
          %6536 = vset.pattern.permute.xlu0 0
          %6537 = vperm.xlu0 %6536, %v6239
          %v6538 = vpop.permute.xlu0 %6537
          %6541 = vset.pattern.permute.xlu0 0
          %6542 = vperm.xlu0 %6541, %v6240
          %v6543 = vpop.permute.xlu0 %6542
          %6546 = vset.pattern.permute.xlu0 0
          %6547 = vperm.xlu0 %6546, %v6241
          %v6548 = vpop.permute.xlu0 %6547
          %6551 = vset.pattern.permute.xlu0 0
          %6552 = vperm.xlu0 %6551, %v6242
          %v6553 = vpop.permute.xlu0 %6552
          %6556 = vset.pattern.permute.xlu0 0
          %6557 = vperm.xlu0 %6556, %v6243
          %v6558 = vpop.permute.xlu0 %6557
          %6561 = vset.pattern.permute.xlu0 0
          %6562 = vperm.xlu0 %6561, %v6244
          %v6563 = vpop.permute.xlu0 %6562
          %6566 = vset.pattern.permute.xlu0 0
          %6567 = vperm.xlu0 %6566, %v6245
          %v6568 = vpop.permute.xlu0 %6567
          %6571 = vset.pattern.permute.xlu0 0
          %6572 = vperm.xlu0 %6571, %v6246
          %v6573 = vpop.permute.xlu0 %6572
          %6576 = vset.pattern.permute.xlu0 0
          %6577 = vperm.xlu0 %6576, %v6247
          %v6578 = vpop.permute.xlu0 %6577
          %6581 = vset.pattern.permute.xlu0 0
          %6582 = vperm.xlu0 %6581, %v6248
          %v6583 = vpop.permute.xlu0 %6582
          %6586 = vset.pattern.permute.xlu0 0
          %6587 = vperm.xlu0 %6586, %v6249
          %v6588 = vpop.permute.xlu0 %6587
          %6591 = vset.pattern.permute.xlu0 0
          %6592 = vperm.xlu0 %6591, %v6250
          %v6593 = vpop.permute.xlu0 %6592
          %6596 = vset.pattern.permute.xlu0 0
          %6597 = vperm.xlu0 %6596, %v6251
          %v6598 = vpop.permute.xlu0 %6597
          %6601 = vset.pattern.permute.xlu0 0
          %6602 = vperm.xlu0 %6601, %v6252
          %v6603 = vpop.permute.xlu0 %6602
          %6606 = vset.pattern.permute.xlu0 0
          %6607 = vperm.xlu0 %6606, %v6253
          %v6608 = vpop.permute.xlu0 %6607
          %6611 = vset.pattern.permute.xlu0 0
          %6612 = vperm.xlu0 %6611, %v6254
          %v6613 = vpop.permute.xlu0 %6612
          %6616 = vset.pattern.permute.xlu0 0
          %6617 = vperm.xlu0 %6616, %v6255
          %v6618 = vpop.permute.xlu0 %6617
          %6621 = vset.pattern.permute.xlu0 0
          %6622 = vperm.xlu0 %6621, %v6256
          %v6623 = vpop.permute.xlu0 %6622
          %6626 = vset.pattern.permute.xlu0 0
          %6627 = vperm.xlu0 %6626, %v6257
          %v6628 = vpop.permute.xlu0 %6627
          %6631 = vset.pattern.permute.xlu0 0
          %6632 = vperm.xlu0 %6631, %v6258
          %v6633 = vpop.permute.xlu0 %6632
          %6636 = vset.pattern.permute.xlu0 0
          %6637 = vperm.xlu0 %6636, %v6259
          %v6638 = vpop.permute.xlu0 %6637
          %6641 = vset.pattern.permute.xlu0 0
          %6642 = vperm.xlu0 %6641, %v6260
          %v6643 = vpop.permute.xlu0 %6642
          %6646 = vset.pattern.permute.xlu0 0
          %6647 = vperm.xlu0 %6646, %v6261
          %v6648 = vpop.permute.xlu0 %6647
          %6651 = vset.pattern.permute.xlu0 0
          %6652 = vperm.xlu0 %6651, %v6262
          %v6653 = vpop.permute.xlu0 %6652
          %6656 = vset.pattern.permute.xlu0 0
          %6657 = vperm.xlu0 %6656, %v6263
          %v6658 = vpop.permute.xlu0 %6657
          %6661 = vset.pattern.permute.xlu0 0
          %6662 = vperm.xlu0 %6661, %v6264
          %v6663 = vpop.permute.xlu0 %6662
          %6666 = vset.pattern.permute.xlu0 0
          %6667 = vperm.xlu0 %6666, %v6265
          %v6668 = vpop.permute.xlu0 %6667
          %6671 = vset.pattern.permute.xlu0 0
          %6672 = vperm.xlu0 %6671, %v6266
          %v6673 = vpop.permute.xlu0 %6672
          %6676 = vset.pattern.permute.xlu0 0
          %6677 = vperm.xlu0 %6676, %v6267
          %v6678 = vpop.permute.xlu0 %6677
          %6681 = vset.pattern.permute.xlu0 0
          %6682 = vperm.xlu0 %6681, %v6268
          %v6683 = vpop.permute.xlu0 %6682
          %6686 = vset.pattern.permute.xlu0 0
          %6687 = vperm.xlu0 %6686, %v6269
          %v6688 = vpop.permute.xlu0 %6687
          %6691 = vset.pattern.permute.xlu0 0
          %6692 = vperm.xlu0 %6691, %v6270
          %v6693 = vpop.permute.xlu0 %6692
          %6696 = vset.pattern.permute.xlu0 0
          %6697 = vperm.xlu0 %6696, %v6271
          %v6698 = vpop.permute.xlu0 %6697
          %6701 = vset.pattern.permute.xlu0 0
          %6702 = vperm.xlu0 %6701, %v6272
          %v6703 = vpop.permute.xlu0 %6702
          %6706 = vset.pattern.permute.xlu0 0
          %6707 = vperm.xlu0 %6706, %v6273
          %v6708 = vpop.permute.xlu0 %6707
          %6711 = vset.pattern.permute.xlu0 0
          %6712 = vperm.xlu0 %6711, %v6274
          %v6713 = vpop.permute.xlu0 %6712
          %6716 = vset.pattern.permute.xlu0 0
          %6717 = vperm.xlu0 %6716, %v6275
          %v6718 = vpop.permute.xlu0 %6717
          %6721 = vset.pattern.permute.xlu0 0
          %6722 = vperm.xlu0 %6721, %v6276
          %v6723 = vpop.permute.xlu0 %6722
          %6726 = vset.pattern.permute.xlu0 0
          %6727 = vperm.xlu0 %6726, %v6277
          %v6728 = vpop.permute.xlu0 %6727
          %6731 = vset.pattern.permute.xlu0 0
          %6732 = vperm.xlu0 %6731, %v6278
          %v6733 = vpop.permute.xlu0 %6732
          %6736 = vset.pattern.permute.xlu0 0
          %6737 = vperm.xlu0 %6736, %v6279
          %v6738 = vpop.permute.xlu0 %6737
          %6741 = vset.pattern.permute.xlu0 0
          %6742 = vperm.xlu0 %6741, %v6280
          %v6743 = vpop.permute.xlu0 %6742
          %6746 = vset.pattern.permute.xlu0 0
          %6747 = vperm.xlu0 %6746, %v6281
          %v6748 = vpop.permute.xlu0 %6747
          %6751 = vset.pattern.permute.xlu0 0
          %6752 = vperm.xlu0 %6751, %v6282
          %v6753 = vpop.permute.xlu0 %6752
          %6756 = vset.pattern.permute.xlu0 0
          %6757 = vperm.xlu0 %6756, %v6283
          %v6758 = vpop.permute.xlu0 %6757
          %6761 = vset.pattern.permute.xlu0 0
          %6762 = vperm.xlu0 %6761, %v6284
          %v6763 = vpop.permute.xlu0 %6762
          %6766 = vset.pattern.permute.xlu0 0
          %6767 = vperm.xlu0 %6766, %v6285
          %v6768 = vpop.permute.xlu0 %6767
          %6771 = vset.pattern.permute.xlu0 0
          %6772 = vperm.xlu0 %6771, %v6286
          %v6773 = vpop.permute.xlu0 %6772
          %6776 = vset.pattern.permute.xlu0 0
          %6777 = vperm.xlu0 %6776, %v6287
          %v6778 = vpop.permute.xlu0 %6777
          %6781 = vset.pattern.permute.xlu0 0
          %6782 = vperm.xlu0 %6781, %v6288
          %v6783 = vpop.permute.xlu0 %6782
          %6786 = vset.pattern.permute.xlu0 0
          %6787 = vperm.xlu0 %6786, %v6289
          %v6788 = vpop.permute.xlu0 %6787
          %6791 = vset.pattern.permute.xlu0 0
          %6792 = vperm.xlu0 %6791, %v6290
          %v6793 = vpop.permute.xlu0 %6792
          %6796 = vset.pattern.permute.xlu0 0
          %6797 = vperm.xlu0 %6796, %v6291
          %v6798 = vpop.permute.xlu0 %6797
          %6801 = vset.pattern.permute.xlu0 0
          %6802 = vperm.xlu0 %6801, %v6292
          %v6803 = vpop.permute.xlu0 %6802
          %6806 = vset.pattern.permute.xlu0 0
          %6807 = vperm.xlu0 %6806, %v6293
          %v6808 = vpop.permute.xlu0 %6807
          %6811 = vset.pattern.permute.xlu0 0
          %6812 = vperm.xlu0 %6811, %v6294
          %v6813 = vpop.permute.xlu0 %6812
          %6816 = vset.pattern.permute.xlu0 0
          %6817 = vperm.xlu0 %6816, %v6295
          %v6818 = vpop.permute.xlu0 %6817
          %6821 = vset.pattern.permute.xlu0 0
          %6822 = vperm.xlu0 %6821, %v6296
          %v6823 = vpop.permute.xlu0 %6822
          %6826 = vset.pattern.permute.xlu0 0
          %6827 = vperm.xlu0 %6826, %v6297
          %v6828 = vpop.permute.xlu0 %6827
          %6831 = vset.pattern.permute.xlu0 0
          %6832 = vperm.xlu0 %6831, %v6298
          %v6833 = vpop.permute.xlu0 %6832
          %6836 = vset.pattern.permute.xlu0 0
          %6837 = vperm.xlu0 %6836, %v6299
          %v6838 = vpop.permute.xlu0 %6837
          %6841 = vset.pattern.permute.xlu0 0
          %6842 = vperm.xlu0 %6841, %v6300
          %v6843 = vpop.permute.xlu0 %6842
          %6846 = vset.pattern.permute.xlu0 0
          %6847 = vperm.xlu0 %6846, %v6301
          %v6848 = vpop.permute.xlu0 %6847
          %6851 = vset.pattern.permute.xlu0 0
          %6852 = vperm.xlu0 %6851, %v6302
          %v6853 = vpop.permute.xlu0 %6852
          %6856 = vset.pattern.permute.xlu0 0
          %6857 = vperm.xlu0 %6856, %v6303
          %v6858 = vpop.permute.xlu0 %6857
          %6861 = vset.pattern.permute.xlu0 0
          %6862 = vperm.xlu0 %6861, %v6304
          %v6863 = vpop.permute.xlu0 %6862
          %v6865 = vmul.f32 %v6468, %v6385
          %v6866 = vmul.f32 %v6473, %v6386
          %v6867 = vmul.f32 %v6478, %v6387
          %v6868 = vmul.f32 %v6483, %v6388
          %v6869 = vmul.f32 %v6488, %v6389
          %v6870 = vmul.f32 %v6493, %v6390
          %v6871 = vmul.f32 %v6498, %v6391
          %v6872 = vmul.f32 %v6503, %v6392
          %v6873 = vmul.f32 %v6508, %v6393
          %v6874 = vmul.f32 %v6513, %v6394
          %v6875 = vmul.f32 %v6518, %v6395
          %v6876 = vmul.f32 %v6523, %v6396
          %v6877 = vmul.f32 %v6528, %v6397
          %v6878 = vmul.f32 %v6533, %v6398
          %v6879 = vmul.f32 %v6538, %v6399
          %v6880 = vmul.f32 %v6543, %v6400
          %v6881 = vmul.f32 %v6548, %v6401
          %v6882 = vmul.f32 %v6553, %v6402
          %v6883 = vmul.f32 %v6558, %v6403
          %v6884 = vmul.f32 %v6563, %v6404
          %v6885 = vmul.f32 %v6568, %v6405
          %v6886 = vmul.f32 %v6573, %v6406
          %v6887 = vmul.f32 %v6578, %v6407
          %v6888 = vmul.f32 %v6583, %v6408
          %v6889 = vmul.f32 %v6588, %v6409
          %v6890 = vmul.f32 %v6593, %v6410
          %v6891 = vmul.f32 %v6598, %v6411
          %v6892 = vmul.f32 %v6603, %v6412
          %v6893 = vmul.f32 %v6608, %v6413
          %v6894 = vmul.f32 %v6613, %v6414
          %v6895 = vmul.f32 %v6618, %v6415
          %v6896 = vmul.f32 %v6623, %v6416
          %v6897 = vmul.f32 %v6628, %v6417
          %v6898 = vmul.f32 %v6633, %v6418
          %v6899 = vmul.f32 %v6638, %v6419
          %v6900 = vmul.f32 %v6643, %v6420
          %v6901 = vmul.f32 %v6648, %v6421
          %v6902 = vmul.f32 %v6653, %v6422
          %v6903 = vmul.f32 %v6658, %v6423
          %v6904 = vmul.f32 %v6663, %v6424
          %v6905 = vmul.f32 %v6668, %v6425
          %v6906 = vmul.f32 %v6673, %v6426
          %v6907 = vmul.f32 %v6678, %v6427
          %v6908 = vmul.f32 %v6683, %v6428
          %v6909 = vmul.f32 %v6688, %v6429
          %v6910 = vmul.f32 %v6693, %v6430
          %v6911 = vmul.f32 %v6698, %v6431
          %v6912 = vmul.f32 %v6703, %v6432
          %v6913 = vmul.f32 %v6708, %v6433
          %v6914 = vmul.f32 %v6713, %v6434
          %v6915 = vmul.f32 %v6718, %v6435
          %v6916 = vmul.f32 %v6723, %v6436
          %v6917 = vmul.f32 %v6728, %v6437
          %v6918 = vmul.f32 %v6733, %v6438
          %v6919 = vmul.f32 %v6738, %v6439
          %v6920 = vmul.f32 %v6743, %v6440
          %v6921 = vmul.f32 %v6748, %v6441
          %v6922 = vmul.f32 %v6753, %v6442
          %v6923 = vmul.f32 %v6758, %v6443
          %v6924 = vmul.f32 %v6763, %v6444
          %v6925 = vmul.f32 %v6768, %v6445
          %v6926 = vmul.f32 %v6773, %v6446
          %v6927 = vmul.f32 %v6778, %v6447
          %v6928 = vmul.f32 %v6783, %v6448
          %v6929 = vmul.f32 %v6788, %v6449
          %v6930 = vmul.f32 %v6793, %v6450
          %v6931 = vmul.f32 %v6798, %v6451
          %v6932 = vmul.f32 %v6803, %v6452
          %v6933 = vmul.f32 %v6808, %v6453
          %v6934 = vmul.f32 %v6813, %v6454
          %v6935 = vmul.f32 %v6818, %v6455
          %v6936 = vmul.f32 %v6823, %v6456
          %v6937 = vmul.f32 %v6828, %v6457
          %v6938 = vmul.f32 %v6833, %v6458
          %v6939 = vmul.f32 %v6838, %v6459
          %v6940 = vmul.f32 %v6843, %v6460
          %v6941 = vmul.f32 %v6848, %v6461
          %v6942 = vmul.f32 %v6853, %v6462
          %v6943 = vmul.f32 %v6858, %v6463
          %v6944 = vmul.f32 %v6863, %v6464
          %vm6945 = vcmask 31744
          %v6946 = vsel %vm6945, %v6865, 0.0
          %v6947 = vsel %vm6945, %v6866, 0.0
          %v6948 = vadd.f32 %v6946, %v6947
          %v6949 = vsel %vm6945, %v6867, 0.0
          %v6950 = vadd.f32 %v6948, %v6949
          %v6951 = vsel %vm6945, %v6868, 0.0
          %v6952 = vadd.f32 %v6950, %v6951
          %v6953 = vsel %vm6945, %v6869, 0.0
          %v6954 = vadd.f32 %v6952, %v6953
          %v6955 = vsel %vm6945, %v6870, 0.0
          %v6956 = vadd.f32 %v6954, %v6955
          %v6957 = vsel %vm6945, %v6871, 0.0
          %v6958 = vadd.f32 %v6956, %v6957
          %v6959 = vsel %vm6945, %v6872, 0.0
          %v6960 = vadd.f32 %v6958, %v6959
          %v6961 = vsel %vm6945, %v6873, 0.0
          %v6962 = vadd.f32 %v6960, %v6961
          %v6963 = vsel %vm6945, %v6874, 0.0
          %v6964 = vadd.f32 %v6962, %v6963
          %v6965 = vsel %vm6945, %v6875, 0.0
          %v6966 = vadd.f32 %v6964, %v6965
          %v6967 = vsel %vm6945, %v6876, 0.0
          %v6968 = vadd.f32 %v6966, %v6967
          %v6969 = vsel %vm6945, %v6877, 0.0
          %v6970 = vadd.f32 %v6968, %v6969
          %v6971 = vsel %vm6945, %v6878, 0.0
          %v6972 = vadd.f32 %v6970, %v6971
          %v6973 = vsel %vm6945, %v6879, 0.0
          %v6974 = vadd.f32 %v6972, %v6973
          %v6975 = vsel %vm6945, %v6880, 0.0
          %v6976 = vadd.f32 %v6974, %v6975
          %v6977 = vsel %vm6945, %v6881, 0.0
          %v6978 = vadd.f32 %v6976, %v6977
          %v6979 = vsel %vm6945, %v6882, 0.0
          %v6980 = vadd.f32 %v6978, %v6979
          %v6981 = vsel %vm6945, %v6883, 0.0
          %v6982 = vadd.f32 %v6980, %v6981
          %v6983 = vsel %vm6945, %v6884, 0.0
          %v6984 = vadd.f32 %v6982, %v6983
          %v6985 = vsel %vm6945, %v6885, 0.0
          %v6986 = vadd.f32 %v6984, %v6985
          %v6987 = vsel %vm6945, %v6886, 0.0
          %v6988 = vadd.f32 %v6986, %v6987
          %v6989 = vsel %vm6945, %v6887, 0.0
          %v6990 = vadd.f32 %v6988, %v6989
          %v6991 = vsel %vm6945, %v6888, 0.0
          %v6992 = vadd.f32 %v6990, %v6991
          %v6993 = vsel %vm6945, %v6889, 0.0
          %v6994 = vadd.f32 %v6992, %v6993
          %v6995 = vsel %vm6945, %v6890, 0.0
          %v6996 = vadd.f32 %v6994, %v6995
          %v6997 = vsel %vm6945, %v6891, 0.0
          %v6998 = vadd.f32 %v6996, %v6997
          %v6999 = vsel %vm6945, %v6892, 0.0
          %v7000 = vadd.f32 %v6998, %v6999
          %v7001 = vsel %vm6945, %v6893, 0.0
          %v7002 = vadd.f32 %v7000, %v7001
          %v7003 = vsel %vm6945, %v6894, 0.0
          %v7004 = vadd.f32 %v7002, %v7003
          %v7005 = vsel %vm6945, %v6895, 0.0
          %v7006 = vadd.f32 %v7004, %v7005
          %v7007 = vsel %vm6945, %v6896, 0.0
          %v7008 = vadd.f32 %v7006, %v7007
          %v7009 = vsel %vm6945, %v6897, 0.0
          %v7010 = vadd.f32 %v7008, %v7009
          %v7011 = vsel %vm6945, %v6898, 0.0
          %v7012 = vadd.f32 %v7010, %v7011
          %v7013 = vsel %vm6945, %v6899, 0.0
          %v7014 = vadd.f32 %v7012, %v7013
          %v7015 = vsel %vm6945, %v6900, 0.0
          %v7016 = vadd.f32 %v7014, %v7015
          %v7017 = vsel %vm6945, %v6901, 0.0
          %v7018 = vadd.f32 %v7016, %v7017
          %v7019 = vsel %vm6945, %v6902, 0.0
          %v7020 = vadd.f32 %v7018, %v7019
          %v7021 = vsel %vm6945, %v6903, 0.0
          %v7022 = vadd.f32 %v7020, %v7021
          %v7023 = vsel %vm6945, %v6904, 0.0
          %v7024 = vadd.f32 %v7022, %v7023
          %v7025 = vsel %vm6945, %v6905, 0.0
          %v7026 = vadd.f32 %v7024, %v7025
          %v7027 = vsel %vm6945, %v6906, 0.0
          %v7028 = vadd.f32 %v7026, %v7027
          %v7029 = vsel %vm6945, %v6907, 0.0
          %v7030 = vadd.f32 %v7028, %v7029
          %v7031 = vsel %vm6945, %v6908, 0.0
          %v7032 = vadd.f32 %v7030, %v7031
          %v7033 = vsel %vm6945, %v6909, 0.0
          %v7034 = vadd.f32 %v7032, %v7033
          %v7035 = vsel %vm6945, %v6910, 0.0
          %v7036 = vadd.f32 %v7034, %v7035
          %v7037 = vsel %vm6945, %v6911, 0.0
          %v7038 = vadd.f32 %v7036, %v7037
          %v7039 = vsel %vm6945, %v6912, 0.0
          %v7040 = vadd.f32 %v7038, %v7039
          %v7041 = vsel %vm6945, %v6913, 0.0
          %v7042 = vadd.f32 %v7040, %v7041
          %v7043 = vsel %vm6945, %v6914, 0.0
          %v7044 = vadd.f32 %v7042, %v7043
          %v7045 = vsel %vm6945, %v6915, 0.0
          %v7046 = vadd.f32 %v7044, %v7045
          %v7047 = vsel %vm6945, %v6916, 0.0
          %v7048 = vadd.f32 %v7046, %v7047
          %v7049 = vsel %vm6945, %v6917, 0.0
          %v7050 = vadd.f32 %v7048, %v7049
          %v7051 = vsel %vm6945, %v6918, 0.0
          %v7052 = vadd.f32 %v7050, %v7051
          %v7053 = vsel %vm6945, %v6919, 0.0
          %v7054 = vadd.f32 %v7052, %v7053
          %v7055 = vsel %vm6945, %v6920, 0.0
          %v7056 = vadd.f32 %v7054, %v7055
          %v7057 = vsel %vm6945, %v6921, 0.0
          %v7058 = vadd.f32 %v7056, %v7057
          %v7059 = vsel %vm6945, %v6922, 0.0
          %v7060 = vadd.f32 %v7058, %v7059
          %v7061 = vsel %vm6945, %v6923, 0.0
          %v7062 = vadd.f32 %v7060, %v7061
          %v7063 = vsel %vm6945, %v6924, 0.0
          %v7064 = vadd.f32 %v7062, %v7063
          %v7065 = vsel %vm6945, %v6925, 0.0
          %v7066 = vadd.f32 %v7064, %v7065
          %v7067 = vsel %vm6945, %v6926, 0.0
          %v7068 = vadd.f32 %v7066, %v7067
          %v7069 = vsel %vm6945, %v6927, 0.0
          %v7070 = vadd.f32 %v7068, %v7069
          %v7071 = vsel %vm6945, %v6928, 0.0
          %v7072 = vadd.f32 %v7070, %v7071
          %v7073 = vsel %vm6945, %v6929, 0.0
          %v7074 = vadd.f32 %v7072, %v7073
          %v7075 = vsel %vm6945, %v6930, 0.0
          %v7076 = vadd.f32 %v7074, %v7075
          %v7077 = vsel %vm6945, %v6931, 0.0
          %v7078 = vadd.f32 %v7076, %v7077
          %v7079 = vsel %vm6945, %v6932, 0.0
          %v7080 = vadd.f32 %v7078, %v7079
          %v7081 = vsel %vm6945, %v6933, 0.0
          %v7082 = vadd.f32 %v7080, %v7081
          %v7083 = vsel %vm6945, %v6934, 0.0
          %v7084 = vadd.f32 %v7082, %v7083
          %v7085 = vsel %vm6945, %v6935, 0.0
          %v7086 = vadd.f32 %v7084, %v7085
          %v7087 = vsel %vm6945, %v6936, 0.0
          %v7088 = vadd.f32 %v7086, %v7087
          %v7089 = vsel %vm6945, %v6937, 0.0
          %v7090 = vadd.f32 %v7088, %v7089
          %v7091 = vsel %vm6945, %v6938, 0.0
          %v7092 = vadd.f32 %v7090, %v7091
          %v7093 = vsel %vm6945, %v6939, 0.0
          %v7094 = vadd.f32 %v7092, %v7093
          %v7095 = vsel %vm6945, %v6940, 0.0
          %v7096 = vadd.f32 %v7094, %v7095
          %v7097 = vsel %vm6945, %v6941, 0.0
          %v7098 = vadd.f32 %v7096, %v7097
          %v7099 = vsel %vm6945, %v6942, 0.0
          %v7100 = vadd.f32 %v7098, %v7099
          %v7101 = vsel %vm6945, %v6943, 0.0
          %v7102 = vadd.f32 %v7100, %v7101
          %v7103 = vsel %vm6945, %v6944, 0.0
          %v7104 = vadd.f32 %v7102, %v7103
          %v7105 = vrot.slane %v7104, 4
          %v7106 = vadd.f32 %v7104, %v7105
          %v7107 = vrot.slane %v7106, 2
          %v7108 = vadd.f32 %v7106, %v7107
          %v7109 = vrot.slane %v7108, 1
          %v7110 = vadd.f32 %v7108, %v7109
          %v7111 = vld [vmem:[#allocation3] sm:$0x1]
          %v7112 = vadd.f32 %v7110, %v7111
          %vm7113 = vcmask 24576
          %7114 = vst.msk [vmem:[%s326] sm:$0x1] %vm7113, %v7112
        $region52: #{tpu_custom_call.1} parent=39 // pred_fallthru
          _
        %s7115 = sand.u32 %s160, 1
        %s7116 = scalar_lea.sflag [#allocation5], %s7115
        %s7117 = sand.u32 %s160, 1
        %s7118 = smul.addr %s7117, 1280
        %s7119 = scalar_lea.vmem [#allocation6], %s7118
        %p7120 = scmp.lt.s32.totalorder %s30, 1
        %s7121 = scalar_select %p7120, %s30, 1
        %s7122 = smul.addr %s7121, 80
        %s7123 = smul.addr %s7122, 8
        %s7124 = scalar_lea.vmem %s6, %s7123
        %s7125 = sand.u32 %s212, 1
        %s7126 = scalar_lea.sflag [#allocation8], %s7125
        %s7127 = sand.u32 %s212, 1
        %s7128 = scalar_lea.vmem [#allocation7], %s7127
        // Predicated region
        $region53: #{tpu_custom_call.1} parent=39 // pred_check
          %p7129 = pneg %p170
        $region54: #{tpu_custom_call.1} parent=39 // pred_check_branch
          %7131 = sbr.rel (%p7129) target = $region56
        $region55: #{tpu_custom_call.1} parent=39 // pred_region
          %s7132 = smul.u32 4, %s31
          %s7134 = ssub.s32 20480, 20480
          %7135 = vsyncadd %s7116, %s7134
          %s7136 = smul.addr %s30, 640
          %s7137 = sadd.s32 %s7132, %s7136
          %s7138 = smul.addr %s7137, 64
          %s7139 = scalar_lea.hbm %s5, %s7138
          %s7140 = sshll.u32 %s7119, 4
          %s7141 = int_to_ptr.vmem [resolvable:$true] %s7140
          %7146 = dma.vmem_to_hbm [thread:$0]  %s7141, 20480, %s7139, %s7116, 256, 512, 16
        $region56: #{tpu_custom_call.1} parent=39 // pred_fallthru
          _
        // Predicated region
        $region57: #{tpu_custom_call.1} parent=39 // pred_check
          %p7147 = pneg %p196
        $region58: #{tpu_custom_call.1} parent=39 // pred_check_branch
          %7149 = sbr.rel (%p7147) target = $region60
        $region59: #{tpu_custom_call.1} parent=39 // pred_region
          _
        $region60: #{tpu_custom_call.1} parent=39 // pred_fallthru
          _
        // Predicated region
        $region61: #{tpu_custom_call.1} parent=39 // pred_check
          %p7150 = pneg %p222
        $region62: #{tpu_custom_call.1} parent=39 // pred_check_branch
          %7152 = sbr.rel (%p7150) target = $region64
        $region63: #{tpu_custom_call.1} parent=39 // pred_region
          %s7154 = ssub.s32 16, 16
          %7155 = vsyncadd %s7126, %s7154
          %s7156 = smul.addr %s30, 16
          %s7157 = scalar_lea.hbm %s7, %s7156
          %s7159 = sshll.u32 %s7128, 4
          %s7160 = int_to_ptr.vmem [resolvable:$true] %s7159
          %7162 = dma.vmem_to_hbm [thread:$0]  %s7160, 16, %s7157, %s7126
        $region64: #{tpu_custom_call.1} parent=39 // pred_fallthru
          _
      $region40: #{tpu_custom_call.1} parent=5 // pred_fallthru
        _
      %p7163 = scmp.le.s32.totalorder 2, %s21
      // Predicated region
      $region65: #{tpu_custom_call.1} parent=5 // pred_check
        %p7164 = pneg %p7163
      $region66: #{tpu_custom_call.1} parent=5 // pred_check_branch
        %7166 = sbr.rel (%p7164) target = $region68
      $region67: #{tpu_custom_call.1} parent=5 // pred_region
        %s7167 = ssub.s32 %s21, 2
        // Predicated region
        $region69: #{tpu_custom_call.1} parent=67 // pred_check
          %p7168 = pneg %p176
        $region70: #{tpu_custom_call.1} parent=67 // pred_check_branch
          %7170 = sbr.rel (%p7168) target = $region72
        $region71: #{tpu_custom_call.1} parent=67 // pred_region
          %s7171 = sand.u32 %s161, 1
          %s7172 = scalar_lea.sflag [#allocation5], %s7171
          %s7173 = sand.u32 %s161, 1
          %s7174 = smul.addr %s7173, 1280
          %s7175 = scalar_lea.vmem [#allocation6], %s7174
          %7176 = dma.done %s7172, 20480
        $region72: #{tpu_custom_call.1} parent=67 // pred_fallthru
          _
        // Predicated region
        $region73: #{tpu_custom_call.1} parent=67 // pred_check
          %p7177 = pneg %p202
        $region74: #{tpu_custom_call.1} parent=67 // pred_check_branch
          %7179 = sbr.rel (%p7177) target = $region76
        $region75: #{tpu_custom_call.1} parent=67 // pred_region
          %p7180 = scmp.lt.s32.totalorder %s32, 1
          %s7181 = scalar_select %p7180, %s32, 1
          %s7182 = smul.addr %s7181, 80
          %s7183 = smul.addr %s7182, 8
          %s7184 = scalar_lea.vmem %s6, %s7183
        $region76: #{tpu_custom_call.1} parent=67 // pred_fallthru
          _
        // Predicated region
        $region77: #{tpu_custom_call.1} parent=67 // pred_check
          %p7185 = pneg %p228
        $region78: #{tpu_custom_call.1} parent=67 // pred_check_branch
          %7187 = sbr.rel (%p7185) target = $region80
        $region79: #{tpu_custom_call.1} parent=67 // pred_region
          %s7188 = sand.u32 %s213, 1
          %s7189 = scalar_lea.sflag [#allocation8], %s7188
          %s7190 = sand.u32 %s213, 1
          %s7191 = scalar_lea.vmem [#allocation7], %s7190
          %7192 = dma.done %s7189, 16
        $region80: #{tpu_custom_call.1} parent=67 // pred_fallthru
          _
      $region68: #{tpu_custom_call.1} parent=5 // pred_fallthru
        _
    $region6: #{tpu_custom_call.1} parent=1 // loop_footer
      %s25 = sadd.s32 1, %s21
    $region7: #{tpu_custom_call.1} parent=1 // loop_footer_branch
      %20 = sbr.rel target = $region3
    $region8: #{tpu_custom_call.1} parent=1 // loop_exit
      _
    %7193 = vsyncpa [#allocation4], 1
    %s7194 = scalar_lea.sflag [#allocation4], 1
    %7195 = vsyncpa %s7194, 1
    %7196 = vsyncpa [#allocation5], 1
    %s7197 = scalar_lea.sflag [#allocation5], 1
    %7198 = vsyncpa %s7197, 1
    %7199 = vsyncpa [#allocation8], 1
    %s7200 = scalar_lea.sflag [#allocation8], 1
    %7201 = vsyncpa %s7200, 1

</llo_original>
